<compile_context>
chip_gen: v7x
topology: tpu7x:2x2x1
jax: 0.10.0
libtpu: 0.0.40
codegen_flags: <defaults>
</compile_context>

<pallas_src>
import math
from functools import partial

import jax
import jax.numpy as jnp
from jax import lax
from jax.experimental import pallas as pl
from jax.experimental.pallas import tpu as pltpu

# ----------------------------- configuration -------------------------------
B        = 2     # batch
L_DEC    = 16    # decoder sequence length
L_ENC    = 24    # encoder (cross) sequence length
D_MODEL  = 32
N_HEADS  = 4
D_FF     = 64
C_OUT    = 8     # projection output channels
N_LAYERS = 2
EPS = 1e-5       # PyTorch LayerNorm default


# --------------------------- in-kernel helpers ------------------------------
def _layer_norm(x, g, b):
    # var = E[x^2] - mu^2 : the two lane reductions are independent and can
    # pipeline through the XLU (vs. serializing the second behind mu).
    mu = jnp.mean(x, axis=-1, keepdims=True)
    ms = jnp.mean(x * x, axis=-1, keepdims=True)
    var = ms - mu * mu
    return (x - mu) * lax.rsqrt(var + EPS) * g + b


def _mha(qsrc, q0, ksrc, k0, vsrc, v0, bsz, lq, lk, dh, n_heads,
         wo, bo, bias, ocat_ref):
    """Multi-head attention; returns (B*lq, D).

    Head h reads lanes [off + h*dh, off + (h+1)*dh) directly from the flat
    projected slabs (no intermediate (B, L, D) copies), writes its output into
    lane offset h*dh of the VMEM scratch `ocat_ref`, and the head concat is
    finished with ONE K=D output projection.  `bias` (if given) is already
    broadcast to (B, lq, lk).  Q is pre-scaled by 1/sqrt(dh) (folded into the
    packed weights in the wrapper)."""
    for h in range(n_heads):
        a, b = h * dh, (h + 1) * dh
        qh = qsrc[:, q0 + a:q0 + b].reshape(bsz, lq, dh)
        kh = ksrc[:, k0 + a:k0 + b].reshape(bsz, lk, dh)
        vh = vsrc[:, v0 + a:v0 + b].reshape(bsz, lk, dh)
        s = jnp.einsum('bqd,bkd->bqk', qh, kh,
                       preferred_element_type=jnp.float32)
        if bias is not None:
            s = s + bias
        s = s - jnp.max(s, axis=-1, keepdims=True)
        p = jnp.exp(s)
        # After max subtraction denom >= 1, so the EUP approximate reciprocal
        # is safe (would NOT be for fully-masked padding rows).
        p = p * pl.reciprocal(jnp.sum(p, axis=-1, keepdims=True), approx=True)
        oh = jnp.einsum('bqk,bkd->bqd', p, vh,
                        preferred_element_type=jnp.float32)
        ocat_ref[:, a:b] = oh.reshape(bsz * lq, dh)
    # Single K=D output projection over the concatenated heads.
    return jnp.dot(ocat_ref[...], wo, preferred_element_type=jnp.float32) + bo


# --------------------------------- kernel ------------------------------------
def decoder_kernel(n_layers, n_heads, bsz, l_dec, l_enc,
                   x_ref,       # (B*L_dec, D)
                   cross_ref,   # (B*L_enc, D)
                   w_big_ref,   # (L, 2, D, 3D): [Wq|Wk|Wv (self) ; Wk|Wv|0 (cross)]
                   w_dd_ref,    # (L, 3, D, D) : [Wo_self, Wq_cross, Wo_cross]
                   w1b1_ref,    # (L, D+1, D_FF): conv1 weight rows + bias row
                   w2b2_ref,    # (L, D_FF+1, D): conv2 weight rows + bias row
                   vec_ref,     # (L, 11, 3D)  : biases + LayerNorm params
                   fin_ref,     # (2, D)       : final norm gamma / beta
                   proj_ref,    # (D+1, C_OUT) : projection weight rows + bias row
                   o_ref,       # (B*L_dec, C_OUT)
                   ocat_ref):   # VMEM scratch (B*L_dec, D): head-concat buffer
    d = x_ref.shape[-1]
    dff = w2b2_ref.shape[1] - 1
    dh = d // n_heads

    x = x_ref[...]
    cross = cross_ref[...]

    # Causal additive bias: built and broadcast ONCE, shared by all layers.
    row = lax.broadcasted_iota(jnp.int32, (l_dec, l_dec), 0)
    col = lax.broadcasted_iota(jnp.int32, (l_dec, l_dec), 1)
    causal = jnp.where(col <= row, jnp.float32(0.0), jnp.float32(-1e30))
    causal = jnp.broadcast_to(causal[None], (bsz, l_dec, l_dec))

    for layer in range(n_layers):            # static unroll, all in VMEM
        vl = vec_ref[layer]                  # (11, 3D)
        g1, be1 = vl[5:6, :d], vl[6:7, :d]
        g2, be2 = vl[7:8, :d], vl[8:9, :d]
        g3, be3 = vl[9:10, :d], vl[10:11, :d]

        # ---- x = norm1(x + self_attention(x, x, x))   (causal) ----
        qkv = (jnp.dot(x, w_big_ref[layer, 0],
                       preferred_element_type=jnp.float32) + vl[0:1, :])
        sa = _mha(qkv, 0, qkv, d, qkv, 2 * d, bsz, l_dec, l_dec, dh, n_heads,
                  w_dd_ref[layer, 0], vl[2:3, :d], causal, ocat_ref)
        x = _layer_norm(x + sa, g1, be1)

        # ---- x = norm2(x + cross_attention(x, cross, cross)) ----
        qc = (jnp.dot(x, w_dd_ref[layer, 1],
                      preferred_element_type=jnp.float32) + vl[3:4, :d])
        kv = (jnp.dot(cross, w_big_ref[layer, 1],
                      preferred_element_type=jnp.float32) + vl[1:2, :])
        ca = _mha(qc, 0, kv, 0, kv, d, bsz, l_dec, l_enc, dh, n_heads,
                  w_dd_ref[layer, 2], vl[4:5, :d], None, ocat_ref)
        x = _layer_norm(x + ca, g2, be2)

        # ---- y = x = norm3(x); y = conv2(relu(conv1(y))); x = norm3(x + y) ----
        # (norm3 applied twice, exactly as in the reference forward)
        x = _layer_norm(x, g3, be3)
        y = jnp.maximum(
            jnp.dot(x, w1b1_ref[layer, :d], preferred_element_type=jnp.float32)
            + w1b1_ref[layer, d:d + 1], 0.0)
        y = (jnp.dot(y, w2b2_ref[layer, :dff],
                     preferred_element_type=jnp.float32)
             + w2b2_ref[layer, dff:dff + 1])
        x = _layer_norm(x + y, g3, be3)

    # ---- final Decoder norm + linear projection (2-D store) ----
    xn = _layer_norm(x, fin_ref[0:1], fin_ref[1:2])
    o_ref[...] = (jnp.dot(xn, proj_ref[:d], preferred_element_type=jnp.float32)
                  + proj_ref[d:d + 1])


# ------------------------------ weight packing --------------------------------
def pack_params(layer_params, norm_params, proj_params, n_heads):
    """Fuse QKV / KV projections, fold in the 1/sqrt(dh) attention scale, and
    pack every per-layer tensor into a handful of stacked slabs (few DMAs)."""
    d = layer_params[0]["wq_s"].shape[0]
    scale = jnp.float32(1.0 / math.sqrt(d // n_heads))
    zcol = jnp.zeros((d, d), jnp.float32)

    def pad_lanes(v, width):
        return jnp.pad(v, ((0, 0), (0, width - v.shape[1])))

    w_big, w_dd, w1b1, w2b2, vecs = [], [], [], [], []
    for p in layer_params:
        w_big.append(jnp.stack([
            jnp.concatenate([p["wq_s"] * scale, p["wk_s"], p["wv_s"]], axis=1),
            jnp.concatenate([p["wk_c"], p["wv_c"], zcol], axis=1)], axis=0))
        w_dd.append(jnp.stack([p["wo_s"], p["wq_c"] * scale, p["wo_c"]], axis=0))
        w1b1.append(jnp.concatenate([p["w1"], p["b1"]], axis=0))
        w2b2.append(jnp.concatenate([p["w2"], p["b2"]], axis=0))
        vecs.append(jnp.concatenate([
            jnp.concatenate([p["bq_s"] * scale, p["bk_s"], p["bv_s"]], axis=1),
            pad_lanes(jnp.concatenate([p["bk_c"], p["bv_c"]], axis=1), 3 * d),
            pad_lanes(p["bo_s"], 3 * d),
            pad_lanes(p["bq_c"] * scale, 3 * d),
            pad_lanes(p["bo_c"], 3 * d),
            pad_lanes(p["g1"], 3 * d), pad_lanes(p["be1"], 3 * d),
            pad_lanes(p["g2"], 3 * d), pad_lanes(p["be2"], 3 * d),
            pad_lanes(p["g3"], 3 * d), pad_lanes(p["be3"], 3 * d)], axis=0))
    fin = jnp.concatenate([norm_params["g"], norm_params["b"]], axis=0)
    proj = jnp.concatenate([proj_params["w"], proj_params["b"]], axis=0)
    return (jnp.stack(w_big), jnp.stack(w_dd), jnp.stack(w1b1),
            jnp.stack(w2b2), jnp.stack(vecs), fin, proj)


# --------------------------------- wrapper ------------------------------------
def decoder_forward(x, cross, layer_params, norm_params, proj_params):
    """Pallas Decoder.forward(x, cross): N DecoderLayers + final norm + proj,
    fused into one pallas_call with all operands resident in VMEM (no grid)."""
    bsz, l_dec, d = x.shape
    l_enc = cross.shape[1]
    d_ff = layer_params[0]["w1"].shape[1]
    c_out = proj_params["w"].shape[1]
    n_layers = len(layer_params)

    packed = pack_params(layer_params, norm_params, proj_params, N_HEADS)
    args = [x.reshape(bsz * l_dec, d), cross.reshape(bsz * l_enc, d), *packed]

    # Advisory cost estimate so XLA can schedule around this tiny call.
    per_layer_flops = (2 * bsz * l_dec * d * 3 * d      # fused self QKV
                       + 4 * bsz * l_dec * l_dec * d    # self scores + PV
                       + 2 * bsz * l_dec * d * d        # self out-proj
                       + 2 * bsz * l_dec * d * d        # cross Q
                       + 2 * bsz * l_enc * d * 3 * d    # cross KV (padded)
                       + 4 * bsz * l_dec * l_enc * d    # cross scores + PV
                       + 2 * bsz * l_dec * d * d        # cross out-proj
                       + 4 * bsz * l_dec * d * d_ff)    # conv1 + conv2
    flops = n_layers * per_layer_flops + 2 * bsz * l_dec * d * c_out
    transc = n_layers * bsz * N_HEADS * l_dec * (l_dec + l_enc) + 9 * bsz * l_dec
    bytes_acc = (sum(int(a.size) * a.dtype.itemsize for a in args)
                 + bsz * l_dec * c_out * 4)

    vmem = pl.BlockSpec(memory_space=pltpu.MemorySpace.VMEM)
    out2d = pl.pallas_call(
        partial(decoder_kernel, n_layers, N_HEADS, bsz, l_dec, l_enc),
        out_shape=jax.ShapeDtypeStruct((bsz * l_dec, c_out), jnp.float32),
        in_specs=[vmem] * len(args),
        out_specs=vmem,
        scratch_shapes=[pltpu.VMEM((bsz * l_dec, d), jnp.float32)],
        cost_estimate=pl.CostEstimate(flops=int(flops),
                                      transcendentals=int(transc),
                                      bytes_accessed=int(bytes_acc)),
    )(*args)
    return out2d.reshape(bsz, l_dec, c_out)


# --------------------------- deterministic params ----------------------------
def _w(key, shape, scale=0.05):
    return jax.random.normal(key, shape, jnp.float32) * scale


def init_layer_params(key):
    ks = jax.random.split(key, 32)
    i = iter(range(32))
    p = {}
    # self-attention (Linear weights stored as (in, out))
    p["wq_s"] = _w(ks[next(i)], (D_MODEL, D_MODEL))
    p["wk_s"] = _w(ks[next(i)], (D_MODEL, D_MODEL))
    p["wv_s"] = _w(ks[next(i)], (D_MODEL, D_MODEL))
    p["wo_s"] = _w(ks[next(i)], (D_MODEL, D_MODEL))
    p["bq_s"] = _w(ks[next(i)], (1, D_MODEL), 0.02)
    p["bk_s"] = _w(ks[next(i)], (1, D_MODEL), 0.02)
    p["bv_s"] = _w(ks[next(i)], (1, D_MODEL), 0.02)
    p["bo_s"] = _w(ks[next(i)], (1, D_MODEL), 0.02)
    # cross-attention
    p["wq_c"] = _w(ks[next(i)], (D_MODEL, D_MODEL))
    p["wk_c"] = _w(ks[next(i)], (D_MODEL, D_MODEL))
    p["wv_c"] = _w(ks[next(i)], (D_MODEL, D_MODEL))
    p["wo_c"] = _w(ks[next(i)], (D_MODEL, D_MODEL))
    p["bq_c"] = _w(ks[next(i)], (1, D_MODEL), 0.02)
    p["bk_c"] = _w(ks[next(i)], (1, D_MODEL), 0.02)
    p["bv_c"] = _w(ks[next(i)], (1, D_MODEL), 0.02)
    p["bo_c"] = _w(ks[next(i)], (1, D_MODEL), 0.02)
    # conv1/conv2 (kernel_size=1) feed-forward
    p["w1"] = _w(ks[next(i)], (D_MODEL, D_FF))
    p["b1"] = _w(ks[next(i)], (1, D_FF), 0.02)
    p["w2"] = _w(ks[next(i)], (D_FF, D_MODEL))
    p["b2"] = _w(ks[next(i)], (1, D_MODEL), 0.02)
    # layer norms
    for name in ("1", "2", "3"):
        p["g" + name] = 1.0 + _w(ks[next(i)], (1, D_MODEL), 0.01)
        p["be" + name] = _w(ks[next(i)], (1, D_MODEL), 0.01)
    return p


# ------------------------------ pure-JAX reference ---------------------------
def _ref_layer_norm(x, g, b):
    mu = jnp.mean(x, axis=-1, keepdims=True)
    var = jnp.mean(jnp.square(x - mu), axis=-1, keepdims=True)
    return (x - mu) * lax.rsqrt(var + EPS) * g + b


def _ref_mha(q_in, kv_in, wq, bq, wk, bk, wv, bv, wo, bo, n_heads, causal):
    bsz, lq, d = q_in.shape
    lk = kv_in.shape[1]
    dh = d // n_heads
    q = (q_in @ wq + bq).reshape(bsz, lq, n_heads, dh)
    k = (kv_in @ wk + bk).reshape(bsz, lk, n_heads, dh)
    v = (kv_in @ wv + bv).reshape(bsz, lk, n_heads, dh)
    s = jnp.einsum('bqhd,bkhd->bhqk', q, k) / math.sqrt(dh)
    if causal:
        mask = jnp.tril(jnp.ones((lq, lk), bool))
        s = jnp.where(mask[None, None], s, -jnp.inf)
    p = jax.nn.softmax(s, axis=-1)
    o = jnp.einsum('bhqk,bkhd->bqhd', p, v).reshape(bsz, lq, d)
    return o @ wo + bo


def ref_forward(x, cross, layer_params, norm_params, proj_params):
    for p in layer_params:
        sa = _ref_mha(x, x, p["wq_s"], p["bq_s"], p["wk_s"], p["bk_s"],
                      p["wv_s"], p["bv_s"], p["wo_s"], p["bo_s"], N_HEADS, True)
        x = _ref_layer_norm(x + sa, p["g1"], p["be1"])
        ca = _ref_mha(x, cross, p["wq_c"], p["bq_c"], p["wk_c"], p["bk_c"],
                      p["wv_c"], p["bv_c"], p["wo_c"], p["bo_c"], N_HEADS, False)
        x = _ref_layer_norm(x + ca, p["g2"], p["be2"])
        x = _ref_layer_norm(x, p["g3"], p["be3"])        # y = x = norm3(x)
        y = jnp.maximum(x @ p["w1"] + p["b1"], 0.0) @ p["w2"] + p["b2"]
        x = _ref_layer_norm(x + y, p["g3"], p["be3"])    # norm3(x + y)
    xn = _ref_layer_norm(x, norm_params["g"], norm_params["b"])
    return xn @ proj_params["w"] + proj_params["b"]


# --------------------------------- main --------------------------------------
if __name__ == "__main__":
    root = jax.random.PRNGKey(0)
    k_x, k_c, k_l0, k_l1, k_n, k_p = jax.random.split(root, 6)

    x = jax.random.normal(k_x, (B, L_DEC, D_MODEL), jnp.float32)
    cross = jax.random.normal(k_c, (B, L_ENC, D_MODEL), jnp.float32)

    layer_params = [init_layer_params(k_l0), init_layer_params(k_l1)][:N_LAYERS]
    norm_params = {"g": 1.0 + _w(jax.random.fold_in(k_n, 0), (1, D_MODEL), 0.01),
                   "b": _w(jax.random.fold_in(k_n, 1), (1, D_MODEL), 0.01)}
    proj_params = {"w": _w(jax.random.fold_in(k_p, 0), (D_MODEL, C_OUT)),
                   "b": _w(jax.random.fold_in(k_p, 1), (1, C_OUT), 0.02)}

    out = decoder_forward(x, cross, layer_params, norm_params, proj_params)
    out = jax.block_until_ready(out)
    assert out.shape == (B, L_DEC, C_OUT), out.shape

    ref = jax.block_until_ready(
        ref_forward(x, cross, layer_params, norm_params, proj_params))
    # Tolerance covers the EUP approximate-reciprocal softmax normalization
    # (the only intentional deviation from exact f32 math).
    assert jnp.allclose(out, ref, atol=2e-3, rtol=2e-3), \
        float(jnp.max(jnp.abs(out - ref)))

    print("KERNEL_OK")
</pallas_src>

<mosaic_0001>
module attributes {stable_mosaic.version = 11 : i64} {
  func.func @decoder_kernel(%arg0: memref<32x32xf32, #tpu.memory_space<vmem>>, %arg1: memref<48x32xf32, #tpu.memory_space<vmem>>, %arg2: memref<2x2x32x96xf32, #tpu.memory_space<vmem>>, %arg3: memref<2x3x32x32xf32, #tpu.memory_space<vmem>>, %arg4: memref<2x33x64xf32, #tpu.memory_space<vmem>>, %arg5: memref<2x65x32xf32, #tpu.memory_space<vmem>>, %arg6: memref<2x11x96xf32, #tpu.memory_space<vmem>>, %arg7: memref<2x32xf32, #tpu.memory_space<vmem>>, %arg8: memref<33x8xf32, #tpu.memory_space<vmem>>, %arg9: memref<32x8xf32, #tpu.memory_space<vmem>>, %arg10: memref<32x32xf32, #tpu.memory_space<vmem>>) attributes {dimension_semantics = [], scalar_prefetch = 0 : i64, scratch_operands = 1 : i64, tpu.core_type = #tpu.core_type<tc>} {
    %c0 = arith.constant 0 : index
    %c0_0 = arith.constant 0 : index
    %0 = vector.load %arg0[%c0, %c0_0] : memref<32x32xf32, #tpu.memory_space<vmem>>, vector<32x32xf32>
    %c0_1 = arith.constant 0 : index
    %c0_2 = arith.constant 0 : index
    %1 = vector.load %arg1[%c0_1, %c0_2] : memref<48x32xf32, #tpu.memory_space<vmem>>, vector<48x32xf32>
    %2 = tpu.iota {dimensions = array<i32: 0>} : vector<16x16xi32>
    %3 = tpu.iota {dimensions = array<i32: 1>} : vector<16x16xi32>
    %4 = arith.cmpi sle, %3, %2 : vector<16x16xi32>
    %cst = arith.constant 0.000000e+00 : f32
    %cst_3 = arith.constant -1.000000e+30 : f32
    %5 = vector.broadcast %cst : f32 to vector<16x16xf32>
    %6 = vector.broadcast %cst_3 : f32 to vector<16x16xf32>
    %7 = arith.select %4, %5, %6 : vector<16x16xi1>, vector<16x16xf32>
    %8 = vector.shape_cast %7 : vector<16x16xf32> to vector<1x16x16xf32>
    %9 = vector.shape_cast %8 : vector<1x16x16xf32> to vector<1x16x16xf32>
    %10 = vector.broadcast %9 : vector<1x16x16xf32> to vector<2x16x16xf32>
    %c0_4 = arith.constant 0 : index
    %c0_5 = arith.constant 0 : index
    %c0_6 = arith.constant 0 : index
    %11 = vector.load %arg6[%c0_4, %c0_5, %c0_6] : memref<2x11x96xf32, #tpu.memory_space<vmem>>, vector<1x11x96xf32>
    %12 = vector.shape_cast %11 : vector<1x11x96xf32> to vector<11x96xf32>
    %13 = vector.extract_strided_slice %12 {offsets = [5, 0], sizes = [1, 32], strides = [1, 1]} : vector<11x96xf32> to vector<1x32xf32>
    %14 = vector.extract_strided_slice %12 {offsets = [6, 0], sizes = [1, 32], strides = [1, 1]} : vector<11x96xf32> to vector<1x32xf32>
    %15 = vector.extract_strided_slice %12 {offsets = [7, 0], sizes = [1, 32], strides = [1, 1]} : vector<11x96xf32> to vector<1x32xf32>
    %16 = vector.extract_strided_slice %12 {offsets = [8, 0], sizes = [1, 32], strides = [1, 1]} : vector<11x96xf32> to vector<1x32xf32>
    %17 = vector.extract_strided_slice %12 {offsets = [9, 0], sizes = [1, 32], strides = [1, 1]} : vector<11x96xf32> to vector<1x32xf32>
    %18 = vector.extract_strided_slice %12 {offsets = [10, 0], sizes = [1, 32], strides = [1, 1]} : vector<11x96xf32> to vector<1x32xf32>
    %c0_7 = arith.constant 0 : index
    %c0_8 = arith.constant 0 : index
    %c0_9 = arith.constant 0 : index
    %c0_10 = arith.constant 0 : index
    %19 = vector.load %arg2[%c0_7, %c0_8, %c0_9, %c0_10] : memref<2x2x32x96xf32, #tpu.memory_space<vmem>>, vector<1x1x32x96xf32>
    %20 = vector.shape_cast %19 : vector<1x1x32x96xf32> to vector<32x96xf32>
    %cst_11 = arith.constant dense<0.000000e+00> : vector<32x96xf32>
    %21 = tpu.matmul %0, %20, %cst_11 {dimension_numbers = #tpu.dot_dimension_numbers<[1], [0], [0], [1], [0, 0, 1, 1], [], []>} : vector<32x32xf32>, vector<32x96xf32>, vector<32x96xf32> -> vector<32x96xf32>
    %22 = vector.extract_strided_slice %12 {offsets = [0, 0], sizes = [1, 96], strides = [1, 1]} : vector<11x96xf32> to vector<1x96xf32>
    %23 = vector.broadcast %22 : vector<1x96xf32> to vector<32x96xf32>
    %24 = arith.addf %21, %23 : vector<32x96xf32>
    %c0_12 = arith.constant 0 : index
    %c0_13 = arith.constant 0 : index
    %c0_14 = arith.constant 0 : index
    %c0_15 = arith.constant 0 : index
    %25 = vector.load %arg3[%c0_12, %c0_13, %c0_14, %c0_15] : memref<2x3x32x32xf32, #tpu.memory_space<vmem>>, vector<1x1x32x32xf32>
    %26 = vector.shape_cast %25 : vector<1x1x32x32xf32> to vector<32x32xf32>
    %27 = vector.extract_strided_slice %12 {offsets = [2, 0], sizes = [1, 32], strides = [1, 1]} : vector<11x96xf32> to vector<1x32xf32>
    %28 = vector.extract_strided_slice %24 {offsets = [0, 0], sizes = [32, 8], strides = [1, 1]} : vector<32x96xf32> to vector<32x8xf32>
    %29 = vector.shape_cast %28 : vector<32x8xf32> to vector<2x16x8xf32>
    %30 = vector.extract_strided_slice %24 {offsets = [0, 32], sizes = [32, 8], strides = [1, 1]} : vector<32x96xf32> to vector<32x8xf32>
    %31 = vector.shape_cast %30 : vector<32x8xf32> to vector<2x16x8xf32>
    %32 = vector.extract_strided_slice %24 {offsets = [0, 64], sizes = [32, 8], strides = [1, 1]} : vector<32x96xf32> to vector<32x8xf32>
    %33 = vector.shape_cast %32 : vector<32x8xf32> to vector<2x16x8xf32>
    "tpu.trace_start"() <{level = 10 : i32, message = "bqd,bkd->bqk"}> : () -> ()
    %cst_16 = arith.constant dense<0.000000e+00> : vector<2x16x16xf32>
    %34 = tpu.matmul %29, %31, %cst_16 {dimension_numbers = #tpu.dot_dimension_numbers<[2], [2], [1], [1], [0, 0, 0, 1, 1, 1], [0], [0]>} : vector<2x16x8xf32>, vector<2x16x8xf32>, vector<2x16x16xf32> -> vector<2x16x16xf32>
    "tpu.trace_stop"() : () -> ()
    %35 = arith.addf %34, %10 : vector<2x16x16xf32>
    %cst_17 = arith.constant dense<0xFF800000> : vector<2x16xf32>
    %36 = vector.multi_reduction <maximumf>, %35, %cst_17 [2] : vector<2x16x16xf32> to vector<2x16xf32>
    %37 = vector.shape_cast %36 : vector<2x16xf32> to vector<2x16x1xf32>
    %38 = vector.broadcast %37 : vector<2x16x1xf32> to vector<2x16x16xf32>
    %39 = arith.subf %35, %38 : vector<2x16x16xf32>
    %40 = math.exp %39 : vector<2x16x16xf32>
    %cst_18 = arith.constant dense<0.000000e+00> : vector<2x16xf32>
    %41 = vector.multi_reduction <add>, %40, %cst_18 [2] : vector<2x16x16xf32> to vector<2x16xf32>
    %42 = vector.shape_cast %41 : vector<2x16xf32> to vector<2x16x1xf32>
    %43 = tpu.reciprocal %42 {approx = true} : vector<2x16x1xf32> -> vector<2x16x1xf32>
    %44 = vector.broadcast %43 : vector<2x16x1xf32> to vector<2x16x16xf32>
    %45 = arith.mulf %40, %44 : vector<2x16x16xf32>
    "tpu.trace_start"() <{level = 10 : i32, message = "bqk,bkd->bqd"}> : () -> ()
    %cst_19 = arith.constant dense<0.000000e+00> : vector<2x16x8xf32>
    %46 = tpu.matmul %45, %33, %cst_19 {dimension_numbers = #tpu.dot_dimension_numbers<[2], [1], [1], [2], [0, 0, 0, 1, 1, 2], [0], [0]>} : vector<2x16x16xf32>, vector<2x16x8xf32>, vector<2x16x8xf32> -> vector<2x16x8xf32>
    "tpu.trace_stop"() : () -> ()
    %47 = vector.shape_cast %46 : vector<2x16x8xf32> to vector<32x8xf32>
    %c0_20 = arith.constant 0 : index
    %c0_21 = arith.constant 0 : index
    %48 = vector.load %arg10[%c0_20, %c0_21] : memref<32x32xf32, #tpu.memory_space<vmem>>, vector<32x8xf32>
    tpu.vector_store %arg10[%c0_20, %c0_21], %47 {strides = array<i32>} : memref<32x32xf32, #tpu.memory_space<vmem>>, vector<32x8xf32>,
    %49 = vector.extract_strided_slice %24 {offsets = [0, 8], sizes = [32, 8], strides = [1, 1]} : vector<32x96xf32> to vector<32x8xf32>
    %50 = vector.shape_cast %49 : vector<32x8xf32> to vector<2x16x8xf32>
    %51 = vector.extract_strided_slice %24 {offsets = [0, 40], sizes = [32, 8], strides = [1, 1]} : vector<32x96xf32> to vector<32x8xf32>
    %52 = vector.shape_cast %51 : vector<32x8xf32> to vector<2x16x8xf32>
    %53 = vector.extract_strided_slice %24 {offsets = [0, 72], sizes = [32, 8], strides = [1, 1]} : vector<32x96xf32> to vector<32x8xf32>
    %54 = vector.shape_cast %53 : vector<32x8xf32> to vector<2x16x8xf32>
    "tpu.trace_start"() <{level = 10 : i32, message = "bqd,bkd->bqk"}> : () -> ()
    %cst_22 = arith.constant dense<0.000000e+00> : vector<2x16x16xf32>
    %55 = tpu.matmul %50, %52, %cst_22 {dimension_numbers = #tpu.dot_dimension_numbers<[2], [2], [1], [1], [0, 0, 0, 1, 1, 1], [0], [0]>} : vector<2x16x8xf32>, vector<2x16x8xf32>, vector<2x16x16xf32> -> vector<2x16x16xf32>
    "tpu.trace_stop"() : () -> ()
    %56 = arith.addf %55, %10 : vector<2x16x16xf32>
    %cst_23 = arith.constant dense<0xFF800000> : vector<2x16xf32>
    %57 = vector.multi_reduction <maximumf>, %56, %cst_23 [2] : vector<2x16x16xf32> to vector<2x16xf32>
    %58 = vector.shape_cast %57 : vector<2x16xf32> to vector<2x16x1xf32>
    %59 = vector.broadcast %58 : vector<2x16x1xf32> to vector<2x16x16xf32>
    %60 = arith.subf %56, %59 : vector<2x16x16xf32>
    %61 = math.exp %60 : vector<2x16x16xf32>
    %cst_24 = arith.constant dense<0.000000e+00> : vector<2x16xf32>
    %62 = vector.multi_reduction <add>, %61, %cst_24 [2] : vector<2x16x16xf32> to vector<2x16xf32>
    %63 = vector.shape_cast %62 : vector<2x16xf32> to vector<2x16x1xf32>
    %64 = tpu.reciprocal %63 {approx = true} : vector<2x16x1xf32> -> vector<2x16x1xf32>
    %65 = vector.broadcast %64 : vector<2x16x1xf32> to vector<2x16x16xf32>
    %66 = arith.mulf %61, %65 : vector<2x16x16xf32>
    "tpu.trace_start"() <{level = 10 : i32, message = "bqk,bkd->bqd"}> : () -> ()
    %cst_25 = arith.constant dense<0.000000e+00> : vector<2x16x8xf32>
    %67 = tpu.matmul %66, %54, %cst_25 {dimension_numbers = #tpu.dot_dimension_numbers<[2], [1], [1], [2], [0, 0, 0, 1, 1, 2], [0], [0]>} : vector<2x16x16xf32>, vector<2x16x8xf32>, vector<2x16x8xf32> -> vector<2x16x8xf32>
    "tpu.trace_stop"() : () -> ()
    %68 = vector.shape_cast %67 : vector<2x16x8xf32> to vector<32x8xf32>
    %c0_26 = arith.constant 0 : index
    %c8 = arith.constant 8 : index
    %69 = vector.load %arg10[%c0_26, %c8] : memref<32x32xf32, #tpu.memory_space<vmem>>, vector<32x8xf32>
    tpu.vector_store %arg10[%c0_26, %c8], %68 {strides = array<i32>} : memref<32x32xf32, #tpu.memory_space<vmem>>, vector<32x8xf32>,
    %70 = vector.extract_strided_slice %24 {offsets = [0, 16], sizes = [32, 8], strides = [1, 1]} : vector<32x96xf32> to vector<32x8xf32>
    %71 = vector.shape_cast %70 : vector<32x8xf32> to vector<2x16x8xf32>
    %72 = vector.extract_strided_slice %24 {offsets = [0, 48], sizes = [32, 8], strides = [1, 1]} : vector<32x96xf32> to vector<32x8xf32>
    %73 = vector.shape_cast %72 : vector<32x8xf32> to vector<2x16x8xf32>
    %74 = vector.extract_strided_slice %24 {offsets = [0, 80], sizes = [32, 8], strides = [1, 1]} : vector<32x96xf32> to vector<32x8xf32>
    %75 = vector.shape_cast %74 : vector<32x8xf32> to vector<2x16x8xf32>
    "tpu.trace_start"() <{level = 10 : i32, message = "bqd,bkd->bqk"}> : () -> ()
    %cst_27 = arith.constant dense<0.000000e+00> : vector<2x16x16xf32>
    %76 = tpu.matmul %71, %73, %cst_27 {dimension_numbers = #tpu.dot_dimension_numbers<[2], [2], [1], [1], [0, 0, 0, 1, 1, 1], [0], [0]>} : vector<2x16x8xf32>, vector<2x16x8xf32>, vector<2x16x16xf32> -> vector<2x16x16xf32>
    "tpu.trace_stop"() : () -> ()
    %77 = arith.addf %76, %10 : vector<2x16x16xf32>
    %cst_28 = arith.constant dense<0xFF800000> : vector<2x16xf32>
    %78 = vector.multi_reduction <maximumf>, %77, %cst_28 [2] : vector<2x16x16xf32> to vector<2x16xf32>
    %79 = vector.shape_cast %78 : vector<2x16xf32> to vector<2x16x1xf32>
    %80 = vector.broadcast %79 : vector<2x16x1xf32> to vector<2x16x16xf32>
    %81 = arith.subf %77, %80 : vector<2x16x16xf32>
    %82 = math.exp %81 : vector<2x16x16xf32>
    %cst_29 = arith.constant dense<0.000000e+00> : vector<2x16xf32>
    %83 = vector.multi_reduction <add>, %82, %cst_29 [2] : vector<2x16x16xf32> to vector<2x16xf32>
    %84 = vector.shape_cast %83 : vector<2x16xf32> to vector<2x16x1xf32>
    %85 = tpu.reciprocal %84 {approx = true} : vector<2x16x1xf32> -> vector<2x16x1xf32>
    %86 = vector.broadcast %85 : vector<2x16x1xf32> to vector<2x16x16xf32>
    %87 = arith.mulf %82, %86 : vector<2x16x16xf32>
    "tpu.trace_start"() <{level = 10 : i32, message = "bqk,bkd->bqd"}> : () -> ()
    %cst_30 = arith.constant dense<0.000000e+00> : vector<2x16x8xf32>
    %88 = tpu.matmul %87, %75, %cst_30 {dimension_numbers = #tpu.dot_dimension_numbers<[2], [1], [1], [2], [0, 0, 0, 1, 1, 2], [0], [0]>} : vector<2x16x16xf32>, vector<2x16x8xf32>, vector<2x16x8xf32> -> vector<2x16x8xf32>
    "tpu.trace_stop"() : () -> ()
    %89 = vector.shape_cast %88 : vector<2x16x8xf32> to vector<32x8xf32>
    %c0_31 = arith.constant 0 : index
    %c16 = arith.constant 16 : index
    %90 = vector.load %arg10[%c0_31, %c16] : memref<32x32xf32, #tpu.memory_space<vmem>>, vector<32x8xf32>
    tpu.vector_store %arg10[%c0_31, %c16], %89 {strides = array<i32>} : memref<32x32xf32, #tpu.memory_space<vmem>>, vector<32x8xf32>,
    %91 = vector.extract_strided_slice %24 {offsets = [0, 24], sizes = [32, 8], strides = [1, 1]} : vector<32x96xf32> to vector<32x8xf32>
    %92 = vector.shape_cast %91 : vector<32x8xf32> to vector<2x16x8xf32>
    %93 = vector.extract_strided_slice %24 {offsets = [0, 56], sizes = [32, 8], strides = [1, 1]} : vector<32x96xf32> to vector<32x8xf32>
    %94 = vector.shape_cast %93 : vector<32x8xf32> to vector<2x16x8xf32>
    %95 = vector.extract_strided_slice %24 {offsets = [0, 88], sizes = [32, 8], strides = [1, 1]} : vector<32x96xf32> to vector<32x8xf32>
    %96 = vector.shape_cast %95 : vector<32x8xf32> to vector<2x16x8xf32>
    "tpu.trace_start"() <{level = 10 : i32, message = "bqd,bkd->bqk"}> : () -> ()
    %cst_32 = arith.constant dense<0.000000e+00> : vector<2x16x16xf32>
    %97 = tpu.matmul %92, %94, %cst_32 {dimension_numbers = #tpu.dot_dimension_numbers<[2], [2], [1], [1], [0, 0, 0, 1, 1, 1], [0], [0]>} : vector<2x16x8xf32>, vector<2x16x8xf32>, vector<2x16x16xf32> -> vector<2x16x16xf32>
    "tpu.trace_stop"() : () -> ()
    %98 = arith.addf %97, %10 : vector<2x16x16xf32>
    %cst_33 = arith.constant dense<0xFF800000> : vector<2x16xf32>
    %99 = vector.multi_reduction <maximumf>, %98, %cst_33 [2] : vector<2x16x16xf32> to vector<2x16xf32>
    %100 = vector.shape_cast %99 : vector<2x16xf32> to vector<2x16x1xf32>
    %101 = vector.broadcast %100 : vector<2x16x1xf32> to vector<2x16x16xf32>
    %102 = arith.subf %98, %101 : vector<2x16x16xf32>
    %103 = math.exp %102 : vector<2x16x16xf32>
    %cst_34 = arith.constant dense<0.000000e+00> : vector<2x16xf32>
    %104 = vector.multi_reduction <add>, %103, %cst_34 [2] : vector<2x16x16xf32> to vector<2x16xf32>
    %105 = vector.shape_cast %104 : vector<2x16xf32> to vector<2x16x1xf32>
    %106 = tpu.reciprocal %105 {approx = true} : vector<2x16x1xf32> -> vector<2x16x1xf32>
    %107 = vector.broadcast %106 : vector<2x16x1xf32> to vector<2x16x16xf32>
    %108 = arith.mulf %103, %107 : vector<2x16x16xf32>
    "tpu.trace_start"() <{level = 10 : i32, message = "bqk,bkd->bqd"}> : () -> ()
    %cst_35 = arith.constant dense<0.000000e+00> : vector<2x16x8xf32>
    %109 = tpu.matmul %108, %96, %cst_35 {dimension_numbers = #tpu.dot_dimension_numbers<[2], [1], [1], [2], [0, 0, 0, 1, 1, 2], [0], [0]>} : vector<2x16x16xf32>, vector<2x16x8xf32>, vector<2x16x8xf32> -> vector<2x16x8xf32>
    "tpu.trace_stop"() : () -> ()
    %110 = vector.shape_cast %109 : vector<2x16x8xf32> to vector<32x8xf32>
    %c0_36 = arith.constant 0 : index
    %c24 = arith.constant 24 : index
    %111 = vector.load %arg10[%c0_36, %c24] : memref<32x32xf32, #tpu.memory_space<vmem>>, vector<32x8xf32>
    tpu.vector_store %arg10[%c0_36, %c24], %110 {strides = array<i32>} : memref<32x32xf32, #tpu.memory_space<vmem>>, vector<32x8xf32>,
    %c0_37 = arith.constant 0 : index
    %c0_38 = arith.constant 0 : index
    %112 = vector.load %arg10[%c0_37, %c0_38] : memref<32x32xf32, #tpu.memory_space<vmem>>, vector<32x32xf32>
    %cst_39 = arith.constant dense<0.000000e+00> : vector<32x32xf32>
    %113 = tpu.matmul %112, %26, %cst_39 {dimension_numbers = #tpu.dot_dimension_numbers<[1], [0], [0], [1], [0, 0, 1, 1], [], []>} : vector<32x32xf32>, vector<32x32xf32>, vector<32x32xf32> -> vector<32x32xf32>
    %114 = vector.broadcast %27 : vector<1x32xf32> to vector<32x32xf32>
    %115 = arith.addf %113, %114 : vector<32x32xf32>
    %116 = arith.addf %0, %115 : vector<32x32xf32>
    %cst_40 = arith.constant dense<0.000000e+00> : vector<32xf32>
    %117 = vector.multi_reduction <add>, %116, %cst_40 [1] : vector<32x32xf32> to vector<32xf32>
    %118 = vector.shape_cast %117 : vector<32xf32> to vector<32x1xf32>
    %cst_41 = arith.constant 3.200000e+01 : f32
    %119 = vector.broadcast %cst_41 : f32 to vector<32x1xf32>
    %120 = arith.divf %118, %119 : vector<32x1xf32>
    %121 = arith.mulf %116, %116 : vector<32x32xf32>
    %cst_42 = arith.constant dense<0.000000e+00> : vector<32xf32>
    %122 = vector.multi_reduction <add>, %121, %cst_42 [1] : vector<32x32xf32> to vector<32xf32>
    %123 = vector.shape_cast %122 : vector<32xf32> to vector<32x1xf32>
    %cst_43 = arith.constant 3.200000e+01 : f32
    %124 = vector.broadcast %cst_43 : f32 to vector<32x1xf32>
    %125 = arith.divf %123, %124 : vector<32x1xf32>
    %126 = arith.mulf %120, %120 : vector<32x1xf32>
    %127 = arith.subf %125, %126 : vector<32x1xf32>
    %128 = vector.broadcast %120 : vector<32x1xf32> to vector<32x32xf32>
    %129 = arith.subf %116, %128 : vector<32x32xf32>
    %cst_44 = arith.constant 9.99999974E-6 : f32
    %130 = vector.broadcast %cst_44 : f32 to vector<32x1xf32>
    %131 = arith.addf %127, %130 : vector<32x1xf32>
    %132 = math.rsqrt %131 : vector<32x1xf32>
    %133 = vector.broadcast %132 : vector<32x1xf32> to vector<32x32xf32>
    %134 = arith.mulf %129, %133 : vector<32x32xf32>
    %135 = vector.broadcast %13 : vector<1x32xf32> to vector<32x32xf32>
    %136 = arith.mulf %134, %135 : vector<32x32xf32>
    %137 = vector.broadcast %14 : vector<1x32xf32> to vector<32x32xf32>
    %138 = arith.addf %136, %137 : vector<32x32xf32>
    %c0_45 = arith.constant 0 : index
    %c1 = arith.constant 1 : index
    %c0_46 = arith.constant 0 : index
    %c0_47 = arith.constant 0 : index
    %139 = vector.load %arg3[%c0_45, %c1, %c0_46, %c0_47] : memref<2x3x32x32xf32, #tpu.memory_space<vmem>>, vector<1x1x32x32xf32>
    %140 = vector.shape_cast %139 : vector<1x1x32x32xf32> to vector<32x32xf32>
    %cst_48 = arith.constant dense<0.000000e+00> : vector<32x32xf32>
    %141 = tpu.matmul %138, %140, %cst_48 {dimension_numbers = #tpu.dot_dimension_numbers<[1], [0], [0], [1], [0, 0, 1, 1], [], []>} : vector<32x32xf32>, vector<32x32xf32>, vector<32x32xf32> -> vector<32x32xf32>
    %142 = vector.extract_strided_slice %12 {offsets = [3, 0], sizes = [1, 32], strides = [1, 1]} : vector<11x96xf32> to vector<1x32xf32>
    %143 = vector.broadcast %142 : vector<1x32xf32> to vector<32x32xf32>
    %144 = arith.addf %141, %143 : vector<32x32xf32>
    %c0_49 = arith.constant 0 : index
    %c1_50 = arith.constant 1 : index
    %c0_51 = arith.constant 0 : index
    %c0_52 = arith.constant 0 : index
    %145 = vector.load %arg2[%c0_49, %c1_50, %c0_51, %c0_52] : memref<2x2x32x96xf32, #tpu.memory_space<vmem>>, vector<1x1x32x96xf32>
    %146 = vector.shape_cast %145 : vector<1x1x32x96xf32> to vector<32x96xf32>
    %cst_53 = arith.constant dense<0.000000e+00> : vector<48x96xf32>
    %147 = tpu.matmul %1, %146, %cst_53 {dimension_numbers = #tpu.dot_dimension_numbers<[1], [0], [0], [1], [0, 0, 1, 1], [], []>} : vector<48x32xf32>, vector<32x96xf32>, vector<48x96xf32> -> vector<48x96xf32>
    %148 = vector.extract_strided_slice %12 {offsets = [1, 0], sizes = [1, 96], strides = [1, 1]} : vector<11x96xf32> to vector<1x96xf32>
    %149 = vector.broadcast %148 : vector<1x96xf32> to vector<48x96xf32>
    %150 = arith.addf %147, %149 : vector<48x96xf32>
    %c0_54 = arith.constant 0 : index
    %c2 = arith.constant 2 : index
    %c0_55 = arith.constant 0 : index
    %c0_56 = arith.constant 0 : index
    %151 = vector.load %arg3[%c0_54, %c2, %c0_55, %c0_56] : memref<2x3x32x32xf32, #tpu.memory_space<vmem>>, vector<1x1x32x32xf32>
    %152 = vector.shape_cast %151 : vector<1x1x32x32xf32> to vector<32x32xf32>
    %153 = vector.extract_strided_slice %12 {offsets = [4, 0], sizes = [1, 32], strides = [1, 1]} : vector<11x96xf32> to vector<1x32xf32>
    %154 = vector.extract_strided_slice %144 {offsets = [0, 0], sizes = [32, 8], strides = [1, 1]} : vector<32x32xf32> to vector<32x8xf32>
    %155 = vector.shape_cast %154 : vector<32x8xf32> to vector<2x16x8xf32>
    %156 = vector.extract_strided_slice %150 {offsets = [0, 0], sizes = [48, 8], strides = [1, 1]} : vector<48x96xf32> to vector<48x8xf32>
    %157 = vector.shape_cast %156 : vector<48x8xf32> to vector<2x24x8xf32>
    %158 = vector.extract_strided_slice %150 {offsets = [0, 32], sizes = [48, 8], strides = [1, 1]} : vector<48x96xf32> to vector<48x8xf32>
    %159 = vector.shape_cast %158 : vector<48x8xf32> to vector<2x24x8xf32>
    "tpu.trace_start"() <{level = 10 : i32, message = "bqd,bkd->bqk"}> : () -> ()
    %cst_57 = arith.constant dense<0.000000e+00> : vector<2x16x24xf32>
    %160 = tpu.matmul %155, %157, %cst_57 {dimension_numbers = #tpu.dot_dimension_numbers<[2], [2], [1], [1], [0, 0, 0, 1, 1, 1], [0], [0]>} : vector<2x16x8xf32>, vector<2x24x8xf32>, vector<2x16x24xf32> -> vector<2x16x24xf32>
    "tpu.trace_stop"() : () -> ()
    %cst_58 = arith.constant dense<0xFF800000> : vector<2x16xf32>
    %161 = vector.multi_reduction <maximumf>, %160, %cst_58 [2] : vector<2x16x24xf32> to vector<2x16xf32>
    %162 = vector.shape_cast %161 : vector<2x16xf32> to vector<2x16x1xf32>
    %163 = vector.broadcast %162 : vector<2x16x1xf32> to vector<2x16x24xf32>
    %164 = arith.subf %160, %163 : vector<2x16x24xf32>
    %165 = math.exp %164 : vector<2x16x24xf32>
    %cst_59 = arith.constant dense<0.000000e+00> : vector<2x16xf32>
    %166 = vector.multi_reduction <add>, %165, %cst_59 [2] : vector<2x16x24xf32> to vector<2x16xf32>
    %167 = vector.shape_cast %166 : vector<2x16xf32> to vector<2x16x1xf32>
    %168 = tpu.reciprocal %167 {approx = true} : vector<2x16x1xf32> -> vector<2x16x1xf32>
    %169 = vector.broadcast %168 : vector<2x16x1xf32> to vector<2x16x24xf32>
    %170 = arith.mulf %165, %169 : vector<2x16x24xf32>
    "tpu.trace_start"() <{level = 10 : i32, message = "bqk,bkd->bqd"}> : () -> ()
    %cst_60 = arith.constant dense<0.000000e+00> : vector<2x16x8xf32>
    %171 = tpu.matmul %170, %159, %cst_60 {dimension_numbers = #tpu.dot_dimension_numbers<[2], [1], [1], [2], [0, 0, 0, 1, 1, 2], [0], [0]>} : vector<2x16x24xf32>, vector<2x24x8xf32>, vector<2x16x8xf32> -> vector<2x16x8xf32>
    "tpu.trace_stop"() : () -> ()
    %172 = vector.shape_cast %171 : vector<2x16x8xf32> to vector<32x8xf32>
    %c0_61 = arith.constant 0 : index
    %c0_62 = arith.constant 0 : index
    %173 = vector.load %arg10[%c0_61, %c0_62] : memref<32x32xf32, #tpu.memory_space<vmem>>, vector<32x8xf32>
    tpu.vector_store %arg10[%c0_61, %c0_62], %172 {strides = array<i32>} : memref<32x32xf32, #tpu.memory_space<vmem>>, vector<32x8xf32>,
    %174 = vector.extract_strided_slice %144 {offsets = [0, 8], sizes = [32, 8], strides = [1, 1]} : vector<32x32xf32> to vector<32x8xf32>
    %175 = vector.shape_cast %174 : vector<32x8xf32> to vector<2x16x8xf32>
    %176 = vector.extract_strided_slice %150 {offsets = [0, 8], sizes = [48, 8], strides = [1, 1]} : vector<48x96xf32> to vector<48x8xf32>
    %177 = vector.shape_cast %176 : vector<48x8xf32> to vector<2x24x8xf32>
    %178 = vector.extract_strided_slice %150 {offsets = [0, 40], sizes = [48, 8], strides = [1, 1]} : vector<48x96xf32> to vector<48x8xf32>
    %179 = vector.shape_cast %178 : vector<48x8xf32> to vector<2x24x8xf32>
    "tpu.trace_start"() <{level = 10 : i32, message = "bqd,bkd->bqk"}> : () -> ()
    %cst_63 = arith.constant dense<0.000000e+00> : vector<2x16x24xf32>
    %180 = tpu.matmul %175, %177, %cst_63 {dimension_numbers = #tpu.dot_dimension_numbers<[2], [2], [1], [1], [0, 0, 0, 1, 1, 1], [0], [0]>} : vector<2x16x8xf32>, vector<2x24x8xf32>, vector<2x16x24xf32> -> vector<2x16x24xf32>
    "tpu.trace_stop"() : () -> ()
    %cst_64 = arith.constant dense<0xFF800000> : vector<2x16xf32>
    %181 = vector.multi_reduction <maximumf>, %180, %cst_64 [2] : vector<2x16x24xf32> to vector<2x16xf32>
    %182 = vector.shape_cast %181 : vector<2x16xf32> to vector<2x16x1xf32>
    %183 = vector.broadcast %182 : vector<2x16x1xf32> to vector<2x16x24xf32>
    %184 = arith.subf %180, %183 : vector<2x16x24xf32>
    %185 = math.exp %184 : vector<2x16x24xf32>
    %cst_65 = arith.constant dense<0.000000e+00> : vector<2x16xf32>
    %186 = vector.multi_reduction <add>, %185, %cst_65 [2] : vector<2x16x24xf32> to vector<2x16xf32>
    %187 = vector.shape_cast %186 : vector<2x16xf32> to vector<2x16x1xf32>
    %188 = tpu.reciprocal %187 {approx = true} : vector<2x16x1xf32> -> vector<2x16x1xf32>
    %189 = vector.broadcast %188 : vector<2x16x1xf32> to vector<2x16x24xf32>
    %190 = arith.mulf %185, %189 : vector<2x16x24xf32>
    "tpu.trace_start"() <{level = 10 : i32, message = "bqk,bkd->bqd"}> : () -> ()
    %cst_66 = arith.constant dense<0.000000e+00> : vector<2x16x8xf32>
    %191 = tpu.matmul %190, %179, %cst_66 {dimension_numbers = #tpu.dot_dimension_numbers<[2], [1], [1], [2], [0, 0, 0, 1, 1, 2], [0], [0]>} : vector<2x16x24xf32>, vector<2x24x8xf32>, vector<2x16x8xf32> -> vector<2x16x8xf32>
    "tpu.trace_stop"() : () -> ()
    %192 = vector.shape_cast %191 : vector<2x16x8xf32> to vector<32x8xf32>
    %c0_67 = arith.constant 0 : index
    %c8_68 = arith.constant 8 : index
    %193 = vector.load %arg10[%c0_67, %c8_68] : memref<32x32xf32, #tpu.memory_space<vmem>>, vector<32x8xf32>
    tpu.vector_store %arg10[%c0_67, %c8_68], %192 {strides = array<i32>} : memref<32x32xf32, #tpu.memory_space<vmem>>, vector<32x8xf32>,
    %194 = vector.extract_strided_slice %144 {offsets = [0, 16], sizes = [32, 8], strides = [1, 1]} : vector<32x32xf32> to vector<32x8xf32>
    %195 = vector.shape_cast %194 : vector<32x8xf32> to vector<2x16x8xf32>
    %196 = vector.extract_strided_slice %150 {offsets = [0, 16], sizes = [48, 8], strides = [1, 1]} : vector<48x96xf32> to vector<48x8xf32>
    %197 = vector.shape_cast %196 : vector<48x8xf32> to vector<2x24x8xf32>
    %198 = vector.extract_strided_slice %150 {offsets = [0, 48], sizes = [48, 8], strides = [1, 1]} : vector<48x96xf32> to vector<48x8xf32>
    %199 = vector.shape_cast %198 : vector<48x8xf32> to vector<2x24x8xf32>
    "tpu.trace_start"() <{level = 10 : i32, message = "bqd,bkd->bqk"}> : () -> ()
    %cst_69 = arith.constant dense<0.000000e+00> : vector<2x16x24xf32>
    %200 = tpu.matmul %195, %197, %cst_69 {dimension_numbers = #tpu.dot_dimension_numbers<[2], [2], [1], [1], [0, 0, 0, 1, 1, 1], [0], [0]>} : vector<2x16x8xf32>, vector<2x24x8xf32>, vector<2x16x24xf32> -> vector<2x16x24xf32>
    "tpu.trace_stop"() : () -> ()
    %cst_70 = arith.constant dense<0xFF800000> : vector<2x16xf32>
    %201 = vector.multi_reduction <maximumf>, %200, %cst_70 [2] : vector<2x16x24xf32> to vector<2x16xf32>
    %202 = vector.shape_cast %201 : vector<2x16xf32> to vector<2x16x1xf32>
    %203 = vector.broadcast %202 : vector<2x16x1xf32> to vector<2x16x24xf32>
    %204 = arith.subf %200, %203 : vector<2x16x24xf32>
    %205 = math.exp %204 : vector<2x16x24xf32>
    %cst_71 = arith.constant dense<0.000000e+00> : vector<2x16xf32>
    %206 = vector.multi_reduction <add>, %205, %cst_71 [2] : vector<2x16x24xf32> to vector<2x16xf32>
    %207 = vector.shape_cast %206 : vector<2x16xf32> to vector<2x16x1xf32>
    %208 = tpu.reciprocal %207 {approx = true} : vector<2x16x1xf32> -> vector<2x16x1xf32>
    %209 = vector.broadcast %208 : vector<2x16x1xf32> to vector<2x16x24xf32>
    %210 = arith.mulf %205, %209 : vector<2x16x24xf32>
    "tpu.trace_start"() <{level = 10 : i32, message = "bqk,bkd->bqd"}> : () -> ()
    %cst_72 = arith.constant dense<0.000000e+00> : vector<2x16x8xf32>
    %211 = tpu.matmul %210, %199, %cst_72 {dimension_numbers = #tpu.dot_dimension_numbers<[2], [1], [1], [2], [0, 0, 0, 1, 1, 2], [0], [0]>} : vector<2x16x24xf32>, vector<2x24x8xf32>, vector<2x16x8xf32> -> vector<2x16x8xf32>
    "tpu.trace_stop"() : () -> ()
    %212 = vector.shape_cast %211 : vector<2x16x8xf32> to vector<32x8xf32>
    %c0_73 = arith.constant 0 : index
    %c16_74 = arith.constant 16 : index
    %213 = vector.load %arg10[%c0_73, %c16_74] : memref<32x32xf32, #tpu.memory_space<vmem>>, vector<32x8xf32>
    tpu.vector_store %arg10[%c0_73, %c16_74], %212 {strides = array<i32>} : memref<32x32xf32, #tpu.memory_space<vmem>>, vector<32x8xf32>,
    %214 = vector.extract_strided_slice %144 {offsets = [0, 24], sizes = [32, 8], strides = [1, 1]} : vector<32x32xf32> to vector<32x8xf32>
    %215 = vector.shape_cast %214 : vector<32x8xf32> to vector<2x16x8xf32>
    %216 = vector.extract_strided_slice %150 {offsets = [0, 24], sizes = [48, 8], strides = [1, 1]} : vector<48x96xf32> to vector<48x8xf32>
    %217 = vector.shape_cast %216 : vector<48x8xf32> to vector<2x24x8xf32>
    %218 = vector.extract_strided_slice %150 {offsets = [0, 56], sizes = [48, 8], strides = [1, 1]} : vector<48x96xf32> to vector<48x8xf32>
    %219 = vector.shape_cast %218 : vector<48x8xf32> to vector<2x24x8xf32>
    "tpu.trace_start"() <{level = 10 : i32, message = "bqd,bkd->bqk"}> : () -> ()
    %cst_75 = arith.constant dense<0.000000e+00> : vector<2x16x24xf32>
    %220 = tpu.matmul %215, %217, %cst_75 {dimension_numbers = #tpu.dot_dimension_numbers<[2], [2], [1], [1], [0, 0, 0, 1, 1, 1], [0], [0]>} : vector<2x16x8xf32>, vector<2x24x8xf32>, vector<2x16x24xf32> -> vector<2x16x24xf32>
    "tpu.trace_stop"() : () -> ()
    %cst_76 = arith.constant dense<0xFF800000> : vector<2x16xf32>
    %221 = vector.multi_reduction <maximumf>, %220, %cst_76 [2] : vector<2x16x24xf32> to vector<2x16xf32>
    %222 = vector.shape_cast %221 : vector<2x16xf32> to vector<2x16x1xf32>
    %223 = vector.broadcast %222 : vector<2x16x1xf32> to vector<2x16x24xf32>
    %224 = arith.subf %220, %223 : vector<2x16x24xf32>
    %225 = math.exp %224 : vector<2x16x24xf32>
    %cst_77 = arith.constant dense<0.000000e+00> : vector<2x16xf32>
    %226 = vector.multi_reduction <add>, %225, %cst_77 [2] : vector<2x16x24xf32> to vector<2x16xf32>
    %227 = vector.shape_cast %226 : vector<2x16xf32> to vector<2x16x1xf32>
    %228 = tpu.reciprocal %227 {approx = true} : vector<2x16x1xf32> -> vector<2x16x1xf32>
    %229 = vector.broadcast %228 : vector<2x16x1xf32> to vector<2x16x24xf32>
    %230 = arith.mulf %225, %229 : vector<2x16x24xf32>
    "tpu.trace_start"() <{level = 10 : i32, message = "bqk,bkd->bqd"}> : () -> ()
    %cst_78 = arith.constant dense<0.000000e+00> : vector<2x16x8xf32>
    %231 = tpu.matmul %230, %219, %cst_78 {dimension_numbers = #tpu.dot_dimension_numbers<[2], [1], [1], [2], [0, 0, 0, 1, 1, 2], [0], [0]>} : vector<2x16x24xf32>, vector<2x24x8xf32>, vector<2x16x8xf32> -> vector<2x16x8xf32>
    "tpu.trace_stop"() : () -> ()
    %232 = vector.shape_cast %231 : vector<2x16x8xf32> to vector<32x8xf32>
    %c0_79 = arith.constant 0 : index
    %c24_80 = arith.constant 24 : index
    %233 = vector.load %arg10[%c0_79, %c24_80] : memref<32x32xf32, #tpu.memory_space<vmem>>, vector<32x8xf32>
    tpu.vector_store %arg10[%c0_79, %c24_80], %232 {strides = array<i32>} : memref<32x32xf32, #tpu.memory_space<vmem>>, vector<32x8xf32>,
    %c0_81 = arith.constant 0 : index
    %c0_82 = arith.constant 0 : index
    %234 = vector.load %arg10[%c0_81, %c0_82] : memref<32x32xf32, #tpu.memory_space<vmem>>, vector<32x32xf32>
    %cst_83 = arith.constant dense<0.000000e+00> : vector<32x32xf32>
    %235 = tpu.matmul %234, %152, %cst_83 {dimension_numbers = #tpu.dot_dimension_numbers<[1], [0], [0], [1], [0, 0, 1, 1], [], []>} : vector<32x32xf32>, vector<32x32xf32>, vector<32x32xf32> -> vector<32x32xf32>
    %236 = vector.broadcast %153 : vector<1x32xf32> to vector<32x32xf32>
    %237 = arith.addf %235, %236 : vector<32x32xf32>
    %238 = arith.addf %138, %237 : vector<32x32xf32>
    %cst_84 = arith.constant dense<0.000000e+00> : vector<32xf32>
    %239 = vector.multi_reduction <add>, %238, %cst_84 [1] : vector<32x32xf32> to vector<32xf32>
    %240 = vector.shape_cast %239 : vector<32xf32> to vector<32x1xf32>
    %cst_85 = arith.constant 3.200000e+01 : f32
    %241 = vector.broadcast %cst_85 : f32 to vector<32x1xf32>
    %242 = arith.divf %240, %241 : vector<32x1xf32>
    %243 = arith.mulf %238, %238 : vector<32x32xf32>
    %cst_86 = arith.constant dense<0.000000e+00> : vector<32xf32>
    %244 = vector.multi_reduction <add>, %243, %cst_86 [1] : vector<32x32xf32> to vector<32xf32>
    %245 = vector.shape_cast %244 : vector<32xf32> to vector<32x1xf32>
    %cst_87 = arith.constant 3.200000e+01 : f32
    %246 = vector.broadcast %cst_87 : f32 to vector<32x1xf32>
    %247 = arith.divf %245, %246 : vector<32x1xf32>
    %248 = arith.mulf %242, %242 : vector<32x1xf32>
    %249 = arith.subf %247, %248 : vector<32x1xf32>
    %250 = vector.broadcast %242 : vector<32x1xf32> to vector<32x32xf32>
    %251 = arith.subf %238, %250 : vector<32x32xf32>
    %cst_88 = arith.constant 9.99999974E-6 : f32
    %252 = vector.broadcast %cst_88 : f32 to vector<32x1xf32>
    %253 = arith.addf %249, %252 : vector<32x1xf32>
    %254 = math.rsqrt %253 : vector<32x1xf32>
    %255 = vector.broadcast %254 : vector<32x1xf32> to vector<32x32xf32>
    %256 = arith.mulf %251, %255 : vector<32x32xf32>
    %257 = vector.broadcast %15 : vector<1x32xf32> to vector<32x32xf32>
    %258 = arith.mulf %256, %257 : vector<32x32xf32>
    %259 = vector.broadcast %16 : vector<1x32xf32> to vector<32x32xf32>
    %260 = arith.addf %258, %259 : vector<32x32xf32>
    %cst_89 = arith.constant dense<0.000000e+00> : vector<32xf32>
    %261 = vector.multi_reduction <add>, %260, %cst_89 [1] : vector<32x32xf32> to vector<32xf32>
    %262 = vector.shape_cast %261 : vector<32xf32> to vector<32x1xf32>
    %cst_90 = arith.constant 3.200000e+01 : f32
    %263 = vector.broadcast %cst_90 : f32 to vector<32x1xf32>
    %264 = arith.divf %262, %263 : vector<32x1xf32>
    %265 = arith.mulf %260, %260 : vector<32x32xf32>
    %cst_91 = arith.constant dense<0.000000e+00> : vector<32xf32>
    %266 = vector.multi_reduction <add>, %265, %cst_91 [1] : vector<32x32xf32> to vector<32xf32>
    %267 = vector.shape_cast %266 : vector<32xf32> to vector<32x1xf32>
    %cst_92 = arith.constant 3.200000e+01 : f32
    %268 = vector.broadcast %cst_92 : f32 to vector<32x1xf32>
    %269 = arith.divf %267, %268 : vector<32x1xf32>
    %270 = arith.mulf %264, %264 : vector<32x1xf32>
    %271 = arith.subf %269, %270 : vector<32x1xf32>
    %272 = vector.broadcast %264 : vector<32x1xf32> to vector<32x32xf32>
    %273 = arith.subf %260, %272 : vector<32x32xf32>
    %cst_93 = arith.constant 9.99999974E-6 : f32
    %274 = vector.broadcast %cst_93 : f32 to vector<32x1xf32>
    %275 = arith.addf %271, %274 : vector<32x1xf32>
    %276 = math.rsqrt %275 : vector<32x1xf32>
    %277 = vector.broadcast %276 : vector<32x1xf32> to vector<32x32xf32>
    %278 = arith.mulf %273, %277 : vector<32x32xf32>
    %279 = vector.broadcast %17 : vector<1x32xf32> to vector<32x32xf32>
    %280 = arith.mulf %278, %279 : vector<32x32xf32>
    %281 = vector.broadcast %18 : vector<1x32xf32> to vector<32x32xf32>
    %282 = arith.addf %280, %281 : vector<32x32xf32>
    %c0_94 = arith.constant 0 : index
    %c0_95 = arith.constant 0 : index
    %c0_96 = arith.constant 0 : index
    %283 = vector.load %arg4[%c0_94, %c0_95, %c0_96] : memref<2x33x64xf32, #tpu.memory_space<vmem>>, vector<1x32x64xf32>
    %284 = vector.shape_cast %283 : vector<1x32x64xf32> to vector<32x64xf32>
    %cst_97 = arith.constant dense<0.000000e+00> : vector<32x64xf32>
    %285 = tpu.matmul %282, %284, %cst_97 {dimension_numbers = #tpu.dot_dimension_numbers<[1], [0], [0], [1], [0, 0, 1, 1], [], []>} : vector<32x32xf32>, vector<32x64xf32>, vector<32x64xf32> -> vector<32x64xf32>
    %c0_98 = arith.constant 0 : index
    %c32 = arith.constant 32 : index
    %c0_99 = arith.constant 0 : index
    %286 = vector.load %arg4[%c0_98, %c32, %c0_99] : memref<2x33x64xf32, #tpu.memory_space<vmem>>, vector<1x1x64xf32>
    %287 = vector.shape_cast %286 : vector<1x1x64xf32> to vector<1x64xf32>
    %288 = vector.broadcast %287 : vector<1x64xf32> to vector<32x64xf32>
    %289 = arith.addf %285, %288 : vector<32x64xf32>
    %cst_100 = arith.constant 0.000000e+00 : f32
    %290 = vector.broadcast %cst_100 : f32 to vector<32x64xf32>
    %291 = arith.maximumf %289, %290 : vector<32x64xf32>
    %c0_101 = arith.constant 0 : index
    %c0_102 = arith.constant 0 : index
    %c0_103 = arith.constant 0 : index
    %292 = vector.load %arg5[%c0_101, %c0_102, %c0_103] : memref<2x65x32xf32, #tpu.memory_space<vmem>>, vector<1x64x32xf32>
    %293 = vector.shape_cast %292 : vector<1x64x32xf32> to vector<64x32xf32>
    %cst_104 = arith.constant dense<0.000000e+00> : vector<32x32xf32>
    %294 = tpu.matmul %291, %293, %cst_104 {dimension_numbers = #tpu.dot_dimension_numbers<[1], [0], [0], [1], [0, 0, 1, 1], [], []>} : vector<32x64xf32>, vector<64x32xf32>, vector<32x32xf32> -> vector<32x32xf32>
    %c0_105 = arith.constant 0 : index
    %c64 = arith.constant 64 : index
    %c0_106 = arith.constant 0 : index
    %295 = vector.load %arg5[%c0_105, %c64, %c0_106] : memref<2x65x32xf32, #tpu.memory_space<vmem>>, vector<1x1x32xf32>
    %296 = vector.shape_cast %295 : vector<1x1x32xf32> to vector<1x32xf32>
    %297 = vector.broadcast %296 : vector<1x32xf32> to vector<32x32xf32>
    %298 = arith.addf %294, %297 : vector<32x32xf32>
    %299 = arith.addf %282, %298 : vector<32x32xf32>
    %cst_107 = arith.constant dense<0.000000e+00> : vector<32xf32>
    %300 = vector.multi_reduction <add>, %299, %cst_107 [1] : vector<32x32xf32> to vector<32xf32>
    %301 = vector.shape_cast %300 : vector<32xf32> to vector<32x1xf32>
    %cst_108 = arith.constant 3.200000e+01 : f32
    %302 = vector.broadcast %cst_108 : f32 to vector<32x1xf32>
    %303 = arith.divf %301, %302 : vector<32x1xf32>
    %304 = arith.mulf %299, %299 : vector<32x32xf32>
    %cst_109 = arith.constant dense<0.000000e+00> : vector<32xf32>
    %305 = vector.multi_reduction <add>, %304, %cst_109 [1] : vector<32x32xf32> to vector<32xf32>
    %306 = vector.shape_cast %305 : vector<32xf32> to vector<32x1xf32>
    %cst_110 = arith.constant 3.200000e+01 : f32
    %307 = vector.broadcast %cst_110 : f32 to vector<32x1xf32>
    %308 = arith.divf %306, %307 : vector<32x1xf32>
    %309 = arith.mulf %303, %303 : vector<32x1xf32>
    %310 = arith.subf %308, %309 : vector<32x1xf32>
    %311 = vector.broadcast %303 : vector<32x1xf32> to vector<32x32xf32>
    %312 = arith.subf %299, %311 : vector<32x32xf32>
    %cst_111 = arith.constant 9.99999974E-6 : f32
    %313 = vector.broadcast %cst_111 : f32 to vector<32x1xf32>
    %314 = arith.addf %310, %313 : vector<32x1xf32>
    %315 = math.rsqrt %314 : vector<32x1xf32>
    %316 = vector.broadcast %315 : vector<32x1xf32> to vector<32x32xf32>
    %317 = arith.mulf %312, %316 : vector<32x32xf32>
    %318 = vector.broadcast %17 : vector<1x32xf32> to vector<32x32xf32>
    %319 = arith.mulf %317, %318 : vector<32x32xf32>
    %320 = vector.broadcast %18 : vector<1x32xf32> to vector<32x32xf32>
    %321 = arith.addf %319, %320 : vector<32x32xf32>
    %c1_112 = arith.constant 1 : index
    %c0_113 = arith.constant 0 : index
    %c0_114 = arith.constant 0 : index
    %322 = vector.load %arg6[%c1_112, %c0_113, %c0_114] : memref<2x11x96xf32, #tpu.memory_space<vmem>>, vector<1x11x96xf32>
    %323 = vector.shape_cast %322 : vector<1x11x96xf32> to vector<11x96xf32>
    %324 = vector.extract_strided_slice %323 {offsets = [5, 0], sizes = [1, 32], strides = [1, 1]} : vector<11x96xf32> to vector<1x32xf32>
    %325 = vector.extract_strided_slice %323 {offsets = [6, 0], sizes = [1, 32], strides = [1, 1]} : vector<11x96xf32> to vector<1x32xf32>
    %326 = vector.extract_strided_slice %323 {offsets = [7, 0], sizes = [1, 32], strides = [1, 1]} : vector<11x96xf32> to vector<1x32xf32>
    %327 = vector.extract_strided_slice %323 {offsets = [8, 0], sizes = [1, 32], strides = [1, 1]} : vector<11x96xf32> to vector<1x32xf32>
    %328 = vector.extract_strided_slice %323 {offsets = [9, 0], sizes = [1, 32], strides = [1, 1]} : vector<11x96xf32> to vector<1x32xf32>
    %329 = vector.extract_strided_slice %323 {offsets = [10, 0], sizes = [1, 32], strides = [1, 1]} : vector<11x96xf32> to vector<1x32xf32>
    %c1_115 = arith.constant 1 : index
    %c0_116 = arith.constant 0 : index
    %c0_117 = arith.constant 0 : index
    %c0_118 = arith.constant 0 : index
    %330 = vector.load %arg2[%c1_115, %c0_116, %c0_117, %c0_118] : memref<2x2x32x96xf32, #tpu.memory_space<vmem>>, vector<1x1x32x96xf32>
    %331 = vector.shape_cast %330 : vector<1x1x32x96xf32> to vector<32x96xf32>
    %cst_119 = arith.constant dense<0.000000e+00> : vector<32x96xf32>
    %332 = tpu.matmul %321, %331, %cst_119 {dimension_numbers = #tpu.dot_dimension_numbers<[1], [0], [0], [1], [0, 0, 1, 1], [], []>} : vector<32x32xf32>, vector<32x96xf32>, vector<32x96xf32> -> vector<32x96xf32>
    %333 = vector.extract_strided_slice %323 {offsets = [0, 0], sizes = [1, 96], strides = [1, 1]} : vector<11x96xf32> to vector<1x96xf32>
    %334 = vector.broadcast %333 : vector<1x96xf32> to vector<32x96xf32>
    %335 = arith.addf %332, %334 : vector<32x96xf32>
    %c1_120 = arith.constant 1 : index
    %c0_121 = arith.constant 0 : index
    %c0_122 = arith.constant 0 : index
    %c0_123 = arith.constant 0 : index
    %336 = vector.load %arg3[%c1_120, %c0_121, %c0_122, %c0_123] : memref<2x3x32x32xf32, #tpu.memory_space<vmem>>, vector<1x1x32x32xf32>
    %337 = vector.shape_cast %336 : vector<1x1x32x32xf32> to vector<32x32xf32>
    %338 = vector.extract_strided_slice %323 {offsets = [2, 0], sizes = [1, 32], strides = [1, 1]} : vector<11x96xf32> to vector<1x32xf32>
    %339 = vector.extract_strided_slice %335 {offsets = [0, 0], sizes = [32, 8], strides = [1, 1]} : vector<32x96xf32> to vector<32x8xf32>
    %340 = vector.shape_cast %339 : vector<32x8xf32> to vector<2x16x8xf32>
    %341 = vector.extract_strided_slice %335 {offsets = [0, 32], sizes = [32, 8], strides = [1, 1]} : vector<32x96xf32> to vector<32x8xf32>
    %342 = vector.shape_cast %341 : vector<32x8xf32> to vector<2x16x8xf32>
    %343 = vector.extract_strided_slice %335 {offsets = [0, 64], sizes = [32, 8], strides = [1, 1]} : vector<32x96xf32> to vector<32x8xf32>
    %344 = vector.shape_cast %343 : vector<32x8xf32> to vector<2x16x8xf32>
    "tpu.trace_start"() <{level = 10 : i32, message = "bqd,bkd->bqk"}> : () -> ()
    %cst_124 = arith.constant dense<0.000000e+00> : vector<2x16x16xf32>
    %345 = tpu.matmul %340, %342, %cst_124 {dimension_numbers = #tpu.dot_dimension_numbers<[2], [2], [1], [1], [0, 0, 0, 1, 1, 1], [0], [0]>} : vector<2x16x8xf32>, vector<2x16x8xf32>, vector<2x16x16xf32> -> vector<2x16x16xf32>
    "tpu.trace_stop"() : () -> ()
    %346 = arith.addf %345, %10 : vector<2x16x16xf32>
    %cst_125 = arith.constant dense<0xFF800000> : vector<2x16xf32>
    %347 = vector.multi_reduction <maximumf>, %346, %cst_125 [2] : vector<2x16x16xf32> to vector<2x16xf32>
    %348 = vector.shape_cast %347 : vector<2x16xf32> to vector<2x16x1xf32>
    %349 = vector.broadcast %348 : vector<2x16x1xf32> to vector<2x16x16xf32>
    %350 = arith.subf %346, %349 : vector<2x16x16xf32>
    %351 = math.exp %350 : vector<2x16x16xf32>
    %cst_126 = arith.constant dense<0.000000e+00> : vector<2x16xf32>
    %352 = vector.multi_reduction <add>, %351, %cst_126 [2] : vector<2x16x16xf32> to vector<2x16xf32>
    %353 = vector.shape_cast %352 : vector<2x16xf32> to vector<2x16x1xf32>
    %354 = tpu.reciprocal %353 {approx = true} : vector<2x16x1xf32> -> vector<2x16x1xf32>
    %355 = vector.broadcast %354 : vector<2x16x1xf32> to vector<2x16x16xf32>
    %356 = arith.mulf %351, %355 : vector<2x16x16xf32>
    "tpu.trace_start"() <{level = 10 : i32, message = "bqk,bkd->bqd"}> : () -> ()
    %cst_127 = arith.constant dense<0.000000e+00> : vector<2x16x8xf32>
    %357 = tpu.matmul %356, %344, %cst_127 {dimension_numbers = #tpu.dot_dimension_numbers<[2], [1], [1], [2], [0, 0, 0, 1, 1, 2], [0], [0]>} : vector<2x16x16xf32>, vector<2x16x8xf32>, vector<2x16x8xf32> -> vector<2x16x8xf32>
    "tpu.trace_stop"() : () -> ()
    %358 = vector.shape_cast %357 : vector<2x16x8xf32> to vector<32x8xf32>
    %c0_128 = arith.constant 0 : index
    %c0_129 = arith.constant 0 : index
    %359 = vector.load %arg10[%c0_128, %c0_129] : memref<32x32xf32, #tpu.memory_space<vmem>>, vector<32x8xf32>
    tpu.vector_store %arg10[%c0_128, %c0_129], %358 {strides = array<i32>} : memref<32x32xf32, #tpu.memory_space<vmem>>, vector<32x8xf32>,
    %360 = vector.extract_strided_slice %335 {offsets = [0, 8], sizes = [32, 8], strides = [1, 1]} : vector<32x96xf32> to vector<32x8xf32>
    %361 = vector.shape_cast %360 : vector<32x8xf32> to vector<2x16x8xf32>
    %362 = vector.extract_strided_slice %335 {offsets = [0, 40], sizes = [32, 8], strides = [1, 1]} : vector<32x96xf32> to vector<32x8xf32>
    %363 = vector.shape_cast %362 : vector<32x8xf32> to vector<2x16x8xf32>
    %364 = vector.extract_strided_slice %335 {offsets = [0, 72], sizes = [32, 8], strides = [1, 1]} : vector<32x96xf32> to vector<32x8xf32>
    %365 = vector.shape_cast %364 : vector<32x8xf32> to vector<2x16x8xf32>
    "tpu.trace_start"() <{level = 10 : i32, message = "bqd,bkd->bqk"}> : () -> ()
    %cst_130 = arith.constant dense<0.000000e+00> : vector<2x16x16xf32>
    %366 = tpu.matmul %361, %363, %cst_130 {dimension_numbers = #tpu.dot_dimension_numbers<[2], [2], [1], [1], [0, 0, 0, 1, 1, 1], [0], [0]>} : vector<2x16x8xf32>, vector<2x16x8xf32>, vector<2x16x16xf32> -> vector<2x16x16xf32>
    "tpu.trace_stop"() : () -> ()
    %367 = arith.addf %366, %10 : vector<2x16x16xf32>
    %cst_131 = arith.constant dense<0xFF800000> : vector<2x16xf32>
    %368 = vector.multi_reduction <maximumf>, %367, %cst_131 [2] : vector<2x16x16xf32> to vector<2x16xf32>
    %369 = vector.shape_cast %368 : vector<2x16xf32> to vector<2x16x1xf32>
    %370 = vector.broadcast %369 : vector<2x16x1xf32> to vector<2x16x16xf32>
    %371 = arith.subf %367, %370 : vector<2x16x16xf32>
    %372 = math.exp %371 : vector<2x16x16xf32>
    %cst_132 = arith.constant dense<0.000000e+00> : vector<2x16xf32>
    %373 = vector.multi_reduction <add>, %372, %cst_132 [2] : vector<2x16x16xf32> to vector<2x16xf32>
    %374 = vector.shape_cast %373 : vector<2x16xf32> to vector<2x16x1xf32>
    %375 = tpu.reciprocal %374 {approx = true} : vector<2x16x1xf32> -> vector<2x16x1xf32>
    %376 = vector.broadcast %375 : vector<2x16x1xf32> to vector<2x16x16xf32>
    %377 = arith.mulf %372, %376 : vector<2x16x16xf32>
    "tpu.trace_start"() <{level = 10 : i32, message = "bqk,bkd->bqd"}> : () -> ()
    %cst_133 = arith.constant dense<0.000000e+00> : vector<2x16x8xf32>
    %378 = tpu.matmul %377, %365, %cst_133 {dimension_numbers = #tpu.dot_dimension_numbers<[2], [1], [1], [2], [0, 0, 0, 1, 1, 2], [0], [0]>} : vector<2x16x16xf32>, vector<2x16x8xf32>, vector<2x16x8xf32> -> vector<2x16x8xf32>
    "tpu.trace_stop"() : () -> ()
    %379 = vector.shape_cast %378 : vector<2x16x8xf32> to vector<32x8xf32>
    %c0_134 = arith.constant 0 : index
    %c8_135 = arith.constant 8 : index
    %380 = vector.load %arg10[%c0_134, %c8_135] : memref<32x32xf32, #tpu.memory_space<vmem>>, vector<32x8xf32>
    tpu.vector_store %arg10[%c0_134, %c8_135], %379 {strides = array<i32>} : memref<32x32xf32, #tpu.memory_space<vmem>>, vector<32x8xf32>,
    %381 = vector.extract_strided_slice %335 {offsets = [0, 16], sizes = [32, 8], strides = [1, 1]} : vector<32x96xf32> to vector<32x8xf32>
    %382 = vector.shape_cast %381 : vector<32x8xf32> to vector<2x16x8xf32>
    %383 = vector.extract_strided_slice %335 {offsets = [0, 48], sizes = [32, 8], strides = [1, 1]} : vector<32x96xf32> to vector<32x8xf32>
    %384 = vector.shape_cast %383 : vector<32x8xf32> to vector<2x16x8xf32>
    %385 = vector.extract_strided_slice %335 {offsets = [0, 80], sizes = [32, 8], strides = [1, 1]} : vector<32x96xf32> to vector<32x8xf32>
    %386 = vector.shape_cast %385 : vector<32x8xf32> to vector<2x16x8xf32>
    "tpu.trace_start"() <{level = 10 : i32, message = "bqd,bkd->bqk"}> : () -> ()
    %cst_136 = arith.constant dense<0.000000e+00> : vector<2x16x16xf32>
    %387 = tpu.matmul %382, %384, %cst_136 {dimension_numbers = #tpu.dot_dimension_numbers<[2], [2], [1], [1], [0, 0, 0, 1, 1, 1], [0], [0]>} : vector<2x16x8xf32>, vector<2x16x8xf32>, vector<2x16x16xf32> -> vector<2x16x16xf32>
    "tpu.trace_stop"() : () -> ()
    %388 = arith.addf %387, %10 : vector<2x16x16xf32>
    %cst_137 = arith.constant dense<0xFF800000> : vector<2x16xf32>
    %389 = vector.multi_reduction <maximumf>, %388, %cst_137 [2] : vector<2x16x16xf32> to vector<2x16xf32>
    %390 = vector.shape_cast %389 : vector<2x16xf32> to vector<2x16x1xf32>
    %391 = vector.broadcast %390 : vector<2x16x1xf32> to vector<2x16x16xf32>
    %392 = arith.subf %388, %391 : vector<2x16x16xf32>
    %393 = math.exp %392 : vector<2x16x16xf32>
    %cst_138 = arith.constant dense<0.000000e+00> : vector<2x16xf32>
    %394 = vector.multi_reduction <add>, %393, %cst_138 [2] : vector<2x16x16xf32> to vector<2x16xf32>
    %395 = vector.shape_cast %394 : vector<2x16xf32> to vector<2x16x1xf32>
    %396 = tpu.reciprocal %395 {approx = true} : vector<2x16x1xf32> -> vector<2x16x1xf32>
    %397 = vector.broadcast %396 : vector<2x16x1xf32> to vector<2x16x16xf32>
    %398 = arith.mulf %393, %397 : vector<2x16x16xf32>
    "tpu.trace_start"() <{level = 10 : i32, message = "bqk,bkd->bqd"}> : () -> ()
    %cst_139 = arith.constant dense<0.000000e+00> : vector<2x16x8xf32>
    %399 = tpu.matmul %398, %386, %cst_139 {dimension_numbers = #tpu.dot_dimension_numbers<[2], [1], [1], [2], [0, 0, 0, 1, 1, 2], [0], [0]>} : vector<2x16x16xf32>, vector<2x16x8xf32>, vector<2x16x8xf32> -> vector<2x16x8xf32>
    "tpu.trace_stop"() : () -> ()
    %400 = vector.shape_cast %399 : vector<2x16x8xf32> to vector<32x8xf32>
    %c0_140 = arith.constant 0 : index
    %c16_141 = arith.constant 16 : index
    %401 = vector.load %arg10[%c0_140, %c16_141] : memref<32x32xf32, #tpu.memory_space<vmem>>, vector<32x8xf32>
    tpu.vector_store %arg10[%c0_140, %c16_141], %400 {strides = array<i32>} : memref<32x32xf32, #tpu.memory_space<vmem>>, vector<32x8xf32>,
    %402 = vector.extract_strided_slice %335 {offsets = [0, 24], sizes = [32, 8], strides = [1, 1]} : vector<32x96xf32> to vector<32x8xf32>
    %403 = vector.shape_cast %402 : vector<32x8xf32> to vector<2x16x8xf32>
    %404 = vector.extract_strided_slice %335 {offsets = [0, 56], sizes = [32, 8], strides = [1, 1]} : vector<32x96xf32> to vector<32x8xf32>
    %405 = vector.shape_cast %404 : vector<32x8xf32> to vector<2x16x8xf32>
    %406 = vector.extract_strided_slice %335 {offsets = [0, 88], sizes = [32, 8], strides = [1, 1]} : vector<32x96xf32> to vector<32x8xf32>
    %407 = vector.shape_cast %406 : vector<32x8xf32> to vector<2x16x8xf32>
    "tpu.trace_start"() <{level = 10 : i32, message = "bqd,bkd->bqk"}> : () -> ()
    %cst_142 = arith.constant dense<0.000000e+00> : vector<2x16x16xf32>
    %408 = tpu.matmul %403, %405, %cst_142 {dimension_numbers = #tpu.dot_dimension_numbers<[2], [2], [1], [1], [0, 0, 0, 1, 1, 1], [0], [0]>} : vector<2x16x8xf32>, vector<2x16x8xf32>, vector<2x16x16xf32> -> vector<2x16x16xf32>
    "tpu.trace_stop"() : () -> ()
    %409 = arith.addf %408, %10 : vector<2x16x16xf32>
    %cst_143 = arith.constant dense<0xFF800000> : vector<2x16xf32>
    %410 = vector.multi_reduction <maximumf>, %409, %cst_143 [2] : vector<2x16x16xf32> to vector<2x16xf32>
    %411 = vector.shape_cast %410 : vector<2x16xf32> to vector<2x16x1xf32>
    %412 = vector.broadcast %411 : vector<2x16x1xf32> to vector<2x16x16xf32>
    %413 = arith.subf %409, %412 : vector<2x16x16xf32>
    %414 = math.exp %413 : vector<2x16x16xf32>
    %cst_144 = arith.constant dense<0.000000e+00> : vector<2x16xf32>
    %415 = vector.multi_reduction <add>, %414, %cst_144 [2] : vector<2x16x16xf32> to vector<2x16xf32>
    %416 = vector.shape_cast %415 : vector<2x16xf32> to vector<2x16x1xf32>
    %417 = tpu.reciprocal %416 {approx = true} : vector<2x16x1xf32> -> vector<2x16x1xf32>
    %418 = vector.broadcast %417 : vector<2x16x1xf32> to vector<2x16x16xf32>
    %419 = arith.mulf %414, %418 : vector<2x16x16xf32>
    "tpu.trace_start"() <{level = 10 : i32, message = "bqk,bkd->bqd"}> : () -> ()
    %cst_145 = arith.constant dense<0.000000e+00> : vector<2x16x8xf32>
    %420 = tpu.matmul %419, %407, %cst_145 {dimension_numbers = #tpu.dot_dimension_numbers<[2], [1], [1], [2], [0, 0, 0, 1, 1, 2], [0], [0]>} : vector<2x16x16xf32>, vector<2x16x8xf32>, vector<2x16x8xf32> -> vector<2x16x8xf32>
    "tpu.trace_stop"() : () -> ()
    %421 = vector.shape_cast %420 : vector<2x16x8xf32> to vector<32x8xf32>
    %c0_146 = arith.constant 0 : index
    %c24_147 = arith.constant 24 : index
    %422 = vector.load %arg10[%c0_146, %c24_147] : memref<32x32xf32, #tpu.memory_space<vmem>>, vector<32x8xf32>
    tpu.vector_store %arg10[%c0_146, %c24_147], %421 {strides = array<i32>} : memref<32x32xf32, #tpu.memory_space<vmem>>, vector<32x8xf32>,
    %c0_148 = arith.constant 0 : index
    %c0_149 = arith.constant 0 : index
    %423 = vector.load %arg10[%c0_148, %c0_149] : memref<32x32xf32, #tpu.memory_space<vmem>>, vector<32x32xf32>
    %cst_150 = arith.constant dense<0.000000e+00> : vector<32x32xf32>
    %424 = tpu.matmul %423, %337, %cst_150 {dimension_numbers = #tpu.dot_dimension_numbers<[1], [0], [0], [1], [0, 0, 1, 1], [], []>} : vector<32x32xf32>, vector<32x32xf32>, vector<32x32xf32> -> vector<32x32xf32>
    %425 = vector.broadcast %338 : vector<1x32xf32> to vector<32x32xf32>
    %426 = arith.addf %424, %425 : vector<32x32xf32>
    %427 = arith.addf %321, %426 : vector<32x32xf32>
    %cst_151 = arith.constant dense<0.000000e+00> : vector<32xf32>
    %428 = vector.multi_reduction <add>, %427, %cst_151 [1] : vector<32x32xf32> to vector<32xf32>
    %429 = vector.shape_cast %428 : vector<32xf32> to vector<32x1xf32>
    %cst_152 = arith.constant 3.200000e+01 : f32
    %430 = vector.broadcast %cst_152 : f32 to vector<32x1xf32>
    %431 = arith.divf %429, %430 : vector<32x1xf32>
    %432 = arith.mulf %427, %427 : vector<32x32xf32>
    %cst_153 = arith.constant dense<0.000000e+00> : vector<32xf32>
    %433 = vector.multi_reduction <add>, %432, %cst_153 [1] : vector<32x32xf32> to vector<32xf32>
    %434 = vector.shape_cast %433 : vector<32xf32> to vector<32x1xf32>
    %cst_154 = arith.constant 3.200000e+01 : f32
    %435 = vector.broadcast %cst_154 : f32 to vector<32x1xf32>
    %436 = arith.divf %434, %435 : vector<32x1xf32>
    %437 = arith.mulf %431, %431 : vector<32x1xf32>
    %438 = arith.subf %436, %437 : vector<32x1xf32>
    %439 = vector.broadcast %431 : vector<32x1xf32> to vector<32x32xf32>
    %440 = arith.subf %427, %439 : vector<32x32xf32>
    %cst_155 = arith.constant 9.99999974E-6 : f32
    %441 = vector.broadcast %cst_155 : f32 to vector<32x1xf32>
    %442 = arith.addf %438, %441 : vector<32x1xf32>
    %443 = math.rsqrt %442 : vector<32x1xf32>
    %444 = vector.broadcast %443 : vector<32x1xf32> to vector<32x32xf32>
    %445 = arith.mulf %440, %444 : vector<32x32xf32>
    %446 = vector.broadcast %324 : vector<1x32xf32> to vector<32x32xf32>
    %447 = arith.mulf %445, %446 : vector<32x32xf32>
    %448 = vector.broadcast %325 : vector<1x32xf32> to vector<32x32xf32>
    %449 = arith.addf %447, %448 : vector<32x32xf32>
    %c1_156 = arith.constant 1 : index
    %c1_157 = arith.constant 1 : index
    %c0_158 = arith.constant 0 : index
    %c0_159 = arith.constant 0 : index
    %450 = vector.load %arg3[%c1_156, %c1_157, %c0_158, %c0_159] : memref<2x3x32x32xf32, #tpu.memory_space<vmem>>, vector<1x1x32x32xf32>
    %451 = vector.shape_cast %450 : vector<1x1x32x32xf32> to vector<32x32xf32>
    %cst_160 = arith.constant dense<0.000000e+00> : vector<32x32xf32>
    %452 = tpu.matmul %449, %451, %cst_160 {dimension_numbers = #tpu.dot_dimension_numbers<[1], [0], [0], [1], [0, 0, 1, 1], [], []>} : vector<32x32xf32>, vector<32x32xf32>, vector<32x32xf32> -> vector<32x32xf32>
    %453 = vector.extract_strided_slice %323 {offsets = [3, 0], sizes = [1, 32], strides = [1, 1]} : vector<11x96xf32> to vector<1x32xf32>
    %454 = vector.broadcast %453 : vector<1x32xf32> to vector<32x32xf32>
    %455 = arith.addf %452, %454 : vector<32x32xf32>
    %c1_161 = arith.constant 1 : index
    %c1_162 = arith.constant 1 : index
    %c0_163 = arith.constant 0 : index
    %c0_164 = arith.constant 0 : index
    %456 = vector.load %arg2[%c1_161, %c1_162, %c0_163, %c0_164] : memref<2x2x32x96xf32, #tpu.memory_space<vmem>>, vector<1x1x32x96xf32>
    %457 = vector.shape_cast %456 : vector<1x1x32x96xf32> to vector<32x96xf32>
    %cst_165 = arith.constant dense<0.000000e+00> : vector<48x96xf32>
    %458 = tpu.matmul %1, %457, %cst_165 {dimension_numbers = #tpu.dot_dimension_numbers<[1], [0], [0], [1], [0, 0, 1, 1], [], []>} : vector<48x32xf32>, vector<32x96xf32>, vector<48x96xf32> -> vector<48x96xf32>
    %459 = vector.extract_strided_slice %323 {offsets = [1, 0], sizes = [1, 96], strides = [1, 1]} : vector<11x96xf32> to vector<1x96xf32>
    %460 = vector.broadcast %459 : vector<1x96xf32> to vector<48x96xf32>
    %461 = arith.addf %458, %460 : vector<48x96xf32>
    %c1_166 = arith.constant 1 : index
    %c2_167 = arith.constant 2 : index
    %c0_168 = arith.constant 0 : index
    %c0_169 = arith.constant 0 : index
    %462 = vector.load %arg3[%c1_166, %c2_167, %c0_168, %c0_169] : memref<2x3x32x32xf32, #tpu.memory_space<vmem>>, vector<1x1x32x32xf32>
    %463 = vector.shape_cast %462 : vector<1x1x32x32xf32> to vector<32x32xf32>
    %464 = vector.extract_strided_slice %323 {offsets = [4, 0], sizes = [1, 32], strides = [1, 1]} : vector<11x96xf32> to vector<1x32xf32>
    %465 = vector.extract_strided_slice %455 {offsets = [0, 0], sizes = [32, 8], strides = [1, 1]} : vector<32x32xf32> to vector<32x8xf32>
    %466 = vector.shape_cast %465 : vector<32x8xf32> to vector<2x16x8xf32>
    %467 = vector.extract_strided_slice %461 {offsets = [0, 0], sizes = [48, 8], strides = [1, 1]} : vector<48x96xf32> to vector<48x8xf32>
    %468 = vector.shape_cast %467 : vector<48x8xf32> to vector<2x24x8xf32>
    %469 = vector.extract_strided_slice %461 {offsets = [0, 32], sizes = [48, 8], strides = [1, 1]} : vector<48x96xf32> to vector<48x8xf32>
    %470 = vector.shape_cast %469 : vector<48x8xf32> to vector<2x24x8xf32>
    "tpu.trace_start"() <{level = 10 : i32, message = "bqd,bkd->bqk"}> : () -> ()
    %cst_170 = arith.constant dense<0.000000e+00> : vector<2x16x24xf32>
    %471 = tpu.matmul %466, %468, %cst_170 {dimension_numbers = #tpu.dot_dimension_numbers<[2], [2], [1], [1], [0, 0, 0, 1, 1, 1], [0], [0]>} : vector<2x16x8xf32>, vector<2x24x8xf32>, vector<2x16x24xf32> -> vector<2x16x24xf32>
    "tpu.trace_stop"() : () -> ()
    %cst_171 = arith.constant dense<0xFF800000> : vector<2x16xf32>
    %472 = vector.multi_reduction <maximumf>, %471, %cst_171 [2] : vector<2x16x24xf32> to vector<2x16xf32>
    %473 = vector.shape_cast %472 : vector<2x16xf32> to vector<2x16x1xf32>
    %474 = vector.broadcast %473 : vector<2x16x1xf32> to vector<2x16x24xf32>
    %475 = arith.subf %471, %474 : vector<2x16x24xf32>
    %476 = math.exp %475 : vector<2x16x24xf32>
    %cst_172 = arith.constant dense<0.000000e+00> : vector<2x16xf32>
    %477 = vector.multi_reduction <add>, %476, %cst_172 [2] : vector<2x16x24xf32> to vector<2x16xf32>
    %478 = vector.shape_cast %477 : vector<2x16xf32> to vector<2x16x1xf32>
    %479 = tpu.reciprocal %478 {approx = true} : vector<2x16x1xf32> -> vector<2x16x1xf32>
    %480 = vector.broadcast %479 : vector<2x16x1xf32> to vector<2x16x24xf32>
    %481 = arith.mulf %476, %480 : vector<2x16x24xf32>
    "tpu.trace_start"() <{level = 10 : i32, message = "bqk,bkd->bqd"}> : () -> ()
    %cst_173 = arith.constant dense<0.000000e+00> : vector<2x16x8xf32>
    %482 = tpu.matmul %481, %470, %cst_173 {dimension_numbers = #tpu.dot_dimension_numbers<[2], [1], [1], [2], [0, 0, 0, 1, 1, 2], [0], [0]>} : vector<2x16x24xf32>, vector<2x24x8xf32>, vector<2x16x8xf32> -> vector<2x16x8xf32>
    "tpu.trace_stop"() : () -> ()
    %483 = vector.shape_cast %482 : vector<2x16x8xf32> to vector<32x8xf32>
    %c0_174 = arith.constant 0 : index
    %c0_175 = arith.constant 0 : index
    %484 = vector.load %arg10[%c0_174, %c0_175] : memref<32x32xf32, #tpu.memory_space<vmem>>, vector<32x8xf32>
    tpu.vector_store %arg10[%c0_174, %c0_175], %483 {strides = array<i32>} : memref<32x32xf32, #tpu.memory_space<vmem>>, vector<32x8xf32>,
    %485 = vector.extract_strided_slice %455 {offsets = [0, 8], sizes = [32, 8], strides = [1, 1]} : vector<32x32xf32> to vector<32x8xf32>
    %486 = vector.shape_cast %485 : vector<32x8xf32> to vector<2x16x8xf32>
    %487 = vector.extract_strided_slice %461 {offsets = [0, 8], sizes = [48, 8], strides = [1, 1]} : vector<48x96xf32> to vector<48x8xf32>
    %488 = vector.shape_cast %487 : vector<48x8xf32> to vector<2x24x8xf32>
    %489 = vector.extract_strided_slice %461 {offsets = [0, 40], sizes = [48, 8], strides = [1, 1]} : vector<48x96xf32> to vector<48x8xf32>
    %490 = vector.shape_cast %489 : vector<48x8xf32> to vector<2x24x8xf32>
    "tpu.trace_start"() <{level = 10 : i32, message = "bqd,bkd->bqk"}> : () -> ()
    %cst_176 = arith.constant dense<0.000000e+00> : vector<2x16x24xf32>
    %491 = tpu.matmul %486, %488, %cst_176 {dimension_numbers = #tpu.dot_dimension_numbers<[2], [2], [1], [1], [0, 0, 0, 1, 1, 1], [0], [0]>} : vector<2x16x8xf32>, vector<2x24x8xf32>, vector<2x16x24xf32> -> vector<2x16x24xf32>
    "tpu.trace_stop"() : () -> ()
    %cst_177 = arith.constant dense<0xFF800000> : vector<2x16xf32>
    %492 = vector.multi_reduction <maximumf>, %491, %cst_177 [2] : vector<2x16x24xf32> to vector<2x16xf32>
    %493 = vector.shape_cast %492 : vector<2x16xf32> to vector<2x16x1xf32>
    %494 = vector.broadcast %493 : vector<2x16x1xf32> to vector<2x16x24xf32>
    %495 = arith.subf %491, %494 : vector<2x16x24xf32>
    %496 = math.exp %495 : vector<2x16x24xf32>
    %cst_178 = arith.constant dense<0.000000e+00> : vector<2x16xf32>
    %497 = vector.multi_reduction <add>, %496, %cst_178 [2] : vector<2x16x24xf32> to vector<2x16xf32>
    %498 = vector.shape_cast %497 : vector<2x16xf32> to vector<2x16x1xf32>
    %499 = tpu.reciprocal %498 {approx = true} : vector<2x16x1xf32> -> vector<2x16x1xf32>
    %500 = vector.broadcast %499 : vector<2x16x1xf32> to vector<2x16x24xf32>
    %501 = arith.mulf %496, %500 : vector<2x16x24xf32>
    "tpu.trace_start"() <{level = 10 : i32, message = "bqk,bkd->bqd"}> : () -> ()
    %cst_179 = arith.constant dense<0.000000e+00> : vector<2x16x8xf32>
    %502 = tpu.matmul %501, %490, %cst_179 {dimension_numbers = #tpu.dot_dimension_numbers<[2], [1], [1], [2], [0, 0, 0, 1, 1, 2], [0], [0]>} : vector<2x16x24xf32>, vector<2x24x8xf32>, vector<2x16x8xf32> -> vector<2x16x8xf32>
    "tpu.trace_stop"() : () -> ()
    %503 = vector.shape_cast %502 : vector<2x16x8xf32> to vector<32x8xf32>
    %c0_180 = arith.constant 0 : index
    %c8_181 = arith.constant 8 : index
    %504 = vector.load %arg10[%c0_180, %c8_181] : memref<32x32xf32, #tpu.memory_space<vmem>>, vector<32x8xf32>
    tpu.vector_store %arg10[%c0_180, %c8_181], %503 {strides = array<i32>} : memref<32x32xf32, #tpu.memory_space<vmem>>, vector<32x8xf32>,
    %505 = vector.extract_strided_slice %455 {offsets = [0, 16], sizes = [32, 8], strides = [1, 1]} : vector<32x32xf32> to vector<32x8xf32>
    %506 = vector.shape_cast %505 : vector<32x8xf32> to vector<2x16x8xf32>
    %507 = vector.extract_strided_slice %461 {offsets = [0, 16], sizes = [48, 8], strides = [1, 1]} : vector<48x96xf32> to vector<48x8xf32>
    %508 = vector.shape_cast %507 : vector<48x8xf32> to vector<2x24x8xf32>
    %509 = vector.extract_strided_slice %461 {offsets = [0, 48], sizes = [48, 8], strides = [1, 1]} : vector<48x96xf32> to vector<48x8xf32>
    %510 = vector.shape_cast %509 : vector<48x8xf32> to vector<2x24x8xf32>
    "tpu.trace_start"() <{level = 10 : i32, message = "bqd,bkd->bqk"}> : () -> ()
    %cst_182 = arith.constant dense<0.000000e+00> : vector<2x16x24xf32>
    %511 = tpu.matmul %506, %508, %cst_182 {dimension_numbers = #tpu.dot_dimension_numbers<[2], [2], [1], [1], [0, 0, 0, 1, 1, 1], [0], [0]>} : vector<2x16x8xf32>, vector<2x24x8xf32>, vector<2x16x24xf32> -> vector<2x16x24xf32>
    "tpu.trace_stop"() : () -> ()
    %cst_183 = arith.constant dense<0xFF800000> : vector<2x16xf32>
    %512 = vector.multi_reduction <maximumf>, %511, %cst_183 [2] : vector<2x16x24xf32> to vector<2x16xf32>
    %513 = vector.shape_cast %512 : vector<2x16xf32> to vector<2x16x1xf32>
    %514 = vector.broadcast %513 : vector<2x16x1xf32> to vector<2x16x24xf32>
    %515 = arith.subf %511, %514 : vector<2x16x24xf32>
    %516 = math.exp %515 : vector<2x16x24xf32>
    %cst_184 = arith.constant dense<0.000000e+00> : vector<2x16xf32>
    %517 = vector.multi_reduction <add>, %516, %cst_184 [2] : vector<2x16x24xf32> to vector<2x16xf32>
    %518 = vector.shape_cast %517 : vector<2x16xf32> to vector<2x16x1xf32>
    %519 = tpu.reciprocal %518 {approx = true} : vector<2x16x1xf32> -> vector<2x16x1xf32>
    %520 = vector.broadcast %519 : vector<2x16x1xf32> to vector<2x16x24xf32>
    %521 = arith.mulf %516, %520 : vector<2x16x24xf32>
    "tpu.trace_start"() <{level = 10 : i32, message = "bqk,bkd->bqd"}> : () -> ()
    %cst_185 = arith.constant dense<0.000000e+00> : vector<2x16x8xf32>
    %522 = tpu.matmul %521, %510, %cst_185 {dimension_numbers = #tpu.dot_dimension_numbers<[2], [1], [1], [2], [0, 0, 0, 1, 1, 2], [0], [0]>} : vector<2x16x24xf32>, vector<2x24x8xf32>, vector<2x16x8xf32> -> vector<2x16x8xf32>
    "tpu.trace_stop"() : () -> ()
    %523 = vector.shape_cast %522 : vector<2x16x8xf32> to vector<32x8xf32>
    %c0_186 = arith.constant 0 : index
    %c16_187 = arith.constant 16 : index
    %524 = vector.load %arg10[%c0_186, %c16_187] : memref<32x32xf32, #tpu.memory_space<vmem>>, vector<32x8xf32>
    tpu.vector_store %arg10[%c0_186, %c16_187], %523 {strides = array<i32>} : memref<32x32xf32, #tpu.memory_space<vmem>>, vector<32x8xf32>,
    %525 = vector.extract_strided_slice %455 {offsets = [0, 24], sizes = [32, 8], strides = [1, 1]} : vector<32x32xf32> to vector<32x8xf32>
    %526 = vector.shape_cast %525 : vector<32x8xf32> to vector<2x16x8xf32>
    %527 = vector.extract_strided_slice %461 {offsets = [0, 24], sizes = [48, 8], strides = [1, 1]} : vector<48x96xf32> to vector<48x8xf32>
    %528 = vector.shape_cast %527 : vector<48x8xf32> to vector<2x24x8xf32>
    %529 = vector.extract_strided_slice %461 {offsets = [0, 56], sizes = [48, 8], strides = [1, 1]} : vector<48x96xf32> to vector<48x8xf32>
    %530 = vector.shape_cast %529 : vector<48x8xf32> to vector<2x24x8xf32>
    "tpu.trace_start"() <{level = 10 : i32, message = "bqd,bkd->bqk"}> : () -> ()
    %cst_188 = arith.constant dense<0.000000e+00> : vector<2x16x24xf32>
    %531 = tpu.matmul %526, %528, %cst_188 {dimension_numbers = #tpu.dot_dimension_numbers<[2], [2], [1], [1], [0, 0, 0, 1, 1, 1], [0], [0]>} : vector<2x16x8xf32>, vector<2x24x8xf32>, vector<2x16x24xf32> -> vector<2x16x24xf32>
    "tpu.trace_stop"() : () -> ()
    %cst_189 = arith.constant dense<0xFF800000> : vector<2x16xf32>
    %532 = vector.multi_reduction <maximumf>, %531, %cst_189 [2] : vector<2x16x24xf32> to vector<2x16xf32>
    %533 = vector.shape_cast %532 : vector<2x16xf32> to vector<2x16x1xf32>
    %534 = vector.broadcast %533 : vector<2x16x1xf32> to vector<2x16x24xf32>
    %535 = arith.subf %531, %534 : vector<2x16x24xf32>
    %536 = math.exp %535 : vector<2x16x24xf32>
    %cst_190 = arith.constant dense<0.000000e+00> : vector<2x16xf32>
    %537 = vector.multi_reduction <add>, %536, %cst_190 [2] : vector<2x16x24xf32> to vector<2x16xf32>
    %538 = vector.shape_cast %537 : vector<2x16xf32> to vector<2x16x1xf32>
    %539 = tpu.reciprocal %538 {approx = true} : vector<2x16x1xf32> -> vector<2x16x1xf32>
    %540 = vector.broadcast %539 : vector<2x16x1xf32> to vector<2x16x24xf32>
    %541 = arith.mulf %536, %540 : vector<2x16x24xf32>
    "tpu.trace_start"() <{level = 10 : i32, message = "bqk,bkd->bqd"}> : () -> ()
    %cst_191 = arith.constant dense<0.000000e+00> : vector<2x16x8xf32>
    %542 = tpu.matmul %541, %530, %cst_191 {dimension_numbers = #tpu.dot_dimension_numbers<[2], [1], [1], [2], [0, 0, 0, 1, 1, 2], [0], [0]>} : vector<2x16x24xf32>, vector<2x24x8xf32>, vector<2x16x8xf32> -> vector<2x16x8xf32>
    "tpu.trace_stop"() : () -> ()
    %543 = vector.shape_cast %542 : vector<2x16x8xf32> to vector<32x8xf32>
    %c0_192 = arith.constant 0 : index
    %c24_193 = arith.constant 24 : index
    %544 = vector.load %arg10[%c0_192, %c24_193] : memref<32x32xf32, #tpu.memory_space<vmem>>, vector<32x8xf32>
    tpu.vector_store %arg10[%c0_192, %c24_193], %543 {strides = array<i32>} : memref<32x32xf32, #tpu.memory_space<vmem>>, vector<32x8xf32>,
    %c0_194 = arith.constant 0 : index
    %c0_195 = arith.constant 0 : index
    %545 = vector.load %arg10[%c0_194, %c0_195] : memref<32x32xf32, #tpu.memory_space<vmem>>, vector<32x32xf32>
    %cst_196 = arith.constant dense<0.000000e+00> : vector<32x32xf32>
    %546 = tpu.matmul %545, %463, %cst_196 {dimension_numbers = #tpu.dot_dimension_numbers<[1], [0], [0], [1], [0, 0, 1, 1], [], []>} : vector<32x32xf32>, vector<32x32xf32>, vector<32x32xf32> -> vector<32x32xf32>
    %547 = vector.broadcast %464 : vector<1x32xf32> to vector<32x32xf32>
    %548 = arith.addf %546, %547 : vector<32x32xf32>
    %549 = arith.addf %449, %548 : vector<32x32xf32>
    %cst_197 = arith.constant dense<0.000000e+00> : vector<32xf32>
    %550 = vector.multi_reduction <add>, %549, %cst_197 [1] : vector<32x32xf32> to vector<32xf32>
    %551 = vector.shape_cast %550 : vector<32xf32> to vector<32x1xf32>
    %cst_198 = arith.constant 3.200000e+01 : f32
    %552 = vector.broadcast %cst_198 : f32 to vector<32x1xf32>
    %553 = arith.divf %551, %552 : vector<32x1xf32>
    %554 = arith.mulf %549, %549 : vector<32x32xf32>
    %cst_199 = arith.constant dense<0.000000e+00> : vector<32xf32>
    %555 = vector.multi_reduction <add>, %554, %cst_199 [1] : vector<32x32xf32> to vector<32xf32>
    %556 = vector.shape_cast %555 : vector<32xf32> to vector<32x1xf32>
    %cst_200 = arith.constant 3.200000e+01 : f32
    %557 = vector.broadcast %cst_200 : f32 to vector<32x1xf32>
    %558 = arith.divf %556, %557 : vector<32x1xf32>
    %559 = arith.mulf %553, %553 : vector<32x1xf32>
    %560 = arith.subf %558, %559 : vector<32x1xf32>
    %561 = vector.broadcast %553 : vector<32x1xf32> to vector<32x32xf32>
    %562 = arith.subf %549, %561 : vector<32x32xf32>
    %cst_201 = arith.constant 9.99999974E-6 : f32
    %563 = vector.broadcast %cst_201 : f32 to vector<32x1xf32>
    %564 = arith.addf %560, %563 : vector<32x1xf32>
    %565 = math.rsqrt %564 : vector<32x1xf32>
    %566 = vector.broadcast %565 : vector<32x1xf32> to vector<32x32xf32>
    %567 = arith.mulf %562, %566 : vector<32x32xf32>
    %568 = vector.broadcast %326 : vector<1x32xf32> to vector<32x32xf32>
    %569 = arith.mulf %567, %568 : vector<32x32xf32>
    %570 = vector.broadcast %327 : vector<1x32xf32> to vector<32x32xf32>
    %571 = arith.addf %569, %570 : vector<32x32xf32>
    %cst_202 = arith.constant dense<0.000000e+00> : vector<32xf32>
    %572 = vector.multi_reduction <add>, %571, %cst_202 [1] : vector<32x32xf32> to vector<32xf32>
    %573 = vector.shape_cast %572 : vector<32xf32> to vector<32x1xf32>
    %cst_203 = arith.constant 3.200000e+01 : f32
    %574 = vector.broadcast %cst_203 : f32 to vector<32x1xf32>
    %575 = arith.divf %573, %574 : vector<32x1xf32>
    %576 = arith.mulf %571, %571 : vector<32x32xf32>
    %cst_204 = arith.constant dense<0.000000e+00> : vector<32xf32>
    %577 = vector.multi_reduction <add>, %576, %cst_204 [1] : vector<32x32xf32> to vector<32xf32>
    %578 = vector.shape_cast %577 : vector<32xf32> to vector<32x1xf32>
    %cst_205 = arith.constant 3.200000e+01 : f32
    %579 = vector.broadcast %cst_205 : f32 to vector<32x1xf32>
    %580 = arith.divf %578, %579 : vector<32x1xf32>
    %581 = arith.mulf %575, %575 : vector<32x1xf32>
    %582 = arith.subf %580, %581 : vector<32x1xf32>
    %583 = vector.broadcast %575 : vector<32x1xf32> to vector<32x32xf32>
    %584 = arith.subf %571, %583 : vector<32x32xf32>
    %cst_206 = arith.constant 9.99999974E-6 : f32
    %585 = vector.broadcast %cst_206 : f32 to vector<32x1xf32>
    %586 = arith.addf %582, %585 : vector<32x1xf32>
    %587 = math.rsqrt %586 : vector<32x1xf32>
    %588 = vector.broadcast %587 : vector<32x1xf32> to vector<32x32xf32>
    %589 = arith.mulf %584, %588 : vector<32x32xf32>
    %590 = vector.broadcast %328 : vector<1x32xf32> to vector<32x32xf32>
    %591 = arith.mulf %589, %590 : vector<32x32xf32>
    %592 = vector.broadcast %329 : vector<1x32xf32> to vector<32x32xf32>
    %593 = arith.addf %591, %592 : vector<32x32xf32>
    %c1_207 = arith.constant 1 : index
    %c0_208 = arith.constant 0 : index
    %c0_209 = arith.constant 0 : index
    %594 = vector.load %arg4[%c1_207, %c0_208, %c0_209] : memref<2x33x64xf32, #tpu.memory_space<vmem>>, vector<1x32x64xf32>
    %595 = vector.shape_cast %594 : vector<1x32x64xf32> to vector<32x64xf32>
    %cst_210 = arith.constant dense<0.000000e+00> : vector<32x64xf32>
    %596 = tpu.matmul %593, %595, %cst_210 {dimension_numbers = #tpu.dot_dimension_numbers<[1], [0], [0], [1], [0, 0, 1, 1], [], []>} : vector<32x32xf32>, vector<32x64xf32>, vector<32x64xf32> -> vector<32x64xf32>
    %c1_211 = arith.constant 1 : index
    %c32_212 = arith.constant 32 : index
    %c0_213 = arith.constant 0 : index
    %597 = vector.load %arg4[%c1_211, %c32_212, %c0_213] : memref<2x33x64xf32, #tpu.memory_space<vmem>>, vector<1x1x64xf32>
    %598 = vector.shape_cast %597 : vector<1x1x64xf32> to vector<1x64xf32>
    %599 = vector.broadcast %598 : vector<1x64xf32> to vector<32x64xf32>
    %600 = arith.addf %596, %599 : vector<32x64xf32>
    %cst_214 = arith.constant 0.000000e+00 : f32
    %601 = vector.broadcast %cst_214 : f32 to vector<32x64xf32>
    %602 = arith.maximumf %600, %601 : vector<32x64xf32>
    %c1_215 = arith.constant 1 : index
    %c0_216 = arith.constant 0 : index
    %c0_217 = arith.constant 0 : index
    %603 = vector.load %arg5[%c1_215, %c0_216, %c0_217] : memref<2x65x32xf32, #tpu.memory_space<vmem>>, vector<1x64x32xf32>
    %604 = vector.shape_cast %603 : vector<1x64x32xf32> to vector<64x32xf32>
    %cst_218 = arith.constant dense<0.000000e+00> : vector<32x32xf32>
    %605 = tpu.matmul %602, %604, %cst_218 {dimension_numbers = #tpu.dot_dimension_numbers<[1], [0], [0], [1], [0, 0, 1, 1], [], []>} : vector<32x64xf32>, vector<64x32xf32>, vector<32x32xf32> -> vector<32x32xf32>
    %c1_219 = arith.constant 1 : index
    %c64_220 = arith.constant 64 : index
    %c0_221 = arith.constant 0 : index
    %606 = vector.load %arg5[%c1_219, %c64_220, %c0_221] : memref<2x65x32xf32, #tpu.memory_space<vmem>>, vector<1x1x32xf32>
    %607 = vector.shape_cast %606 : vector<1x1x32xf32> to vector<1x32xf32>
    %608 = vector.broadcast %607 : vector<1x32xf32> to vector<32x32xf32>
    %609 = arith.addf %605, %608 : vector<32x32xf32>
    %610 = arith.addf %593, %609 : vector<32x32xf32>
    %cst_222 = arith.constant dense<0.000000e+00> : vector<32xf32>
    %611 = vector.multi_reduction <add>, %610, %cst_222 [1] : vector<32x32xf32> to vector<32xf32>
    %612 = vector.shape_cast %611 : vector<32xf32> to vector<32x1xf32>
    %cst_223 = arith.constant 3.200000e+01 : f32
    %613 = vector.broadcast %cst_223 : f32 to vector<32x1xf32>
    %614 = arith.divf %612, %613 : vector<32x1xf32>
    %615 = arith.mulf %610, %610 : vector<32x32xf32>
    %cst_224 = arith.constant dense<0.000000e+00> : vector<32xf32>
    %616 = vector.multi_reduction <add>, %615, %cst_224 [1] : vector<32x32xf32> to vector<32xf32>
    %617 = vector.shape_cast %616 : vector<32xf32> to vector<32x1xf32>
    %cst_225 = arith.constant 3.200000e+01 : f32
    %618 = vector.broadcast %cst_225 : f32 to vector<32x1xf32>
    %619 = arith.divf %617, %618 : vector<32x1xf32>
    %620 = arith.mulf %614, %614 : vector<32x1xf32>
    %621 = arith.subf %619, %620 : vector<32x1xf32>
    %622 = vector.broadcast %614 : vector<32x1xf32> to vector<32x32xf32>
    %623 = arith.subf %610, %622 : vector<32x32xf32>
    %cst_226 = arith.constant 9.99999974E-6 : f32
    %624 = vector.broadcast %cst_226 : f32 to vector<32x1xf32>
    %625 = arith.addf %621, %624 : vector<32x1xf32>
    %626 = math.rsqrt %625 : vector<32x1xf32>
    %627 = vector.broadcast %626 : vector<32x1xf32> to vector<32x32xf32>
    %628 = arith.mulf %623, %627 : vector<32x32xf32>
    %629 = vector.broadcast %328 : vector<1x32xf32> to vector<32x32xf32>
    %630 = arith.mulf %628, %629 : vector<32x32xf32>
    %631 = vector.broadcast %329 : vector<1x32xf32> to vector<32x32xf32>
    %632 = arith.addf %630, %631 : vector<32x32xf32>
    %c0_227 = arith.constant 0 : index
    %c0_228 = arith.constant 0 : index
    %633 = vector.load %arg7[%c0_227, %c0_228] : memref<2x32xf32, #tpu.memory_space<vmem>>, vector<1x32xf32>
    %c1_229 = arith.constant 1 : index
    %c0_230 = arith.constant 0 : index
    %634 = vector.load %arg7[%c1_229, %c0_230] : memref<2x32xf32, #tpu.memory_space<vmem>>, vector<1x32xf32>
    %cst_231 = arith.constant dense<0.000000e+00> : vector<32xf32>
    %635 = vector.multi_reduction <add>, %632, %cst_231 [1] : vector<32x32xf32> to vector<32xf32>
    %636 = vector.shape_cast %635 : vector<32xf32> to vector<32x1xf32>
    %cst_232 = arith.constant 3.200000e+01 : f32
    %637 = vector.broadcast %cst_232 : f32 to vector<32x1xf32>
    %638 = arith.divf %636, %637 : vector<32x1xf32>
    %639 = arith.mulf %632, %632 : vector<32x32xf32>
    %cst_233 = arith.constant dense<0.000000e+00> : vector<32xf32>
    %640 = vector.multi_reduction <add>, %639, %cst_233 [1] : vector<32x32xf32> to vector<32xf32>
    %641 = vector.shape_cast %640 : vector<32xf32> to vector<32x1xf32>
    %cst_234 = arith.constant 3.200000e+01 : f32
    %642 = vector.broadcast %cst_234 : f32 to vector<32x1xf32>
    %643 = arith.divf %641, %642 : vector<32x1xf32>
    %644 = arith.mulf %638, %638 : vector<32x1xf32>
    %645 = arith.subf %643, %644 : vector<32x1xf32>
    %646 = vector.broadcast %638 : vector<32x1xf32> to vector<32x32xf32>
    %647 = arith.subf %632, %646 : vector<32x32xf32>
    %cst_235 = arith.constant 9.99999974E-6 : f32
    %648 = vector.broadcast %cst_235 : f32 to vector<32x1xf32>
    %649 = arith.addf %645, %648 : vector<32x1xf32>
    %650 = math.rsqrt %649 : vector<32x1xf32>
    %651 = vector.broadcast %650 : vector<32x1xf32> to vector<32x32xf32>
    %652 = arith.mulf %647, %651 : vector<32x32xf32>
    %653 = vector.broadcast %633 : vector<1x32xf32> to vector<32x32xf32>
    %654 = arith.mulf %652, %653 : vector<32x32xf32>
    %655 = vector.broadcast %634 : vector<1x32xf32> to vector<32x32xf32>
    %656 = arith.addf %654, %655 : vector<32x32xf32>
    %c0_236 = arith.constant 0 : index
    %c0_237 = arith.constant 0 : index
    %657 = vector.load %arg8[%c0_236, %c0_237] : memref<33x8xf32, #tpu.memory_space<vmem>>, vector<32x8xf32>
    %cst_238 = arith.constant dense<0.000000e+00> : vector<32x8xf32>
    %658 = tpu.matmul %656, %657, %cst_238 {dimension_numbers = #tpu.dot_dimension_numbers<[1], [0], [0], [1], [0, 0, 1, 1], [], []>} : vector<32x32xf32>, vector<32x8xf32>, vector<32x8xf32> -> vector<32x8xf32>
    %c32_239 = arith.constant 32 : index
    %c0_240 = arith.constant 0 : index
    %659 = vector.load %arg8[%c32_239, %c0_240] : memref<33x8xf32, #tpu.memory_space<vmem>>, vector<1x8xf32>
    %660 = vector.broadcast %659 : vector<1x8xf32> to vector<32x8xf32>
    %661 = arith.addf %658, %660 : vector<32x8xf32>
    %c0_241 = arith.constant 0 : index
    %c0_242 = arith.constant 0 : index
    %662 = vector.load %arg9[%c0_241, %c0_242] : memref<32x8xf32, #tpu.memory_space<vmem>>, vector<32x8xf32>
    tpu.vector_store %arg9[%c0_241, %c0_242], %661 {strides = array<i32>} : memref<32x8xf32, #tpu.memory_space<vmem>>, vector<32x8xf32>,
    return
  }
}

</mosaic_0001>

<llo_original>
// kernel: tpu_custom_call.1
$region0: #{tpu_custom_call.1}
  #allocation0 [shape = 'u32[]', space=smem, size = 0x4, offset = 0x4, fixed_abs, tag = 'smem constant byte address 0x4 - core index']
  #allocation1 [shape = 'u32[144,128]{1,0:T(1,128)}', space=vmem, size = 0x12000, scoped, tag = 'internal scratch']
  #allocation2 [shape = 'f32[32,32]{1,0:T(8,128)}', space=vmem, size = 0x4000, scoped, tag = 'scratch operand']
  %s0 = inlined_call_operand.vmem [shape: f32[32,32], index: 0, kind: input, shape index: {}]
  %s1 = inlined_call_operand.vmem [shape: f32[48,32], index: 1, kind: input, shape index: {}]
  %s2 = inlined_call_operand.vmem [shape: f32[2,2,32,96], index: 2, kind: input, shape index: {}]
  %s3 = inlined_call_operand.vmem [shape: f32[2,3,32,32], index: 3, kind: input, shape index: {}]
  %s4 = inlined_call_operand.vmem [shape: f32[2,33,64], index: 4, kind: input, shape index: {}]
  %s5 = inlined_call_operand.vmem [shape: f32[2,65,32], index: 5, kind: input, shape index: {}]
  %s6 = inlined_call_operand.vmem [shape: f32[2,11,96], index: 6, kind: input, shape index: {}]
  %s7 = inlined_call_operand.vmem [shape: f32[2,32], index: 7, kind: input, shape index: {}]
  %s8 = inlined_call_operand.vmem [shape: f32[33,8], index: 8, kind: input, shape index: {}]
  %s9 = inlined_call_operand.vmem [shape: f32[32,8], index: 9, kind: output, shape index: {}]
  %s10 = sld [smem:[#allocation0]]
  $region46: #{tpu_custom_call.1} parent=0
    _
  %s12 = ssub.s32 1, %s10
  %s13 = scalar_select 0, %s12, %s10
  // Predicated region
  $region2: #{tpu_custom_call.1} parent=0 // pred_check
    _
  $region3: #{tpu_custom_call.1} parent=0 // pred_check_branch
    %15 = sbr.rel (0) target = $region5
  $region4: #{tpu_custom_call.1} parent=0 // pred_region
    _
  $region5: #{tpu_custom_call.1} parent=0 // pred_fallthru
    _
  // Predicated region
  $region6: #{tpu_custom_call.1} parent=0 // pred_check
    _
  $region7: #{tpu_custom_call.1} parent=0 // pred_check_branch
    %17 = sbr.rel (0) target = $region9
  $region8: #{tpu_custom_call.1} parent=0 // pred_region
    _
  $region9: #{tpu_custom_call.1} parent=0 // pred_fallthru
    _
  // Predicated region
  $region10: #{tpu_custom_call.1} parent=0 // pred_check
    _
  $region11: #{tpu_custom_call.1} parent=0 // pred_check_branch
    %19 = sbr.rel (0) target = $region13
  $region12: #{tpu_custom_call.1} parent=0 // pred_region
    _
  $region13: #{tpu_custom_call.1} parent=0 // pred_fallthru
    _
  // Predicated region
  $region14: #{tpu_custom_call.1} parent=0 // pred_check
    _
  $region15: #{tpu_custom_call.1} parent=0 // pred_check_branch
    %21 = sbr.rel (0) target = $region17
  $region16: #{tpu_custom_call.1} parent=0 // pred_region
    _
  $region17: #{tpu_custom_call.1} parent=0 // pred_fallthru
    _
  // Predicated region
  $region18: #{tpu_custom_call.1} parent=0 // pred_check
    _
  $region19: #{tpu_custom_call.1} parent=0 // pred_check_branch
    %23 = sbr.rel (0) target = $region21
  $region20: #{tpu_custom_call.1} parent=0 // pred_region
    _
  $region21: #{tpu_custom_call.1} parent=0 // pred_fallthru
    _
  // Predicated region
  $region22: #{tpu_custom_call.1} parent=0 // pred_check
    _
  $region23: #{tpu_custom_call.1} parent=0 // pred_check_branch
    %25 = sbr.rel (0) target = $region25
  $region24: #{tpu_custom_call.1} parent=0 // pred_region
    _
  $region25: #{tpu_custom_call.1} parent=0 // pred_fallthru
    _
  // Predicated region
  $region26: #{tpu_custom_call.1} parent=0 // pred_check
    _
  $region27: #{tpu_custom_call.1} parent=0 // pred_check_branch
    %27 = sbr.rel (0) target = $region29
  $region28: #{tpu_custom_call.1} parent=0 // pred_region
    _
  $region29: #{tpu_custom_call.1} parent=0 // pred_fallthru
    _
  // Predicated region
  $region30: #{tpu_custom_call.1} parent=0 // pred_check
    _
  $region31: #{tpu_custom_call.1} parent=0 // pred_check_branch
    %29 = sbr.rel (0) target = $region33
  $region32: #{tpu_custom_call.1} parent=0 // pred_region
    _
  $region33: #{tpu_custom_call.1} parent=0 // pred_fallthru
    _
  // Predicated region
  $region34: #{tpu_custom_call.1} parent=0 // pred_check
    _
  $region35: #{tpu_custom_call.1} parent=0 // pred_check_branch
    %31 = sbr.rel (0) target = $region37
  $region36: #{tpu_custom_call.1} parent=0 // pred_region
    _
  $region37: #{tpu_custom_call.1} parent=0 // pred_fallthru
    _
  %v32 = vld [vmem:[%s0] sm:$0xff]
  %v33 = vld [vmem:[%s0 + $0x8] sm:$0xff]
  %v34 = vld [vmem:[%s0 + $0x10] sm:$0xff]
  %v35 = vld [vmem:[%s0 + $0x18] sm:$0xff]
  %v36 = vld [vmem:[%s1] sm:$0xff]
  %v37 = vld [vmem:[%s1 + $0x8] sm:$0xff]
  %v38 = vld [vmem:[%s1 + $0x10] sm:$0xff]
  %v39 = vld [vmem:[%s1 + $0x18] sm:$0xff]
  %v40 = vld [vmem:[%s1 + $0x20] sm:$0xff]
  %v41 = vld [vmem:[%s1 + $0x28] sm:$0xff]
  %v42 = vlaneseq
  %v43 = vshrl.u32 %v42, 7
  %v44 = vadd.s32 %v43, 8
  %v45 = vlaneseq
  %v46 = vand.u32 %v45, 127
  %vm47 = vcmp.le.s32.totalorder %v46, %v43
  %vm48 = vcmp.le.s32.totalorder %v46, %v44
  %v49 = vsel %vm47, 0.0, -1e+30
  %v50 = vsel %vm48, 0.0, -1e+30
  %v51 = vld [vmem:[%s6] sm:$0xff]
  %v52 = vld [vmem:[%s6 + $0x8] sm:$0x7]
  %v53 = vld [vmem:[%s2] sm:$0xff]
  %v54 = vld [vmem:[%s2 + $0x8] sm:$0xff]
  %v55 = vld [vmem:[%s2 + $0x10] sm:$0xff]
  %v56 = vld [vmem:[%s2 + $0x18] sm:$0xff]
  %v57 = vlaneseq
  %v58 = vshrl.u32 %v57, 7
  %v59 = vsub.s32 0, %v58
  %v60 = vrot.slane %v51, %v59
  %vm61 = vcmask 261120
  %v63 = vsel %vm61, %v32, 0
  %v66 = vsel %vm61, %v33, 0
  %v69 = vsel %vm61, %v34, 0
  %v72 = vsel %vm61, %v35, 0
  %74 = vmatprep.subr.mxu0 0.0
  %75 = vmatpush1.msra.mxu0 %v53
  %76 = vmatprep.subr.mxu0 0.0
  %77 = vmatpush1.msra.mxu0 %v54
  %78 = vmatprep.subr.mxu0 0.0
  %79 = vmatpush1.msra.mxu0 %v55
  %80 = vmatprep.subr.mxu0 0.0
  %81 = vmatpush1.msra.mxu0 %v56
  %82 = vmatprep.subr.mxu0 0.0
  %83 = vmatpush1.msra.mxu0 0.0
  %84 = vmatprep.subr.mxu0 0.0
  %85 = vmatpush1.msra.mxu0 0.0
  %86 = vmatprep.subr.mxu0 0.0
  %87 = vmatpush1.msra.mxu0 0.0
  %88 = vmatprep.subr.mxu0 0.0
  %89 = vmatpush1.msra.mxu0 0.0
  %90 = vmatprep.subr.mxu0 0.0
  %91 = vmatpush1.msra.mxu0 0.0
  %92 = vmatprep.subr.mxu0 0.0
  %93 = vmatpush1.msra.mxu0 0.0
  %94 = vmatprep.subr.mxu0 0.0
  %95 = vmatpush1.msra.mxu0 0.0
  %96 = vmatprep.subr.mxu0 0.0
  %97 = vmatpush1.msra.mxu0 0.0
  %98 = vmatprep.subr.mxu0 0.0
  %99 = vmatpush1.msra.mxu0 0.0
  %100 = vmatprep.subr.mxu0 0.0
  %101 = vmatpush1.msra.mxu0 0.0
  %102 = vmatprep.subr.mxu0 0.0
  %103 = vmatpush1.msra.mxu0 0.0
  %104 = vmatprep.subr.mxu0 0.0
  %105 = vmatpush1.msra.mxu0 0.0
  %106 = vmatprep.subr.mxu0 0.0
  %107 = vmatpush1.msra.mxu0 0.0
  %108 = vmatprep.subr.mxu0 0.0
  %109 = vmatpush1.msra.mxu0 0.0
  %110 = vmatprep.subr.mxu0 0.0
  %111 = vmatpush1.msra.mxu0 0.0
  %112 = vmatprep.subr.mxu0 0.0
  %113 = vmatpush1.msra.mxu0 0.0
  %114 = vmatprep.subr.mxu0 0.0
  %115 = vmatpush1.msra.mxu0 0.0
  %116 = vmatprep.subr.mxu0 0.0
  %117 = vmatpush1.msra.mxu0 0.0
  %118 = vmatprep.subr.mxu0 0.0
  %119 = vmatpush1.msra.mxu0 0.0
  %120 = vmatprep.subr.mxu0 0.0
  %121 = vmatpush1.msra.mxu0 0.0
  %122 = vmatprep.subr.mxu0 0.0
  %123 = vmatpush1.msra.mxu0 0.0
  %124 = vmatprep.subr.mxu0 0.0
  %125 = vmatpush1.msra.mxu0 0.0
  %126 = vmatprep.subr.mxu0 0.0
  %127 = vmatpush1.msra.mxu0 0.0
  %128 = vmatprep.subr.mxu0 0.0
  %129 = vmatpush1.msra.mxu0 0.0
  %130 = vmatprep.subr.mxu0 0.0
  %131 = vmatpush1.msra.mxu0 0.0
  %132 = vmatprep.subr.mxu0 0.0
  %133 = vmatpush1.msra.mxu0 0.0
  %134 = vmatprep.subr.mxu0 0.0
  %135 = vmatpush1.msra.mxu0 0.0
  %136 = vmatprep.subr.mxu0 0.0
  %137 = vmatpush1.msra.mxu0 0.0
  %138 = vmatprep.mubr.f32.mxu0 0.0
  %139 = vmatmul.mubr.f32.gmra.mrb[0].mxu0 %v63
  %v140 = vpop.f32.mrb[0].mxu0
  %v141 = vadd.f32 %v60, %v140
  %v142 = vpop.f32.mrb[0].mxu0
  %143 = vmatprep.mubr.f32.mxu0 0.0
  %144 = vmatmul.mubr.f32.gmra.mrb[0].mxu0 %v66
  %v145 = vpop.f32.mrb[0].mxu0
  %v146 = vadd.f32 %v60, %v145
  %v147 = vpop.f32.mrb[0].mxu0
  %148 = vmatprep.mubr.f32.mxu0 0.0
  %149 = vmatmul.mubr.f32.gmra.mrb[0].mxu0 %v69
  %v150 = vpop.f32.mrb[0].mxu0
  %v151 = vadd.f32 %v60, %v150
  %v152 = vpop.f32.mrb[0].mxu0
  %153 = vmatprep.mubr.f32.mxu0 0.0
  %154 = vmatmul.mubr.f32.gmra.mrb[0].mxu0 %v72
  %v155 = vpop.f32.mrb[0].mxu0
  %v156 = vadd.f32 %v60, %v155
  %v157 = vpop.f32.mrb[0].mxu0
  %158 = vdwg.mxu0
  %v159 = vld [vmem:[%s3] sm:$0xff]
  %v160 = vld [vmem:[%s3 + $0x8] sm:$0xff]
  %v161 = vld [vmem:[%s3 + $0x10] sm:$0xff]
  %v162 = vld [vmem:[%s3 + $0x18] sm:$0xff]
  %165 = vrot.lane.b32.xlu0 %v141, 96
  %v166 = vpop.permute.xlu0 %165
  %167 = vrot.lane.b32.xlu0 %v146, 96
  %v168 = vpop.permute.xlu0 %167
  %vm169 = vcmask 64512
  %v170 = vsel %vm169, %v141, 0
  %v172 = vsel %vm169, %v146, 0
  %v174 = vsel %vm169, %v166, 0
  %v176 = vsel %vm169, %v168, 0
  %178 = vmatprep.subr.mxu0 0.0
  %179 = vmatpush1.xpose.msra.mxu0 %v174
  %180 = vmatprep.subr.mxu0 0.0
  %181 = vmatpush1.xpose.msra.mxu0 %v176
  %182 = vmatprep.subr.mxu0 0.0
  %183 = vmatpush1.xpose.msra.mxu0 0.0
  %184 = vmatprep.subr.mxu0 0.0
  %185 = vmatpush1.xpose.msra.mxu0 0.0
  %186 = vmatprep.subr.mxu0 0.0
  %187 = vmatpush1.xpose.msra.mxu0 0.0
  %188 = vmatprep.subr.mxu0 0.0
  %189 = vmatpush1.xpose.msra.mxu0 0.0
  %190 = vmatprep.subr.mxu0 0.0
  %191 = vmatpush1.xpose.msra.mxu0 0.0
  %192 = vmatprep.subr.mxu0 0.0
  %193 = vmatpush1.xpose.msra.mxu0 0.0
  %194 = vmatprep.subr.mxu0 0.0
  %195 = vmatpush1.xpose.msra.mxu0 0.0
  %196 = vmatprep.subr.mxu0 0.0
  %197 = vmatpush1.xpose.msra.mxu0 0.0
  %198 = vmatprep.subr.mxu0 0.0
  %199 = vmatpush1.xpose.msra.mxu0 0.0
  %200 = vmatprep.subr.mxu0 0.0
  %201 = vmatpush1.xpose.msra.mxu0 0.0
  %202 = vmatprep.subr.mxu0 0.0
  %203 = vmatpush1.xpose.msra.mxu0 0.0
  %204 = vmatprep.subr.mxu0 0.0
  %205 = vmatpush1.xpose.msra.mxu0 0.0
  %206 = vmatprep.subr.mxu0 0.0
  %207 = vmatpush1.xpose.msra.mxu0 0.0
  %208 = vmatprep.subr.mxu0 0.0
  %209 = vmatpush1.xpose.msra.mxu0 0.0
  %210 = vmatprep.subr.mxu0 0.0
  %211 = vmatpush1.xpose.msra.mxu0 0.0
  %212 = vmatprep.subr.mxu0 0.0
  %213 = vmatpush1.xpose.msra.mxu0 0.0
  %214 = vmatprep.subr.mxu0 0.0
  %215 = vmatpush1.xpose.msra.mxu0 0.0
  %216 = vmatprep.subr.mxu0 0.0
  %217 = vmatpush1.xpose.msra.mxu0 0.0
  %218 = vmatprep.subr.mxu0 0.0
  %219 = vmatpush1.xpose.msra.mxu0 0.0
  %220 = vmatprep.subr.mxu0 0.0
  %221 = vmatpush1.xpose.msra.mxu0 0.0
  %222 = vmatprep.subr.mxu0 0.0
  %223 = vmatpush1.xpose.msra.mxu0 0.0
  %224 = vmatprep.subr.mxu0 0.0
  %225 = vmatpush1.xpose.msra.mxu0 0.0
  %226 = vmatprep.subr.mxu0 0.0
  %227 = vmatpush1.xpose.msra.mxu0 0.0
  %228 = vmatprep.subr.mxu0 0.0
  %229 = vmatpush1.xpose.msra.mxu0 0.0
  %230 = vmatprep.subr.mxu0 0.0
  %231 = vmatpush1.xpose.msra.mxu0 0.0
  %232 = vmatprep.subr.mxu0 0.0
  %233 = vmatpush1.xpose.msra.mxu0 0.0
  %234 = vmatprep.subr.mxu0 0.0
  %235 = vmatpush1.xpose.msra.mxu0 0.0
  %236 = vmatprep.subr.mxu0 0.0
  %237 = vmatpush1.xpose.msra.mxu0 0.0
  %238 = vmatprep.subr.mxu0 0.0
  %239 = vmatpush1.xpose.msra.mxu0 0.0
  %240 = vmatprep.subr.mxu0 0.0
  %241 = vmatpush1.xpose.msra.mxu0 0.0
  %242 = vmatprep.mubr.f32.mxu0 0.0
  %243 = vmatmul.mubr.f32.gmra.mrb[0].mxu0 %v170
  %v244 = vpop.f32.mrb[0].mxu0
  %v245 = vadd.f32 %v49, %v244
  %v246 = vpop.f32.mrb[0].mxu0
  %247 = vmatprep.mubr.f32.mxu0 0.0
  %248 = vmatmul.mubr.f32.gmra.mrb[0].mxu0 %v172
  %v249 = vpop.f32.mrb[0].mxu0
  %v250 = vadd.f32 %v50, %v249
  %v251 = vpop.f32.mrb[0].mxu0
  %252 = vdwg.mxu0
  %255 = vrot.lane.b32.xlu0 %v151, 96
  %v256 = vpop.permute.xlu0 %255
  %257 = vrot.lane.b32.xlu0 %v156, 96
  %v258 = vpop.permute.xlu0 %257
  %v259 = vsel %vm169, %v151, 0
  %v261 = vsel %vm169, %v156, 0
  %v263 = vsel %vm169, %v256, 0
  %v265 = vsel %vm169, %v258, 0
  %267 = vmatprep.subr.mxu0 0.0
  %268 = vmatpush1.xpose.msra.mxu0 %v263
  %269 = vmatprep.subr.mxu0 0.0
  %270 = vmatpush1.xpose.msra.mxu0 %v265
  %271 = vmatprep.subr.mxu0 0.0
  %272 = vmatpush1.xpose.msra.mxu0 0.0
  %273 = vmatprep.subr.mxu0 0.0
  %274 = vmatpush1.xpose.msra.mxu0 0.0
  %275 = vmatprep.subr.mxu0 0.0
  %276 = vmatpush1.xpose.msra.mxu0 0.0
  %277 = vmatprep.subr.mxu0 0.0
  %278 = vmatpush1.xpose.msra.mxu0 0.0
  %279 = vmatprep.subr.mxu0 0.0
  %280 = vmatpush1.xpose.msra.mxu0 0.0
  %281 = vmatprep.subr.mxu0 0.0
  %282 = vmatpush1.xpose.msra.mxu0 0.0
  %283 = vmatprep.subr.mxu0 0.0
  %284 = vmatpush1.xpose.msra.mxu0 0.0
  %285 = vmatprep.subr.mxu0 0.0
  %286 = vmatpush1.xpose.msra.mxu0 0.0
  %287 = vmatprep.subr.mxu0 0.0
  %288 = vmatpush1.xpose.msra.mxu0 0.0
  %289 = vmatprep.subr.mxu0 0.0
  %290 = vmatpush1.xpose.msra.mxu0 0.0
  %291 = vmatprep.subr.mxu0 0.0
  %292 = vmatpush1.xpose.msra.mxu0 0.0
  %293 = vmatprep.subr.mxu0 0.0
  %294 = vmatpush1.xpose.msra.mxu0 0.0
  %295 = vmatprep.subr.mxu0 0.0
  %296 = vmatpush1.xpose.msra.mxu0 0.0
  %297 = vmatprep.subr.mxu0 0.0
  %298 = vmatpush1.xpose.msra.mxu0 0.0
  %299 = vmatprep.subr.mxu0 0.0
  %300 = vmatpush1.xpose.msra.mxu0 0.0
  %301 = vmatprep.subr.mxu0 0.0
  %302 = vmatpush1.xpose.msra.mxu0 0.0
  %303 = vmatprep.subr.mxu0 0.0
  %304 = vmatpush1.xpose.msra.mxu0 0.0
  %305 = vmatprep.subr.mxu0 0.0
  %306 = vmatpush1.xpose.msra.mxu0 0.0
  %307 = vmatprep.subr.mxu0 0.0
  %308 = vmatpush1.xpose.msra.mxu0 0.0
  %309 = vmatprep.subr.mxu0 0.0
  %310 = vmatpush1.xpose.msra.mxu0 0.0
  %311 = vmatprep.subr.mxu0 0.0
  %312 = vmatpush1.xpose.msra.mxu0 0.0
  %313 = vmatprep.subr.mxu0 0.0
  %314 = vmatpush1.xpose.msra.mxu0 0.0
  %315 = vmatprep.subr.mxu0 0.0
  %316 = vmatpush1.xpose.msra.mxu0 0.0
  %317 = vmatprep.subr.mxu0 0.0
  %318 = vmatpush1.xpose.msra.mxu0 0.0
  %319 = vmatprep.subr.mxu0 0.0
  %320 = vmatpush1.xpose.msra.mxu0 0.0
  %321 = vmatprep.subr.mxu0 0.0
  %322 = vmatpush1.xpose.msra.mxu0 0.0
  %323 = vmatprep.subr.mxu0 0.0
  %324 = vmatpush1.xpose.msra.mxu0 0.0
  %325 = vmatprep.subr.mxu0 0.0
  %326 = vmatpush1.xpose.msra.mxu0 0.0
  %327 = vmatprep.subr.mxu0 0.0
  %328 = vmatpush1.xpose.msra.mxu0 0.0
  %329 = vmatprep.subr.mxu0 0.0
  %330 = vmatpush1.xpose.msra.mxu0 0.0
  %331 = vmatprep.mubr.f32.mxu0 0.0
  %332 = vmatmul.mubr.f32.gmra.mrb[0].mxu0 %v259
  %v333 = vpop.f32.mrb[0].mxu0
  %v334 = vadd.f32 %v49, %v333
  %v335 = vpop.f32.mrb[0].mxu0
  %336 = vmatprep.mubr.f32.mxu0 0.0
  %337 = vmatmul.mubr.f32.gmra.mrb[0].mxu0 %v261
  %v338 = vpop.f32.mrb[0].mxu0
  %v339 = vadd.f32 %v50, %v338
  %v340 = vpop.f32.mrb[0].mxu0
  %341 = vdwg.mxu0
  %vm342 = vcmask 130048
  %v343 = vsel %vm342, %v245, -inf
  %344 = vmax.xlane.f32.xlu0 %v343
  %v345 = vpop.xlane.xlu0 %344
  %v346 = vsel %vm342, %v250, -inf
  %347 = vmax.xlane.f32.xlu0 %v346
  %v348 = vpop.xlane.xlu0 %347
  %v349 = vsel %vm342, %v334, -inf
  %350 = vmax.xlane.f32.xlu0 %v349
  %v351 = vpop.xlane.xlu0 %350
  %v352 = vsel %vm342, %v339, -inf
  %353 = vmax.xlane.f32.xlu0 %v352
  %v354 = vpop.xlane.xlu0 %353
  %v355 = vsub.f32 %v245, %v345
  %v356 = vsub.f32 %v250, %v348
  %v357 = vsub.f32 %v334, %v351
  %v358 = vsub.f32 %v339, %v354
  %v359 = vmul.f32 %v355, 1.442695
  %v360 = vpow.pop %v359
  %v361 = vmul.f32 %v356, 1.442695
  %v362 = vpow.pop %v361
  %v363 = vmul.f32 %v357, 1.442695
  %v364 = vpow.pop %v363
  %v365 = vmul.f32 %v358, 1.442695
  %v366 = vpow.pop %v365
  %v367 = vsel %vm342, %v360, 0.0
  %368 = vadd.xlane.f32.xlu0 %v367
  %v369 = vpop.xlane.xlu0 %368
  %v370 = vsel %vm342, %v362, 0.0
  %371 = vadd.xlane.f32.xlu0 %v370
  %v372 = vpop.xlane.xlu0 %371
  %v373 = vsel %vm342, %v364, 0.0
  %374 = vadd.xlane.f32.xlu0 %v373
  %v375 = vpop.xlane.xlu0 %374
  %v376 = vsel %vm342, %v366, 0.0
  %377 = vadd.xlane.f32.xlu0 %v376
  %v378 = vpop.xlane.xlu0 %377
  %v379 = vrcp.pop %v369
  %v380 = vrcp.pop %v372
  %v381 = vrcp.pop %v375
  %v382 = vrcp.pop %v378
  %v383 = vmul.f32 %v360, %v379
  %v384 = vmul.f32 %v362, %v380
  %v385 = vmul.f32 %v364, %v381
  %v386 = vmul.f32 %v366, %v382
  %387 = vrot.lane.b32.xlu0 %v141, 64
  %v388 = vpop.permute.xlu0 %387
  %389 = vrot.lane.b32.xlu0 %v146, 64
  %v390 = vpop.permute.xlu0 %389
  %v394 = vsel %vm342, %v383, 0
  %v397 = vsel %vm342, %v384, 0
  %399 = vmatprep.subr.mxu0 0.0
  %400 = vmatpush1.msra.mxu0 %v388
  %401 = vmatprep.subr.mxu0 0.0
  %402 = vmatpush1.msra.mxu0 %v390
  %403 = vmatprep.subr.mxu0 0.0
  %404 = vmatpush1.msra.mxu0 0.0
  %405 = vmatprep.subr.mxu0 0.0
  %406 = vmatpush1.msra.mxu0 0.0
  %407 = vmatprep.subr.mxu0 0.0
  %408 = vmatpush1.msra.mxu0 0.0
  %409 = vmatprep.subr.mxu0 0.0
  %410 = vmatpush1.msra.mxu0 0.0
  %411 = vmatprep.subr.mxu0 0.0
  %412 = vmatpush1.msra.mxu0 0.0
  %413 = vmatprep.subr.mxu0 0.0
  %414 = vmatpush1.msra.mxu0 0.0
  %415 = vmatprep.subr.mxu0 0.0
  %416 = vmatpush1.msra.mxu0 0.0
  %417 = vmatprep.subr.mxu0 0.0
  %418 = vmatpush1.msra.mxu0 0.0
  %419 = vmatprep.subr.mxu0 0.0
  %420 = vmatpush1.msra.mxu0 0.0
  %421 = vmatprep.subr.mxu0 0.0
  %422 = vmatpush1.msra.mxu0 0.0
  %423 = vmatprep.subr.mxu0 0.0
  %424 = vmatpush1.msra.mxu0 0.0
  %425 = vmatprep.subr.mxu0 0.0
  %426 = vmatpush1.msra.mxu0 0.0
  %427 = vmatprep.subr.mxu0 0.0
  %428 = vmatpush1.msra.mxu0 0.0
  %429 = vmatprep.subr.mxu0 0.0
  %430 = vmatpush1.msra.mxu0 0.0
  %431 = vmatprep.subr.mxu0 0.0
  %432 = vmatpush1.msra.mxu0 0.0
  %433 = vmatprep.subr.mxu0 0.0
  %434 = vmatpush1.msra.mxu0 0.0
  %435 = vmatprep.subr.mxu0 0.0
  %436 = vmatpush1.msra.mxu0 0.0
  %437 = vmatprep.subr.mxu0 0.0
  %438 = vmatpush1.msra.mxu0 0.0
  %439 = vmatprep.subr.mxu0 0.0
  %440 = vmatpush1.msra.mxu0 0.0
  %441 = vmatprep.subr.mxu0 0.0
  %442 = vmatpush1.msra.mxu0 0.0
  %443 = vmatprep.subr.mxu0 0.0
  %444 = vmatpush1.msra.mxu0 0.0
  %445 = vmatprep.subr.mxu0 0.0
  %446 = vmatpush1.msra.mxu0 0.0
  %447 = vmatprep.subr.mxu0 0.0
  %448 = vmatpush1.msra.mxu0 0.0
  %449 = vmatprep.subr.mxu0 0.0
  %450 = vmatpush1.msra.mxu0 0.0
  %451 = vmatprep.subr.mxu0 0.0
  %452 = vmatpush1.msra.mxu0 0.0
  %453 = vmatprep.subr.mxu0 0.0
  %454 = vmatpush1.msra.mxu0 0.0
  %455 = vmatprep.subr.mxu0 0.0
  %456 = vmatpush1.msra.mxu0 0.0
  %457 = vmatprep.subr.mxu0 0.0
  %458 = vmatpush1.msra.mxu0 0.0
  %459 = vmatprep.subr.mxu0 0.0
  %460 = vmatpush1.msra.mxu0 0.0
  %461 = vmatprep.subr.mxu0 0.0
  %462 = vmatpush1.msra.mxu0 0.0
  %463 = vmatprep.mubr.f32.mxu0 0.0
  %464 = vmatmul.mubr.f32.gmra.mrb[0].mxu0 %v394
  %v465 = vpop.f32.mrb[0].mxu0
  %v466 = vadd.f32 0.0, %v465
  %v467 = vpop.f32.mrb[0].mxu0
  %468 = vmatprep.mubr.f32.mxu0 0.0
  %469 = vmatmul.mubr.f32.gmra.mrb[0].mxu0 %v397
  %v470 = vpop.f32.mrb[0].mxu0
  %v471 = vadd.f32 0.0, %v470
  %v472 = vpop.f32.mrb[0].mxu0
  %473 = vdwg.mxu0
  %474 = vrot.lane.b32.xlu0 %v151, 64
  %v475 = vpop.permute.xlu0 %474
  %476 = vrot.lane.b32.xlu0 %v156, 64
  %v477 = vpop.permute.xlu0 %476
  %v481 = vsel %vm342, %v385, 0
  %v484 = vsel %vm342, %v386, 0
  %486 = vmatprep.subr.mxu0 0.0
  %487 = vmatpush1.msra.mxu0 %v475
  %488 = vmatprep.subr.mxu0 0.0
  %489 = vmatpush1.msra.mxu0 %v477
  %490 = vmatprep.subr.mxu0 0.0
  %491 = vmatpush1.msra.mxu0 0.0
  %492 = vmatprep.subr.mxu0 0.0
  %493 = vmatpush1.msra.mxu0 0.0
  %494 = vmatprep.subr.mxu0 0.0
  %495 = vmatpush1.msra.mxu0 0.0
  %496 = vmatprep.subr.mxu0 0.0
  %497 = vmatpush1.msra.mxu0 0.0
  %498 = vmatprep.subr.mxu0 0.0
  %499 = vmatpush1.msra.mxu0 0.0
  %500 = vmatprep.subr.mxu0 0.0
  %501 = vmatpush1.msra.mxu0 0.0
  %502 = vmatprep.subr.mxu0 0.0
  %503 = vmatpush1.msra.mxu0 0.0
  %504 = vmatprep.subr.mxu0 0.0
  %505 = vmatpush1.msra.mxu0 0.0
  %506 = vmatprep.subr.mxu0 0.0
  %507 = vmatpush1.msra.mxu0 0.0
  %508 = vmatprep.subr.mxu0 0.0
  %509 = vmatpush1.msra.mxu0 0.0
  %510 = vmatprep.subr.mxu0 0.0
  %511 = vmatpush1.msra.mxu0 0.0
  %512 = vmatprep.subr.mxu0 0.0
  %513 = vmatpush1.msra.mxu0 0.0
  %514 = vmatprep.subr.mxu0 0.0
  %515 = vmatpush1.msra.mxu0 0.0
  %516 = vmatprep.subr.mxu0 0.0
  %517 = vmatpush1.msra.mxu0 0.0
  %518 = vmatprep.subr.mxu0 0.0
  %519 = vmatpush1.msra.mxu0 0.0
  %520 = vmatprep.subr.mxu0 0.0
  %521 = vmatpush1.msra.mxu0 0.0
  %522 = vmatprep.subr.mxu0 0.0
  %523 = vmatpush1.msra.mxu0 0.0
  %524 = vmatprep.subr.mxu0 0.0
  %525 = vmatpush1.msra.mxu0 0.0
  %526 = vmatprep.subr.mxu0 0.0
  %527 = vmatpush1.msra.mxu0 0.0
  %528 = vmatprep.subr.mxu0 0.0
  %529 = vmatpush1.msra.mxu0 0.0
  %530 = vmatprep.subr.mxu0 0.0
  %531 = vmatpush1.msra.mxu0 0.0
  %532 = vmatprep.subr.mxu0 0.0
  %533 = vmatpush1.msra.mxu0 0.0
  %534 = vmatprep.subr.mxu0 0.0
  %535 = vmatpush1.msra.mxu0 0.0
  %536 = vmatprep.subr.mxu0 0.0
  %537 = vmatpush1.msra.mxu0 0.0
  %538 = vmatprep.subr.mxu0 0.0
  %539 = vmatpush1.msra.mxu0 0.0
  %540 = vmatprep.subr.mxu0 0.0
  %541 = vmatpush1.msra.mxu0 0.0
  %542 = vmatprep.subr.mxu0 0.0
  %543 = vmatpush1.msra.mxu0 0.0
  %544 = vmatprep.subr.mxu0 0.0
  %545 = vmatpush1.msra.mxu0 0.0
  %546 = vmatprep.subr.mxu0 0.0
  %547 = vmatpush1.msra.mxu0 0.0
  %548 = vmatprep.subr.mxu0 0.0
  %549 = vmatpush1.msra.mxu0 0.0
  %550 = vmatprep.mubr.f32.mxu0 0.0
  %551 = vmatmul.mubr.f32.gmra.mrb[0].mxu0 %v481
  %v552 = vpop.f32.mrb[0].mxu0
  %v553 = vadd.f32 0.0, %v552
  %v554 = vpop.f32.mrb[0].mxu0
  %555 = vmatprep.mubr.f32.mxu0 0.0
  %556 = vmatmul.mubr.f32.gmra.mrb[0].mxu0 %v484
  %v557 = vpop.f32.mrb[0].mxu0
  %v558 = vadd.f32 0.0, %v557
  %v559 = vpop.f32.mrb[0].mxu0
  %560 = vdwg.mxu0
  %561 = vst.msk [vmem:[#allocation2] sm:$0xff] %vm169, %v466
  %562 = vst.msk [vmem:[#allocation2 + $0x8] sm:$0xff] %vm169, %v471
  %563 = vst.msk [vmem:[#allocation2 + $0x10] sm:$0xff] %vm169, %v553
  %564 = vst.msk [vmem:[#allocation2 + $0x18] sm:$0xff] %vm169, %v558
  %565 = vrot.lane.b32.xlu0 %v141, 120
  %v566 = vpop.permute.xlu0 %565
  %567 = vrot.lane.b32.xlu0 %v146, 120
  %v568 = vpop.permute.xlu0 %567
  %569 = vrot.lane.b32.xlu0 %v141, 88
  %v570 = vpop.permute.xlu0 %569
  %571 = vrot.lane.b32.xlu0 %v146, 88
  %v572 = vpop.permute.xlu0 %571
  %v573 = vsel %vm169, %v566, 0
  %v575 = vsel %vm169, %v568, 0
  %v577 = vsel %vm169, %v570, 0
  %v579 = vsel %vm169, %v572, 0
  %581 = vmatprep.subr.mxu0 0.0
  %582 = vmatpush1.xpose.msra.mxu0 %v577
  %583 = vmatprep.subr.mxu0 0.0
  %584 = vmatpush1.xpose.msra.mxu0 %v579
  %585 = vmatprep.subr.mxu0 0.0
  %586 = vmatpush1.xpose.msra.mxu0 0.0
  %587 = vmatprep.subr.mxu0 0.0
  %588 = vmatpush1.xpose.msra.mxu0 0.0
  %589 = vmatprep.subr.mxu0 0.0
  %590 = vmatpush1.xpose.msra.mxu0 0.0
  %591 = vmatprep.subr.mxu0 0.0
  %592 = vmatpush1.xpose.msra.mxu0 0.0
  %593 = vmatprep.subr.mxu0 0.0
  %594 = vmatpush1.xpose.msra.mxu0 0.0
  %595 = vmatprep.subr.mxu0 0.0
  %596 = vmatpush1.xpose.msra.mxu0 0.0
  %597 = vmatprep.subr.mxu0 0.0
  %598 = vmatpush1.xpose.msra.mxu0 0.0
  %599 = vmatprep.subr.mxu0 0.0
  %600 = vmatpush1.xpose.msra.mxu0 0.0
  %601 = vmatprep.subr.mxu0 0.0
  %602 = vmatpush1.xpose.msra.mxu0 0.0
  %603 = vmatprep.subr.mxu0 0.0
  %604 = vmatpush1.xpose.msra.mxu0 0.0
  %605 = vmatprep.subr.mxu0 0.0
  %606 = vmatpush1.xpose.msra.mxu0 0.0
  %607 = vmatprep.subr.mxu0 0.0
  %608 = vmatpush1.xpose.msra.mxu0 0.0
  %609 = vmatprep.subr.mxu0 0.0
  %610 = vmatpush1.xpose.msra.mxu0 0.0
  %611 = vmatprep.subr.mxu0 0.0
  %612 = vmatpush1.xpose.msra.mxu0 0.0
  %613 = vmatprep.subr.mxu0 0.0
  %614 = vmatpush1.xpose.msra.mxu0 0.0
  %615 = vmatprep.subr.mxu0 0.0
  %616 = vmatpush1.xpose.msra.mxu0 0.0
  %617 = vmatprep.subr.mxu0 0.0
  %618 = vmatpush1.xpose.msra.mxu0 0.0
  %619 = vmatprep.subr.mxu0 0.0
  %620 = vmatpush1.xpose.msra.mxu0 0.0
  %621 = vmatprep.subr.mxu0 0.0
  %622 = vmatpush1.xpose.msra.mxu0 0.0
  %623 = vmatprep.subr.mxu0 0.0
  %624 = vmatpush1.xpose.msra.mxu0 0.0
  %625 = vmatprep.subr.mxu0 0.0
  %626 = vmatpush1.xpose.msra.mxu0 0.0
  %627 = vmatprep.subr.mxu0 0.0
  %628 = vmatpush1.xpose.msra.mxu0 0.0
  %629 = vmatprep.subr.mxu0 0.0
  %630 = vmatpush1.xpose.msra.mxu0 0.0
  %631 = vmatprep.subr.mxu0 0.0
  %632 = vmatpush1.xpose.msra.mxu0 0.0
  %633 = vmatprep.subr.mxu0 0.0
  %634 = vmatpush1.xpose.msra.mxu0 0.0
  %635 = vmatprep.subr.mxu0 0.0
  %636 = vmatpush1.xpose.msra.mxu0 0.0
  %637 = vmatprep.subr.mxu0 0.0
  %638 = vmatpush1.xpose.msra.mxu0 0.0
  %639 = vmatprep.subr.mxu0 0.0
  %640 = vmatpush1.xpose.msra.mxu0 0.0
  %641 = vmatprep.subr.mxu0 0.0
  %642 = vmatpush1.xpose.msra.mxu0 0.0
  %643 = vmatprep.subr.mxu0 0.0
  %644 = vmatpush1.xpose.msra.mxu0 0.0
  %645 = vmatprep.mubr.f32.mxu0 0.0
  %646 = vmatmul.mubr.f32.gmra.mrb[0].mxu0 %v573
  %v647 = vpop.f32.mrb[0].mxu0
  %v648 = vadd.f32 %v49, %v647
  %v649 = vpop.f32.mrb[0].mxu0
  %650 = vmatprep.mubr.f32.mxu0 0.0
  %651 = vmatmul.mubr.f32.gmra.mrb[0].mxu0 %v575
  %v652 = vpop.f32.mrb[0].mxu0
  %v653 = vadd.f32 %v50, %v652
  %v654 = vpop.f32.mrb[0].mxu0
  %655 = vdwg.mxu0
  %656 = vrot.lane.b32.xlu0 %v151, 120
  %v657 = vpop.permute.xlu0 %656
  %658 = vrot.lane.b32.xlu0 %v156, 120
  %v659 = vpop.permute.xlu0 %658
  %660 = vrot.lane.b32.xlu0 %v151, 88
  %v661 = vpop.permute.xlu0 %660
  %662 = vrot.lane.b32.xlu0 %v156, 88
  %v663 = vpop.permute.xlu0 %662
  %v664 = vsel %vm169, %v657, 0
  %v666 = vsel %vm169, %v659, 0
  %v668 = vsel %vm169, %v661, 0
  %v670 = vsel %vm169, %v663, 0
  %672 = vmatprep.subr.mxu0 0.0
  %673 = vmatpush1.xpose.msra.mxu0 %v668
  %674 = vmatprep.subr.mxu0 0.0
  %675 = vmatpush1.xpose.msra.mxu0 %v670
  %676 = vmatprep.subr.mxu0 0.0
  %677 = vmatpush1.xpose.msra.mxu0 0.0
  %678 = vmatprep.subr.mxu0 0.0
  %679 = vmatpush1.xpose.msra.mxu0 0.0
  %680 = vmatprep.subr.mxu0 0.0
  %681 = vmatpush1.xpose.msra.mxu0 0.0
  %682 = vmatprep.subr.mxu0 0.0
  %683 = vmatpush1.xpose.msra.mxu0 0.0
  %684 = vmatprep.subr.mxu0 0.0
  %685 = vmatpush1.xpose.msra.mxu0 0.0
  %686 = vmatprep.subr.mxu0 0.0
  %687 = vmatpush1.xpose.msra.mxu0 0.0
  %688 = vmatprep.subr.mxu0 0.0
  %689 = vmatpush1.xpose.msra.mxu0 0.0
  %690 = vmatprep.subr.mxu0 0.0
  %691 = vmatpush1.xpose.msra.mxu0 0.0
  %692 = vmatprep.subr.mxu0 0.0
  %693 = vmatpush1.xpose.msra.mxu0 0.0
  %694 = vmatprep.subr.mxu0 0.0
  %695 = vmatpush1.xpose.msra.mxu0 0.0
  %696 = vmatprep.subr.mxu0 0.0
  %697 = vmatpush1.xpose.msra.mxu0 0.0
  %698 = vmatprep.subr.mxu0 0.0
  %699 = vmatpush1.xpose.msra.mxu0 0.0
  %700 = vmatprep.subr.mxu0 0.0
  %701 = vmatpush1.xpose.msra.mxu0 0.0
  %702 = vmatprep.subr.mxu0 0.0
  %703 = vmatpush1.xpose.msra.mxu0 0.0
  %704 = vmatprep.subr.mxu0 0.0
  %705 = vmatpush1.xpose.msra.mxu0 0.0
  %706 = vmatprep.subr.mxu0 0.0
  %707 = vmatpush1.xpose.msra.mxu0 0.0
  %708 = vmatprep.subr.mxu0 0.0
  %709 = vmatpush1.xpose.msra.mxu0 0.0
  %710 = vmatprep.subr.mxu0 0.0
  %711 = vmatpush1.xpose.msra.mxu0 0.0
  %712 = vmatprep.subr.mxu0 0.0
  %713 = vmatpush1.xpose.msra.mxu0 0.0
  %714 = vmatprep.subr.mxu0 0.0
  %715 = vmatpush1.xpose.msra.mxu0 0.0
  %716 = vmatprep.subr.mxu0 0.0
  %717 = vmatpush1.xpose.msra.mxu0 0.0
  %718 = vmatprep.subr.mxu0 0.0
  %719 = vmatpush1.xpose.msra.mxu0 0.0
  %720 = vmatprep.subr.mxu0 0.0
  %721 = vmatpush1.xpose.msra.mxu0 0.0
  %722 = vmatprep.subr.mxu0 0.0
  %723 = vmatpush1.xpose.msra.mxu0 0.0
  %724 = vmatprep.subr.mxu0 0.0
  %725 = vmatpush1.xpose.msra.mxu0 0.0
  %726 = vmatprep.subr.mxu0 0.0
  %727 = vmatpush1.xpose.msra.mxu0 0.0
  %728 = vmatprep.subr.mxu0 0.0
  %729 = vmatpush1.xpose.msra.mxu0 0.0
  %730 = vmatprep.subr.mxu0 0.0
  %731 = vmatpush1.xpose.msra.mxu0 0.0
  %732 = vmatprep.subr.mxu0 0.0
  %733 = vmatpush1.xpose.msra.mxu0 0.0
  %734 = vmatprep.subr.mxu0 0.0
  %735 = vmatpush1.xpose.msra.mxu0 0.0
  %736 = vmatprep.mubr.f32.mxu0 0.0
  %737 = vmatmul.mubr.f32.gmra.mrb[0].mxu0 %v664
  %v738 = vpop.f32.mrb[0].mxu0
  %v739 = vadd.f32 %v49, %v738
  %v740 = vpop.f32.mrb[0].mxu0
  %741 = vmatprep.mubr.f32.mxu0 0.0
  %742 = vmatmul.mubr.f32.gmra.mrb[0].mxu0 %v666
  %v743 = vpop.f32.mrb[0].mxu0
  %v744 = vadd.f32 %v50, %v743
  %v745 = vpop.f32.mrb[0].mxu0
  %746 = vdwg.mxu0
  %v747 = vsel %vm342, %v648, -inf
  %748 = vmax.xlane.f32.xlu0 %v747
  %v749 = vpop.xlane.xlu0 %748
  %v750 = vsel %vm342, %v653, -inf
  %751 = vmax.xlane.f32.xlu0 %v750
  %v752 = vpop.xlane.xlu0 %751
  %v753 = vsel %vm342, %v739, -inf
  %754 = vmax.xlane.f32.xlu0 %v753
  %v755 = vpop.xlane.xlu0 %754
  %v756 = vsel %vm342, %v744, -inf
  %757 = vmax.xlane.f32.xlu0 %v756
  %v758 = vpop.xlane.xlu0 %757
  %v759 = vsub.f32 %v648, %v749
  %v760 = vsub.f32 %v653, %v752
  %v761 = vsub.f32 %v739, %v755
  %v762 = vsub.f32 %v744, %v758
  %v763 = vmul.f32 %v759, 1.442695
  %v764 = vpow.pop %v763
  %v765 = vmul.f32 %v760, 1.442695
  %v766 = vpow.pop %v765
  %v767 = vmul.f32 %v761, 1.442695
  %v768 = vpow.pop %v767
  %v769 = vmul.f32 %v762, 1.442695
  %v770 = vpow.pop %v769
  %v771 = vsel %vm342, %v764, 0.0
  %772 = vadd.xlane.f32.xlu0 %v771
  %v773 = vpop.xlane.xlu0 %772
  %v774 = vsel %vm342, %v766, 0.0
  %775 = vadd.xlane.f32.xlu0 %v774
  %v776 = vpop.xlane.xlu0 %775
  %v777 = vsel %vm342, %v768, 0.0
  %778 = vadd.xlane.f32.xlu0 %v777
  %v779 = vpop.xlane.xlu0 %778
  %v780 = vsel %vm342, %v770, 0.0
  %781 = vadd.xlane.f32.xlu0 %v780
  %v782 = vpop.xlane.xlu0 %781
  %v783 = vrcp.pop %v773
  %v784 = vrcp.pop %v776
  %v785 = vrcp.pop %v779
  %v786 = vrcp.pop %v782
  %v787 = vmul.f32 %v764, %v783
  %v788 = vmul.f32 %v766, %v784
  %v789 = vmul.f32 %v768, %v785
  %v790 = vmul.f32 %v770, %v786
  %791 = vrot.lane.b32.xlu0 %v141, 56
  %v792 = vpop.permute.xlu0 %791
  %793 = vrot.lane.b32.xlu0 %v146, 56
  %v794 = vpop.permute.xlu0 %793
  %v798 = vsel %vm342, %v787, 0
  %v801 = vsel %vm342, %v788, 0
  %803 = vmatprep.subr.mxu0 0.0
  %804 = vmatpush1.msra.mxu0 %v792
  %805 = vmatprep.subr.mxu0 0.0
  %806 = vmatpush1.msra.mxu0 %v794
  %807 = vmatprep.subr.mxu0 0.0
  %808 = vmatpush1.msra.mxu0 0.0
  %809 = vmatprep.subr.mxu0 0.0
  %810 = vmatpush1.msra.mxu0 0.0
  %811 = vmatprep.subr.mxu0 0.0
  %812 = vmatpush1.msra.mxu0 0.0
  %813 = vmatprep.subr.mxu0 0.0
  %814 = vmatpush1.msra.mxu0 0.0
  %815 = vmatprep.subr.mxu0 0.0
  %816 = vmatpush1.msra.mxu0 0.0
  %817 = vmatprep.subr.mxu0 0.0
  %818 = vmatpush1.msra.mxu0 0.0
  %819 = vmatprep.subr.mxu0 0.0
  %820 = vmatpush1.msra.mxu0 0.0
  %821 = vmatprep.subr.mxu0 0.0
  %822 = vmatpush1.msra.mxu0 0.0
  %823 = vmatprep.subr.mxu0 0.0
  %824 = vmatpush1.msra.mxu0 0.0
  %825 = vmatprep.subr.mxu0 0.0
  %826 = vmatpush1.msra.mxu0 0.0
  %827 = vmatprep.subr.mxu0 0.0
  %828 = vmatpush1.msra.mxu0 0.0
  %829 = vmatprep.subr.mxu0 0.0
  %830 = vmatpush1.msra.mxu0 0.0
  %831 = vmatprep.subr.mxu0 0.0
  %832 = vmatpush1.msra.mxu0 0.0
  %833 = vmatprep.subr.mxu0 0.0
  %834 = vmatpush1.msra.mxu0 0.0
  %835 = vmatprep.subr.mxu0 0.0
  %836 = vmatpush1.msra.mxu0 0.0
  %837 = vmatprep.subr.mxu0 0.0
  %838 = vmatpush1.msra.mxu0 0.0
  %839 = vmatprep.subr.mxu0 0.0
  %840 = vmatpush1.msra.mxu0 0.0
  %841 = vmatprep.subr.mxu0 0.0
  %842 = vmatpush1.msra.mxu0 0.0
  %843 = vmatprep.subr.mxu0 0.0
  %844 = vmatpush1.msra.mxu0 0.0
  %845 = vmatprep.subr.mxu0 0.0
  %846 = vmatpush1.msra.mxu0 0.0
  %847 = vmatprep.subr.mxu0 0.0
  %848 = vmatpush1.msra.mxu0 0.0
  %849 = vmatprep.subr.mxu0 0.0
  %850 = vmatpush1.msra.mxu0 0.0
  %851 = vmatprep.subr.mxu0 0.0
  %852 = vmatpush1.msra.mxu0 0.0
  %853 = vmatprep.subr.mxu0 0.0
  %854 = vmatpush1.msra.mxu0 0.0
  %855 = vmatprep.subr.mxu0 0.0
  %856 = vmatpush1.msra.mxu0 0.0
  %857 = vmatprep.subr.mxu0 0.0
  %858 = vmatpush1.msra.mxu0 0.0
  %859 = vmatprep.subr.mxu0 0.0
  %860 = vmatpush1.msra.mxu0 0.0
  %861 = vmatprep.subr.mxu0 0.0
  %862 = vmatpush1.msra.mxu0 0.0
  %863 = vmatprep.subr.mxu0 0.0
  %864 = vmatpush1.msra.mxu0 0.0
  %865 = vmatprep.subr.mxu0 0.0
  %866 = vmatpush1.msra.mxu0 0.0
  %867 = vmatprep.mubr.f32.mxu0 0.0
  %868 = vmatmul.mubr.f32.gmra.mrb[0].mxu0 %v798
  %v869 = vpop.f32.mrb[0].mxu0
  %v870 = vadd.f32 0.0, %v869
  %v871 = vpop.f32.mrb[0].mxu0
  %872 = vmatprep.mubr.f32.mxu0 0.0
  %873 = vmatmul.mubr.f32.gmra.mrb[0].mxu0 %v801
  %v874 = vpop.f32.mrb[0].mxu0
  %v875 = vadd.f32 0.0, %v874
  %v876 = vpop.f32.mrb[0].mxu0
  %877 = vdwg.mxu0
  %878 = vrot.lane.b32.xlu0 %v151, 56
  %v879 = vpop.permute.xlu0 %878
  %880 = vrot.lane.b32.xlu0 %v156, 56
  %v881 = vpop.permute.xlu0 %880
  %v885 = vsel %vm342, %v789, 0
  %v888 = vsel %vm342, %v790, 0
  %890 = vmatprep.subr.mxu0 0.0
  %891 = vmatpush1.msra.mxu0 %v879
  %892 = vmatprep.subr.mxu0 0.0
  %893 = vmatpush1.msra.mxu0 %v881
  %894 = vmatprep.subr.mxu0 0.0
  %895 = vmatpush1.msra.mxu0 0.0
  %896 = vmatprep.subr.mxu0 0.0
  %897 = vmatpush1.msra.mxu0 0.0
  %898 = vmatprep.subr.mxu0 0.0
  %899 = vmatpush1.msra.mxu0 0.0
  %900 = vmatprep.subr.mxu0 0.0
  %901 = vmatpush1.msra.mxu0 0.0
  %902 = vmatprep.subr.mxu0 0.0
  %903 = vmatpush1.msra.mxu0 0.0
  %904 = vmatprep.subr.mxu0 0.0
  %905 = vmatpush1.msra.mxu0 0.0
  %906 = vmatprep.subr.mxu0 0.0
  %907 = vmatpush1.msra.mxu0 0.0
  %908 = vmatprep.subr.mxu0 0.0
  %909 = vmatpush1.msra.mxu0 0.0
  %910 = vmatprep.subr.mxu0 0.0
  %911 = vmatpush1.msra.mxu0 0.0
  %912 = vmatprep.subr.mxu0 0.0
  %913 = vmatpush1.msra.mxu0 0.0
  %914 = vmatprep.subr.mxu0 0.0
  %915 = vmatpush1.msra.mxu0 0.0
  %916 = vmatprep.subr.mxu0 0.0
  %917 = vmatpush1.msra.mxu0 0.0
  %918 = vmatprep.subr.mxu0 0.0
  %919 = vmatpush1.msra.mxu0 0.0
  %920 = vmatprep.subr.mxu0 0.0
  %921 = vmatpush1.msra.mxu0 0.0
  %922 = vmatprep.subr.mxu0 0.0
  %923 = vmatpush1.msra.mxu0 0.0
  %924 = vmatprep.subr.mxu0 0.0
  %925 = vmatpush1.msra.mxu0 0.0
  %926 = vmatprep.subr.mxu0 0.0
  %927 = vmatpush1.msra.mxu0 0.0
  %928 = vmatprep.subr.mxu0 0.0
  %929 = vmatpush1.msra.mxu0 0.0
  %930 = vmatprep.subr.mxu0 0.0
  %931 = vmatpush1.msra.mxu0 0.0
  %932 = vmatprep.subr.mxu0 0.0
  %933 = vmatpush1.msra.mxu0 0.0
  %934 = vmatprep.subr.mxu0 0.0
  %935 = vmatpush1.msra.mxu0 0.0
  %936 = vmatprep.subr.mxu0 0.0
  %937 = vmatpush1.msra.mxu0 0.0
  %938 = vmatprep.subr.mxu0 0.0
  %939 = vmatpush1.msra.mxu0 0.0
  %940 = vmatprep.subr.mxu0 0.0
  %941 = vmatpush1.msra.mxu0 0.0
  %942 = vmatprep.subr.mxu0 0.0
  %943 = vmatpush1.msra.mxu0 0.0
  %944 = vmatprep.subr.mxu0 0.0
  %945 = vmatpush1.msra.mxu0 0.0
  %946 = vmatprep.subr.mxu0 0.0
  %947 = vmatpush1.msra.mxu0 0.0
  %948 = vmatprep.subr.mxu0 0.0
  %949 = vmatpush1.msra.mxu0 0.0
  %950 = vmatprep.subr.mxu0 0.0
  %951 = vmatpush1.msra.mxu0 0.0
  %952 = vmatprep.subr.mxu0 0.0
  %953 = vmatpush1.msra.mxu0 0.0
  %954 = vmatprep.mubr.f32.mxu0 0.0
  %955 = vmatmul.mubr.f32.gmra.mrb[0].mxu0 %v885
  %v956 = vpop.f32.mrb[0].mxu0
  %v957 = vadd.f32 0.0, %v956
  %v958 = vpop.f32.mrb[0].mxu0
  %959 = vmatprep.mubr.f32.mxu0 0.0
  %960 = vmatmul.mubr.f32.gmra.mrb[0].mxu0 %v888
  %v961 = vpop.f32.mrb[0].mxu0
  %v962 = vadd.f32 0.0, %v961
  %v963 = vpop.f32.mrb[0].mxu0
  %964 = vdwg.mxu0
  %969 = vrot.lane.b32.xlu0 %v870, 8
  %v970 = vpop.permute.xlu0 %969
  %971 = vrot.lane.b32.xlu0 %v875, 8
  %v972 = vpop.permute.xlu0 %971
  %973 = vrot.lane.b32.xlu0 %v957, 8
  %v974 = vpop.permute.xlu0 %973
  %975 = vrot.lane.b32.xlu0 %v962, 8
  %v976 = vpop.permute.xlu0 %975
  %vm981 = vcmask 130112
  %982 = vst.msk [vmem:[#allocation2] sm:$0xff] %vm981, %v970
  %983 = vst.msk [vmem:[#allocation2 + $0x8] sm:$0xff] %vm981, %v972
  %984 = vst.msk [vmem:[#allocation2 + $0x10] sm:$0xff] %vm981, %v974
  %985 = vst.msk [vmem:[#allocation2 + $0x18] sm:$0xff] %vm981, %v976
  %986 = vrot.lane.b32.xlu0 %v141, 112
  %v987 = vpop.permute.xlu0 %986
  %988 = vrot.lane.b32.xlu0 %v146, 112
  %v989 = vpop.permute.xlu0 %988
  %990 = vrot.lane.b32.xlu0 %v141, 80
  %v991 = vpop.permute.xlu0 %990
  %992 = vrot.lane.b32.xlu0 %v146, 80
  %v993 = vpop.permute.xlu0 %992
  %v994 = vsel %vm169, %v987, 0
  %v996 = vsel %vm169, %v989, 0
  %v998 = vsel %vm169, %v991, 0
  %v1000 = vsel %vm169, %v993, 0
  %1002 = vmatprep.subr.mxu0 0.0
  %1003 = vmatpush1.xpose.msra.mxu0 %v998
  %1004 = vmatprep.subr.mxu0 0.0
  %1005 = vmatpush1.xpose.msra.mxu0 %v1000
  %1006 = vmatprep.subr.mxu0 0.0
  %1007 = vmatpush1.xpose.msra.mxu0 0.0
  %1008 = vmatprep.subr.mxu0 0.0
  %1009 = vmatpush1.xpose.msra.mxu0 0.0
  %1010 = vmatprep.subr.mxu0 0.0
  %1011 = vmatpush1.xpose.msra.mxu0 0.0
  %1012 = vmatprep.subr.mxu0 0.0
  %1013 = vmatpush1.xpose.msra.mxu0 0.0
  %1014 = vmatprep.subr.mxu0 0.0
  %1015 = vmatpush1.xpose.msra.mxu0 0.0
  %1016 = vmatprep.subr.mxu0 0.0
  %1017 = vmatpush1.xpose.msra.mxu0 0.0
  %1018 = vmatprep.subr.mxu0 0.0
  %1019 = vmatpush1.xpose.msra.mxu0 0.0
  %1020 = vmatprep.subr.mxu0 0.0
  %1021 = vmatpush1.xpose.msra.mxu0 0.0
  %1022 = vmatprep.subr.mxu0 0.0
  %1023 = vmatpush1.xpose.msra.mxu0 0.0
  %1024 = vmatprep.subr.mxu0 0.0
  %1025 = vmatpush1.xpose.msra.mxu0 0.0
  %1026 = vmatprep.subr.mxu0 0.0
  %1027 = vmatpush1.xpose.msra.mxu0 0.0
  %1028 = vmatprep.subr.mxu0 0.0
  %1029 = vmatpush1.xpose.msra.mxu0 0.0
  %1030 = vmatprep.subr.mxu0 0.0
  %1031 = vmatpush1.xpose.msra.mxu0 0.0
  %1032 = vmatprep.subr.mxu0 0.0
  %1033 = vmatpush1.xpose.msra.mxu0 0.0
  %1034 = vmatprep.subr.mxu0 0.0
  %1035 = vmatpush1.xpose.msra.mxu0 0.0
  %1036 = vmatprep.subr.mxu0 0.0
  %1037 = vmatpush1.xpose.msra.mxu0 0.0
  %1038 = vmatprep.subr.mxu0 0.0
  %1039 = vmatpush1.xpose.msra.mxu0 0.0
  %1040 = vmatprep.subr.mxu0 0.0
  %1041 = vmatpush1.xpose.msra.mxu0 0.0
  %1042 = vmatprep.subr.mxu0 0.0
  %1043 = vmatpush1.xpose.msra.mxu0 0.0
  %1044 = vmatprep.subr.mxu0 0.0
  %1045 = vmatpush1.xpose.msra.mxu0 0.0
  %1046 = vmatprep.subr.mxu0 0.0
  %1047 = vmatpush1.xpose.msra.mxu0 0.0
  %1048 = vmatprep.subr.mxu0 0.0
  %1049 = vmatpush1.xpose.msra.mxu0 0.0
  %1050 = vmatprep.subr.mxu0 0.0
  %1051 = vmatpush1.xpose.msra.mxu0 0.0
  %1052 = vmatprep.subr.mxu0 0.0
  %1053 = vmatpush1.xpose.msra.mxu0 0.0
  %1054 = vmatprep.subr.mxu0 0.0
  %1055 = vmatpush1.xpose.msra.mxu0 0.0
  %1056 = vmatprep.subr.mxu0 0.0
  %1057 = vmatpush1.xpose.msra.mxu0 0.0
  %1058 = vmatprep.subr.mxu0 0.0
  %1059 = vmatpush1.xpose.msra.mxu0 0.0
  %1060 = vmatprep.subr.mxu0 0.0
  %1061 = vmatpush1.xpose.msra.mxu0 0.0
  %1062 = vmatprep.subr.mxu0 0.0
  %1063 = vmatpush1.xpose.msra.mxu0 0.0
  %1064 = vmatprep.subr.mxu0 0.0
  %1065 = vmatpush1.xpose.msra.mxu0 0.0
  %1066 = vmatprep.mubr.f32.mxu0 0.0
  %1067 = vmatmul.mubr.f32.gmra.mrb[0].mxu0 %v994
  %v1068 = vpop.f32.mrb[0].mxu0
  %v1069 = vadd.f32 %v49, %v1068
  %v1070 = vpop.f32.mrb[0].mxu0
  %1071 = vmatprep.mubr.f32.mxu0 0.0
  %1072 = vmatmul.mubr.f32.gmra.mrb[0].mxu0 %v996
  %v1073 = vpop.f32.mrb[0].mxu0
  %v1074 = vadd.f32 %v50, %v1073
  %v1075 = vpop.f32.mrb[0].mxu0
  %1076 = vdwg.mxu0
  %1077 = vrot.lane.b32.xlu0 %v151, 112
  %v1078 = vpop.permute.xlu0 %1077
  %1079 = vrot.lane.b32.xlu0 %v156, 112
  %v1080 = vpop.permute.xlu0 %1079
  %1081 = vrot.lane.b32.xlu0 %v151, 80
  %v1082 = vpop.permute.xlu0 %1081
  %1083 = vrot.lane.b32.xlu0 %v156, 80
  %v1084 = vpop.permute.xlu0 %1083
  %v1085 = vsel %vm169, %v1078, 0
  %v1087 = vsel %vm169, %v1080, 0
  %v1089 = vsel %vm169, %v1082, 0
  %v1091 = vsel %vm169, %v1084, 0
  %1093 = vmatprep.subr.mxu0 0.0
  %1094 = vmatpush1.xpose.msra.mxu0 %v1089
  %1095 = vmatprep.subr.mxu0 0.0
  %1096 = vmatpush1.xpose.msra.mxu0 %v1091
  %1097 = vmatprep.subr.mxu0 0.0
  %1098 = vmatpush1.xpose.msra.mxu0 0.0
  %1099 = vmatprep.subr.mxu0 0.0
  %1100 = vmatpush1.xpose.msra.mxu0 0.0
  %1101 = vmatprep.subr.mxu0 0.0
  %1102 = vmatpush1.xpose.msra.mxu0 0.0
  %1103 = vmatprep.subr.mxu0 0.0
  %1104 = vmatpush1.xpose.msra.mxu0 0.0
  %1105 = vmatprep.subr.mxu0 0.0
  %1106 = vmatpush1.xpose.msra.mxu0 0.0
  %1107 = vmatprep.subr.mxu0 0.0
  %1108 = vmatpush1.xpose.msra.mxu0 0.0
  %1109 = vmatprep.subr.mxu0 0.0
  %1110 = vmatpush1.xpose.msra.mxu0 0.0
  %1111 = vmatprep.subr.mxu0 0.0
  %1112 = vmatpush1.xpose.msra.mxu0 0.0
  %1113 = vmatprep.subr.mxu0 0.0
  %1114 = vmatpush1.xpose.msra.mxu0 0.0
  %1115 = vmatprep.subr.mxu0 0.0
  %1116 = vmatpush1.xpose.msra.mxu0 0.0
  %1117 = vmatprep.subr.mxu0 0.0
  %1118 = vmatpush1.xpose.msra.mxu0 0.0
  %1119 = vmatprep.subr.mxu0 0.0
  %1120 = vmatpush1.xpose.msra.mxu0 0.0
  %1121 = vmatprep.subr.mxu0 0.0
  %1122 = vmatpush1.xpose.msra.mxu0 0.0
  %1123 = vmatprep.subr.mxu0 0.0
  %1124 = vmatpush1.xpose.msra.mxu0 0.0
  %1125 = vmatprep.subr.mxu0 0.0
  %1126 = vmatpush1.xpose.msra.mxu0 0.0
  %1127 = vmatprep.subr.mxu0 0.0
  %1128 = vmatpush1.xpose.msra.mxu0 0.0
  %1129 = vmatprep.subr.mxu0 0.0
  %1130 = vmatpush1.xpose.msra.mxu0 0.0
  %1131 = vmatprep.subr.mxu0 0.0
  %1132 = vmatpush1.xpose.msra.mxu0 0.0
  %1133 = vmatprep.subr.mxu0 0.0
  %1134 = vmatpush1.xpose.msra.mxu0 0.0
  %1135 = vmatprep.subr.mxu0 0.0
  %1136 = vmatpush1.xpose.msra.mxu0 0.0
  %1137 = vmatprep.subr.mxu0 0.0
  %1138 = vmatpush1.xpose.msra.mxu0 0.0
  %1139 = vmatprep.subr.mxu0 0.0
  %1140 = vmatpush1.xpose.msra.mxu0 0.0
  %1141 = vmatprep.subr.mxu0 0.0
  %1142 = vmatpush1.xpose.msra.mxu0 0.0
  %1143 = vmatprep.subr.mxu0 0.0
  %1144 = vmatpush1.xpose.msra.mxu0 0.0
  %1145 = vmatprep.subr.mxu0 0.0
  %1146 = vmatpush1.xpose.msra.mxu0 0.0
  %1147 = vmatprep.subr.mxu0 0.0
  %1148 = vmatpush1.xpose.msra.mxu0 0.0
  %1149 = vmatprep.subr.mxu0 0.0
  %1150 = vmatpush1.xpose.msra.mxu0 0.0
  %1151 = vmatprep.subr.mxu0 0.0
  %1152 = vmatpush1.xpose.msra.mxu0 0.0
  %1153 = vmatprep.subr.mxu0 0.0
  %1154 = vmatpush1.xpose.msra.mxu0 0.0
  %1155 = vmatprep.subr.mxu0 0.0
  %1156 = vmatpush1.xpose.msra.mxu0 0.0
  %1157 = vmatprep.mubr.f32.mxu0 0.0
  %1158 = vmatmul.mubr.f32.gmra.mrb[0].mxu0 %v1085
  %v1159 = vpop.f32.mrb[0].mxu0
  %v1160 = vadd.f32 %v49, %v1159
  %v1161 = vpop.f32.mrb[0].mxu0
  %1162 = vmatprep.mubr.f32.mxu0 0.0
  %1163 = vmatmul.mubr.f32.gmra.mrb[0].mxu0 %v1087
  %v1164 = vpop.f32.mrb[0].mxu0
  %v1165 = vadd.f32 %v50, %v1164
  %v1166 = vpop.f32.mrb[0].mxu0
  %1167 = vdwg.mxu0
  %v1168 = vsel %vm342, %v1069, -inf
  %1169 = vmax.xlane.f32.xlu0 %v1168
  %v1170 = vpop.xlane.xlu0 %1169
  %v1171 = vsel %vm342, %v1074, -inf
  %1172 = vmax.xlane.f32.xlu0 %v1171
  %v1173 = vpop.xlane.xlu0 %1172
  %v1174 = vsel %vm342, %v1160, -inf
  %1175 = vmax.xlane.f32.xlu0 %v1174
  %v1176 = vpop.xlane.xlu0 %1175
  %v1177 = vsel %vm342, %v1165, -inf
  %1178 = vmax.xlane.f32.xlu0 %v1177
  %v1179 = vpop.xlane.xlu0 %1178
  %v1180 = vsub.f32 %v1069, %v1170
  %v1181 = vsub.f32 %v1074, %v1173
  %v1182 = vsub.f32 %v1160, %v1176
  %v1183 = vsub.f32 %v1165, %v1179
  %v1184 = vmul.f32 %v1180, 1.442695
  %v1185 = vpow.pop %v1184
  %v1186 = vmul.f32 %v1181, 1.442695
  %v1187 = vpow.pop %v1186
  %v1188 = vmul.f32 %v1182, 1.442695
  %v1189 = vpow.pop %v1188
  %v1190 = vmul.f32 %v1183, 1.442695
  %v1191 = vpow.pop %v1190
  %v1192 = vsel %vm342, %v1185, 0.0
  %1193 = vadd.xlane.f32.xlu0 %v1192
  %v1194 = vpop.xlane.xlu0 %1193
  %v1195 = vsel %vm342, %v1187, 0.0
  %1196 = vadd.xlane.f32.xlu0 %v1195
  %v1197 = vpop.xlane.xlu0 %1196
  %v1198 = vsel %vm342, %v1189, 0.0
  %1199 = vadd.xlane.f32.xlu0 %v1198
  %v1200 = vpop.xlane.xlu0 %1199
  %v1201 = vsel %vm342, %v1191, 0.0
  %1202 = vadd.xlane.f32.xlu0 %v1201
  %v1203 = vpop.xlane.xlu0 %1202
  %v1204 = vrcp.pop %v1194
  %v1205 = vrcp.pop %v1197
  %v1206 = vrcp.pop %v1200
  %v1207 = vrcp.pop %v1203
  %v1208 = vmul.f32 %v1185, %v1204
  %v1209 = vmul.f32 %v1187, %v1205
  %v1210 = vmul.f32 %v1189, %v1206
  %v1211 = vmul.f32 %v1191, %v1207
  %1212 = vrot.lane.b32.xlu0 %v141, 48
  %v1213 = vpop.permute.xlu0 %1212
  %1214 = vrot.lane.b32.xlu0 %v146, 48
  %v1215 = vpop.permute.xlu0 %1214
  %v1219 = vsel %vm342, %v1208, 0
  %v1222 = vsel %vm342, %v1209, 0
  %1224 = vmatprep.subr.mxu0 0.0
  %1225 = vmatpush1.msra.mxu0 %v1213
  %1226 = vmatprep.subr.mxu0 0.0
  %1227 = vmatpush1.msra.mxu0 %v1215
  %1228 = vmatprep.subr.mxu0 0.0
  %1229 = vmatpush1.msra.mxu0 0.0
  %1230 = vmatprep.subr.mxu0 0.0
  %1231 = vmatpush1.msra.mxu0 0.0
  %1232 = vmatprep.subr.mxu0 0.0
  %1233 = vmatpush1.msra.mxu0 0.0
  %1234 = vmatprep.subr.mxu0 0.0
  %1235 = vmatpush1.msra.mxu0 0.0
  %1236 = vmatprep.subr.mxu0 0.0
  %1237 = vmatpush1.msra.mxu0 0.0
  %1238 = vmatprep.subr.mxu0 0.0
  %1239 = vmatpush1.msra.mxu0 0.0
  %1240 = vmatprep.subr.mxu0 0.0
  %1241 = vmatpush1.msra.mxu0 0.0
  %1242 = vmatprep.subr.mxu0 0.0
  %1243 = vmatpush1.msra.mxu0 0.0
  %1244 = vmatprep.subr.mxu0 0.0
  %1245 = vmatpush1.msra.mxu0 0.0
  %1246 = vmatprep.subr.mxu0 0.0
  %1247 = vmatpush1.msra.mxu0 0.0
  %1248 = vmatprep.subr.mxu0 0.0
  %1249 = vmatpush1.msra.mxu0 0.0
  %1250 = vmatprep.subr.mxu0 0.0
  %1251 = vmatpush1.msra.mxu0 0.0
  %1252 = vmatprep.subr.mxu0 0.0
  %1253 = vmatpush1.msra.mxu0 0.0
  %1254 = vmatprep.subr.mxu0 0.0
  %1255 = vmatpush1.msra.mxu0 0.0
  %1256 = vmatprep.subr.mxu0 0.0
  %1257 = vmatpush1.msra.mxu0 0.0
  %1258 = vmatprep.subr.mxu0 0.0
  %1259 = vmatpush1.msra.mxu0 0.0
  %1260 = vmatprep.subr.mxu0 0.0
  %1261 = vmatpush1.msra.mxu0 0.0
  %1262 = vmatprep.subr.mxu0 0.0
  %1263 = vmatpush1.msra.mxu0 0.0
  %1264 = vmatprep.subr.mxu0 0.0
  %1265 = vmatpush1.msra.mxu0 0.0
  %1266 = vmatprep.subr.mxu0 0.0
  %1267 = vmatpush1.msra.mxu0 0.0
  %1268 = vmatprep.subr.mxu0 0.0
  %1269 = vmatpush1.msra.mxu0 0.0
  %1270 = vmatprep.subr.mxu0 0.0
  %1271 = vmatpush1.msra.mxu0 0.0
  %1272 = vmatprep.subr.mxu0 0.0
  %1273 = vmatpush1.msra.mxu0 0.0
  %1274 = vmatprep.subr.mxu0 0.0
  %1275 = vmatpush1.msra.mxu0 0.0
  %1276 = vmatprep.subr.mxu0 0.0
  %1277 = vmatpush1.msra.mxu0 0.0
  %1278 = vmatprep.subr.mxu0 0.0
  %1279 = vmatpush1.msra.mxu0 0.0
  %1280 = vmatprep.subr.mxu0 0.0
  %1281 = vmatpush1.msra.mxu0 0.0
  %1282 = vmatprep.subr.mxu0 0.0
  %1283 = vmatpush1.msra.mxu0 0.0
  %1284 = vmatprep.subr.mxu0 0.0
  %1285 = vmatpush1.msra.mxu0 0.0
  %1286 = vmatprep.subr.mxu0 0.0
  %1287 = vmatpush1.msra.mxu0 0.0
  %1288 = vmatprep.mubr.f32.mxu0 0.0
  %1289 = vmatmul.mubr.f32.gmra.mrb[0].mxu0 %v1219
  %v1290 = vpop.f32.mrb[0].mxu0
  %v1291 = vadd.f32 0.0, %v1290
  %v1292 = vpop.f32.mrb[0].mxu0
  %1293 = vmatprep.mubr.f32.mxu0 0.0
  %1294 = vmatmul.mubr.f32.gmra.mrb[0].mxu0 %v1222
  %v1295 = vpop.f32.mrb[0].mxu0
  %v1296 = vadd.f32 0.0, %v1295
  %v1297 = vpop.f32.mrb[0].mxu0
  %1298 = vdwg.mxu0
  %1299 = vrot.lane.b32.xlu0 %v151, 48
  %v1300 = vpop.permute.xlu0 %1299
  %1301 = vrot.lane.b32.xlu0 %v156, 48
  %v1302 = vpop.permute.xlu0 %1301
  %v1306 = vsel %vm342, %v1210, 0
  %v1309 = vsel %vm342, %v1211, 0
  %1311 = vmatprep.subr.mxu0 0.0
  %1312 = vmatpush1.msra.mxu0 %v1300
  %1313 = vmatprep.subr.mxu0 0.0
  %1314 = vmatpush1.msra.mxu0 %v1302
  %1315 = vmatprep.subr.mxu0 0.0
  %1316 = vmatpush1.msra.mxu0 0.0
  %1317 = vmatprep.subr.mxu0 0.0
  %1318 = vmatpush1.msra.mxu0 0.0
  %1319 = vmatprep.subr.mxu0 0.0
  %1320 = vmatpush1.msra.mxu0 0.0
  %1321 = vmatprep.subr.mxu0 0.0
  %1322 = vmatpush1.msra.mxu0 0.0
  %1323 = vmatprep.subr.mxu0 0.0
  %1324 = vmatpush1.msra.mxu0 0.0
  %1325 = vmatprep.subr.mxu0 0.0
  %1326 = vmatpush1.msra.mxu0 0.0
  %1327 = vmatprep.subr.mxu0 0.0
  %1328 = vmatpush1.msra.mxu0 0.0
  %1329 = vmatprep.subr.mxu0 0.0
  %1330 = vmatpush1.msra.mxu0 0.0
  %1331 = vmatprep.subr.mxu0 0.0
  %1332 = vmatpush1.msra.mxu0 0.0
  %1333 = vmatprep.subr.mxu0 0.0
  %1334 = vmatpush1.msra.mxu0 0.0
  %1335 = vmatprep.subr.mxu0 0.0
  %1336 = vmatpush1.msra.mxu0 0.0
  %1337 = vmatprep.subr.mxu0 0.0
  %1338 = vmatpush1.msra.mxu0 0.0
  %1339 = vmatprep.subr.mxu0 0.0
  %1340 = vmatpush1.msra.mxu0 0.0
  %1341 = vmatprep.subr.mxu0 0.0
  %1342 = vmatpush1.msra.mxu0 0.0
  %1343 = vmatprep.subr.mxu0 0.0
  %1344 = vmatpush1.msra.mxu0 0.0
  %1345 = vmatprep.subr.mxu0 0.0
  %1346 = vmatpush1.msra.mxu0 0.0
  %1347 = vmatprep.subr.mxu0 0.0
  %1348 = vmatpush1.msra.mxu0 0.0
  %1349 = vmatprep.subr.mxu0 0.0
  %1350 = vmatpush1.msra.mxu0 0.0
  %1351 = vmatprep.subr.mxu0 0.0
  %1352 = vmatpush1.msra.mxu0 0.0
  %1353 = vmatprep.subr.mxu0 0.0
  %1354 = vmatpush1.msra.mxu0 0.0
  %1355 = vmatprep.subr.mxu0 0.0
  %1356 = vmatpush1.msra.mxu0 0.0
  %1357 = vmatprep.subr.mxu0 0.0
  %1358 = vmatpush1.msra.mxu0 0.0
  %1359 = vmatprep.subr.mxu0 0.0
  %1360 = vmatpush1.msra.mxu0 0.0
  %1361 = vmatprep.subr.mxu0 0.0
  %1362 = vmatpush1.msra.mxu0 0.0
  %1363 = vmatprep.subr.mxu0 0.0
  %1364 = vmatpush1.msra.mxu0 0.0
  %1365 = vmatprep.subr.mxu0 0.0
  %1366 = vmatpush1.msra.mxu0 0.0
  %1367 = vmatprep.subr.mxu0 0.0
  %1368 = vmatpush1.msra.mxu0 0.0
  %1369 = vmatprep.subr.mxu0 0.0
  %1370 = vmatpush1.msra.mxu0 0.0
  %1371 = vmatprep.subr.mxu0 0.0
  %1372 = vmatpush1.msra.mxu0 0.0
  %1373 = vmatprep.subr.mxu0 0.0
  %1374 = vmatpush1.msra.mxu0 0.0
  %1375 = vmatprep.mubr.f32.mxu0 0.0
  %1376 = vmatmul.mubr.f32.gmra.mrb[0].mxu0 %v1306
  %v1377 = vpop.f32.mrb[0].mxu0
  %v1378 = vadd.f32 0.0, %v1377
  %v1379 = vpop.f32.mrb[0].mxu0
  %1380 = vmatprep.mubr.f32.mxu0 0.0
  %1381 = vmatmul.mubr.f32.gmra.mrb[0].mxu0 %v1309
  %v1382 = vpop.f32.mrb[0].mxu0
  %v1383 = vadd.f32 0.0, %v1382
  %v1384 = vpop.f32.mrb[0].mxu0
  %1385 = vdwg.mxu0
  %1390 = vrot.lane.b32.xlu0 %v1291, 16
  %v1391 = vpop.permute.xlu0 %1390
  %1392 = vrot.lane.b32.xlu0 %v1296, 16
  %v1393 = vpop.permute.xlu0 %1392
  %1394 = vrot.lane.b32.xlu0 %v1378, 16
  %v1395 = vpop.permute.xlu0 %1394
  %1396 = vrot.lane.b32.xlu0 %v1383, 16
  %v1397 = vpop.permute.xlu0 %1396
  %vm1402 = vcmask 195712
  %1403 = vst.msk [vmem:[#allocation2] sm:$0xff] %vm1402, %v1391
  %1404 = vst.msk [vmem:[#allocation2 + $0x8] sm:$0xff] %vm1402, %v1393
  %1405 = vst.msk [vmem:[#allocation2 + $0x10] sm:$0xff] %vm1402, %v1395
  %1406 = vst.msk [vmem:[#allocation2 + $0x18] sm:$0xff] %vm1402, %v1397
  %1407 = vrot.lane.b32.xlu0 %v141, 104
  %v1408 = vpop.permute.xlu0 %1407
  %1409 = vrot.lane.b32.xlu0 %v146, 104
  %v1410 = vpop.permute.xlu0 %1409
  %1411 = vrot.lane.b32.xlu0 %v141, 72
  %v1412 = vpop.permute.xlu0 %1411
  %1413 = vrot.lane.b32.xlu0 %v146, 72
  %v1414 = vpop.permute.xlu0 %1413
  %v1415 = vsel %vm169, %v1408, 0
  %v1417 = vsel %vm169, %v1410, 0
  %v1419 = vsel %vm169, %v1412, 0
  %v1421 = vsel %vm169, %v1414, 0
  %1423 = vmatprep.subr.mxu0 0.0
  %1424 = vmatpush1.xpose.msra.mxu0 %v1419
  %1425 = vmatprep.subr.mxu0 0.0
  %1426 = vmatpush1.xpose.msra.mxu0 %v1421
  %1427 = vmatprep.subr.mxu0 0.0
  %1428 = vmatpush1.xpose.msra.mxu0 0.0
  %1429 = vmatprep.subr.mxu0 0.0
  %1430 = vmatpush1.xpose.msra.mxu0 0.0
  %1431 = vmatprep.subr.mxu0 0.0
  %1432 = vmatpush1.xpose.msra.mxu0 0.0
  %1433 = vmatprep.subr.mxu0 0.0
  %1434 = vmatpush1.xpose.msra.mxu0 0.0
  %1435 = vmatprep.subr.mxu0 0.0
  %1436 = vmatpush1.xpose.msra.mxu0 0.0
  %1437 = vmatprep.subr.mxu0 0.0
  %1438 = vmatpush1.xpose.msra.mxu0 0.0
  %1439 = vmatprep.subr.mxu0 0.0
  %1440 = vmatpush1.xpose.msra.mxu0 0.0
  %1441 = vmatprep.subr.mxu0 0.0
  %1442 = vmatpush1.xpose.msra.mxu0 0.0
  %1443 = vmatprep.subr.mxu0 0.0
  %1444 = vmatpush1.xpose.msra.mxu0 0.0
  %1445 = vmatprep.subr.mxu0 0.0
  %1446 = vmatpush1.xpose.msra.mxu0 0.0
  %1447 = vmatprep.subr.mxu0 0.0
  %1448 = vmatpush1.xpose.msra.mxu0 0.0
  %1449 = vmatprep.subr.mxu0 0.0
  %1450 = vmatpush1.xpose.msra.mxu0 0.0
  %1451 = vmatprep.subr.mxu0 0.0
  %1452 = vmatpush1.xpose.msra.mxu0 0.0
  %1453 = vmatprep.subr.mxu0 0.0
  %1454 = vmatpush1.xpose.msra.mxu0 0.0
  %1455 = vmatprep.subr.mxu0 0.0
  %1456 = vmatpush1.xpose.msra.mxu0 0.0
  %1457 = vmatprep.subr.mxu0 0.0
  %1458 = vmatpush1.xpose.msra.mxu0 0.0
  %1459 = vmatprep.subr.mxu0 0.0
  %1460 = vmatpush1.xpose.msra.mxu0 0.0
  %1461 = vmatprep.subr.mxu0 0.0
  %1462 = vmatpush1.xpose.msra.mxu0 0.0
  %1463 = vmatprep.subr.mxu0 0.0
  %1464 = vmatpush1.xpose.msra.mxu0 0.0
  %1465 = vmatprep.subr.mxu0 0.0
  %1466 = vmatpush1.xpose.msra.mxu0 0.0
  %1467 = vmatprep.subr.mxu0 0.0
  %1468 = vmatpush1.xpose.msra.mxu0 0.0
  %1469 = vmatprep.subr.mxu0 0.0
  %1470 = vmatpush1.xpose.msra.mxu0 0.0
  %1471 = vmatprep.subr.mxu0 0.0
  %1472 = vmatpush1.xpose.msra.mxu0 0.0
  %1473 = vmatprep.subr.mxu0 0.0
  %1474 = vmatpush1.xpose.msra.mxu0 0.0
  %1475 = vmatprep.subr.mxu0 0.0
  %1476 = vmatpush1.xpose.msra.mxu0 0.0
  %1477 = vmatprep.subr.mxu0 0.0
  %1478 = vmatpush1.xpose.msra.mxu0 0.0
  %1479 = vmatprep.subr.mxu0 0.0
  %1480 = vmatpush1.xpose.msra.mxu0 0.0
  %1481 = vmatprep.subr.mxu0 0.0
  %1482 = vmatpush1.xpose.msra.mxu0 0.0
  %1483 = vmatprep.subr.mxu0 0.0
  %1484 = vmatpush1.xpose.msra.mxu0 0.0
  %1485 = vmatprep.subr.mxu0 0.0
  %1486 = vmatpush1.xpose.msra.mxu0 0.0
  %1487 = vmatprep.mubr.f32.mxu0 0.0
  %1488 = vmatmul.mubr.f32.gmra.mrb[0].mxu0 %v1415
  %v1489 = vpop.f32.mrb[0].mxu0
  %v1490 = vadd.f32 %v49, %v1489
  %v1491 = vpop.f32.mrb[0].mxu0
  %1492 = vmatprep.mubr.f32.mxu0 0.0
  %1493 = vmatmul.mubr.f32.gmra.mrb[0].mxu0 %v1417
  %v1494 = vpop.f32.mrb[0].mxu0
  %v1495 = vadd.f32 %v50, %v1494
  %v1496 = vpop.f32.mrb[0].mxu0
  %1497 = vdwg.mxu0
  %1498 = vrot.lane.b32.xlu0 %v151, 104
  %v1499 = vpop.permute.xlu0 %1498
  %1500 = vrot.lane.b32.xlu0 %v156, 104
  %v1501 = vpop.permute.xlu0 %1500
  %1502 = vrot.lane.b32.xlu0 %v151, 72
  %v1503 = vpop.permute.xlu0 %1502
  %1504 = vrot.lane.b32.xlu0 %v156, 72
  %v1505 = vpop.permute.xlu0 %1504
  %v1506 = vsel %vm169, %v1499, 0
  %v1508 = vsel %vm169, %v1501, 0
  %v1510 = vsel %vm169, %v1503, 0
  %v1512 = vsel %vm169, %v1505, 0
  %1514 = vmatprep.subr.mxu0 0.0
  %1515 = vmatpush1.xpose.msra.mxu0 %v1510
  %1516 = vmatprep.subr.mxu0 0.0
  %1517 = vmatpush1.xpose.msra.mxu0 %v1512
  %1518 = vmatprep.subr.mxu0 0.0
  %1519 = vmatpush1.xpose.msra.mxu0 0.0
  %1520 = vmatprep.subr.mxu0 0.0
  %1521 = vmatpush1.xpose.msra.mxu0 0.0
  %1522 = vmatprep.subr.mxu0 0.0
  %1523 = vmatpush1.xpose.msra.mxu0 0.0
  %1524 = vmatprep.subr.mxu0 0.0
  %1525 = vmatpush1.xpose.msra.mxu0 0.0
  %1526 = vmatprep.subr.mxu0 0.0
  %1527 = vmatpush1.xpose.msra.mxu0 0.0
  %1528 = vmatprep.subr.mxu0 0.0
  %1529 = vmatpush1.xpose.msra.mxu0 0.0
  %1530 = vmatprep.subr.mxu0 0.0
  %1531 = vmatpush1.xpose.msra.mxu0 0.0
  %1532 = vmatprep.subr.mxu0 0.0
  %1533 = vmatpush1.xpose.msra.mxu0 0.0
  %1534 = vmatprep.subr.mxu0 0.0
  %1535 = vmatpush1.xpose.msra.mxu0 0.0
  %1536 = vmatprep.subr.mxu0 0.0
  %1537 = vmatpush1.xpose.msra.mxu0 0.0
  %1538 = vmatprep.subr.mxu0 0.0
  %1539 = vmatpush1.xpose.msra.mxu0 0.0
  %1540 = vmatprep.subr.mxu0 0.0
  %1541 = vmatpush1.xpose.msra.mxu0 0.0
  %1542 = vmatprep.subr.mxu0 0.0
  %1543 = vmatpush1.xpose.msra.mxu0 0.0
  %1544 = vmatprep.subr.mxu0 0.0
  %1545 = vmatpush1.xpose.msra.mxu0 0.0
  %1546 = vmatprep.subr.mxu0 0.0
  %1547 = vmatpush1.xpose.msra.mxu0 0.0
  %1548 = vmatprep.subr.mxu0 0.0
  %1549 = vmatpush1.xpose.msra.mxu0 0.0
  %1550 = vmatprep.subr.mxu0 0.0
  %1551 = vmatpush1.xpose.msra.mxu0 0.0
  %1552 = vmatprep.subr.mxu0 0.0
  %1553 = vmatpush1.xpose.msra.mxu0 0.0
  %1554 = vmatprep.subr.mxu0 0.0
  %1555 = vmatpush1.xpose.msra.mxu0 0.0
  %1556 = vmatprep.subr.mxu0 0.0
  %1557 = vmatpush1.xpose.msra.mxu0 0.0
  %1558 = vmatprep.subr.mxu0 0.0
  %1559 = vmatpush1.xpose.msra.mxu0 0.0
  %1560 = vmatprep.subr.mxu0 0.0
  %1561 = vmatpush1.xpose.msra.mxu0 0.0
  %1562 = vmatprep.subr.mxu0 0.0
  %1563 = vmatpush1.xpose.msra.mxu0 0.0
  %1564 = vmatprep.subr.mxu0 0.0
  %1565 = vmatpush1.xpose.msra.mxu0 0.0
  %1566 = vmatprep.subr.mxu0 0.0
  %1567 = vmatpush1.xpose.msra.mxu0 0.0
  %1568 = vmatprep.subr.mxu0 0.0
  %1569 = vmatpush1.xpose.msra.mxu0 0.0
  %1570 = vmatprep.subr.mxu0 0.0
  %1571 = vmatpush1.xpose.msra.mxu0 0.0
  %1572 = vmatprep.subr.mxu0 0.0
  %1573 = vmatpush1.xpose.msra.mxu0 0.0
  %1574 = vmatprep.subr.mxu0 0.0
  %1575 = vmatpush1.xpose.msra.mxu0 0.0
  %1576 = vmatprep.subr.mxu0 0.0
  %1577 = vmatpush1.xpose.msra.mxu0 0.0
  %1578 = vmatprep.mubr.f32.mxu0 0.0
  %1579 = vmatmul.mubr.f32.gmra.mrb[0].mxu0 %v1506
  %v1580 = vpop.f32.mrb[0].mxu0
  %v1581 = vadd.f32 %v49, %v1580
  %v1582 = vpop.f32.mrb[0].mxu0
  %1583 = vmatprep.mubr.f32.mxu0 0.0
  %1584 = vmatmul.mubr.f32.gmra.mrb[0].mxu0 %v1508
  %v1585 = vpop.f32.mrb[0].mxu0
  %v1586 = vadd.f32 %v50, %v1585
  %v1587 = vpop.f32.mrb[0].mxu0
  %1588 = vdwg.mxu0
  %v1589 = vsel %vm342, %v1490, -inf
  %1590 = vmax.xlane.f32.xlu0 %v1589
  %v1591 = vpop.xlane.xlu0 %1590
  %v1592 = vsel %vm342, %v1495, -inf
  %1593 = vmax.xlane.f32.xlu0 %v1592
  %v1594 = vpop.xlane.xlu0 %1593
  %v1595 = vsel %vm342, %v1581, -inf
  %1596 = vmax.xlane.f32.xlu0 %v1595
  %v1597 = vpop.xlane.xlu0 %1596
  %v1598 = vsel %vm342, %v1586, -inf
  %1599 = vmax.xlane.f32.xlu0 %v1598
  %v1600 = vpop.xlane.xlu0 %1599
  %v1601 = vsub.f32 %v1490, %v1591
  %v1602 = vsub.f32 %v1495, %v1594
  %v1603 = vsub.f32 %v1581, %v1597
  %v1604 = vsub.f32 %v1586, %v1600
  %v1605 = vmul.f32 %v1601, 1.442695
  %v1606 = vpow.pop %v1605
  %v1607 = vmul.f32 %v1602, 1.442695
  %v1608 = vpow.pop %v1607
  %v1609 = vmul.f32 %v1603, 1.442695
  %v1610 = vpow.pop %v1609
  %v1611 = vmul.f32 %v1604, 1.442695
  %v1612 = vpow.pop %v1611
  %v1613 = vsel %vm342, %v1606, 0.0
  %1614 = vadd.xlane.f32.xlu0 %v1613
  %v1615 = vpop.xlane.xlu0 %1614
  %v1616 = vsel %vm342, %v1608, 0.0
  %1617 = vadd.xlane.f32.xlu0 %v1616
  %v1618 = vpop.xlane.xlu0 %1617
  %v1619 = vsel %vm342, %v1610, 0.0
  %1620 = vadd.xlane.f32.xlu0 %v1619
  %v1621 = vpop.xlane.xlu0 %1620
  %v1622 = vsel %vm342, %v1612, 0.0
  %1623 = vadd.xlane.f32.xlu0 %v1622
  %v1624 = vpop.xlane.xlu0 %1623
  %v1625 = vrcp.pop %v1615
  %v1626 = vrcp.pop %v1618
  %v1627 = vrcp.pop %v1621
  %v1628 = vrcp.pop %v1624
  %v1629 = vmul.f32 %v1606, %v1625
  %v1630 = vmul.f32 %v1608, %v1626
  %v1631 = vmul.f32 %v1610, %v1627
  %v1632 = vmul.f32 %v1612, %v1628
  %1633 = vrot.lane.b32.xlu0 %v141, 40
  %v1634 = vpop.permute.xlu0 %1633
  %1635 = vrot.lane.b32.xlu0 %v146, 40
  %v1636 = vpop.permute.xlu0 %1635
  %v1640 = vsel %vm342, %v1629, 0
  %v1643 = vsel %vm342, %v1630, 0
  %1645 = vmatprep.subr.mxu0 0.0
  %1646 = vmatpush1.msra.mxu0 %v1634
  %1647 = vmatprep.subr.mxu0 0.0
  %1648 = vmatpush1.msra.mxu0 %v1636
  %1649 = vmatprep.subr.mxu0 0.0
  %1650 = vmatpush1.msra.mxu0 0.0
  %1651 = vmatprep.subr.mxu0 0.0
  %1652 = vmatpush1.msra.mxu0 0.0
  %1653 = vmatprep.subr.mxu0 0.0
  %1654 = vmatpush1.msra.mxu0 0.0
  %1655 = vmatprep.subr.mxu0 0.0
  %1656 = vmatpush1.msra.mxu0 0.0
  %1657 = vmatprep.subr.mxu0 0.0
  %1658 = vmatpush1.msra.mxu0 0.0
  %1659 = vmatprep.subr.mxu0 0.0
  %1660 = vmatpush1.msra.mxu0 0.0
  %1661 = vmatprep.subr.mxu0 0.0
  %1662 = vmatpush1.msra.mxu0 0.0
  %1663 = vmatprep.subr.mxu0 0.0
  %1664 = vmatpush1.msra.mxu0 0.0
  %1665 = vmatprep.subr.mxu0 0.0
  %1666 = vmatpush1.msra.mxu0 0.0
  %1667 = vmatprep.subr.mxu0 0.0
  %1668 = vmatpush1.msra.mxu0 0.0
  %1669 = vmatprep.subr.mxu0 0.0
  %1670 = vmatpush1.msra.mxu0 0.0
  %1671 = vmatprep.subr.mxu0 0.0
  %1672 = vmatpush1.msra.mxu0 0.0
  %1673 = vmatprep.subr.mxu0 0.0
  %1674 = vmatpush1.msra.mxu0 0.0
  %1675 = vmatprep.subr.mxu0 0.0
  %1676 = vmatpush1.msra.mxu0 0.0
  %1677 = vmatprep.subr.mxu0 0.0
  %1678 = vmatpush1.msra.mxu0 0.0
  %1679 = vmatprep.subr.mxu0 0.0
  %1680 = vmatpush1.msra.mxu0 0.0
  %1681 = vmatprep.subr.mxu0 0.0
  %1682 = vmatpush1.msra.mxu0 0.0
  %1683 = vmatprep.subr.mxu0 0.0
  %1684 = vmatpush1.msra.mxu0 0.0
  %1685 = vmatprep.subr.mxu0 0.0
  %1686 = vmatpush1.msra.mxu0 0.0
  %1687 = vmatprep.subr.mxu0 0.0
  %1688 = vmatpush1.msra.mxu0 0.0
  %1689 = vmatprep.subr.mxu0 0.0
  %1690 = vmatpush1.msra.mxu0 0.0
  %1691 = vmatprep.subr.mxu0 0.0
  %1692 = vmatpush1.msra.mxu0 0.0
  %1693 = vmatprep.subr.mxu0 0.0
  %1694 = vmatpush1.msra.mxu0 0.0
  %1695 = vmatprep.subr.mxu0 0.0
  %1696 = vmatpush1.msra.mxu0 0.0
  %1697 = vmatprep.subr.mxu0 0.0
  %1698 = vmatpush1.msra.mxu0 0.0
  %1699 = vmatprep.subr.mxu0 0.0
  %1700 = vmatpush1.msra.mxu0 0.0
  %1701 = vmatprep.subr.mxu0 0.0
  %1702 = vmatpush1.msra.mxu0 0.0
  %1703 = vmatprep.subr.mxu0 0.0
  %1704 = vmatpush1.msra.mxu0 0.0
  %1705 = vmatprep.subr.mxu0 0.0
  %1706 = vmatpush1.msra.mxu0 0.0
  %1707 = vmatprep.subr.mxu0 0.0
  %1708 = vmatpush1.msra.mxu0 0.0
  %1709 = vmatprep.mubr.f32.mxu0 0.0
  %1710 = vmatmul.mubr.f32.gmra.mrb[0].mxu0 %v1640
  %v1711 = vpop.f32.mrb[0].mxu0
  %v1712 = vadd.f32 0.0, %v1711
  %v1713 = vpop.f32.mrb[0].mxu0
  %1714 = vmatprep.mubr.f32.mxu0 0.0
  %1715 = vmatmul.mubr.f32.gmra.mrb[0].mxu0 %v1643
  %v1716 = vpop.f32.mrb[0].mxu0
  %v1717 = vadd.f32 0.0, %v1716
  %v1718 = vpop.f32.mrb[0].mxu0
  %1719 = vdwg.mxu0
  %1720 = vrot.lane.b32.xlu0 %v151, 40
  %v1721 = vpop.permute.xlu0 %1720
  %1722 = vrot.lane.b32.xlu0 %v156, 40
  %v1723 = vpop.permute.xlu0 %1722
  %v1727 = vsel %vm342, %v1631, 0
  %v1730 = vsel %vm342, %v1632, 0
  %1732 = vmatprep.subr.mxu0 0.0
  %1733 = vmatpush1.msra.mxu0 %v1721
  %1734 = vmatprep.subr.mxu0 0.0
  %1735 = vmatpush1.msra.mxu0 %v1723
  %1736 = vmatprep.subr.mxu0 0.0
  %1737 = vmatpush1.msra.mxu0 0.0
  %1738 = vmatprep.subr.mxu0 0.0
  %1739 = vmatpush1.msra.mxu0 0.0
  %1740 = vmatprep.subr.mxu0 0.0
  %1741 = vmatpush1.msra.mxu0 0.0
  %1742 = vmatprep.subr.mxu0 0.0
  %1743 = vmatpush1.msra.mxu0 0.0
  %1744 = vmatprep.subr.mxu0 0.0
  %1745 = vmatpush1.msra.mxu0 0.0
  %1746 = vmatprep.subr.mxu0 0.0
  %1747 = vmatpush1.msra.mxu0 0.0
  %1748 = vmatprep.subr.mxu0 0.0
  %1749 = vmatpush1.msra.mxu0 0.0
  %1750 = vmatprep.subr.mxu0 0.0
  %1751 = vmatpush1.msra.mxu0 0.0
  %1752 = vmatprep.subr.mxu0 0.0
  %1753 = vmatpush1.msra.mxu0 0.0
  %1754 = vmatprep.subr.mxu0 0.0
  %1755 = vmatpush1.msra.mxu0 0.0
  %1756 = vmatprep.subr.mxu0 0.0
  %1757 = vmatpush1.msra.mxu0 0.0
  %1758 = vmatprep.subr.mxu0 0.0
  %1759 = vmatpush1.msra.mxu0 0.0
  %1760 = vmatprep.subr.mxu0 0.0
  %1761 = vmatpush1.msra.mxu0 0.0
  %1762 = vmatprep.subr.mxu0 0.0
  %1763 = vmatpush1.msra.mxu0 0.0
  %1764 = vmatprep.subr.mxu0 0.0
  %1765 = vmatpush1.msra.mxu0 0.0
  %1766 = vmatprep.subr.mxu0 0.0
  %1767 = vmatpush1.msra.mxu0 0.0
  %1768 = vmatprep.subr.mxu0 0.0
  %1769 = vmatpush1.msra.mxu0 0.0
  %1770 = vmatprep.subr.mxu0 0.0
  %1771 = vmatpush1.msra.mxu0 0.0
  %1772 = vmatprep.subr.mxu0 0.0
  %1773 = vmatpush1.msra.mxu0 0.0
  %1774 = vmatprep.subr.mxu0 0.0
  %1775 = vmatpush1.msra.mxu0 0.0
  %1776 = vmatprep.subr.mxu0 0.0
  %1777 = vmatpush1.msra.mxu0 0.0
  %1778 = vmatprep.subr.mxu0 0.0
  %1779 = vmatpush1.msra.mxu0 0.0
  %1780 = vmatprep.subr.mxu0 0.0
  %1781 = vmatpush1.msra.mxu0 0.0
  %1782 = vmatprep.subr.mxu0 0.0
  %1783 = vmatpush1.msra.mxu0 0.0
  %1784 = vmatprep.subr.mxu0 0.0
  %1785 = vmatpush1.msra.mxu0 0.0
  %1786 = vmatprep.subr.mxu0 0.0
  %1787 = vmatpush1.msra.mxu0 0.0
  %1788 = vmatprep.subr.mxu0 0.0
  %1789 = vmatpush1.msra.mxu0 0.0
  %1790 = vmatprep.subr.mxu0 0.0
  %1791 = vmatpush1.msra.mxu0 0.0
  %1792 = vmatprep.subr.mxu0 0.0
  %1793 = vmatpush1.msra.mxu0 0.0
  %1794 = vmatprep.subr.mxu0 0.0
  %1795 = vmatpush1.msra.mxu0 0.0
  %1796 = vmatprep.mubr.f32.mxu0 0.0
  %1797 = vmatmul.mubr.f32.gmra.mrb[0].mxu0 %v1727
  %v1798 = vpop.f32.mrb[0].mxu0
  %v1799 = vadd.f32 0.0, %v1798
  %v1800 = vpop.f32.mrb[0].mxu0
  %1801 = vmatprep.mubr.f32.mxu0 0.0
  %1802 = vmatmul.mubr.f32.gmra.mrb[0].mxu0 %v1730
  %v1803 = vpop.f32.mrb[0].mxu0
  %v1804 = vadd.f32 0.0, %v1803
  %v1805 = vpop.f32.mrb[0].mxu0
  %1806 = vdwg.mxu0
  %1811 = vrot.lane.b32.xlu0 %v1712, 24
  %v1812 = vpop.permute.xlu0 %1811
  %1813 = vrot.lane.b32.xlu0 %v1717, 24
  %v1814 = vpop.permute.xlu0 %1813
  %1815 = vrot.lane.b32.xlu0 %v1799, 24
  %v1816 = vpop.permute.xlu0 %1815
  %1817 = vrot.lane.b32.xlu0 %v1804, 24
  %v1818 = vpop.permute.xlu0 %1817
  %vm1823 = vcmask 261312
  %1824 = vst.msk [vmem:[#allocation2] sm:$0xff] %vm1823, %v1812
  %1825 = vst.msk [vmem:[#allocation2 + $0x8] sm:$0xff] %vm1823, %v1814
  %1826 = vst.msk [vmem:[#allocation2 + $0x10] sm:$0xff] %vm1823, %v1816
  %1827 = vst.msk [vmem:[#allocation2 + $0x18] sm:$0xff] %vm1823, %v1818
  %v1828 = vld [vmem:[#allocation2] sm:$0xff]
  %v1829 = vld [vmem:[#allocation2 + $0x8] sm:$0xff]
  %v1830 = vld [vmem:[#allocation2 + $0x10] sm:$0xff]
  %v1831 = vld [vmem:[#allocation2 + $0x18] sm:$0xff]
  %v1832 = vlaneseq
  %v1833 = vshrl.u32 %v1832, 7
  %v1834 = vsub.s32 2, %v1833
  %v1835 = vrot.slane %v51, %v1834
  %v1837 = vsel %vm61, %v1828, 0
  %v1840 = vsel %vm61, %v1829, 0
  %v1843 = vsel %vm61, %v1830, 0
  %v1846 = vsel %vm61, %v1831, 0
  %1848 = vmatprep.subr.mxu0 0.0
  %1849 = vmatpush1.msra.mxu0 %v159
  %1850 = vmatprep.subr.mxu0 0.0
  %1851 = vmatpush1.msra.mxu0 %v160
  %1852 = vmatprep.subr.mxu0 0.0
  %1853 = vmatpush1.msra.mxu0 %v161
  %1854 = vmatprep.subr.mxu0 0.0
  %1855 = vmatpush1.msra.mxu0 %v162
  %1856 = vmatprep.subr.mxu0 0.0
  %1857 = vmatpush1.msra.mxu0 0.0
  %1858 = vmatprep.subr.mxu0 0.0
  %1859 = vmatpush1.msra.mxu0 0.0
  %1860 = vmatprep.subr.mxu0 0.0
  %1861 = vmatpush1.msra.mxu0 0.0
  %1862 = vmatprep.subr.mxu0 0.0
  %1863 = vmatpush1.msra.mxu0 0.0
  %1864 = vmatprep.subr.mxu0 0.0
  %1865 = vmatpush1.msra.mxu0 0.0
  %1866 = vmatprep.subr.mxu0 0.0
  %1867 = vmatpush1.msra.mxu0 0.0
  %1868 = vmatprep.subr.mxu0 0.0
  %1869 = vmatpush1.msra.mxu0 0.0
  %1870 = vmatprep.subr.mxu0 0.0
  %1871 = vmatpush1.msra.mxu0 0.0
  %1872 = vmatprep.subr.mxu0 0.0
  %1873 = vmatpush1.msra.mxu0 0.0
  %1874 = vmatprep.subr.mxu0 0.0
  %1875 = vmatpush1.msra.mxu0 0.0
  %1876 = vmatprep.subr.mxu0 0.0
  %1877 = vmatpush1.msra.mxu0 0.0
  %1878 = vmatprep.subr.mxu0 0.0
  %1879 = vmatpush1.msra.mxu0 0.0
  %1880 = vmatprep.subr.mxu0 0.0
  %1881 = vmatpush1.msra.mxu0 0.0
  %1882 = vmatprep.subr.mxu0 0.0
  %1883 = vmatpush1.msra.mxu0 0.0
  %1884 = vmatprep.subr.mxu0 0.0
  %1885 = vmatpush1.msra.mxu0 0.0
  %1886 = vmatprep.subr.mxu0 0.0
  %1887 = vmatpush1.msra.mxu0 0.0
  %1888 = vmatprep.subr.mxu0 0.0
  %1889 = vmatpush1.msra.mxu0 0.0
  %1890 = vmatprep.subr.mxu0 0.0
  %1891 = vmatpush1.msra.mxu0 0.0
  %1892 = vmatprep.subr.mxu0 0.0
  %1893 = vmatpush1.msra.mxu0 0.0
  %1894 = vmatprep.subr.mxu0 0.0
  %1895 = vmatpush1.msra.mxu0 0.0
  %1896 = vmatprep.subr.mxu0 0.0
  %1897 = vmatpush1.msra.mxu0 0.0
  %1898 = vmatprep.subr.mxu0 0.0
  %1899 = vmatpush1.msra.mxu0 0.0
  %1900 = vmatprep.subr.mxu0 0.0
  %1901 = vmatpush1.msra.mxu0 0.0
  %1902 = vmatprep.subr.mxu0 0.0
  %1903 = vmatpush1.msra.mxu0 0.0
  %1904 = vmatprep.subr.mxu0 0.0
  %1905 = vmatpush1.msra.mxu0 0.0
  %1906 = vmatprep.subr.mxu0 0.0
  %1907 = vmatpush1.msra.mxu0 0.0
  %1908 = vmatprep.subr.mxu0 0.0
  %1909 = vmatpush1.msra.mxu0 0.0
  %1910 = vmatprep.subr.mxu0 0.0
  %1911 = vmatpush1.msra.mxu0 0.0
  %1912 = vmatprep.mubr.f32.mxu0 0.0
  %1913 = vmatmul.mubr.f32.gmra.mrb[0].mxu0 %v1837
  %v1914 = vpop.f32.mrb[0].mxu0
  %v1915 = vadd.f32 %v1835, %v1914
  %v1916 = vpop.f32.mrb[0].mxu0
  %1917 = vmatprep.mubr.f32.mxu0 0.0
  %1918 = vmatmul.mubr.f32.gmra.mrb[0].mxu0 %v1840
  %v1919 = vpop.f32.mrb[0].mxu0
  %v1920 = vadd.f32 %v1835, %v1919
  %v1921 = vpop.f32.mrb[0].mxu0
  %1922 = vmatprep.mubr.f32.mxu0 0.0
  %1923 = vmatmul.mubr.f32.gmra.mrb[0].mxu0 %v1843
  %v1924 = vpop.f32.mrb[0].mxu0
  %v1925 = vadd.f32 %v1835, %v1924
  %v1926 = vpop.f32.mrb[0].mxu0
  %1927 = vmatprep.mubr.f32.mxu0 0.0
  %1928 = vmatmul.mubr.f32.gmra.mrb[0].mxu0 %v1846
  %v1929 = vpop.f32.mrb[0].mxu0
  %v1930 = vadd.f32 %v1835, %v1929
  %v1931 = vpop.f32.mrb[0].mxu0
  %1932 = vdwg.mxu0
  %v1933 = vadd.f32 %v32, %v1915
  %v1934 = vadd.f32 %v33, %v1920
  %v1935 = vadd.f32 %v34, %v1925
  %v1936 = vadd.f32 %v35, %v1930
  %v1937 = vsel %vm61, %v1933, 0.0
  %1938 = vadd.xlane.f32.xlu0 %v1937
  %v1939 = vpop.xlane.xlu0 %1938
  %v1940 = vsel %vm61, %v1934, 0.0
  %1941 = vadd.xlane.f32.xlu0 %v1940
  %v1942 = vpop.xlane.xlu0 %1941
  %v1943 = vsel %vm61, %v1935, 0.0
  %1944 = vadd.xlane.f32.xlu0 %v1943
  %v1945 = vpop.xlane.xlu0 %1944
  %v1946 = vsel %vm61, %v1936, 0.0
  %1947 = vadd.xlane.f32.xlu0 %v1946
  %v1948 = vpop.xlane.xlu0 %1947
  %v1949 = vrcp.pop 32.0
  %v1950 = vmul.f32 %v1939, %v1949
  %v1951 = vmul.f32 %v1942, %v1949
  %v1952 = vmul.f32 %v1945, %v1949
  %v1953 = vmul.f32 %v1948, %v1949
  %v1954 = vmul.f32 %v1933, %v1933
  %v1955 = vmul.f32 %v1934, %v1934
  %v1956 = vmul.f32 %v1935, %v1935
  %v1957 = vmul.f32 %v1936, %v1936
  %v1958 = vsel %vm61, %v1954, 0.0
  %1959 = vadd.xlane.f32.xlu0 %v1958
  %v1960 = vpop.xlane.xlu0 %1959
  %v1961 = vsel %vm61, %v1955, 0.0
  %1962 = vadd.xlane.f32.xlu0 %v1961
  %v1963 = vpop.xlane.xlu0 %1962
  %v1964 = vsel %vm61, %v1956, 0.0
  %1965 = vadd.xlane.f32.xlu0 %v1964
  %v1966 = vpop.xlane.xlu0 %1965
  %v1967 = vsel %vm61, %v1957, 0.0
  %1968 = vadd.xlane.f32.xlu0 %v1967
  %v1969 = vpop.xlane.xlu0 %1968
  %v1970 = vmul.f32 %v1960, %v1949
  %v1971 = vmul.f32 %v1963, %v1949
  %v1972 = vmul.f32 %v1966, %v1949
  %v1973 = vmul.f32 %v1969, %v1949
  %v1974 = vmul.f32 %v1950, %v1950
  %v1975 = vmul.f32 %v1951, %v1951
  %v1976 = vmul.f32 %v1952, %v1952
  %v1977 = vmul.f32 %v1953, %v1953
  %v1978 = vsub.f32 %v1970, %v1974
  %v1979 = vsub.f32 %v1971, %v1975
  %v1980 = vsub.f32 %v1972, %v1976
  %v1981 = vsub.f32 %v1973, %v1977
  %v1982 = vsub.f32 %v1933, %v1950
  %v1983 = vsub.f32 %v1934, %v1951
  %v1984 = vsub.f32 %v1935, %v1952
  %v1985 = vsub.f32 %v1936, %v1953
  %v1986 = vadd.f32 %v1978, 1e-05
  %v1987 = vadd.f32 %v1979, 1e-05
  %v1988 = vadd.f32 %v1980, 1e-05
  %v1989 = vadd.f32 %v1981, 1e-05
  %v1990 = vrsqrt.pop %v1986
  %v1991 = vrsqrt.pop %v1987
  %v1992 = vrsqrt.pop %v1988
  %v1993 = vrsqrt.pop %v1989
  %v1994 = vmul.f32 %v1982, %v1990
  %v1995 = vmul.f32 %v1983, %v1991
  %v1996 = vmul.f32 %v1984, %v1992
  %v1997 = vmul.f32 %v1985, %v1993
  %v1998 = vlaneseq
  %v1999 = vshrl.u32 %v1998, 7
  %v2000 = vsub.s32 5, %v1999
  %v2001 = vrot.slane %v51, %v2000
  %v2002 = vmul.f32 %v1994, %v2001
  %v2003 = vmul.f32 %v1995, %v2001
  %v2004 = vmul.f32 %v1996, %v2001
  %v2005 = vmul.f32 %v1997, %v2001
  %v2006 = vlaneseq
  %v2007 = vshrl.u32 %v2006, 7
  %v2008 = vsub.s32 6, %v2007
  %v2009 = vrot.slane %v51, %v2008
  %v2010 = vadd.f32 %v2002, %v2009
  %v2011 = vadd.f32 %v2003, %v2009
  %v2012 = vadd.f32 %v2004, %v2009
  %v2013 = vadd.f32 %v2005, %v2009
  %s2014 = scalar_lea.vmem %s3, 32
  %v2015 = vld [vmem:[%s2014] sm:$0xff]
  %v2016 = vld [vmem:[%s2014 + $0x8] sm:$0xff]
  %v2017 = vld [vmem:[%s2014 + $0x10] sm:$0xff]
  %v2018 = vld [vmem:[%s2014 + $0x18] sm:$0xff]
  %v2019 = vlaneseq
  %v2020 = vshrl.u32 %v2019, 7
  %v2021 = vsub.s32 3, %v2020
  %v2022 = vrot.slane %v51, %v2021
  %v2024 = vsel %vm61, %v2010, 0
  %v2027 = vsel %vm61, %v2011, 0
  %v2030 = vsel %vm61, %v2012, 0
  %v2033 = vsel %vm61, %v2013, 0
  %2035 = vmatprep.subr.mxu0 0.0
  %2036 = vmatpush1.msra.mxu0 %v2015
  %2037 = vmatprep.subr.mxu0 0.0
  %2038 = vmatpush1.msra.mxu0 %v2016
  %2039 = vmatprep.subr.mxu0 0.0
  %2040 = vmatpush1.msra.mxu0 %v2017
  %2041 = vmatprep.subr.mxu0 0.0
  %2042 = vmatpush1.msra.mxu0 %v2018
  %2043 = vmatprep.subr.mxu0 0.0
  %2044 = vmatpush1.msra.mxu0 0.0
  %2045 = vmatprep.subr.mxu0 0.0
  %2046 = vmatpush1.msra.mxu0 0.0
  %2047 = vmatprep.subr.mxu0 0.0
  %2048 = vmatpush1.msra.mxu0 0.0
  %2049 = vmatprep.subr.mxu0 0.0
  %2050 = vmatpush1.msra.mxu0 0.0
  %2051 = vmatprep.subr.mxu0 0.0
  %2052 = vmatpush1.msra.mxu0 0.0
  %2053 = vmatprep.subr.mxu0 0.0
  %2054 = vmatpush1.msra.mxu0 0.0
  %2055 = vmatprep.subr.mxu0 0.0
  %2056 = vmatpush1.msra.mxu0 0.0
  %2057 = vmatprep.subr.mxu0 0.0
  %2058 = vmatpush1.msra.mxu0 0.0
  %2059 = vmatprep.subr.mxu0 0.0
  %2060 = vmatpush1.msra.mxu0 0.0
  %2061 = vmatprep.subr.mxu0 0.0
  %2062 = vmatpush1.msra.mxu0 0.0
  %2063 = vmatprep.subr.mxu0 0.0
  %2064 = vmatpush1.msra.mxu0 0.0
  %2065 = vmatprep.subr.mxu0 0.0
  %2066 = vmatpush1.msra.mxu0 0.0
  %2067 = vmatprep.subr.mxu0 0.0
  %2068 = vmatpush1.msra.mxu0 0.0
  %2069 = vmatprep.subr.mxu0 0.0
  %2070 = vmatpush1.msra.mxu0 0.0
  %2071 = vmatprep.subr.mxu0 0.0
  %2072 = vmatpush1.msra.mxu0 0.0
  %2073 = vmatprep.subr.mxu0 0.0
  %2074 = vmatpush1.msra.mxu0 0.0
  %2075 = vmatprep.subr.mxu0 0.0
  %2076 = vmatpush1.msra.mxu0 0.0
  %2077 = vmatprep.subr.mxu0 0.0
  %2078 = vmatpush1.msra.mxu0 0.0
  %2079 = vmatprep.subr.mxu0 0.0
  %2080 = vmatpush1.msra.mxu0 0.0
  %2081 = vmatprep.subr.mxu0 0.0
  %2082 = vmatpush1.msra.mxu0 0.0
  %2083 = vmatprep.subr.mxu0 0.0
  %2084 = vmatpush1.msra.mxu0 0.0
  %2085 = vmatprep.subr.mxu0 0.0
  %2086 = vmatpush1.msra.mxu0 0.0
  %2087 = vmatprep.subr.mxu0 0.0
  %2088 = vmatpush1.msra.mxu0 0.0
  %2089 = vmatprep.subr.mxu0 0.0
  %2090 = vmatpush1.msra.mxu0 0.0
  %2091 = vmatprep.subr.mxu0 0.0
  %2092 = vmatpush1.msra.mxu0 0.0
  %2093 = vmatprep.subr.mxu0 0.0
  %2094 = vmatpush1.msra.mxu0 0.0
  %2095 = vmatprep.subr.mxu0 0.0
  %2096 = vmatpush1.msra.mxu0 0.0
  %2097 = vmatprep.subr.mxu0 0.0
  %2098 = vmatpush1.msra.mxu0 0.0
  %2099 = vmatprep.mubr.f32.mxu0 0.0
  %2100 = vmatmul.mubr.f32.gmra.mrb[0].mxu0 %v2024
  %v2101 = vpop.f32.mrb[0].mxu0
  %v2102 = vadd.f32 %v2022, %v2101
  %v2103 = vpop.f32.mrb[0].mxu0
  %2104 = vmatprep.mubr.f32.mxu0 0.0
  %2105 = vmatmul.mubr.f32.gmra.mrb[0].mxu0 %v2027
  %v2106 = vpop.f32.mrb[0].mxu0
  %v2107 = vadd.f32 %v2022, %v2106
  %v2108 = vpop.f32.mrb[0].mxu0
  %2109 = vmatprep.mubr.f32.mxu0 0.0
  %2110 = vmatmul.mubr.f32.gmra.mrb[0].mxu0 %v2030
  %v2111 = vpop.f32.mrb[0].mxu0
  %v2112 = vadd.f32 %v2022, %v2111
  %v2113 = vpop.f32.mrb[0].mxu0
  %2114 = vmatprep.mubr.f32.mxu0 0.0
  %2115 = vmatmul.mubr.f32.gmra.mrb[0].mxu0 %v2033
  %v2116 = vpop.f32.mrb[0].mxu0
  %v2117 = vadd.f32 %v2022, %v2116
  %v2118 = vpop.f32.mrb[0].mxu0
  %2119 = vdwg.mxu0
  %s2120 = scalar_lea.vmem %s2, 32
  %v2121 = vld [vmem:[%s2120] sm:$0xff]
  %v2122 = vld [vmem:[%s2120 + $0x8] sm:$0xff]
  %v2123 = vld [vmem:[%s2120 + $0x10] sm:$0xff]
  %v2124 = vld [vmem:[%s2120 + $0x18] sm:$0xff]
  %v2125 = vlaneseq
  %v2126 = vshrl.u32 %v2125, 7
  %v2127 = vsub.s32 1, %v2126
  %v2128 = vrot.slane %v51, %v2127
  %v2130 = vsel %vm61, %v36, 0
  %v2133 = vsel %vm61, %v37, 0
  %v2136 = vsel %vm61, %v38, 0
  %v2139 = vsel %vm61, %v39, 0
  %v2142 = vsel %vm61, %v40, 0
  %v2145 = vsel %vm61, %v41, 0
  %2147 = vmatprep.subr.mxu0 0.0
  %2148 = vmatpush1.msra.mxu0 %v2121
  %2149 = vmatprep.subr.mxu0 0.0
  %2150 = vmatpush1.msra.mxu0 %v2122
  %2151 = vmatprep.subr.mxu0 0.0
  %2152 = vmatpush1.msra.mxu0 %v2123
  %2153 = vmatprep.subr.mxu0 0.0
  %2154 = vmatpush1.msra.mxu0 %v2124
  %2155 = vmatprep.subr.mxu0 0.0
  %2156 = vmatpush1.msra.mxu0 0.0
  %2157 = vmatprep.subr.mxu0 0.0
  %2158 = vmatpush1.msra.mxu0 0.0
  %2159 = vmatprep.subr.mxu0 0.0
  %2160 = vmatpush1.msra.mxu0 0.0
  %2161 = vmatprep.subr.mxu0 0.0
  %2162 = vmatpush1.msra.mxu0 0.0
  %2163 = vmatprep.subr.mxu0 0.0
  %2164 = vmatpush1.msra.mxu0 0.0
  %2165 = vmatprep.subr.mxu0 0.0
  %2166 = vmatpush1.msra.mxu0 0.0
  %2167 = vmatprep.subr.mxu0 0.0
  %2168 = vmatpush1.msra.mxu0 0.0
  %2169 = vmatprep.subr.mxu0 0.0
  %2170 = vmatpush1.msra.mxu0 0.0
  %2171 = vmatprep.subr.mxu0 0.0
  %2172 = vmatpush1.msra.mxu0 0.0
  %2173 = vmatprep.subr.mxu0 0.0
  %2174 = vmatpush1.msra.mxu0 0.0
  %2175 = vmatprep.subr.mxu0 0.0
  %2176 = vmatpush1.msra.mxu0 0.0
  %2177 = vmatprep.subr.mxu0 0.0
  %2178 = vmatpush1.msra.mxu0 0.0
  %2179 = vmatprep.subr.mxu0 0.0
  %2180 = vmatpush1.msra.mxu0 0.0
  %2181 = vmatprep.subr.mxu0 0.0
  %2182 = vmatpush1.msra.mxu0 0.0
  %2183 = vmatprep.subr.mxu0 0.0
  %2184 = vmatpush1.msra.mxu0 0.0
  %2185 = vmatprep.subr.mxu0 0.0
  %2186 = vmatpush1.msra.mxu0 0.0
  %2187 = vmatprep.subr.mxu0 0.0
  %2188 = vmatpush1.msra.mxu0 0.0
  %2189 = vmatprep.subr.mxu0 0.0
  %2190 = vmatpush1.msra.mxu0 0.0
  %2191 = vmatprep.subr.mxu0 0.0
  %2192 = vmatpush1.msra.mxu0 0.0
  %2193 = vmatprep.subr.mxu0 0.0
  %2194 = vmatpush1.msra.mxu0 0.0
  %2195 = vmatprep.subr.mxu0 0.0
  %2196 = vmatpush1.msra.mxu0 0.0
  %2197 = vmatprep.subr.mxu0 0.0
  %2198 = vmatpush1.msra.mxu0 0.0
  %2199 = vmatprep.subr.mxu0 0.0
  %2200 = vmatpush1.msra.mxu0 0.0
  %2201 = vmatprep.subr.mxu0 0.0
  %2202 = vmatpush1.msra.mxu0 0.0
  %2203 = vmatprep.subr.mxu0 0.0
  %2204 = vmatpush1.msra.mxu0 0.0
  %2205 = vmatprep.subr.mxu0 0.0
  %2206 = vmatpush1.msra.mxu0 0.0
  %2207 = vmatprep.subr.mxu0 0.0
  %2208 = vmatpush1.msra.mxu0 0.0
  %2209 = vmatprep.subr.mxu0 0.0
  %2210 = vmatpush1.msra.mxu0 0.0
  %2211 = vmatprep.mubr.f32.mxu0 0.0
  %2212 = vmatmul.mubr.f32.gmra.mrb[0].mxu0 %v2130
  %v2213 = vpop.f32.mrb[0].mxu0
  %v2214 = vadd.f32 %v2128, %v2213
  %v2215 = vpop.f32.mrb[0].mxu0
  %2216 = vmatprep.mubr.f32.mxu0 0.0
  %2217 = vmatmul.mubr.f32.gmra.mrb[0].mxu0 %v2133
  %v2218 = vpop.f32.mrb[0].mxu0
  %v2219 = vadd.f32 %v2128, %v2218
  %v2220 = vpop.f32.mrb[0].mxu0
  %2221 = vmatprep.mubr.f32.mxu0 0.0
  %2222 = vmatmul.mubr.f32.gmra.mrb[0].mxu0 %v2136
  %v2223 = vpop.f32.mrb[0].mxu0
  %v2224 = vadd.f32 %v2128, %v2223
  %v2225 = vpop.f32.mrb[0].mxu0
  %2226 = vmatprep.mubr.f32.mxu0 0.0
  %2227 = vmatmul.mubr.f32.gmra.mrb[0].mxu0 %v2139
  %v2228 = vpop.f32.mrb[0].mxu0
  %v2229 = vadd.f32 %v2128, %v2228
  %v2230 = vpop.f32.mrb[0].mxu0
  %2231 = vmatprep.mubr.f32.mxu0 0.0
  %2232 = vmatmul.mubr.f32.gmra.mrb[0].mxu0 %v2142
  %v2233 = vpop.f32.mrb[0].mxu0
  %v2234 = vadd.f32 %v2128, %v2233
  %v2235 = vpop.f32.mrb[0].mxu0
  %2236 = vmatprep.mubr.f32.mxu0 0.0
  %2237 = vmatmul.mubr.f32.gmra.mrb[0].mxu0 %v2145
  %v2238 = vpop.f32.mrb[0].mxu0
  %v2239 = vadd.f32 %v2128, %v2238
  %v2240 = vpop.f32.mrb[0].mxu0
  %2241 = vdwg.mxu0
  %s2242 = scalar_lea.vmem %s3, 64
  %v2243 = vld [vmem:[%s2242] sm:$0xff]
  %v2244 = vld [vmem:[%s2242 + $0x8] sm:$0xff]
  %v2245 = vld [vmem:[%s2242 + $0x10] sm:$0xff]
  %v2246 = vld [vmem:[%s2242 + $0x18] sm:$0xff]
  %v2248 = vsel %vm169, %v2102, 0
  %v2251 = vsel %vm169, %v2107, 0
  %v2254 = vsel %vm169, %v2214, 0
  %v2257 = vsel %vm169, %v2219, 0
  %v2260 = vsel %vm169, %v2224, 0
  %2262 = vmatprep.subr.mxu0 0.0
  %2263 = vmatpush1.xpose.msra.mxu0 %v2254
  %2264 = vmatprep.subr.mxu0 0.0
  %2265 = vmatpush1.xpose.msra.mxu0 %v2257
  %2266 = vmatprep.subr.mxu0 0.0
  %2267 = vmatpush1.xpose.msra.mxu0 %v2260
  %2268 = vmatprep.subr.mxu0 0.0
  %2269 = vmatpush1.xpose.msra.mxu0 0.0
  %2270 = vmatprep.subr.mxu0 0.0
  %2271 = vmatpush1.xpose.msra.mxu0 0.0
  %2272 = vmatprep.subr.mxu0 0.0
  %2273 = vmatpush1.xpose.msra.mxu0 0.0
  %2274 = vmatprep.subr.mxu0 0.0
  %2275 = vmatpush1.xpose.msra.mxu0 0.0
  %2276 = vmatprep.subr.mxu0 0.0
  %2277 = vmatpush1.xpose.msra.mxu0 0.0
  %2278 = vmatprep.subr.mxu0 0.0
  %2279 = vmatpush1.xpose.msra.mxu0 0.0
  %2280 = vmatprep.subr.mxu0 0.0
  %2281 = vmatpush1.xpose.msra.mxu0 0.0
  %2282 = vmatprep.subr.mxu0 0.0
  %2283 = vmatpush1.xpose.msra.mxu0 0.0
  %2284 = vmatprep.subr.mxu0 0.0
  %2285 = vmatpush1.xpose.msra.mxu0 0.0
  %2286 = vmatprep.subr.mxu0 0.0
  %2287 = vmatpush1.xpose.msra.mxu0 0.0
  %2288 = vmatprep.subr.mxu0 0.0
  %2289 = vmatpush1.xpose.msra.mxu0 0.0
  %2290 = vmatprep.subr.mxu0 0.0
  %2291 = vmatpush1.xpose.msra.mxu0 0.0
  %2292 = vmatprep.subr.mxu0 0.0
  %2293 = vmatpush1.xpose.msra.mxu0 0.0
  %2294 = vmatprep.subr.mxu0 0.0
  %2295 = vmatpush1.xpose.msra.mxu0 0.0
  %2296 = vmatprep.subr.mxu0 0.0
  %2297 = vmatpush1.xpose.msra.mxu0 0.0
  %2298 = vmatprep.subr.mxu0 0.0
  %2299 = vmatpush1.xpose.msra.mxu0 0.0
  %2300 = vmatprep.subr.mxu0 0.0
  %2301 = vmatpush1.xpose.msra.mxu0 0.0
  %2302 = vmatprep.subr.mxu0 0.0
  %2303 = vmatpush1.xpose.msra.mxu0 0.0
  %2304 = vmatprep.subr.mxu0 0.0
  %2305 = vmatpush1.xpose.msra.mxu0 0.0
  %2306 = vmatprep.subr.mxu0 0.0
  %2307 = vmatpush1.xpose.msra.mxu0 0.0
  %2308 = vmatprep.subr.mxu0 0.0
  %2309 = vmatpush1.xpose.msra.mxu0 0.0
  %2310 = vmatprep.subr.mxu0 0.0
  %2311 = vmatpush1.xpose.msra.mxu0 0.0
  %2312 = vmatprep.subr.mxu0 0.0
  %2313 = vmatpush1.xpose.msra.mxu0 0.0
  %2314 = vmatprep.subr.mxu0 0.0
  %2315 = vmatpush1.xpose.msra.mxu0 0.0
  %2316 = vmatprep.subr.mxu0 0.0
  %2317 = vmatpush1.xpose.msra.mxu0 0.0
  %2318 = vmatprep.subr.mxu0 0.0
  %2319 = vmatpush1.xpose.msra.mxu0 0.0
  %2320 = vmatprep.subr.mxu0 0.0
  %2321 = vmatpush1.xpose.msra.mxu0 0.0
  %2322 = vmatprep.subr.mxu0 0.0
  %2323 = vmatpush1.xpose.msra.mxu0 0.0
  %2324 = vmatprep.subr.mxu0 0.0
  %2325 = vmatpush1.xpose.msra.mxu0 0.0
  %2326 = vmatprep.mubr.f32.mxu0 0.0
  %2327 = vmatmul.mubr.f32.gmra.mrb[0].mxu0 %v2248
  %v2328 = vpop.f32.mrb[0].mxu0
  %v2329 = vadd.f32 0.0, %v2328
  %v2330 = vpop.f32.mrb[0].mxu0
  %2331 = vmatprep.mubr.f32.mxu0 0.0
  %2332 = vmatmul.mubr.f32.gmra.mrb[0].mxu0 %v2251
  %v2333 = vpop.f32.mrb[0].mxu0
  %v2334 = vadd.f32 0.0, %v2333
  %v2335 = vpop.f32.mrb[0].mxu0
  %2336 = vdwg.mxu0
  %v2338 = vsel %vm169, %v2112, 0
  %v2341 = vsel %vm169, %v2117, 0
  %v2344 = vsel %vm169, %v2229, 0
  %v2347 = vsel %vm169, %v2234, 0
  %v2350 = vsel %vm169, %v2239, 0
  %2352 = vmatprep.subr.mxu0 0.0
  %2353 = vmatpush1.xpose.msra.mxu0 %v2344
  %2354 = vmatprep.subr.mxu0 0.0
  %2355 = vmatpush1.xpose.msra.mxu0 %v2347
  %2356 = vmatprep.subr.mxu0 0.0
  %2357 = vmatpush1.xpose.msra.mxu0 %v2350
  %2358 = vmatprep.subr.mxu0 0.0
  %2359 = vmatpush1.xpose.msra.mxu0 0.0
  %2360 = vmatprep.subr.mxu0 0.0
  %2361 = vmatpush1.xpose.msra.mxu0 0.0
  %2362 = vmatprep.subr.mxu0 0.0
  %2363 = vmatpush1.xpose.msra.mxu0 0.0
  %2364 = vmatprep.subr.mxu0 0.0
  %2365 = vmatpush1.xpose.msra.mxu0 0.0
  %2366 = vmatprep.subr.mxu0 0.0
  %2367 = vmatpush1.xpose.msra.mxu0 0.0
  %2368 = vmatprep.subr.mxu0 0.0
  %2369 = vmatpush1.xpose.msra.mxu0 0.0
  %2370 = vmatprep.subr.mxu0 0.0
  %2371 = vmatpush1.xpose.msra.mxu0 0.0
  %2372 = vmatprep.subr.mxu0 0.0
  %2373 = vmatpush1.xpose.msra.mxu0 0.0
  %2374 = vmatprep.subr.mxu0 0.0
  %2375 = vmatpush1.xpose.msra.mxu0 0.0
  %2376 = vmatprep.subr.mxu0 0.0
  %2377 = vmatpush1.xpose.msra.mxu0 0.0
  %2378 = vmatprep.subr.mxu0 0.0
  %2379 = vmatpush1.xpose.msra.mxu0 0.0
  %2380 = vmatprep.subr.mxu0 0.0
  %2381 = vmatpush1.xpose.msra.mxu0 0.0
  %2382 = vmatprep.subr.mxu0 0.0
  %2383 = vmatpush1.xpose.msra.mxu0 0.0
  %2384 = vmatprep.subr.mxu0 0.0
  %2385 = vmatpush1.xpose.msra.mxu0 0.0
  %2386 = vmatprep.subr.mxu0 0.0
  %2387 = vmatpush1.xpose.msra.mxu0 0.0
  %2388 = vmatprep.subr.mxu0 0.0
  %2389 = vmatpush1.xpose.msra.mxu0 0.0
  %2390 = vmatprep.subr.mxu0 0.0
  %2391 = vmatpush1.xpose.msra.mxu0 0.0
  %2392 = vmatprep.subr.mxu0 0.0
  %2393 = vmatpush1.xpose.msra.mxu0 0.0
  %2394 = vmatprep.subr.mxu0 0.0
  %2395 = vmatpush1.xpose.msra.mxu0 0.0
  %2396 = vmatprep.subr.mxu0 0.0
  %2397 = vmatpush1.xpose.msra.mxu0 0.0
  %2398 = vmatprep.subr.mxu0 0.0
  %2399 = vmatpush1.xpose.msra.mxu0 0.0
  %2400 = vmatprep.subr.mxu0 0.0
  %2401 = vmatpush1.xpose.msra.mxu0 0.0
  %2402 = vmatprep.subr.mxu0 0.0
  %2403 = vmatpush1.xpose.msra.mxu0 0.0
  %2404 = vmatprep.subr.mxu0 0.0
  %2405 = vmatpush1.xpose.msra.mxu0 0.0
  %2406 = vmatprep.subr.mxu0 0.0
  %2407 = vmatpush1.xpose.msra.mxu0 0.0
  %2408 = vmatprep.subr.mxu0 0.0
  %2409 = vmatpush1.xpose.msra.mxu0 0.0
  %2410 = vmatprep.subr.mxu0 0.0
  %2411 = vmatpush1.xpose.msra.mxu0 0.0
  %2412 = vmatprep.subr.mxu0 0.0
  %2413 = vmatpush1.xpose.msra.mxu0 0.0
  %2414 = vmatprep.subr.mxu0 0.0
  %2415 = vmatpush1.xpose.msra.mxu0 0.0
  %2416 = vmatprep.mubr.f32.mxu0 0.0
  %2417 = vmatmul.mubr.f32.gmra.mrb[0].mxu0 %v2338
  %v2418 = vpop.f32.mrb[0].mxu0
  %v2419 = vadd.f32 0.0, %v2418
  %v2420 = vpop.f32.mrb[0].mxu0
  %2421 = vmatprep.mubr.f32.mxu0 0.0
  %2422 = vmatmul.mubr.f32.gmra.mrb[0].mxu0 %v2341
  %v2423 = vpop.f32.mrb[0].mxu0
  %v2424 = vadd.f32 0.0, %v2423
  %v2425 = vpop.f32.mrb[0].mxu0
  %2426 = vdwg.mxu0
  %vm2427 = vcmask 195584
  %v2428 = vsel %vm2427, %v2329, -inf
  %2429 = vmax.xlane.f32.xlu0 %v2428
  %v2430 = vpop.xlane.xlu0 %2429
  %v2431 = vsel %vm2427, %v2334, -inf
  %2432 = vmax.xlane.f32.xlu0 %v2431
  %v2433 = vpop.xlane.xlu0 %2432
  %v2434 = vsel %vm2427, %v2419, -inf
  %2435 = vmax.xlane.f32.xlu0 %v2434
  %v2436 = vpop.xlane.xlu0 %2435
  %v2437 = vsel %vm2427, %v2424, -inf
  %2438 = vmax.xlane.f32.xlu0 %v2437
  %v2439 = vpop.xlane.xlu0 %2438
  %v2440 = vsub.f32 %v2329, %v2430
  %v2441 = vsub.f32 %v2334, %v2433
  %v2442 = vsub.f32 %v2419, %v2436
  %v2443 = vsub.f32 %v2424, %v2439
  %v2444 = vmul.f32 %v2440, 1.442695
  %v2445 = vpow.pop %v2444
  %v2446 = vmul.f32 %v2441, 1.442695
  %v2447 = vpow.pop %v2446
  %v2448 = vmul.f32 %v2442, 1.442695
  %v2449 = vpow.pop %v2448
  %v2450 = vmul.f32 %v2443, 1.442695
  %v2451 = vpow.pop %v2450
  %v2452 = vsel %vm2427, %v2445, 0.0
  %2453 = vadd.xlane.f32.xlu0 %v2452
  %v2454 = vpop.xlane.xlu0 %2453
  %v2455 = vsel %vm2427, %v2447, 0.0
  %2456 = vadd.xlane.f32.xlu0 %v2455
  %v2457 = vpop.xlane.xlu0 %2456
  %v2458 = vsel %vm2427, %v2449, 0.0
  %2459 = vadd.xlane.f32.xlu0 %v2458
  %v2460 = vpop.xlane.xlu0 %2459
  %v2461 = vsel %vm2427, %v2451, 0.0
  %2462 = vadd.xlane.f32.xlu0 %v2461
  %v2463 = vpop.xlane.xlu0 %2462
  %v2464 = vrcp.pop %v2454
  %v2465 = vrcp.pop %v2457
  %v2466 = vrcp.pop %v2460
  %v2467 = vrcp.pop %v2463
  %v2468 = vmul.f32 %v2445, %v2464
  %v2469 = vmul.f32 %v2447, %v2465
  %v2470 = vmul.f32 %v2449, %v2466
  %v2471 = vmul.f32 %v2451, %v2467
  %2472 = vrot.lane.b32.xlu0 %v2214, 96
  %v2473 = vpop.permute.xlu0 %2472
  %2474 = vrot.lane.b32.xlu0 %v2219, 96
  %v2475 = vpop.permute.xlu0 %2474
  %2476 = vrot.lane.b32.xlu0 %v2224, 96
  %v2477 = vpop.permute.xlu0 %2476
  %v2482 = vsel %vm2427, %v2468, 0
  %v2485 = vsel %vm2427, %v2469, 0
  %2487 = vmatprep.subr.mxu0 0.0
  %2488 = vmatpush1.msra.mxu0 %v2473
  %2489 = vmatprep.subr.mxu0 0.0
  %2490 = vmatpush1.msra.mxu0 %v2475
  %2491 = vmatprep.subr.mxu0 0.0
  %2492 = vmatpush1.msra.mxu0 %v2477
  %2493 = vmatprep.subr.mxu0 0.0
  %2494 = vmatpush1.msra.mxu0 0.0
  %2495 = vmatprep.subr.mxu0 0.0
  %2496 = vmatpush1.msra.mxu0 0.0
  %2497 = vmatprep.subr.mxu0 0.0
  %2498 = vmatpush1.msra.mxu0 0.0
  %2499 = vmatprep.subr.mxu0 0.0
  %2500 = vmatpush1.msra.mxu0 0.0
  %2501 = vmatprep.subr.mxu0 0.0
  %2502 = vmatpush1.msra.mxu0 0.0
  %2503 = vmatprep.subr.mxu0 0.0
  %2504 = vmatpush1.msra.mxu0 0.0
  %2505 = vmatprep.subr.mxu0 0.0
  %2506 = vmatpush1.msra.mxu0 0.0
  %2507 = vmatprep.subr.mxu0 0.0
  %2508 = vmatpush1.msra.mxu0 0.0
  %2509 = vmatprep.subr.mxu0 0.0
  %2510 = vmatpush1.msra.mxu0 0.0
  %2511 = vmatprep.subr.mxu0 0.0
  %2512 = vmatpush1.msra.mxu0 0.0
  %2513 = vmatprep.subr.mxu0 0.0
  %2514 = vmatpush1.msra.mxu0 0.0
  %2515 = vmatprep.subr.mxu0 0.0
  %2516 = vmatpush1.msra.mxu0 0.0
  %2517 = vmatprep.subr.mxu0 0.0
  %2518 = vmatpush1.msra.mxu0 0.0
  %2519 = vmatprep.subr.mxu0 0.0
  %2520 = vmatpush1.msra.mxu0 0.0
  %2521 = vmatprep.subr.mxu0 0.0
  %2522 = vmatpush1.msra.mxu0 0.0
  %2523 = vmatprep.subr.mxu0 0.0
  %2524 = vmatpush1.msra.mxu0 0.0
  %2525 = vmatprep.subr.mxu0 0.0
  %2526 = vmatpush1.msra.mxu0 0.0
  %2527 = vmatprep.subr.mxu0 0.0
  %2528 = vmatpush1.msra.mxu0 0.0
  %2529 = vmatprep.subr.mxu0 0.0
  %2530 = vmatpush1.msra.mxu0 0.0
  %2531 = vmatprep.subr.mxu0 0.0
  %2532 = vmatpush1.msra.mxu0 0.0
  %2533 = vmatprep.subr.mxu0 0.0
  %2534 = vmatpush1.msra.mxu0 0.0
  %2535 = vmatprep.subr.mxu0 0.0
  %2536 = vmatpush1.msra.mxu0 0.0
  %2537 = vmatprep.subr.mxu0 0.0
  %2538 = vmatpush1.msra.mxu0 0.0
  %2539 = vmatprep.subr.mxu0 0.0
  %2540 = vmatpush1.msra.mxu0 0.0
  %2541 = vmatprep.subr.mxu0 0.0
  %2542 = vmatpush1.msra.mxu0 0.0
  %2543 = vmatprep.subr.mxu0 0.0
  %2544 = vmatpush1.msra.mxu0 0.0
  %2545 = vmatprep.subr.mxu0 0.0
  %2546 = vmatpush1.msra.mxu0 0.0
  %2547 = vmatprep.subr.mxu0 0.0
  %2548 = vmatpush1.msra.mxu0 0.0
  %2549 = vmatprep.subr.mxu0 0.0
  %2550 = vmatpush1.msra.mxu0 0.0
  %2551 = vmatprep.mubr.f32.mxu0 0.0
  %2552 = vmatmul.mubr.f32.gmra.mrb[0].mxu0 %v2482
  %v2553 = vpop.f32.mrb[0].mxu0
  %v2554 = vadd.f32 0.0, %v2553
  %v2555 = vpop.f32.mrb[0].mxu0
  %2556 = vmatprep.mubr.f32.mxu0 0.0
  %2557 = vmatmul.mubr.f32.gmra.mrb[0].mxu0 %v2485
  %v2558 = vpop.f32.mrb[0].mxu0
  %v2559 = vadd.f32 0.0, %v2558
  %v2560 = vpop.f32.mrb[0].mxu0
  %2561 = vdwg.mxu0
  %2562 = vrot.lane.b32.xlu0 %v2229, 96
  %v2563 = vpop.permute.xlu0 %2562
  %2564 = vrot.lane.b32.xlu0 %v2234, 96
  %v2565 = vpop.permute.xlu0 %2564
  %2566 = vrot.lane.b32.xlu0 %v2239, 96
  %v2567 = vpop.permute.xlu0 %2566
  %v2572 = vsel %vm2427, %v2470, 0
  %v2575 = vsel %vm2427, %v2471, 0
  %2577 = vmatprep.subr.mxu0 0.0
  %2578 = vmatpush1.msra.mxu0 %v2563
  %2579 = vmatprep.subr.mxu0 0.0
  %2580 = vmatpush1.msra.mxu0 %v2565
  %2581 = vmatprep.subr.mxu0 0.0
  %2582 = vmatpush1.msra.mxu0 %v2567
  %2583 = vmatprep.subr.mxu0 0.0
  %2584 = vmatpush1.msra.mxu0 0.0
  %2585 = vmatprep.subr.mxu0 0.0
  %2586 = vmatpush1.msra.mxu0 0.0
  %2587 = vmatprep.subr.mxu0 0.0
  %2588 = vmatpush1.msra.mxu0 0.0
  %2589 = vmatprep.subr.mxu0 0.0
  %2590 = vmatpush1.msra.mxu0 0.0
  %2591 = vmatprep.subr.mxu0 0.0
  %2592 = vmatpush1.msra.mxu0 0.0
  %2593 = vmatprep.subr.mxu0 0.0
  %2594 = vmatpush1.msra.mxu0 0.0
  %2595 = vmatprep.subr.mxu0 0.0
  %2596 = vmatpush1.msra.mxu0 0.0
  %2597 = vmatprep.subr.mxu0 0.0
  %2598 = vmatpush1.msra.mxu0 0.0
  %2599 = vmatprep.subr.mxu0 0.0
  %2600 = vmatpush1.msra.mxu0 0.0
  %2601 = vmatprep.subr.mxu0 0.0
  %2602 = vmatpush1.msra.mxu0 0.0
  %2603 = vmatprep.subr.mxu0 0.0
  %2604 = vmatpush1.msra.mxu0 0.0
  %2605 = vmatprep.subr.mxu0 0.0
  %2606 = vmatpush1.msra.mxu0 0.0
  %2607 = vmatprep.subr.mxu0 0.0
  %2608 = vmatpush1.msra.mxu0 0.0
  %2609 = vmatprep.subr.mxu0 0.0
  %2610 = vmatpush1.msra.mxu0 0.0
  %2611 = vmatprep.subr.mxu0 0.0
  %2612 = vmatpush1.msra.mxu0 0.0
  %2613 = vmatprep.subr.mxu0 0.0
  %2614 = vmatpush1.msra.mxu0 0.0
  %2615 = vmatprep.subr.mxu0 0.0
  %2616 = vmatpush1.msra.mxu0 0.0
  %2617 = vmatprep.subr.mxu0 0.0
  %2618 = vmatpush1.msra.mxu0 0.0
  %2619 = vmatprep.subr.mxu0 0.0
  %2620 = vmatpush1.msra.mxu0 0.0
  %2621 = vmatprep.subr.mxu0 0.0
  %2622 = vmatpush1.msra.mxu0 0.0
  %2623 = vmatprep.subr.mxu0 0.0
  %2624 = vmatpush1.msra.mxu0 0.0
  %2625 = vmatprep.subr.mxu0 0.0
  %2626 = vmatpush1.msra.mxu0 0.0
  %2627 = vmatprep.subr.mxu0 0.0
  %2628 = vmatpush1.msra.mxu0 0.0
  %2629 = vmatprep.subr.mxu0 0.0
  %2630 = vmatpush1.msra.mxu0 0.0
  %2631 = vmatprep.subr.mxu0 0.0
  %2632 = vmatpush1.msra.mxu0 0.0
  %2633 = vmatprep.subr.mxu0 0.0
  %2634 = vmatpush1.msra.mxu0 0.0
  %2635 = vmatprep.subr.mxu0 0.0
  %2636 = vmatpush1.msra.mxu0 0.0
  %2637 = vmatprep.subr.mxu0 0.0
  %2638 = vmatpush1.msra.mxu0 0.0
  %2639 = vmatprep.subr.mxu0 0.0
  %2640 = vmatpush1.msra.mxu0 0.0
  %2641 = vmatprep.mubr.f32.mxu0 0.0
  %2642 = vmatmul.mubr.f32.gmra.mrb[0].mxu0 %v2572
  %v2643 = vpop.f32.mrb[0].mxu0
  %v2644 = vadd.f32 0.0, %v2643
  %v2645 = vpop.f32.mrb[0].mxu0
  %2646 = vmatprep.mubr.f32.mxu0 0.0
  %2647 = vmatmul.mubr.f32.gmra.mrb[0].mxu0 %v2575
  %v2648 = vpop.f32.mrb[0].mxu0
  %v2649 = vadd.f32 0.0, %v2648
  %v2650 = vpop.f32.mrb[0].mxu0
  %2651 = vdwg.mxu0
  %2652 = vst.msk [vmem:[#allocation2] sm:$0xff] %vm169, %v2554
  %2653 = vst.msk [vmem:[#allocation2 + $0x8] sm:$0xff] %vm169, %v2559
  %2654 = vst.msk [vmem:[#allocation2 + $0x10] sm:$0xff] %vm169, %v2644
  %2655 = vst.msk [vmem:[#allocation2 + $0x18] sm:$0xff] %vm169, %v2649
  %2656 = vrot.lane.b32.xlu0 %v2102, 120
  %v2657 = vpop.permute.xlu0 %2656
  %2658 = vrot.lane.b32.xlu0 %v2107, 120
  %v2659 = vpop.permute.xlu0 %2658
  %2660 = vrot.lane.b32.xlu0 %v2214, 120
  %v2661 = vpop.permute.xlu0 %2660
  %2662 = vrot.lane.b32.xlu0 %v2219, 120
  %v2663 = vpop.permute.xlu0 %2662
  %2664 = vrot.lane.b32.xlu0 %v2224, 120
  %v2665 = vpop.permute.xlu0 %2664
  %v2666 = vsel %vm169, %v2657, 0
  %v2668 = vsel %vm169, %v2659, 0
  %v2670 = vsel %vm169, %v2661, 0
  %v2672 = vsel %vm169, %v2663, 0
  %v2674 = vsel %vm169, %v2665, 0
  %2676 = vmatprep.subr.mxu0 0.0
  %2677 = vmatpush1.xpose.msra.mxu0 %v2670
  %2678 = vmatprep.subr.mxu0 0.0
  %2679 = vmatpush1.xpose.msra.mxu0 %v2672
  %2680 = vmatprep.subr.mxu0 0.0
  %2681 = vmatpush1.xpose.msra.mxu0 %v2674
  %2682 = vmatprep.subr.mxu0 0.0
  %2683 = vmatpush1.xpose.msra.mxu0 0.0
  %2684 = vmatprep.subr.mxu0 0.0
  %2685 = vmatpush1.xpose.msra.mxu0 0.0
  %2686 = vmatprep.subr.mxu0 0.0
  %2687 = vmatpush1.xpose.msra.mxu0 0.0
  %2688 = vmatprep.subr.mxu0 0.0
  %2689 = vmatpush1.xpose.msra.mxu0 0.0
  %2690 = vmatprep.subr.mxu0 0.0
  %2691 = vmatpush1.xpose.msra.mxu0 0.0
  %2692 = vmatprep.subr.mxu0 0.0
  %2693 = vmatpush1.xpose.msra.mxu0 0.0
  %2694 = vmatprep.subr.mxu0 0.0
  %2695 = vmatpush1.xpose.msra.mxu0 0.0
  %2696 = vmatprep.subr.mxu0 0.0
  %2697 = vmatpush1.xpose.msra.mxu0 0.0
  %2698 = vmatprep.subr.mxu0 0.0
  %2699 = vmatpush1.xpose.msra.mxu0 0.0
  %2700 = vmatprep.subr.mxu0 0.0
  %2701 = vmatpush1.xpose.msra.mxu0 0.0
  %2702 = vmatprep.subr.mxu0 0.0
  %2703 = vmatpush1.xpose.msra.mxu0 0.0
  %2704 = vmatprep.subr.mxu0 0.0
  %2705 = vmatpush1.xpose.msra.mxu0 0.0
  %2706 = vmatprep.subr.mxu0 0.0
  %2707 = vmatpush1.xpose.msra.mxu0 0.0
  %2708 = vmatprep.subr.mxu0 0.0
  %2709 = vmatpush1.xpose.msra.mxu0 0.0
  %2710 = vmatprep.subr.mxu0 0.0
  %2711 = vmatpush1.xpose.msra.mxu0 0.0
  %2712 = vmatprep.subr.mxu0 0.0
  %2713 = vmatpush1.xpose.msra.mxu0 0.0
  %2714 = vmatprep.subr.mxu0 0.0
  %2715 = vmatpush1.xpose.msra.mxu0 0.0
  %2716 = vmatprep.subr.mxu0 0.0
  %2717 = vmatpush1.xpose.msra.mxu0 0.0
  %2718 = vmatprep.subr.mxu0 0.0
  %2719 = vmatpush1.xpose.msra.mxu0 0.0
  %2720 = vmatprep.subr.mxu0 0.0
  %2721 = vmatpush1.xpose.msra.mxu0 0.0
  %2722 = vmatprep.subr.mxu0 0.0
  %2723 = vmatpush1.xpose.msra.mxu0 0.0
  %2724 = vmatprep.subr.mxu0 0.0
  %2725 = vmatpush1.xpose.msra.mxu0 0.0
  %2726 = vmatprep.subr.mxu0 0.0
  %2727 = vmatpush1.xpose.msra.mxu0 0.0
  %2728 = vmatprep.subr.mxu0 0.0
  %2729 = vmatpush1.xpose.msra.mxu0 0.0
  %2730 = vmatprep.subr.mxu0 0.0
  %2731 = vmatpush1.xpose.msra.mxu0 0.0
  %2732 = vmatprep.subr.mxu0 0.0
  %2733 = vmatpush1.xpose.msra.mxu0 0.0
  %2734 = vmatprep.subr.mxu0 0.0
  %2735 = vmatpush1.xpose.msra.mxu0 0.0
  %2736 = vmatprep.subr.mxu0 0.0
  %2737 = vmatpush1.xpose.msra.mxu0 0.0
  %2738 = vmatprep.subr.mxu0 0.0
  %2739 = vmatpush1.xpose.msra.mxu0 0.0
  %2740 = vmatprep.mubr.f32.mxu0 0.0
  %2741 = vmatmul.mubr.f32.gmra.mrb[0].mxu0 %v2666
  %v2742 = vpop.f32.mrb[0].mxu0
  %v2743 = vadd.f32 0.0, %v2742
  %v2744 = vpop.f32.mrb[0].mxu0
  %2745 = vmatprep.mubr.f32.mxu0 0.0
  %2746 = vmatmul.mubr.f32.gmra.mrb[0].mxu0 %v2668
  %v2747 = vpop.f32.mrb[0].mxu0
  %v2748 = vadd.f32 0.0, %v2747
  %v2749 = vpop.f32.mrb[0].mxu0
  %2750 = vdwg.mxu0
  %2751 = vrot.lane.b32.xlu0 %v2112, 120
  %v2752 = vpop.permute.xlu0 %2751
  %2753 = vrot.lane.b32.xlu0 %v2117, 120
  %v2754 = vpop.permute.xlu0 %2753
  %2755 = vrot.lane.b32.xlu0 %v2229, 120
  %v2756 = vpop.permute.xlu0 %2755
  %2757 = vrot.lane.b32.xlu0 %v2234, 120
  %v2758 = vpop.permute.xlu0 %2757
  %2759 = vrot.lane.b32.xlu0 %v2239, 120
  %v2760 = vpop.permute.xlu0 %2759
  %v2761 = vsel %vm169, %v2752, 0
  %v2763 = vsel %vm169, %v2754, 0
  %v2765 = vsel %vm169, %v2756, 0
  %v2767 = vsel %vm169, %v2758, 0
  %v2769 = vsel %vm169, %v2760, 0
  %2771 = vmatprep.subr.mxu0 0.0
  %2772 = vmatpush1.xpose.msra.mxu0 %v2765
  %2773 = vmatprep.subr.mxu0 0.0
  %2774 = vmatpush1.xpose.msra.mxu0 %v2767
  %2775 = vmatprep.subr.mxu0 0.0
  %2776 = vmatpush1.xpose.msra.mxu0 %v2769
  %2777 = vmatprep.subr.mxu0 0.0
  %2778 = vmatpush1.xpose.msra.mxu0 0.0
  %2779 = vmatprep.subr.mxu0 0.0
  %2780 = vmatpush1.xpose.msra.mxu0 0.0
  %2781 = vmatprep.subr.mxu0 0.0
  %2782 = vmatpush1.xpose.msra.mxu0 0.0
  %2783 = vmatprep.subr.mxu0 0.0
  %2784 = vmatpush1.xpose.msra.mxu0 0.0
  %2785 = vmatprep.subr.mxu0 0.0
  %2786 = vmatpush1.xpose.msra.mxu0 0.0
  %2787 = vmatprep.subr.mxu0 0.0
  %2788 = vmatpush1.xpose.msra.mxu0 0.0
  %2789 = vmatprep.subr.mxu0 0.0
  %2790 = vmatpush1.xpose.msra.mxu0 0.0
  %2791 = vmatprep.subr.mxu0 0.0
  %2792 = vmatpush1.xpose.msra.mxu0 0.0
  %2793 = vmatprep.subr.mxu0 0.0
  %2794 = vmatpush1.xpose.msra.mxu0 0.0
  %2795 = vmatprep.subr.mxu0 0.0
  %2796 = vmatpush1.xpose.msra.mxu0 0.0
  %2797 = vmatprep.subr.mxu0 0.0
  %2798 = vmatpush1.xpose.msra.mxu0 0.0
  %2799 = vmatprep.subr.mxu0 0.0
  %2800 = vmatpush1.xpose.msra.mxu0 0.0
  %2801 = vmatprep.subr.mxu0 0.0
  %2802 = vmatpush1.xpose.msra.mxu0 0.0
  %2803 = vmatprep.subr.mxu0 0.0
  %2804 = vmatpush1.xpose.msra.mxu0 0.0
  %2805 = vmatprep.subr.mxu0 0.0
  %2806 = vmatpush1.xpose.msra.mxu0 0.0
  %2807 = vmatprep.subr.mxu0 0.0
  %2808 = vmatpush1.xpose.msra.mxu0 0.0
  %2809 = vmatprep.subr.mxu0 0.0
  %2810 = vmatpush1.xpose.msra.mxu0 0.0
  %2811 = vmatprep.subr.mxu0 0.0
  %2812 = vmatpush1.xpose.msra.mxu0 0.0
  %2813 = vmatprep.subr.mxu0 0.0
  %2814 = vmatpush1.xpose.msra.mxu0 0.0
  %2815 = vmatprep.subr.mxu0 0.0
  %2816 = vmatpush1.xpose.msra.mxu0 0.0
  %2817 = vmatprep.subr.mxu0 0.0
  %2818 = vmatpush1.xpose.msra.mxu0 0.0
  %2819 = vmatprep.subr.mxu0 0.0
  %2820 = vmatpush1.xpose.msra.mxu0 0.0
  %2821 = vmatprep.subr.mxu0 0.0
  %2822 = vmatpush1.xpose.msra.mxu0 0.0
  %2823 = vmatprep.subr.mxu0 0.0
  %2824 = vmatpush1.xpose.msra.mxu0 0.0
  %2825 = vmatprep.subr.mxu0 0.0
  %2826 = vmatpush1.xpose.msra.mxu0 0.0
  %2827 = vmatprep.subr.mxu0 0.0
  %2828 = vmatpush1.xpose.msra.mxu0 0.0
  %2829 = vmatprep.subr.mxu0 0.0
  %2830 = vmatpush1.xpose.msra.mxu0 0.0
  %2831 = vmatprep.subr.mxu0 0.0
  %2832 = vmatpush1.xpose.msra.mxu0 0.0
  %2833 = vmatprep.subr.mxu0 0.0
  %2834 = vmatpush1.xpose.msra.mxu0 0.0
  %2835 = vmatprep.mubr.f32.mxu0 0.0
  %2836 = vmatmul.mubr.f32.gmra.mrb[0].mxu0 %v2761
  %v2837 = vpop.f32.mrb[0].mxu0
  %v2838 = vadd.f32 0.0, %v2837
  %v2839 = vpop.f32.mrb[0].mxu0
  %2840 = vmatprep.mubr.f32.mxu0 0.0
  %2841 = vmatmul.mubr.f32.gmra.mrb[0].mxu0 %v2763
  %v2842 = vpop.f32.mrb[0].mxu0
  %v2843 = vadd.f32 0.0, %v2842
  %v2844 = vpop.f32.mrb[0].mxu0
  %2845 = vdwg.mxu0
  %v2846 = vsel %vm2427, %v2743, -inf
  %2847 = vmax.xlane.f32.xlu0 %v2846
  %v2848 = vpop.xlane.xlu0 %2847
  %v2849 = vsel %vm2427, %v2748, -inf
  %2850 = vmax.xlane.f32.xlu0 %v2849
  %v2851 = vpop.xlane.xlu0 %2850
  %v2852 = vsel %vm2427, %v2838, -inf
  %2853 = vmax.xlane.f32.xlu0 %v2852
  %v2854 = vpop.xlane.xlu0 %2853
  %v2855 = vsel %vm2427, %v2843, -inf
  %2856 = vmax.xlane.f32.xlu0 %v2855
  %v2857 = vpop.xlane.xlu0 %2856
  %v2858 = vsub.f32 %v2743, %v2848
  %v2859 = vsub.f32 %v2748, %v2851
  %v2860 = vsub.f32 %v2838, %v2854
  %v2861 = vsub.f32 %v2843, %v2857
  %v2862 = vmul.f32 %v2858, 1.442695
  %v2863 = vpow.pop %v2862
  %v2864 = vmul.f32 %v2859, 1.442695
  %v2865 = vpow.pop %v2864
  %v2866 = vmul.f32 %v2860, 1.442695
  %v2867 = vpow.pop %v2866
  %v2868 = vmul.f32 %v2861, 1.442695
  %v2869 = vpow.pop %v2868
  %v2870 = vsel %vm2427, %v2863, 0.0
  %2871 = vadd.xlane.f32.xlu0 %v2870
  %v2872 = vpop.xlane.xlu0 %2871
  %v2873 = vsel %vm2427, %v2865, 0.0
  %2874 = vadd.xlane.f32.xlu0 %v2873
  %v2875 = vpop.xlane.xlu0 %2874
  %v2876 = vsel %vm2427, %v2867, 0.0
  %2877 = vadd.xlane.f32.xlu0 %v2876
  %v2878 = vpop.xlane.xlu0 %2877
  %v2879 = vsel %vm2427, %v2869, 0.0
  %2880 = vadd.xlane.f32.xlu0 %v2879
  %v2881 = vpop.xlane.xlu0 %2880
  %v2882 = vrcp.pop %v2872
  %v2883 = vrcp.pop %v2875
  %v2884 = vrcp.pop %v2878
  %v2885 = vrcp.pop %v2881
  %v2886 = vmul.f32 %v2863, %v2882
  %v2887 = vmul.f32 %v2865, %v2883
  %v2888 = vmul.f32 %v2867, %v2884
  %v2889 = vmul.f32 %v2869, %v2885
  %2890 = vrot.lane.b32.xlu0 %v2214, 88
  %v2891 = vpop.permute.xlu0 %2890
  %2892 = vrot.lane.b32.xlu0 %v2219, 88
  %v2893 = vpop.permute.xlu0 %2892
  %2894 = vrot.lane.b32.xlu0 %v2224, 88
  %v2895 = vpop.permute.xlu0 %2894
  %v2900 = vsel %vm2427, %v2886, 0
  %v2903 = vsel %vm2427, %v2887, 0
  %2905 = vmatprep.subr.mxu0 0.0
  %2906 = vmatpush1.msra.mxu0 %v2891
  %2907 = vmatprep.subr.mxu0 0.0
  %2908 = vmatpush1.msra.mxu0 %v2893
  %2909 = vmatprep.subr.mxu0 0.0
  %2910 = vmatpush1.msra.mxu0 %v2895
  %2911 = vmatprep.subr.mxu0 0.0
  %2912 = vmatpush1.msra.mxu0 0.0
  %2913 = vmatprep.subr.mxu0 0.0
  %2914 = vmatpush1.msra.mxu0 0.0
  %2915 = vmatprep.subr.mxu0 0.0
  %2916 = vmatpush1.msra.mxu0 0.0
  %2917 = vmatprep.subr.mxu0 0.0
  %2918 = vmatpush1.msra.mxu0 0.0
  %2919 = vmatprep.subr.mxu0 0.0
  %2920 = vmatpush1.msra.mxu0 0.0
  %2921 = vmatprep.subr.mxu0 0.0
  %2922 = vmatpush1.msra.mxu0 0.0
  %2923 = vmatprep.subr.mxu0 0.0
  %2924 = vmatpush1.msra.mxu0 0.0
  %2925 = vmatprep.subr.mxu0 0.0
  %2926 = vmatpush1.msra.mxu0 0.0
  %2927 = vmatprep.subr.mxu0 0.0
  %2928 = vmatpush1.msra.mxu0 0.0
  %2929 = vmatprep.subr.mxu0 0.0
  %2930 = vmatpush1.msra.mxu0 0.0
  %2931 = vmatprep.subr.mxu0 0.0
  %2932 = vmatpush1.msra.mxu0 0.0
  %2933 = vmatprep.subr.mxu0 0.0
  %2934 = vmatpush1.msra.mxu0 0.0
  %2935 = vmatprep.subr.mxu0 0.0
  %2936 = vmatpush1.msra.mxu0 0.0
  %2937 = vmatprep.subr.mxu0 0.0
  %2938 = vmatpush1.msra.mxu0 0.0
  %2939 = vmatprep.subr.mxu0 0.0
  %2940 = vmatpush1.msra.mxu0 0.0
  %2941 = vmatprep.subr.mxu0 0.0
  %2942 = vmatpush1.msra.mxu0 0.0
  %2943 = vmatprep.subr.mxu0 0.0
  %2944 = vmatpush1.msra.mxu0 0.0
  %2945 = vmatprep.subr.mxu0 0.0
  %2946 = vmatpush1.msra.mxu0 0.0
  %2947 = vmatprep.subr.mxu0 0.0
  %2948 = vmatpush1.msra.mxu0 0.0
  %2949 = vmatprep.subr.mxu0 0.0
  %2950 = vmatpush1.msra.mxu0 0.0
  %2951 = vmatprep.subr.mxu0 0.0
  %2952 = vmatpush1.msra.mxu0 0.0
  %2953 = vmatprep.subr.mxu0 0.0
  %2954 = vmatpush1.msra.mxu0 0.0
  %2955 = vmatprep.subr.mxu0 0.0
  %2956 = vmatpush1.msra.mxu0 0.0
  %2957 = vmatprep.subr.mxu0 0.0
  %2958 = vmatpush1.msra.mxu0 0.0
  %2959 = vmatprep.subr.mxu0 0.0
  %2960 = vmatpush1.msra.mxu0 0.0
  %2961 = vmatprep.subr.mxu0 0.0
  %2962 = vmatpush1.msra.mxu0 0.0
  %2963 = vmatprep.subr.mxu0 0.0
  %2964 = vmatpush1.msra.mxu0 0.0
  %2965 = vmatprep.subr.mxu0 0.0
  %2966 = vmatpush1.msra.mxu0 0.0
  %2967 = vmatprep.subr.mxu0 0.0
  %2968 = vmatpush1.msra.mxu0 0.0
  %2969 = vmatprep.mubr.f32.mxu0 0.0
  %2970 = vmatmul.mubr.f32.gmra.mrb[0].mxu0 %v2900
  %v2971 = vpop.f32.mrb[0].mxu0
  %v2972 = vadd.f32 0.0, %v2971
  %v2973 = vpop.f32.mrb[0].mxu0
  %2974 = vmatprep.mubr.f32.mxu0 0.0
  %2975 = vmatmul.mubr.f32.gmra.mrb[0].mxu0 %v2903
  %v2976 = vpop.f32.mrb[0].mxu0
  %v2977 = vadd.f32 0.0, %v2976
  %v2978 = vpop.f32.mrb[0].mxu0
  %2979 = vdwg.mxu0
  %2980 = vrot.lane.b32.xlu0 %v2229, 88
  %v2981 = vpop.permute.xlu0 %2980
  %2982 = vrot.lane.b32.xlu0 %v2234, 88
  %v2983 = vpop.permute.xlu0 %2982
  %2984 = vrot.lane.b32.xlu0 %v2239, 88
  %v2985 = vpop.permute.xlu0 %2984
  %v2990 = vsel %vm2427, %v2888, 0
  %v2993 = vsel %vm2427, %v2889, 0
  %2995 = vmatprep.subr.mxu0 0.0
  %2996 = vmatpush1.msra.mxu0 %v2981
  %2997 = vmatprep.subr.mxu0 0.0
  %2998 = vmatpush1.msra.mxu0 %v2983
  %2999 = vmatprep.subr.mxu0 0.0
  %3000 = vmatpush1.msra.mxu0 %v2985
  %3001 = vmatprep.subr.mxu0 0.0
  %3002 = vmatpush1.msra.mxu0 0.0
  %3003 = vmatprep.subr.mxu0 0.0
  %3004 = vmatpush1.msra.mxu0 0.0
  %3005 = vmatprep.subr.mxu0 0.0
  %3006 = vmatpush1.msra.mxu0 0.0
  %3007 = vmatprep.subr.mxu0 0.0
  %3008 = vmatpush1.msra.mxu0 0.0
  %3009 = vmatprep.subr.mxu0 0.0
  %3010 = vmatpush1.msra.mxu0 0.0
  %3011 = vmatprep.subr.mxu0 0.0
  %3012 = vmatpush1.msra.mxu0 0.0
  %3013 = vmatprep.subr.mxu0 0.0
  %3014 = vmatpush1.msra.mxu0 0.0
  %3015 = vmatprep.subr.mxu0 0.0
  %3016 = vmatpush1.msra.mxu0 0.0
  %3017 = vmatprep.subr.mxu0 0.0
  %3018 = vmatpush1.msra.mxu0 0.0
  %3019 = vmatprep.subr.mxu0 0.0
  %3020 = vmatpush1.msra.mxu0 0.0
  %3021 = vmatprep.subr.mxu0 0.0
  %3022 = vmatpush1.msra.mxu0 0.0
  %3023 = vmatprep.subr.mxu0 0.0
  %3024 = vmatpush1.msra.mxu0 0.0
  %3025 = vmatprep.subr.mxu0 0.0
  %3026 = vmatpush1.msra.mxu0 0.0
  %3027 = vmatprep.subr.mxu0 0.0
  %3028 = vmatpush1.msra.mxu0 0.0
  %3029 = vmatprep.subr.mxu0 0.0
  %3030 = vmatpush1.msra.mxu0 0.0
  %3031 = vmatprep.subr.mxu0 0.0
  %3032 = vmatpush1.msra.mxu0 0.0
  %3033 = vmatprep.subr.mxu0 0.0
  %3034 = vmatpush1.msra.mxu0 0.0
  %3035 = vmatprep.subr.mxu0 0.0
  %3036 = vmatpush1.msra.mxu0 0.0
  %3037 = vmatprep.subr.mxu0 0.0
  %3038 = vmatpush1.msra.mxu0 0.0
  %3039 = vmatprep.subr.mxu0 0.0
  %3040 = vmatpush1.msra.mxu0 0.0
  %3041 = vmatprep.subr.mxu0 0.0
  %3042 = vmatpush1.msra.mxu0 0.0
  %3043 = vmatprep.subr.mxu0 0.0
  %3044 = vmatpush1.msra.mxu0 0.0
  %3045 = vmatprep.subr.mxu0 0.0
  %3046 = vmatpush1.msra.mxu0 0.0
  %3047 = vmatprep.subr.mxu0 0.0
  %3048 = vmatpush1.msra.mxu0 0.0
  %3049 = vmatprep.subr.mxu0 0.0
  %3050 = vmatpush1.msra.mxu0 0.0
  %3051 = vmatprep.subr.mxu0 0.0
  %3052 = vmatpush1.msra.mxu0 0.0
  %3053 = vmatprep.subr.mxu0 0.0
  %3054 = vmatpush1.msra.mxu0 0.0
  %3055 = vmatprep.subr.mxu0 0.0
  %3056 = vmatpush1.msra.mxu0 0.0
  %3057 = vmatprep.subr.mxu0 0.0
  %3058 = vmatpush1.msra.mxu0 0.0
  %3059 = vmatprep.mubr.f32.mxu0 0.0
  %3060 = vmatmul.mubr.f32.gmra.mrb[0].mxu0 %v2990
  %v3061 = vpop.f32.mrb[0].mxu0
  %v3062 = vadd.f32 0.0, %v3061
  %v3063 = vpop.f32.mrb[0].mxu0
  %3064 = vmatprep.mubr.f32.mxu0 0.0
  %3065 = vmatmul.mubr.f32.gmra.mrb[0].mxu0 %v2993
  %v3066 = vpop.f32.mrb[0].mxu0
  %v3067 = vadd.f32 0.0, %v3066
  %v3068 = vpop.f32.mrb[0].mxu0
  %3069 = vdwg.mxu0
  %3074 = vrot.lane.b32.xlu0 %v2972, 8
  %v3075 = vpop.permute.xlu0 %3074
  %3076 = vrot.lane.b32.xlu0 %v2977, 8
  %v3077 = vpop.permute.xlu0 %3076
  %3078 = vrot.lane.b32.xlu0 %v3062, 8
  %v3079 = vpop.permute.xlu0 %3078
  %3080 = vrot.lane.b32.xlu0 %v3067, 8
  %v3081 = vpop.permute.xlu0 %3080
  %3086 = vst.msk [vmem:[#allocation2] sm:$0xff] %vm981, %v3075
  %3087 = vst.msk [vmem:[#allocation2 + $0x8] sm:$0xff] %vm981, %v3077
  %3088 = vst.msk [vmem:[#allocation2 + $0x10] sm:$0xff] %vm981, %v3079
  %3089 = vst.msk [vmem:[#allocation2 + $0x18] sm:$0xff] %vm981, %v3081
  %3090 = vrot.lane.b32.xlu0 %v2102, 112
  %v3091 = vpop.permute.xlu0 %3090
  %3092 = vrot.lane.b32.xlu0 %v2107, 112
  %v3093 = vpop.permute.xlu0 %3092
  %3094 = vrot.lane.b32.xlu0 %v2214, 112
  %v3095 = vpop.permute.xlu0 %3094
  %3096 = vrot.lane.b32.xlu0 %v2219, 112
  %v3097 = vpop.permute.xlu0 %3096
  %3098 = vrot.lane.b32.xlu0 %v2224, 112
  %v3099 = vpop.permute.xlu0 %3098
  %v3100 = vsel %vm169, %v3091, 0
  %v3102 = vsel %vm169, %v3093, 0
  %v3104 = vsel %vm169, %v3095, 0
  %v3106 = vsel %vm169, %v3097, 0
  %v3108 = vsel %vm169, %v3099, 0
  %3110 = vmatprep.subr.mxu0 0.0
  %3111 = vmatpush1.xpose.msra.mxu0 %v3104
  %3112 = vmatprep.subr.mxu0 0.0
  %3113 = vmatpush1.xpose.msra.mxu0 %v3106
  %3114 = vmatprep.subr.mxu0 0.0
  %3115 = vmatpush1.xpose.msra.mxu0 %v3108
  %3116 = vmatprep.subr.mxu0 0.0
  %3117 = vmatpush1.xpose.msra.mxu0 0.0
  %3118 = vmatprep.subr.mxu0 0.0
  %3119 = vmatpush1.xpose.msra.mxu0 0.0
  %3120 = vmatprep.subr.mxu0 0.0
  %3121 = vmatpush1.xpose.msra.mxu0 0.0
  %3122 = vmatprep.subr.mxu0 0.0
  %3123 = vmatpush1.xpose.msra.mxu0 0.0
  %3124 = vmatprep.subr.mxu0 0.0
  %3125 = vmatpush1.xpose.msra.mxu0 0.0
  %3126 = vmatprep.subr.mxu0 0.0
  %3127 = vmatpush1.xpose.msra.mxu0 0.0
  %3128 = vmatprep.subr.mxu0 0.0
  %3129 = vmatpush1.xpose.msra.mxu0 0.0
  %3130 = vmatprep.subr.mxu0 0.0
  %3131 = vmatpush1.xpose.msra.mxu0 0.0
  %3132 = vmatprep.subr.mxu0 0.0
  %3133 = vmatpush1.xpose.msra.mxu0 0.0
  %3134 = vmatprep.subr.mxu0 0.0
  %3135 = vmatpush1.xpose.msra.mxu0 0.0
  %3136 = vmatprep.subr.mxu0 0.0
  %3137 = vmatpush1.xpose.msra.mxu0 0.0
  %3138 = vmatprep.subr.mxu0 0.0
  %3139 = vmatpush1.xpose.msra.mxu0 0.0
  %3140 = vmatprep.subr.mxu0 0.0
  %3141 = vmatpush1.xpose.msra.mxu0 0.0
  %3142 = vmatprep.subr.mxu0 0.0
  %3143 = vmatpush1.xpose.msra.mxu0 0.0
  %3144 = vmatprep.subr.mxu0 0.0
  %3145 = vmatpush1.xpose.msra.mxu0 0.0
  %3146 = vmatprep.subr.mxu0 0.0
  %3147 = vmatpush1.xpose.msra.mxu0 0.0
  %3148 = vmatprep.subr.mxu0 0.0
  %3149 = vmatpush1.xpose.msra.mxu0 0.0
  %3150 = vmatprep.subr.mxu0 0.0
  %3151 = vmatpush1.xpose.msra.mxu0 0.0
  %3152 = vmatprep.subr.mxu0 0.0
  %3153 = vmatpush1.xpose.msra.mxu0 0.0
  %3154 = vmatprep.subr.mxu0 0.0
  %3155 = vmatpush1.xpose.msra.mxu0 0.0
  %3156 = vmatprep.subr.mxu0 0.0
  %3157 = vmatpush1.xpose.msra.mxu0 0.0
  %3158 = vmatprep.subr.mxu0 0.0
  %3159 = vmatpush1.xpose.msra.mxu0 0.0
  %3160 = vmatprep.subr.mxu0 0.0
  %3161 = vmatpush1.xpose.msra.mxu0 0.0
  %3162 = vmatprep.subr.mxu0 0.0
  %3163 = vmatpush1.xpose.msra.mxu0 0.0
  %3164 = vmatprep.subr.mxu0 0.0
  %3165 = vmatpush1.xpose.msra.mxu0 0.0
  %3166 = vmatprep.subr.mxu0 0.0
  %3167 = vmatpush1.xpose.msra.mxu0 0.0
  %3168 = vmatprep.subr.mxu0 0.0
  %3169 = vmatpush1.xpose.msra.mxu0 0.0
  %3170 = vmatprep.subr.mxu0 0.0
  %3171 = vmatpush1.xpose.msra.mxu0 0.0
  %3172 = vmatprep.subr.mxu0 0.0
  %3173 = vmatpush1.xpose.msra.mxu0 0.0
  %3174 = vmatprep.mubr.f32.mxu0 0.0
  %3175 = vmatmul.mubr.f32.gmra.mrb[0].mxu0 %v3100
  %v3176 = vpop.f32.mrb[0].mxu0
  %v3177 = vadd.f32 0.0, %v3176
  %v3178 = vpop.f32.mrb[0].mxu0
  %3179 = vmatprep.mubr.f32.mxu0 0.0
  %3180 = vmatmul.mubr.f32.gmra.mrb[0].mxu0 %v3102
  %v3181 = vpop.f32.mrb[0].mxu0
  %v3182 = vadd.f32 0.0, %v3181
  %v3183 = vpop.f32.mrb[0].mxu0
  %3184 = vdwg.mxu0
  %3185 = vrot.lane.b32.xlu0 %v2112, 112
  %v3186 = vpop.permute.xlu0 %3185
  %3187 = vrot.lane.b32.xlu0 %v2117, 112
  %v3188 = vpop.permute.xlu0 %3187
  %3189 = vrot.lane.b32.xlu0 %v2229, 112
  %v3190 = vpop.permute.xlu0 %3189
  %3191 = vrot.lane.b32.xlu0 %v2234, 112
  %v3192 = vpop.permute.xlu0 %3191
  %3193 = vrot.lane.b32.xlu0 %v2239, 112
  %v3194 = vpop.permute.xlu0 %3193
  %v3195 = vsel %vm169, %v3186, 0
  %v3197 = vsel %vm169, %v3188, 0
  %v3199 = vsel %vm169, %v3190, 0
  %v3201 = vsel %vm169, %v3192, 0
  %v3203 = vsel %vm169, %v3194, 0
  %3205 = vmatprep.subr.mxu0 0.0
  %3206 = vmatpush1.xpose.msra.mxu0 %v3199
  %3207 = vmatprep.subr.mxu0 0.0
  %3208 = vmatpush1.xpose.msra.mxu0 %v3201
  %3209 = vmatprep.subr.mxu0 0.0
  %3210 = vmatpush1.xpose.msra.mxu0 %v3203
  %3211 = vmatprep.subr.mxu0 0.0
  %3212 = vmatpush1.xpose.msra.mxu0 0.0
  %3213 = vmatprep.subr.mxu0 0.0
  %3214 = vmatpush1.xpose.msra.mxu0 0.0
  %3215 = vmatprep.subr.mxu0 0.0
  %3216 = vmatpush1.xpose.msra.mxu0 0.0
  %3217 = vmatprep.subr.mxu0 0.0
  %3218 = vmatpush1.xpose.msra.mxu0 0.0
  %3219 = vmatprep.subr.mxu0 0.0
  %3220 = vmatpush1.xpose.msra.mxu0 0.0
  %3221 = vmatprep.subr.mxu0 0.0
  %3222 = vmatpush1.xpose.msra.mxu0 0.0
  %3223 = vmatprep.subr.mxu0 0.0
  %3224 = vmatpush1.xpose.msra.mxu0 0.0
  %3225 = vmatprep.subr.mxu0 0.0
  %3226 = vmatpush1.xpose.msra.mxu0 0.0
  %3227 = vmatprep.subr.mxu0 0.0
  %3228 = vmatpush1.xpose.msra.mxu0 0.0
  %3229 = vmatprep.subr.mxu0 0.0
  %3230 = vmatpush1.xpose.msra.mxu0 0.0
  %3231 = vmatprep.subr.mxu0 0.0
  %3232 = vmatpush1.xpose.msra.mxu0 0.0
  %3233 = vmatprep.subr.mxu0 0.0
  %3234 = vmatpush1.xpose.msra.mxu0 0.0
  %3235 = vmatprep.subr.mxu0 0.0
  %3236 = vmatpush1.xpose.msra.mxu0 0.0
  %3237 = vmatprep.subr.mxu0 0.0
  %3238 = vmatpush1.xpose.msra.mxu0 0.0
  %3239 = vmatprep.subr.mxu0 0.0
  %3240 = vmatpush1.xpose.msra.mxu0 0.0
  %3241 = vmatprep.subr.mxu0 0.0
  %3242 = vmatpush1.xpose.msra.mxu0 0.0
  %3243 = vmatprep.subr.mxu0 0.0
  %3244 = vmatpush1.xpose.msra.mxu0 0.0
  %3245 = vmatprep.subr.mxu0 0.0
  %3246 = vmatpush1.xpose.msra.mxu0 0.0
  %3247 = vmatprep.subr.mxu0 0.0
  %3248 = vmatpush1.xpose.msra.mxu0 0.0
  %3249 = vmatprep.subr.mxu0 0.0
  %3250 = vmatpush1.xpose.msra.mxu0 0.0
  %3251 = vmatprep.subr.mxu0 0.0
  %3252 = vmatpush1.xpose.msra.mxu0 0.0
  %3253 = vmatprep.subr.mxu0 0.0
  %3254 = vmatpush1.xpose.msra.mxu0 0.0
  %3255 = vmatprep.subr.mxu0 0.0
  %3256 = vmatpush1.xpose.msra.mxu0 0.0
  %3257 = vmatprep.subr.mxu0 0.0
  %3258 = vmatpush1.xpose.msra.mxu0 0.0
  %3259 = vmatprep.subr.mxu0 0.0
  %3260 = vmatpush1.xpose.msra.mxu0 0.0
  %3261 = vmatprep.subr.mxu0 0.0
  %3262 = vmatpush1.xpose.msra.mxu0 0.0
  %3263 = vmatprep.subr.mxu0 0.0
  %3264 = vmatpush1.xpose.msra.mxu0 0.0
  %3265 = vmatprep.subr.mxu0 0.0
  %3266 = vmatpush1.xpose.msra.mxu0 0.0
  %3267 = vmatprep.subr.mxu0 0.0
  %3268 = vmatpush1.xpose.msra.mxu0 0.0
  %3269 = vmatprep.mubr.f32.mxu0 0.0
  %3270 = vmatmul.mubr.f32.gmra.mrb[0].mxu0 %v3195
  %v3271 = vpop.f32.mrb[0].mxu0
  %v3272 = vadd.f32 0.0, %v3271
  %v3273 = vpop.f32.mrb[0].mxu0
  %3274 = vmatprep.mubr.f32.mxu0 0.0
  %3275 = vmatmul.mubr.f32.gmra.mrb[0].mxu0 %v3197
  %v3276 = vpop.f32.mrb[0].mxu0
  %v3277 = vadd.f32 0.0, %v3276
  %v3278 = vpop.f32.mrb[0].mxu0
  %3279 = vdwg.mxu0
  %v3280 = vsel %vm2427, %v3177, -inf
  %3281 = vmax.xlane.f32.xlu0 %v3280
  %v3282 = vpop.xlane.xlu0 %3281
  %v3283 = vsel %vm2427, %v3182, -inf
  %3284 = vmax.xlane.f32.xlu0 %v3283
  %v3285 = vpop.xlane.xlu0 %3284
  %v3286 = vsel %vm2427, %v3272, -inf
  %3287 = vmax.xlane.f32.xlu0 %v3286
  %v3288 = vpop.xlane.xlu0 %3287
  %v3289 = vsel %vm2427, %v3277, -inf
  %3290 = vmax.xlane.f32.xlu0 %v3289
  %v3291 = vpop.xlane.xlu0 %3290
  %v3292 = vsub.f32 %v3177, %v3282
  %v3293 = vsub.f32 %v3182, %v3285
  %v3294 = vsub.f32 %v3272, %v3288
  %v3295 = vsub.f32 %v3277, %v3291
  %v3296 = vmul.f32 %v3292, 1.442695
  %v3297 = vpow.pop %v3296
  %v3298 = vmul.f32 %v3293, 1.442695
  %v3299 = vpow.pop %v3298
  %v3300 = vmul.f32 %v3294, 1.442695
  %v3301 = vpow.pop %v3300
  %v3302 = vmul.f32 %v3295, 1.442695
  %v3303 = vpow.pop %v3302
  %v3304 = vsel %vm2427, %v3297, 0.0
  %3305 = vadd.xlane.f32.xlu0 %v3304
  %v3306 = vpop.xlane.xlu0 %3305
  %v3307 = vsel %vm2427, %v3299, 0.0
  %3308 = vadd.xlane.f32.xlu0 %v3307
  %v3309 = vpop.xlane.xlu0 %3308
  %v3310 = vsel %vm2427, %v3301, 0.0
  %3311 = vadd.xlane.f32.xlu0 %v3310
  %v3312 = vpop.xlane.xlu0 %3311
  %v3313 = vsel %vm2427, %v3303, 0.0
  %3314 = vadd.xlane.f32.xlu0 %v3313
  %v3315 = vpop.xlane.xlu0 %3314
  %v3316 = vrcp.pop %v3306
  %v3317 = vrcp.pop %v3309
  %v3318 = vrcp.pop %v3312
  %v3319 = vrcp.pop %v3315
  %v3320 = vmul.f32 %v3297, %v3316
  %v3321 = vmul.f32 %v3299, %v3317
  %v3322 = vmul.f32 %v3301, %v3318
  %v3323 = vmul.f32 %v3303, %v3319
  %3324 = vrot.lane.b32.xlu0 %v2214, 80
  %v3325 = vpop.permute.xlu0 %3324
  %3326 = vrot.lane.b32.xlu0 %v2219, 80
  %v3327 = vpop.permute.xlu0 %3326
  %3328 = vrot.lane.b32.xlu0 %v2224, 80
  %v3329 = vpop.permute.xlu0 %3328
  %v3334 = vsel %vm2427, %v3320, 0
  %v3337 = vsel %vm2427, %v3321, 0
  %3339 = vmatprep.subr.mxu0 0.0
  %3340 = vmatpush1.msra.mxu0 %v3325
  %3341 = vmatprep.subr.mxu0 0.0
  %3342 = vmatpush1.msra.mxu0 %v3327
  %3343 = vmatprep.subr.mxu0 0.0
  %3344 = vmatpush1.msra.mxu0 %v3329
  %3345 = vmatprep.subr.mxu0 0.0
  %3346 = vmatpush1.msra.mxu0 0.0
  %3347 = vmatprep.subr.mxu0 0.0
  %3348 = vmatpush1.msra.mxu0 0.0
  %3349 = vmatprep.subr.mxu0 0.0
  %3350 = vmatpush1.msra.mxu0 0.0
  %3351 = vmatprep.subr.mxu0 0.0
  %3352 = vmatpush1.msra.mxu0 0.0
  %3353 = vmatprep.subr.mxu0 0.0
  %3354 = vmatpush1.msra.mxu0 0.0
  %3355 = vmatprep.subr.mxu0 0.0
  %3356 = vmatpush1.msra.mxu0 0.0
  %3357 = vmatprep.subr.mxu0 0.0
  %3358 = vmatpush1.msra.mxu0 0.0
  %3359 = vmatprep.subr.mxu0 0.0
  %3360 = vmatpush1.msra.mxu0 0.0
  %3361 = vmatprep.subr.mxu0 0.0
  %3362 = vmatpush1.msra.mxu0 0.0
  %3363 = vmatprep.subr.mxu0 0.0
  %3364 = vmatpush1.msra.mxu0 0.0
  %3365 = vmatprep.subr.mxu0 0.0
  %3366 = vmatpush1.msra.mxu0 0.0
  %3367 = vmatprep.subr.mxu0 0.0
  %3368 = vmatpush1.msra.mxu0 0.0
  %3369 = vmatprep.subr.mxu0 0.0
  %3370 = vmatpush1.msra.mxu0 0.0
  %3371 = vmatprep.subr.mxu0 0.0
  %3372 = vmatpush1.msra.mxu0 0.0
  %3373 = vmatprep.subr.mxu0 0.0
  %3374 = vmatpush1.msra.mxu0 0.0
  %3375 = vmatprep.subr.mxu0 0.0
  %3376 = vmatpush1.msra.mxu0 0.0
  %3377 = vmatprep.subr.mxu0 0.0
  %3378 = vmatpush1.msra.mxu0 0.0
  %3379 = vmatprep.subr.mxu0 0.0
  %3380 = vmatpush1.msra.mxu0 0.0
  %3381 = vmatprep.subr.mxu0 0.0
  %3382 = vmatpush1.msra.mxu0 0.0
  %3383 = vmatprep.subr.mxu0 0.0
  %3384 = vmatpush1.msra.mxu0 0.0
  %3385 = vmatprep.subr.mxu0 0.0
  %3386 = vmatpush1.msra.mxu0 0.0
  %3387 = vmatprep.subr.mxu0 0.0
  %3388 = vmatpush1.msra.mxu0 0.0
  %3389 = vmatprep.subr.mxu0 0.0
  %3390 = vmatpush1.msra.mxu0 0.0
  %3391 = vmatprep.subr.mxu0 0.0
  %3392 = vmatpush1.msra.mxu0 0.0
  %3393 = vmatprep.subr.mxu0 0.0
  %3394 = vmatpush1.msra.mxu0 0.0
  %3395 = vmatprep.subr.mxu0 0.0
  %3396 = vmatpush1.msra.mxu0 0.0
  %3397 = vmatprep.subr.mxu0 0.0
  %3398 = vmatpush1.msra.mxu0 0.0
  %3399 = vmatprep.subr.mxu0 0.0
  %3400 = vmatpush1.msra.mxu0 0.0
  %3401 = vmatprep.subr.mxu0 0.0
  %3402 = vmatpush1.msra.mxu0 0.0
  %3403 = vmatprep.mubr.f32.mxu0 0.0
  %3404 = vmatmul.mubr.f32.gmra.mrb[0].mxu0 %v3334
  %v3405 = vpop.f32.mrb[0].mxu0
  %v3406 = vadd.f32 0.0, %v3405
  %v3407 = vpop.f32.mrb[0].mxu0
  %3408 = vmatprep.mubr.f32.mxu0 0.0
  %3409 = vmatmul.mubr.f32.gmra.mrb[0].mxu0 %v3337
  %v3410 = vpop.f32.mrb[0].mxu0
  %v3411 = vadd.f32 0.0, %v3410
  %v3412 = vpop.f32.mrb[0].mxu0
  %3413 = vdwg.mxu0
  %3414 = vrot.lane.b32.xlu0 %v2229, 80
  %v3415 = vpop.permute.xlu0 %3414
  %3416 = vrot.lane.b32.xlu0 %v2234, 80
  %v3417 = vpop.permute.xlu0 %3416
  %3418 = vrot.lane.b32.xlu0 %v2239, 80
  %v3419 = vpop.permute.xlu0 %3418
  %v3424 = vsel %vm2427, %v3322, 0
  %v3427 = vsel %vm2427, %v3323, 0
  %3429 = vmatprep.subr.mxu0 0.0
  %3430 = vmatpush1.msra.mxu0 %v3415
  %3431 = vmatprep.subr.mxu0 0.0
  %3432 = vmatpush1.msra.mxu0 %v3417
  %3433 = vmatprep.subr.mxu0 0.0
  %3434 = vmatpush1.msra.mxu0 %v3419
  %3435 = vmatprep.subr.mxu0 0.0
  %3436 = vmatpush1.msra.mxu0 0.0
  %3437 = vmatprep.subr.mxu0 0.0
  %3438 = vmatpush1.msra.mxu0 0.0
  %3439 = vmatprep.subr.mxu0 0.0
  %3440 = vmatpush1.msra.mxu0 0.0
  %3441 = vmatprep.subr.mxu0 0.0
  %3442 = vmatpush1.msra.mxu0 0.0
  %3443 = vmatprep.subr.mxu0 0.0
  %3444 = vmatpush1.msra.mxu0 0.0
  %3445 = vmatprep.subr.mxu0 0.0
  %3446 = vmatpush1.msra.mxu0 0.0
  %3447 = vmatprep.subr.mxu0 0.0
  %3448 = vmatpush1.msra.mxu0 0.0
  %3449 = vmatprep.subr.mxu0 0.0
  %3450 = vmatpush1.msra.mxu0 0.0
  %3451 = vmatprep.subr.mxu0 0.0
  %3452 = vmatpush1.msra.mxu0 0.0
  %3453 = vmatprep.subr.mxu0 0.0
  %3454 = vmatpush1.msra.mxu0 0.0
  %3455 = vmatprep.subr.mxu0 0.0
  %3456 = vmatpush1.msra.mxu0 0.0
  %3457 = vmatprep.subr.mxu0 0.0
  %3458 = vmatpush1.msra.mxu0 0.0
  %3459 = vmatprep.subr.mxu0 0.0
  %3460 = vmatpush1.msra.mxu0 0.0
  %3461 = vmatprep.subr.mxu0 0.0
  %3462 = vmatpush1.msra.mxu0 0.0
  %3463 = vmatprep.subr.mxu0 0.0
  %3464 = vmatpush1.msra.mxu0 0.0
  %3465 = vmatprep.subr.mxu0 0.0
  %3466 = vmatpush1.msra.mxu0 0.0
  %3467 = vmatprep.subr.mxu0 0.0
  %3468 = vmatpush1.msra.mxu0 0.0
  %3469 = vmatprep.subr.mxu0 0.0
  %3470 = vmatpush1.msra.mxu0 0.0
  %3471 = vmatprep.subr.mxu0 0.0
  %3472 = vmatpush1.msra.mxu0 0.0
  %3473 = vmatprep.subr.mxu0 0.0
  %3474 = vmatpush1.msra.mxu0 0.0
  %3475 = vmatprep.subr.mxu0 0.0
  %3476 = vmatpush1.msra.mxu0 0.0
  %3477 = vmatprep.subr.mxu0 0.0
  %3478 = vmatpush1.msra.mxu0 0.0
  %3479 = vmatprep.subr.mxu0 0.0
  %3480 = vmatpush1.msra.mxu0 0.0
  %3481 = vmatprep.subr.mxu0 0.0
  %3482 = vmatpush1.msra.mxu0 0.0
  %3483 = vmatprep.subr.mxu0 0.0
  %3484 = vmatpush1.msra.mxu0 0.0
  %3485 = vmatprep.subr.mxu0 0.0
  %3486 = vmatpush1.msra.mxu0 0.0
  %3487 = vmatprep.subr.mxu0 0.0
  %3488 = vmatpush1.msra.mxu0 0.0
  %3489 = vmatprep.subr.mxu0 0.0
  %3490 = vmatpush1.msra.mxu0 0.0
  %3491 = vmatprep.subr.mxu0 0.0
  %3492 = vmatpush1.msra.mxu0 0.0
  %3493 = vmatprep.mubr.f32.mxu0 0.0
  %3494 = vmatmul.mubr.f32.gmra.mrb[0].mxu0 %v3424
  %v3495 = vpop.f32.mrb[0].mxu0
  %v3496 = vadd.f32 0.0, %v3495
  %v3497 = vpop.f32.mrb[0].mxu0
  %3498 = vmatprep.mubr.f32.mxu0 0.0
  %3499 = vmatmul.mubr.f32.gmra.mrb[0].mxu0 %v3427
  %v3500 = vpop.f32.mrb[0].mxu0
  %v3501 = vadd.f32 0.0, %v3500
  %v3502 = vpop.f32.mrb[0].mxu0
  %3503 = vdwg.mxu0
  %3508 = vrot.lane.b32.xlu0 %v3406, 16
  %v3509 = vpop.permute.xlu0 %3508
  %3510 = vrot.lane.b32.xlu0 %v3411, 16
  %v3511 = vpop.permute.xlu0 %3510
  %3512 = vrot.lane.b32.xlu0 %v3496, 16
  %v3513 = vpop.permute.xlu0 %3512
  %3514 = vrot.lane.b32.xlu0 %v3501, 16
  %v3515 = vpop.permute.xlu0 %3514
  %3520 = vst.msk [vmem:[#allocation2] sm:$0xff] %vm1402, %v3509
  %3521 = vst.msk [vmem:[#allocation2 + $0x8] sm:$0xff] %vm1402, %v3511
  %3522 = vst.msk [vmem:[#allocation2 + $0x10] sm:$0xff] %vm1402, %v3513
  %3523 = vst.msk [vmem:[#allocation2 + $0x18] sm:$0xff] %vm1402, %v3515
  %3524 = vrot.lane.b32.xlu0 %v2102, 104
  %v3525 = vpop.permute.xlu0 %3524
  %3526 = vrot.lane.b32.xlu0 %v2107, 104
  %v3527 = vpop.permute.xlu0 %3526
  %3528 = vrot.lane.b32.xlu0 %v2214, 104
  %v3529 = vpop.permute.xlu0 %3528
  %3530 = vrot.lane.b32.xlu0 %v2219, 104
  %v3531 = vpop.permute.xlu0 %3530
  %3532 = vrot.lane.b32.xlu0 %v2224, 104
  %v3533 = vpop.permute.xlu0 %3532
  %v3534 = vsel %vm169, %v3525, 0
  %v3536 = vsel %vm169, %v3527, 0
  %v3538 = vsel %vm169, %v3529, 0
  %v3540 = vsel %vm169, %v3531, 0
  %v3542 = vsel %vm169, %v3533, 0
  %3544 = vmatprep.subr.mxu0 0.0
  %3545 = vmatpush1.xpose.msra.mxu0 %v3538
  %3546 = vmatprep.subr.mxu0 0.0
  %3547 = vmatpush1.xpose.msra.mxu0 %v3540
  %3548 = vmatprep.subr.mxu0 0.0
  %3549 = vmatpush1.xpose.msra.mxu0 %v3542
  %3550 = vmatprep.subr.mxu0 0.0
  %3551 = vmatpush1.xpose.msra.mxu0 0.0
  %3552 = vmatprep.subr.mxu0 0.0
  %3553 = vmatpush1.xpose.msra.mxu0 0.0
  %3554 = vmatprep.subr.mxu0 0.0
  %3555 = vmatpush1.xpose.msra.mxu0 0.0
  %3556 = vmatprep.subr.mxu0 0.0
  %3557 = vmatpush1.xpose.msra.mxu0 0.0
  %3558 = vmatprep.subr.mxu0 0.0
  %3559 = vmatpush1.xpose.msra.mxu0 0.0
  %3560 = vmatprep.subr.mxu0 0.0
  %3561 = vmatpush1.xpose.msra.mxu0 0.0
  %3562 = vmatprep.subr.mxu0 0.0
  %3563 = vmatpush1.xpose.msra.mxu0 0.0
  %3564 = vmatprep.subr.mxu0 0.0
  %3565 = vmatpush1.xpose.msra.mxu0 0.0
  %3566 = vmatprep.subr.mxu0 0.0
  %3567 = vmatpush1.xpose.msra.mxu0 0.0
  %3568 = vmatprep.subr.mxu0 0.0
  %3569 = vmatpush1.xpose.msra.mxu0 0.0
  %3570 = vmatprep.subr.mxu0 0.0
  %3571 = vmatpush1.xpose.msra.mxu0 0.0
  %3572 = vmatprep.subr.mxu0 0.0
  %3573 = vmatpush1.xpose.msra.mxu0 0.0
  %3574 = vmatprep.subr.mxu0 0.0
  %3575 = vmatpush1.xpose.msra.mxu0 0.0
  %3576 = vmatprep.subr.mxu0 0.0
  %3577 = vmatpush1.xpose.msra.mxu0 0.0
  %3578 = vmatprep.subr.mxu0 0.0
  %3579 = vmatpush1.xpose.msra.mxu0 0.0
  %3580 = vmatprep.subr.mxu0 0.0
  %3581 = vmatpush1.xpose.msra.mxu0 0.0
  %3582 = vmatprep.subr.mxu0 0.0
  %3583 = vmatpush1.xpose.msra.mxu0 0.0
  %3584 = vmatprep.subr.mxu0 0.0
  %3585 = vmatpush1.xpose.msra.mxu0 0.0
  %3586 = vmatprep.subr.mxu0 0.0
  %3587 = vmatpush1.xpose.msra.mxu0 0.0
  %3588 = vmatprep.subr.mxu0 0.0
  %3589 = vmatpush1.xpose.msra.mxu0 0.0
  %3590 = vmatprep.subr.mxu0 0.0
  %3591 = vmatpush1.xpose.msra.mxu0 0.0
  %3592 = vmatprep.subr.mxu0 0.0
  %3593 = vmatpush1.xpose.msra.mxu0 0.0
  %3594 = vmatprep.subr.mxu0 0.0
  %3595 = vmatpush1.xpose.msra.mxu0 0.0
  %3596 = vmatprep.subr.mxu0 0.0
  %3597 = vmatpush1.xpose.msra.mxu0 0.0
  %3598 = vmatprep.subr.mxu0 0.0
  %3599 = vmatpush1.xpose.msra.mxu0 0.0
  %3600 = vmatprep.subr.mxu0 0.0
  %3601 = vmatpush1.xpose.msra.mxu0 0.0
  %3602 = vmatprep.subr.mxu0 0.0
  %3603 = vmatpush1.xpose.msra.mxu0 0.0
  %3604 = vmatprep.subr.mxu0 0.0
  %3605 = vmatpush1.xpose.msra.mxu0 0.0
  %3606 = vmatprep.subr.mxu0 0.0
  %3607 = vmatpush1.xpose.msra.mxu0 0.0
  %3608 = vmatprep.mubr.f32.mxu0 0.0
  %3609 = vmatmul.mubr.f32.gmra.mrb[0].mxu0 %v3534
  %v3610 = vpop.f32.mrb[0].mxu0
  %v3611 = vadd.f32 0.0, %v3610
  %v3612 = vpop.f32.mrb[0].mxu0
  %3613 = vmatprep.mubr.f32.mxu0 0.0
  %3614 = vmatmul.mubr.f32.gmra.mrb[0].mxu0 %v3536
  %v3615 = vpop.f32.mrb[0].mxu0
  %v3616 = vadd.f32 0.0, %v3615
  %v3617 = vpop.f32.mrb[0].mxu0
  %3618 = vdwg.mxu0
  %3619 = vrot.lane.b32.xlu0 %v2112, 104
  %v3620 = vpop.permute.xlu0 %3619
  %3621 = vrot.lane.b32.xlu0 %v2117, 104
  %v3622 = vpop.permute.xlu0 %3621
  %3623 = vrot.lane.b32.xlu0 %v2229, 104
  %v3624 = vpop.permute.xlu0 %3623
  %3625 = vrot.lane.b32.xlu0 %v2234, 104
  %v3626 = vpop.permute.xlu0 %3625
  %3627 = vrot.lane.b32.xlu0 %v2239, 104
  %v3628 = vpop.permute.xlu0 %3627
  %v3629 = vsel %vm169, %v3620, 0
  %v3631 = vsel %vm169, %v3622, 0
  %v3633 = vsel %vm169, %v3624, 0
  %v3635 = vsel %vm169, %v3626, 0
  %v3637 = vsel %vm169, %v3628, 0
  %3639 = vmatprep.subr.mxu0 0.0
  %3640 = vmatpush1.xpose.msra.mxu0 %v3633
  %3641 = vmatprep.subr.mxu0 0.0
  %3642 = vmatpush1.xpose.msra.mxu0 %v3635
  %3643 = vmatprep.subr.mxu0 0.0
  %3644 = vmatpush1.xpose.msra.mxu0 %v3637
  %3645 = vmatprep.subr.mxu0 0.0
  %3646 = vmatpush1.xpose.msra.mxu0 0.0
  %3647 = vmatprep.subr.mxu0 0.0
  %3648 = vmatpush1.xpose.msra.mxu0 0.0
  %3649 = vmatprep.subr.mxu0 0.0
  %3650 = vmatpush1.xpose.msra.mxu0 0.0
  %3651 = vmatprep.subr.mxu0 0.0
  %3652 = vmatpush1.xpose.msra.mxu0 0.0
  %3653 = vmatprep.subr.mxu0 0.0
  %3654 = vmatpush1.xpose.msra.mxu0 0.0
  %3655 = vmatprep.subr.mxu0 0.0
  %3656 = vmatpush1.xpose.msra.mxu0 0.0
  %3657 = vmatprep.subr.mxu0 0.0
  %3658 = vmatpush1.xpose.msra.mxu0 0.0
  %3659 = vmatprep.subr.mxu0 0.0
  %3660 = vmatpush1.xpose.msra.mxu0 0.0
  %3661 = vmatprep.subr.mxu0 0.0
  %3662 = vmatpush1.xpose.msra.mxu0 0.0
  %3663 = vmatprep.subr.mxu0 0.0
  %3664 = vmatpush1.xpose.msra.mxu0 0.0
  %3665 = vmatprep.subr.mxu0 0.0
  %3666 = vmatpush1.xpose.msra.mxu0 0.0
  %3667 = vmatprep.subr.mxu0 0.0
  %3668 = vmatpush1.xpose.msra.mxu0 0.0
  %3669 = vmatprep.subr.mxu0 0.0
  %3670 = vmatpush1.xpose.msra.mxu0 0.0
  %3671 = vmatprep.subr.mxu0 0.0
  %3672 = vmatpush1.xpose.msra.mxu0 0.0
  %3673 = vmatprep.subr.mxu0 0.0
  %3674 = vmatpush1.xpose.msra.mxu0 0.0
  %3675 = vmatprep.subr.mxu0 0.0
  %3676 = vmatpush1.xpose.msra.mxu0 0.0
  %3677 = vmatprep.subr.mxu0 0.0
  %3678 = vmatpush1.xpose.msra.mxu0 0.0
  %3679 = vmatprep.subr.mxu0 0.0
  %3680 = vmatpush1.xpose.msra.mxu0 0.0
  %3681 = vmatprep.subr.mxu0 0.0
  %3682 = vmatpush1.xpose.msra.mxu0 0.0
  %3683 = vmatprep.subr.mxu0 0.0
  %3684 = vmatpush1.xpose.msra.mxu0 0.0
  %3685 = vmatprep.subr.mxu0 0.0
  %3686 = vmatpush1.xpose.msra.mxu0 0.0
  %3687 = vmatprep.subr.mxu0 0.0
  %3688 = vmatpush1.xpose.msra.mxu0 0.0
  %3689 = vmatprep.subr.mxu0 0.0
  %3690 = vmatpush1.xpose.msra.mxu0 0.0
  %3691 = vmatprep.subr.mxu0 0.0
  %3692 = vmatpush1.xpose.msra.mxu0 0.0
  %3693 = vmatprep.subr.mxu0 0.0
  %3694 = vmatpush1.xpose.msra.mxu0 0.0
  %3695 = vmatprep.subr.mxu0 0.0
  %3696 = vmatpush1.xpose.msra.mxu0 0.0
  %3697 = vmatprep.subr.mxu0 0.0
  %3698 = vmatpush1.xpose.msra.mxu0 0.0
  %3699 = vmatprep.subr.mxu0 0.0
  %3700 = vmatpush1.xpose.msra.mxu0 0.0
  %3701 = vmatprep.subr.mxu0 0.0
  %3702 = vmatpush1.xpose.msra.mxu0 0.0
  %3703 = vmatprep.mubr.f32.mxu0 0.0
  %3704 = vmatmul.mubr.f32.gmra.mrb[0].mxu0 %v3629
  %v3705 = vpop.f32.mrb[0].mxu0
  %v3706 = vadd.f32 0.0, %v3705
  %v3707 = vpop.f32.mrb[0].mxu0
  %3708 = vmatprep.mubr.f32.mxu0 0.0
  %3709 = vmatmul.mubr.f32.gmra.mrb[0].mxu0 %v3631
  %v3710 = vpop.f32.mrb[0].mxu0
  %v3711 = vadd.f32 0.0, %v3710
  %v3712 = vpop.f32.mrb[0].mxu0
  %3713 = vdwg.mxu0
  %v3714 = vsel %vm2427, %v3611, -inf
  %3715 = vmax.xlane.f32.xlu0 %v3714
  %v3716 = vpop.xlane.xlu0 %3715
  %v3717 = vsel %vm2427, %v3616, -inf
  %3718 = vmax.xlane.f32.xlu0 %v3717
  %v3719 = vpop.xlane.xlu0 %3718
  %v3720 = vsel %vm2427, %v3706, -inf
  %3721 = vmax.xlane.f32.xlu0 %v3720
  %v3722 = vpop.xlane.xlu0 %3721
  %v3723 = vsel %vm2427, %v3711, -inf
  %3724 = vmax.xlane.f32.xlu0 %v3723
  %v3725 = vpop.xlane.xlu0 %3724
  %v3726 = vsub.f32 %v3611, %v3716
  %v3727 = vsub.f32 %v3616, %v3719
  %v3728 = vsub.f32 %v3706, %v3722
  %v3729 = vsub.f32 %v3711, %v3725
  %v3730 = vmul.f32 %v3726, 1.442695
  %v3731 = vpow.pop %v3730
  %v3732 = vmul.f32 %v3727, 1.442695
  %v3733 = vpow.pop %v3732
  %v3734 = vmul.f32 %v3728, 1.442695
  %v3735 = vpow.pop %v3734
  %v3736 = vmul.f32 %v3729, 1.442695
  %v3737 = vpow.pop %v3736
  %v3738 = vsel %vm2427, %v3731, 0.0
  %3739 = vadd.xlane.f32.xlu0 %v3738
  %v3740 = vpop.xlane.xlu0 %3739
  %v3741 = vsel %vm2427, %v3733, 0.0
  %3742 = vadd.xlane.f32.xlu0 %v3741
  %v3743 = vpop.xlane.xlu0 %3742
  %v3744 = vsel %vm2427, %v3735, 0.0
  %3745 = vadd.xlane.f32.xlu0 %v3744
  %v3746 = vpop.xlane.xlu0 %3745
  %v3747 = vsel %vm2427, %v3737, 0.0
  %3748 = vadd.xlane.f32.xlu0 %v3747
  %v3749 = vpop.xlane.xlu0 %3748
  %v3750 = vrcp.pop %v3740
  %v3751 = vrcp.pop %v3743
  %v3752 = vrcp.pop %v3746
  %v3753 = vrcp.pop %v3749
  %v3754 = vmul.f32 %v3731, %v3750
  %v3755 = vmul.f32 %v3733, %v3751
  %v3756 = vmul.f32 %v3735, %v3752
  %v3757 = vmul.f32 %v3737, %v3753
  %3758 = vrot.lane.b32.xlu0 %v2214, 72
  %v3759 = vpop.permute.xlu0 %3758
  %3760 = vrot.lane.b32.xlu0 %v2219, 72
  %v3761 = vpop.permute.xlu0 %3760
  %3762 = vrot.lane.b32.xlu0 %v2224, 72
  %v3763 = vpop.permute.xlu0 %3762
  %v3768 = vsel %vm2427, %v3754, 0
  %v3771 = vsel %vm2427, %v3755, 0
  %3773 = vmatprep.subr.mxu0 0.0
  %3774 = vmatpush1.msra.mxu0 %v3759
  %3775 = vmatprep.subr.mxu0 0.0
  %3776 = vmatpush1.msra.mxu0 %v3761
  %3777 = vmatprep.subr.mxu0 0.0
  %3778 = vmatpush1.msra.mxu0 %v3763
  %3779 = vmatprep.subr.mxu0 0.0
  %3780 = vmatpush1.msra.mxu0 0.0
  %3781 = vmatprep.subr.mxu0 0.0
  %3782 = vmatpush1.msra.mxu0 0.0
  %3783 = vmatprep.subr.mxu0 0.0
  %3784 = vmatpush1.msra.mxu0 0.0
  %3785 = vmatprep.subr.mxu0 0.0
  %3786 = vmatpush1.msra.mxu0 0.0
  %3787 = vmatprep.subr.mxu0 0.0
  %3788 = vmatpush1.msra.mxu0 0.0
  %3789 = vmatprep.subr.mxu0 0.0
  %3790 = vmatpush1.msra.mxu0 0.0
  %3791 = vmatprep.subr.mxu0 0.0
  %3792 = vmatpush1.msra.mxu0 0.0
  %3793 = vmatprep.subr.mxu0 0.0
  %3794 = vmatpush1.msra.mxu0 0.0
  %3795 = vmatprep.subr.mxu0 0.0
  %3796 = vmatpush1.msra.mxu0 0.0
  %3797 = vmatprep.subr.mxu0 0.0
  %3798 = vmatpush1.msra.mxu0 0.0
  %3799 = vmatprep.subr.mxu0 0.0
  %3800 = vmatpush1.msra.mxu0 0.0
  %3801 = vmatprep.subr.mxu0 0.0
  %3802 = vmatpush1.msra.mxu0 0.0
  %3803 = vmatprep.subr.mxu0 0.0
  %3804 = vmatpush1.msra.mxu0 0.0
  %3805 = vmatprep.subr.mxu0 0.0
  %3806 = vmatpush1.msra.mxu0 0.0
  %3807 = vmatprep.subr.mxu0 0.0
  %3808 = vmatpush1.msra.mxu0 0.0
  %3809 = vmatprep.subr.mxu0 0.0
  %3810 = vmatpush1.msra.mxu0 0.0
  %3811 = vmatprep.subr.mxu0 0.0
  %3812 = vmatpush1.msra.mxu0 0.0
  %3813 = vmatprep.subr.mxu0 0.0
  %3814 = vmatpush1.msra.mxu0 0.0
  %3815 = vmatprep.subr.mxu0 0.0
  %3816 = vmatpush1.msra.mxu0 0.0
  %3817 = vmatprep.subr.mxu0 0.0
  %3818 = vmatpush1.msra.mxu0 0.0
  %3819 = vmatprep.subr.mxu0 0.0
  %3820 = vmatpush1.msra.mxu0 0.0
  %3821 = vmatprep.subr.mxu0 0.0
  %3822 = vmatpush1.msra.mxu0 0.0
  %3823 = vmatprep.subr.mxu0 0.0
  %3824 = vmatpush1.msra.mxu0 0.0
  %3825 = vmatprep.subr.mxu0 0.0
  %3826 = vmatpush1.msra.mxu0 0.0
  %3827 = vmatprep.subr.mxu0 0.0
  %3828 = vmatpush1.msra.mxu0 0.0
  %3829 = vmatprep.subr.mxu0 0.0
  %3830 = vmatpush1.msra.mxu0 0.0
  %3831 = vmatprep.subr.mxu0 0.0
  %3832 = vmatpush1.msra.mxu0 0.0
  %3833 = vmatprep.subr.mxu0 0.0
  %3834 = vmatpush1.msra.mxu0 0.0
  %3835 = vmatprep.subr.mxu0 0.0
  %3836 = vmatpush1.msra.mxu0 0.0
  %3837 = vmatprep.mubr.f32.mxu0 0.0
  %3838 = vmatmul.mubr.f32.gmra.mrb[0].mxu0 %v3768
  %v3839 = vpop.f32.mrb[0].mxu0
  %v3840 = vadd.f32 0.0, %v3839
  %v3841 = vpop.f32.mrb[0].mxu0
  %3842 = vmatprep.mubr.f32.mxu0 0.0
  %3843 = vmatmul.mubr.f32.gmra.mrb[0].mxu0 %v3771
  %v3844 = vpop.f32.mrb[0].mxu0
  %v3845 = vadd.f32 0.0, %v3844
  %v3846 = vpop.f32.mrb[0].mxu0
  %3847 = vdwg.mxu0
  %3848 = vrot.lane.b32.xlu0 %v2229, 72
  %v3849 = vpop.permute.xlu0 %3848
  %3850 = vrot.lane.b32.xlu0 %v2234, 72
  %v3851 = vpop.permute.xlu0 %3850
  %3852 = vrot.lane.b32.xlu0 %v2239, 72
  %v3853 = vpop.permute.xlu0 %3852
  %v3858 = vsel %vm2427, %v3756, 0
  %v3861 = vsel %vm2427, %v3757, 0
  %3863 = vmatprep.subr.mxu0 0.0
  %3864 = vmatpush1.msra.mxu0 %v3849
  %3865 = vmatprep.subr.mxu0 0.0
  %3866 = vmatpush1.msra.mxu0 %v3851
  %3867 = vmatprep.subr.mxu0 0.0
  %3868 = vmatpush1.msra.mxu0 %v3853
  %3869 = vmatprep.subr.mxu0 0.0
  %3870 = vmatpush1.msra.mxu0 0.0
  %3871 = vmatprep.subr.mxu0 0.0
  %3872 = vmatpush1.msra.mxu0 0.0
  %3873 = vmatprep.subr.mxu0 0.0
  %3874 = vmatpush1.msra.mxu0 0.0
  %3875 = vmatprep.subr.mxu0 0.0
  %3876 = vmatpush1.msra.mxu0 0.0
  %3877 = vmatprep.subr.mxu0 0.0
  %3878 = vmatpush1.msra.mxu0 0.0
  %3879 = vmatprep.subr.mxu0 0.0
  %3880 = vmatpush1.msra.mxu0 0.0
  %3881 = vmatprep.subr.mxu0 0.0
  %3882 = vmatpush1.msra.mxu0 0.0
  %3883 = vmatprep.subr.mxu0 0.0
  %3884 = vmatpush1.msra.mxu0 0.0
  %3885 = vmatprep.subr.mxu0 0.0
  %3886 = vmatpush1.msra.mxu0 0.0
  %3887 = vmatprep.subr.mxu0 0.0
  %3888 = vmatpush1.msra.mxu0 0.0
  %3889 = vmatprep.subr.mxu0 0.0
  %3890 = vmatpush1.msra.mxu0 0.0
  %3891 = vmatprep.subr.mxu0 0.0
  %3892 = vmatpush1.msra.mxu0 0.0
  %3893 = vmatprep.subr.mxu0 0.0
  %3894 = vmatpush1.msra.mxu0 0.0
  %3895 = vmatprep.subr.mxu0 0.0
  %3896 = vmatpush1.msra.mxu0 0.0
  %3897 = vmatprep.subr.mxu0 0.0
  %3898 = vmatpush1.msra.mxu0 0.0
  %3899 = vmatprep.subr.mxu0 0.0
  %3900 = vmatpush1.msra.mxu0 0.0
  %3901 = vmatprep.subr.mxu0 0.0
  %3902 = vmatpush1.msra.mxu0 0.0
  %3903 = vmatprep.subr.mxu0 0.0
  %3904 = vmatpush1.msra.mxu0 0.0
  %3905 = vmatprep.subr.mxu0 0.0
  %3906 = vmatpush1.msra.mxu0 0.0
  %3907 = vmatprep.subr.mxu0 0.0
  %3908 = vmatpush1.msra.mxu0 0.0
  %3909 = vmatprep.subr.mxu0 0.0
  %3910 = vmatpush1.msra.mxu0 0.0
  %3911 = vmatprep.subr.mxu0 0.0
  %3912 = vmatpush1.msra.mxu0 0.0
  %3913 = vmatprep.subr.mxu0 0.0
  %3914 = vmatpush1.msra.mxu0 0.0
  %3915 = vmatprep.subr.mxu0 0.0
  %3916 = vmatpush1.msra.mxu0 0.0
  %3917 = vmatprep.subr.mxu0 0.0
  %3918 = vmatpush1.msra.mxu0 0.0
  %3919 = vmatprep.subr.mxu0 0.0
  %3920 = vmatpush1.msra.mxu0 0.0
  %3921 = vmatprep.subr.mxu0 0.0
  %3922 = vmatpush1.msra.mxu0 0.0
  %3923 = vmatprep.subr.mxu0 0.0
  %3924 = vmatpush1.msra.mxu0 0.0
  %3925 = vmatprep.subr.mxu0 0.0
  %3926 = vmatpush1.msra.mxu0 0.0
  %3927 = vmatprep.mubr.f32.mxu0 0.0
  %3928 = vmatmul.mubr.f32.gmra.mrb[0].mxu0 %v3858
  %v3929 = vpop.f32.mrb[0].mxu0
  %v3930 = vadd.f32 0.0, %v3929
  %v3931 = vpop.f32.mrb[0].mxu0
  %3932 = vmatprep.mubr.f32.mxu0 0.0
  %3933 = vmatmul.mubr.f32.gmra.mrb[0].mxu0 %v3861
  %v3934 = vpop.f32.mrb[0].mxu0
  %v3935 = vadd.f32 0.0, %v3934
  %v3936 = vpop.f32.mrb[0].mxu0
  %3937 = vdwg.mxu0
  %3942 = vrot.lane.b32.xlu0 %v3840, 24
  %v3943 = vpop.permute.xlu0 %3942
  %3944 = vrot.lane.b32.xlu0 %v3845, 24
  %v3945 = vpop.permute.xlu0 %3944
  %3946 = vrot.lane.b32.xlu0 %v3930, 24
  %v3947 = vpop.permute.xlu0 %3946
  %3948 = vrot.lane.b32.xlu0 %v3935, 24
  %v3949 = vpop.permute.xlu0 %3948
  %3954 = vst.msk [vmem:[#allocation2] sm:$0xff] %vm1823, %v3943
  %3955 = vst.msk [vmem:[#allocation2 + $0x8] sm:$0xff] %vm1823, %v3945
  %3956 = vst.msk [vmem:[#allocation2 + $0x10] sm:$0xff] %vm1823, %v3947
  %3957 = vst.msk [vmem:[#allocation2 + $0x18] sm:$0xff] %vm1823, %v3949
  %v3958 = vld [vmem:[#allocation2] sm:$0xff]
  %v3959 = vld [vmem:[#allocation2 + $0x8] sm:$0xff]
  %v3960 = vld [vmem:[#allocation2 + $0x10] sm:$0xff]
  %v3961 = vld [vmem:[#allocation2 + $0x18] sm:$0xff]
  %v3962 = vlaneseq
  %v3963 = vshrl.u32 %v3962, 7
  %v3964 = vsub.s32 4, %v3963
  %v3965 = vrot.slane %v51, %v3964
  %v3967 = vsel %vm61, %v3958, 0
  %v3970 = vsel %vm61, %v3959, 0
  %v3973 = vsel %vm61, %v3960, 0
  %v3976 = vsel %vm61, %v3961, 0
  %3978 = vmatprep.subr.mxu0 0.0
  %3979 = vmatpush1.msra.mxu0 %v2243
  %3980 = vmatprep.subr.mxu0 0.0
  %3981 = vmatpush1.msra.mxu0 %v2244
  %3982 = vmatprep.subr.mxu0 0.0
  %3983 = vmatpush1.msra.mxu0 %v2245
  %3984 = vmatprep.subr.mxu0 0.0
  %3985 = vmatpush1.msra.mxu0 %v2246
  %3986 = vmatprep.subr.mxu0 0.0
  %3987 = vmatpush1.msra.mxu0 0.0
  %3988 = vmatprep.subr.mxu0 0.0
  %3989 = vmatpush1.msra.mxu0 0.0
  %3990 = vmatprep.subr.mxu0 0.0
  %3991 = vmatpush1.msra.mxu0 0.0
  %3992 = vmatprep.subr.mxu0 0.0
  %3993 = vmatpush1.msra.mxu0 0.0
  %3994 = vmatprep.subr.mxu0 0.0
  %3995 = vmatpush1.msra.mxu0 0.0
  %3996 = vmatprep.subr.mxu0 0.0
  %3997 = vmatpush1.msra.mxu0 0.0
  %3998 = vmatprep.subr.mxu0 0.0
  %3999 = vmatpush1.msra.mxu0 0.0
  %4000 = vmatprep.subr.mxu0 0.0
  %4001 = vmatpush1.msra.mxu0 0.0
  %4002 = vmatprep.subr.mxu0 0.0
  %4003 = vmatpush1.msra.mxu0 0.0
  %4004 = vmatprep.subr.mxu0 0.0
  %4005 = vmatpush1.msra.mxu0 0.0
  %4006 = vmatprep.subr.mxu0 0.0
  %4007 = vmatpush1.msra.mxu0 0.0
  %4008 = vmatprep.subr.mxu0 0.0
  %4009 = vmatpush1.msra.mxu0 0.0
  %4010 = vmatprep.subr.mxu0 0.0
  %4011 = vmatpush1.msra.mxu0 0.0
  %4012 = vmatprep.subr.mxu0 0.0
  %4013 = vmatpush1.msra.mxu0 0.0
  %4014 = vmatprep.subr.mxu0 0.0
  %4015 = vmatpush1.msra.mxu0 0.0
  %4016 = vmatprep.subr.mxu0 0.0
  %4017 = vmatpush1.msra.mxu0 0.0
  %4018 = vmatprep.subr.mxu0 0.0
  %4019 = vmatpush1.msra.mxu0 0.0
  %4020 = vmatprep.subr.mxu0 0.0
  %4021 = vmatpush1.msra.mxu0 0.0
  %4022 = vmatprep.subr.mxu0 0.0
  %4023 = vmatpush1.msra.mxu0 0.0
  %4024 = vmatprep.subr.mxu0 0.0
  %4025 = vmatpush1.msra.mxu0 0.0
  %4026 = vmatprep.subr.mxu0 0.0
  %4027 = vmatpush1.msra.mxu0 0.0
  %4028 = vmatprep.subr.mxu0 0.0
  %4029 = vmatpush1.msra.mxu0 0.0
  %4030 = vmatprep.subr.mxu0 0.0
  %4031 = vmatpush1.msra.mxu0 0.0
  %4032 = vmatprep.subr.mxu0 0.0
  %4033 = vmatpush1.msra.mxu0 0.0
  %4034 = vmatprep.subr.mxu0 0.0
  %4035 = vmatpush1.msra.mxu0 0.0
  %4036 = vmatprep.subr.mxu0 0.0
  %4037 = vmatpush1.msra.mxu0 0.0
  %4038 = vmatprep.subr.mxu0 0.0
  %4039 = vmatpush1.msra.mxu0 0.0
  %4040 = vmatprep.subr.mxu0 0.0
  %4041 = vmatpush1.msra.mxu0 0.0
  %4042 = vmatprep.mubr.f32.mxu0 0.0
  %4043 = vmatmul.mubr.f32.gmra.mrb[0].mxu0 %v3967
  %v4044 = vpop.f32.mrb[0].mxu0
  %v4045 = vadd.f32 %v3965, %v4044
  %v4046 = vpop.f32.mrb[0].mxu0
  %4047 = vmatprep.mubr.f32.mxu0 0.0
  %4048 = vmatmul.mubr.f32.gmra.mrb[0].mxu0 %v3970
  %v4049 = vpop.f32.mrb[0].mxu0
  %v4050 = vadd.f32 %v3965, %v4049
  %v4051 = vpop.f32.mrb[0].mxu0
  %4052 = vmatprep.mubr.f32.mxu0 0.0
  %4053 = vmatmul.mubr.f32.gmra.mrb[0].mxu0 %v3973
  %v4054 = vpop.f32.mrb[0].mxu0
  %v4055 = vadd.f32 %v3965, %v4054
  %v4056 = vpop.f32.mrb[0].mxu0
  %4057 = vmatprep.mubr.f32.mxu0 0.0
  %4058 = vmatmul.mubr.f32.gmra.mrb[0].mxu0 %v3976
  %v4059 = vpop.f32.mrb[0].mxu0
  %v4060 = vadd.f32 %v3965, %v4059
  %v4061 = vpop.f32.mrb[0].mxu0
  %4062 = vdwg.mxu0
  %v4063 = vadd.f32 %v2010, %v4045
  %v4064 = vadd.f32 %v2011, %v4050
  %v4065 = vadd.f32 %v2012, %v4055
  %v4066 = vadd.f32 %v2013, %v4060
  %v4067 = vsel %vm61, %v4063, 0.0
  %4068 = vadd.xlane.f32.xlu0 %v4067
  %v4069 = vpop.xlane.xlu0 %4068
  %v4070 = vsel %vm61, %v4064, 0.0
  %4071 = vadd.xlane.f32.xlu0 %v4070
  %v4072 = vpop.xlane.xlu0 %4071
  %v4073 = vsel %vm61, %v4065, 0.0
  %4074 = vadd.xlane.f32.xlu0 %v4073
  %v4075 = vpop.xlane.xlu0 %4074
  %v4076 = vsel %vm61, %v4066, 0.0
  %4077 = vadd.xlane.f32.xlu0 %v4076
  %v4078 = vpop.xlane.xlu0 %4077
  %v4079 = vmul.f32 %v4069, %v1949
  %v4080 = vmul.f32 %v4072, %v1949
  %v4081 = vmul.f32 %v4075, %v1949
  %v4082 = vmul.f32 %v4078, %v1949
  %v4083 = vmul.f32 %v4063, %v4063
  %v4084 = vmul.f32 %v4064, %v4064
  %v4085 = vmul.f32 %v4065, %v4065
  %v4086 = vmul.f32 %v4066, %v4066
  %v4087 = vsel %vm61, %v4083, 0.0
  %4088 = vadd.xlane.f32.xlu0 %v4087
  %v4089 = vpop.xlane.xlu0 %4088
  %v4090 = vsel %vm61, %v4084, 0.0
  %4091 = vadd.xlane.f32.xlu0 %v4090
  %v4092 = vpop.xlane.xlu0 %4091
  %v4093 = vsel %vm61, %v4085, 0.0
  %4094 = vadd.xlane.f32.xlu0 %v4093
  %v4095 = vpop.xlane.xlu0 %4094
  %v4096 = vsel %vm61, %v4086, 0.0
  %4097 = vadd.xlane.f32.xlu0 %v4096
  %v4098 = vpop.xlane.xlu0 %4097
  %v4099 = vmul.f32 %v4089, %v1949
  %v4100 = vmul.f32 %v4092, %v1949
  %v4101 = vmul.f32 %v4095, %v1949
  %v4102 = vmul.f32 %v4098, %v1949
  %v4103 = vmul.f32 %v4079, %v4079
  %v4104 = vmul.f32 %v4080, %v4080
  %v4105 = vmul.f32 %v4081, %v4081
  %v4106 = vmul.f32 %v4082, %v4082
  %v4107 = vsub.f32 %v4099, %v4103
  %v4108 = vsub.f32 %v4100, %v4104
  %v4109 = vsub.f32 %v4101, %v4105
  %v4110 = vsub.f32 %v4102, %v4106
  %v4111 = vsub.f32 %v4063, %v4079
  %v4112 = vsub.f32 %v4064, %v4080
  %v4113 = vsub.f32 %v4065, %v4081
  %v4114 = vsub.f32 %v4066, %v4082
  %v4115 = vadd.f32 %v4107, 1e-05
  %v4116 = vadd.f32 %v4108, 1e-05
  %v4117 = vadd.f32 %v4109, 1e-05
  %v4118 = vadd.f32 %v4110, 1e-05
  %v4119 = vrsqrt.pop %v4115
  %v4120 = vrsqrt.pop %v4116
  %v4121 = vrsqrt.pop %v4117
  %v4122 = vrsqrt.pop %v4118
  %v4123 = vmul.f32 %v4111, %v4119
  %v4124 = vmul.f32 %v4112, %v4120
  %v4125 = vmul.f32 %v4113, %v4121
  %v4126 = vmul.f32 %v4114, %v4122
  %v4127 = vlaneseq
  %v4128 = vshrl.u32 %v4127, 7
  %v4129 = vsub.s32 7, %v4128
  %v4130 = vrot.slane %v51, %v4129
  %v4131 = vmul.f32 %v4123, %v4130
  %v4132 = vmul.f32 %v4124, %v4130
  %v4133 = vmul.f32 %v4125, %v4130
  %v4134 = vmul.f32 %v4126, %v4130
  %v4135 = vlaneseq
  %v4136 = vshrl.u32 %v4135, 7
  %v4137 = vsub.s32 0, %v4136
  %v4138 = vrot.slane %v52, %v4137
  %v4139 = vadd.f32 %v4131, %v4138
  %v4140 = vadd.f32 %v4132, %v4138
  %v4141 = vadd.f32 %v4133, %v4138
  %v4142 = vadd.f32 %v4134, %v4138
  %v4143 = vsel %vm61, %v4139, 0.0
  %4144 = vadd.xlane.f32.xlu0 %v4143
  %v4145 = vpop.xlane.xlu0 %4144
  %v4146 = vsel %vm61, %v4140, 0.0
  %4147 = vadd.xlane.f32.xlu0 %v4146
  %v4148 = vpop.xlane.xlu0 %4147
  %v4149 = vsel %vm61, %v4141, 0.0
  %4150 = vadd.xlane.f32.xlu0 %v4149
  %v4151 = vpop.xlane.xlu0 %4150
  %v4152 = vsel %vm61, %v4142, 0.0
  %4153 = vadd.xlane.f32.xlu0 %v4152
  %v4154 = vpop.xlane.xlu0 %4153
  %v4155 = vmul.f32 %v4145, %v1949
  %v4156 = vmul.f32 %v4148, %v1949
  %v4157 = vmul.f32 %v4151, %v1949
  %v4158 = vmul.f32 %v4154, %v1949
  %v4159 = vmul.f32 %v4139, %v4139
  %v4160 = vmul.f32 %v4140, %v4140
  %v4161 = vmul.f32 %v4141, %v4141
  %v4162 = vmul.f32 %v4142, %v4142
  %v4163 = vsel %vm61, %v4159, 0.0
  %4164 = vadd.xlane.f32.xlu0 %v4163
  %v4165 = vpop.xlane.xlu0 %4164
  %v4166 = vsel %vm61, %v4160, 0.0
  %4167 = vadd.xlane.f32.xlu0 %v4166
  %v4168 = vpop.xlane.xlu0 %4167
  %v4169 = vsel %vm61, %v4161, 0.0
  %4170 = vadd.xlane.f32.xlu0 %v4169
  %v4171 = vpop.xlane.xlu0 %4170
  %v4172 = vsel %vm61, %v4162, 0.0
  %4173 = vadd.xlane.f32.xlu0 %v4172
  %v4174 = vpop.xlane.xlu0 %4173
  %v4175 = vmul.f32 %v4165, %v1949
  %v4176 = vmul.f32 %v4168, %v1949
  %v4177 = vmul.f32 %v4171, %v1949
  %v4178 = vmul.f32 %v4174, %v1949
  %v4179 = vmul.f32 %v4155, %v4155
  %v4180 = vmul.f32 %v4156, %v4156
  %v4181 = vmul.f32 %v4157, %v4157
  %v4182 = vmul.f32 %v4158, %v4158
  %v4183 = vsub.f32 %v4175, %v4179
  %v4184 = vsub.f32 %v4176, %v4180
  %v4185 = vsub.f32 %v4177, %v4181
  %v4186 = vsub.f32 %v4178, %v4182
  %v4187 = vsub.f32 %v4139, %v4155
  %v4188 = vsub.f32 %v4140, %v4156
  %v4189 = vsub.f32 %v4141, %v4157
  %v4190 = vsub.f32 %v4142, %v4158
  %v4191 = vadd.f32 %v4183, 1e-05
  %v4192 = vadd.f32 %v4184, 1e-05
  %v4193 = vadd.f32 %v4185, 1e-05
  %v4194 = vadd.f32 %v4186, 1e-05
  %v4195 = vrsqrt.pop %v4191
  %v4196 = vrsqrt.pop %v4192
  %v4197 = vrsqrt.pop %v4193
  %v4198 = vrsqrt.pop %v4194
  %v4199 = vmul.f32 %v4187, %v4195
  %v4200 = vmul.f32 %v4188, %v4196
  %v4201 = vmul.f32 %v4189, %v4197
  %v4202 = vmul.f32 %v4190, %v4198
  %v4203 = vlaneseq
  %v4204 = vshrl.u32 %v4203, 7
  %v4205 = vsub.s32 1, %v4204
  %v4206 = vrot.slane %v52, %v4205
  %v4207 = vmul.f32 %v4199, %v4206
  %v4208 = vmul.f32 %v4200, %v4206
  %v4209 = vmul.f32 %v4201, %v4206
  %v4210 = vmul.f32 %v4202, %v4206
  %v4211 = vlaneseq
  %v4212 = vshrl.u32 %v4211, 7
  %v4213 = vsub.s32 2, %v4212
  %v4214 = vrot.slane %v52, %v4213
  %v4215 = vadd.f32 %v4207, %v4214
  %v4216 = vadd.f32 %v4208, %v4214
  %v4217 = vadd.f32 %v4209, %v4214
  %v4218 = vadd.f32 %v4210, %v4214
  %v4219 = vld [vmem:[%s4] sm:$0xff]
  %v4220 = vld [vmem:[%s4 + $0x8] sm:$0xff]
  %v4221 = vld [vmem:[%s4 + $0x10] sm:$0xff]
  %v4222 = vld [vmem:[%s4 + $0x18] sm:$0xff]
  %v4223 = vld [vmem:[%s4 + $0x20] sm:$0x1]
  %v4224 = vlaneseq
  %v4225 = vshrl.u32 %v4224, 7
  %v4226 = vsub.s32 0, %v4225
  %v4227 = vrot.slane %v4223, %v4226
  %v4229 = vsel %vm61, %v4215, 0
  %v4232 = vsel %vm61, %v4216, 0
  %v4235 = vsel %vm61, %v4217, 0
  %v4238 = vsel %vm61, %v4218, 0
  %4240 = vmatprep.subr.mxu0 0.0
  %4241 = vmatpush1.msra.mxu0 %v4219
  %4242 = vmatprep.subr.mxu0 0.0
  %4243 = vmatpush1.msra.mxu0 %v4220
  %4244 = vmatprep.subr.mxu0 0.0
  %4245 = vmatpush1.msra.mxu0 %v4221
  %4246 = vmatprep.subr.mxu0 0.0
  %4247 = vmatpush1.msra.mxu0 %v4222
  %4248 = vmatprep.subr.mxu0 0.0
  %4249 = vmatpush1.msra.mxu0 0.0
  %4250 = vmatprep.subr.mxu0 0.0
  %4251 = vmatpush1.msra.mxu0 0.0
  %4252 = vmatprep.subr.mxu0 0.0
  %4253 = vmatpush1.msra.mxu0 0.0
  %4254 = vmatprep.subr.mxu0 0.0
  %4255 = vmatpush1.msra.mxu0 0.0
  %4256 = vmatprep.subr.mxu0 0.0
  %4257 = vmatpush1.msra.mxu0 0.0
  %4258 = vmatprep.subr.mxu0 0.0
  %4259 = vmatpush1.msra.mxu0 0.0
  %4260 = vmatprep.subr.mxu0 0.0
  %4261 = vmatpush1.msra.mxu0 0.0
  %4262 = vmatprep.subr.mxu0 0.0
  %4263 = vmatpush1.msra.mxu0 0.0
  %4264 = vmatprep.subr.mxu0 0.0
  %4265 = vmatpush1.msra.mxu0 0.0
  %4266 = vmatprep.subr.mxu0 0.0
  %4267 = vmatpush1.msra.mxu0 0.0
  %4268 = vmatprep.subr.mxu0 0.0
  %4269 = vmatpush1.msra.mxu0 0.0
  %4270 = vmatprep.subr.mxu0 0.0
  %4271 = vmatpush1.msra.mxu0 0.0
  %4272 = vmatprep.subr.mxu0 0.0
  %4273 = vmatpush1.msra.mxu0 0.0
  %4274 = vmatprep.subr.mxu0 0.0
  %4275 = vmatpush1.msra.mxu0 0.0
  %4276 = vmatprep.subr.mxu0 0.0
  %4277 = vmatpush1.msra.mxu0 0.0
  %4278 = vmatprep.subr.mxu0 0.0
  %4279 = vmatpush1.msra.mxu0 0.0
  %4280 = vmatprep.subr.mxu0 0.0
  %4281 = vmatpush1.msra.mxu0 0.0
  %4282 = vmatprep.subr.mxu0 0.0
  %4283 = vmatpush1.msra.mxu0 0.0
  %4284 = vmatprep.subr.mxu0 0.0
  %4285 = vmatpush1.msra.mxu0 0.0
  %4286 = vmatprep.subr.mxu0 0.0
  %4287 = vmatpush1.msra.mxu0 0.0
  %4288 = vmatprep.subr.mxu0 0.0
  %4289 = vmatpush1.msra.mxu0 0.0
  %4290 = vmatprep.subr.mxu0 0.0
  %4291 = vmatpush1.msra.mxu0 0.0
  %4292 = vmatprep.subr.mxu0 0.0
  %4293 = vmatpush1.msra.mxu0 0.0
  %4294 = vmatprep.subr.mxu0 0.0
  %4295 = vmatpush1.msra.mxu0 0.0
  %4296 = vmatprep.subr.mxu0 0.0
  %4297 = vmatpush1.msra.mxu0 0.0
  %4298 = vmatprep.subr.mxu0 0.0
  %4299 = vmatpush1.msra.mxu0 0.0
  %4300 = vmatprep.subr.mxu0 0.0
  %4301 = vmatpush1.msra.mxu0 0.0
  %4302 = vmatprep.subr.mxu0 0.0
  %4303 = vmatpush1.msra.mxu0 0.0
  %4304 = vmatprep.mubr.f32.mxu0 0.0
  %4305 = vmatmul.mubr.f32.gmra.mrb[0].mxu0 %v4229
  %v4306 = vpop.f32.mrb[0].mxu0
  %v4307 = vadd.f32 %v4227, %v4306
  %v4308 = vpop.f32.mrb[0].mxu0
  %4309 = vmatprep.mubr.f32.mxu0 0.0
  %4310 = vmatmul.mubr.f32.gmra.mrb[0].mxu0 %v4232
  %v4311 = vpop.f32.mrb[0].mxu0
  %v4312 = vadd.f32 %v4227, %v4311
  %v4313 = vpop.f32.mrb[0].mxu0
  %4314 = vmatprep.mubr.f32.mxu0 0.0
  %4315 = vmatmul.mubr.f32.gmra.mrb[0].mxu0 %v4235
  %v4316 = vpop.f32.mrb[0].mxu0
  %v4317 = vadd.f32 %v4227, %v4316
  %v4318 = vpop.f32.mrb[0].mxu0
  %4319 = vmatprep.mubr.f32.mxu0 0.0
  %4320 = vmatmul.mubr.f32.gmra.mrb[0].mxu0 %v4238
  %v4321 = vpop.f32.mrb[0].mxu0
  %v4322 = vadd.f32 %v4227, %v4321
  %v4323 = vpop.f32.mrb[0].mxu0
  %4324 = vdwg.mxu0
  %v4325 = vmax.f32 %v4307, 0.0
  %v4326 = vmax.f32 %v4312, 0.0
  %v4327 = vmax.f32 %v4317, 0.0
  %v4328 = vmax.f32 %v4322, 0.0
  %v4329 = vld [vmem:[%s5] sm:$0xff]
  %v4330 = vld [vmem:[%s5 + $0x8] sm:$0xff]
  %v4331 = vld [vmem:[%s5 + $0x10] sm:$0xff]
  %v4332 = vld [vmem:[%s5 + $0x18] sm:$0xff]
  %v4333 = vld [vmem:[%s5 + $0x20] sm:$0xff]
  %v4334 = vld [vmem:[%s5 + $0x28] sm:$0xff]
  %v4335 = vld [vmem:[%s5 + $0x30] sm:$0xff]
  %v4336 = vld [vmem:[%s5 + $0x38] sm:$0xff]
  %v4337 = vld [vmem:[%s5 + $0x40] sm:$0x1]
  %v4338 = vlaneseq
  %v4339 = vshrl.u32 %v4338, 7
  %v4340 = vsub.s32 0, %v4339
  %v4341 = vrot.slane %v4337, %v4340
  %vm4342 = vcmask 523264
  %v4344 = vsel %vm4342, %v4325, 0
  %v4347 = vsel %vm4342, %v4326, 0
  %v4350 = vsel %vm4342, %v4327, 0
  %v4353 = vsel %vm4342, %v4328, 0
  %4355 = vmatprep.subr.mxu0 0.0
  %4356 = vmatpush1.msra.mxu0 %v4329
  %4357 = vmatprep.subr.mxu0 0.0
  %4358 = vmatpush1.msra.mxu0 %v4330
  %4359 = vmatprep.subr.mxu0 0.0
  %4360 = vmatpush1.msra.mxu0 %v4331
  %4361 = vmatprep.subr.mxu0 0.0
  %4362 = vmatpush1.msra.mxu0 %v4332
  %4363 = vmatprep.subr.mxu0 0.0
  %4364 = vmatpush1.msra.mxu0 %v4333
  %4365 = vmatprep.subr.mxu0 0.0
  %4366 = vmatpush1.msra.mxu0 %v4334
  %4367 = vmatprep.subr.mxu0 0.0
  %4368 = vmatpush1.msra.mxu0 %v4335
  %4369 = vmatprep.subr.mxu0 0.0
  %4370 = vmatpush1.msra.mxu0 %v4336
  %4371 = vmatprep.subr.mxu0 0.0
  %4372 = vmatpush1.msra.mxu0 0.0
  %4373 = vmatprep.subr.mxu0 0.0
  %4374 = vmatpush1.msra.mxu0 0.0
  %4375 = vmatprep.subr.mxu0 0.0
  %4376 = vmatpush1.msra.mxu0 0.0
  %4377 = vmatprep.subr.mxu0 0.0
  %4378 = vmatpush1.msra.mxu0 0.0
  %4379 = vmatprep.subr.mxu0 0.0
  %4380 = vmatpush1.msra.mxu0 0.0
  %4381 = vmatprep.subr.mxu0 0.0
  %4382 = vmatpush1.msra.mxu0 0.0
  %4383 = vmatprep.subr.mxu0 0.0
  %4384 = vmatpush1.msra.mxu0 0.0
  %4385 = vmatprep.subr.mxu0 0.0
  %4386 = vmatpush1.msra.mxu0 0.0
  %4387 = vmatprep.subr.mxu0 0.0
  %4388 = vmatpush1.msra.mxu0 0.0
  %4389 = vmatprep.subr.mxu0 0.0
  %4390 = vmatpush1.msra.mxu0 0.0
  %4391 = vmatprep.subr.mxu0 0.0
  %4392 = vmatpush1.msra.mxu0 0.0
  %4393 = vmatprep.subr.mxu0 0.0
  %4394 = vmatpush1.msra.mxu0 0.0
  %4395 = vmatprep.subr.mxu0 0.0
  %4396 = vmatpush1.msra.mxu0 0.0
  %4397 = vmatprep.subr.mxu0 0.0
  %4398 = vmatpush1.msra.mxu0 0.0
  %4399 = vmatprep.subr.mxu0 0.0
  %4400 = vmatpush1.msra.mxu0 0.0
  %4401 = vmatprep.subr.mxu0 0.0
  %4402 = vmatpush1.msra.mxu0 0.0
  %4403 = vmatprep.subr.mxu0 0.0
  %4404 = vmatpush1.msra.mxu0 0.0
  %4405 = vmatprep.subr.mxu0 0.0
  %4406 = vmatpush1.msra.mxu0 0.0
  %4407 = vmatprep.subr.mxu0 0.0
  %4408 = vmatpush1.msra.mxu0 0.0
  %4409 = vmatprep.subr.mxu0 0.0
  %4410 = vmatpush1.msra.mxu0 0.0
  %4411 = vmatprep.subr.mxu0 0.0
  %4412 = vmatpush1.msra.mxu0 0.0
  %4413 = vmatprep.subr.mxu0 0.0
  %4414 = vmatpush1.msra.mxu0 0.0
  %4415 = vmatprep.subr.mxu0 0.0
  %4416 = vmatpush1.msra.mxu0 0.0
  %4417 = vmatprep.subr.mxu0 0.0
  %4418 = vmatpush1.msra.mxu0 0.0
  %4419 = vmatprep.mubr.f32.mxu0 0.0
  %4420 = vmatmul.mubr.f32.gmra.mrb[0].mxu0 %v4344
  %v4421 = vpop.f32.mrb[0].mxu0
  %v4422 = vadd.f32 %v4341, %v4421
  %v4423 = vpop.f32.mrb[0].mxu0
  %4424 = vmatprep.mubr.f32.mxu0 0.0
  %4425 = vmatmul.mubr.f32.gmra.mrb[0].mxu0 %v4347
  %v4426 = vpop.f32.mrb[0].mxu0
  %v4427 = vadd.f32 %v4341, %v4426
  %v4428 = vpop.f32.mrb[0].mxu0
  %4429 = vmatprep.mubr.f32.mxu0 0.0
  %4430 = vmatmul.mubr.f32.gmra.mrb[0].mxu0 %v4350
  %v4431 = vpop.f32.mrb[0].mxu0
  %v4432 = vadd.f32 %v4341, %v4431
  %v4433 = vpop.f32.mrb[0].mxu0
  %4434 = vmatprep.mubr.f32.mxu0 0.0
  %4435 = vmatmul.mubr.f32.gmra.mrb[0].mxu0 %v4353
  %v4436 = vpop.f32.mrb[0].mxu0
  %v4437 = vadd.f32 %v4341, %v4436
  %v4438 = vpop.f32.mrb[0].mxu0
  %4439 = vdwg.mxu0
  %v4440 = vadd.f32 %v4215, %v4422
  %v4441 = vadd.f32 %v4216, %v4427
  %v4442 = vadd.f32 %v4217, %v4432
  %v4443 = vadd.f32 %v4218, %v4437
  %v4444 = vsel %vm61, %v4440, 0.0
  %4445 = vadd.xlane.f32.xlu0 %v4444
  %v4446 = vpop.xlane.xlu0 %4445
  %v4447 = vsel %vm61, %v4441, 0.0
  %4448 = vadd.xlane.f32.xlu0 %v4447
  %v4449 = vpop.xlane.xlu0 %4448
  %v4450 = vsel %vm61, %v4442, 0.0
  %4451 = vadd.xlane.f32.xlu0 %v4450
  %v4452 = vpop.xlane.xlu0 %4451
  %v4453 = vsel %vm61, %v4443, 0.0
  %4454 = vadd.xlane.f32.xlu0 %v4453
  %v4455 = vpop.xlane.xlu0 %4454
  %v4456 = vmul.f32 %v4446, %v1949
  %v4457 = vmul.f32 %v4449, %v1949
  %v4458 = vmul.f32 %v4452, %v1949
  %v4459 = vmul.f32 %v4455, %v1949
  %v4460 = vmul.f32 %v4440, %v4440
  %v4461 = vmul.f32 %v4441, %v4441
  %v4462 = vmul.f32 %v4442, %v4442
  %v4463 = vmul.f32 %v4443, %v4443
  %v4464 = vsel %vm61, %v4460, 0.0
  %4465 = vadd.xlane.f32.xlu0 %v4464
  %v4466 = vpop.xlane.xlu0 %4465
  %v4467 = vsel %vm61, %v4461, 0.0
  %4468 = vadd.xlane.f32.xlu0 %v4467
  %v4469 = vpop.xlane.xlu0 %4468
  %v4470 = vsel %vm61, %v4462, 0.0
  %4471 = vadd.xlane.f32.xlu0 %v4470
  %v4472 = vpop.xlane.xlu0 %4471
  %v4473 = vsel %vm61, %v4463, 0.0
  %4474 = vadd.xlane.f32.xlu0 %v4473
  %v4475 = vpop.xlane.xlu0 %4474
  %v4476 = vmul.f32 %v4466, %v1949
  %v4477 = vmul.f32 %v4469, %v1949
  %v4478 = vmul.f32 %v4472, %v1949
  %v4479 = vmul.f32 %v4475, %v1949
  %v4480 = vmul.f32 %v4456, %v4456
  %v4481 = vmul.f32 %v4457, %v4457
  %v4482 = vmul.f32 %v4458, %v4458
  %v4483 = vmul.f32 %v4459, %v4459
  %v4484 = vsub.f32 %v4476, %v4480
  %v4485 = vsub.f32 %v4477, %v4481
  %v4486 = vsub.f32 %v4478, %v4482
  %v4487 = vsub.f32 %v4479, %v4483
  %v4488 = vsub.f32 %v4440, %v4456
  %v4489 = vsub.f32 %v4441, %v4457
  %v4490 = vsub.f32 %v4442, %v4458
  %v4491 = vsub.f32 %v4443, %v4459
  %v4492 = vadd.f32 %v4484, 1e-05
  %v4493 = vadd.f32 %v4485, 1e-05
  %v4494 = vadd.f32 %v4486, 1e-05
  %v4495 = vadd.f32 %v4487, 1e-05
  %v4496 = vrsqrt.pop %v4492
  %v4497 = vrsqrt.pop %v4493
  %v4498 = vrsqrt.pop %v4494
  %v4499 = vrsqrt.pop %v4495
  %v4500 = vmul.f32 %v4488, %v4496
  %v4501 = vmul.f32 %v4489, %v4497
  %v4502 = vmul.f32 %v4490, %v4498
  %v4503 = vmul.f32 %v4491, %v4499
  %v4504 = vmul.f32 %v4500, %v4206
  %v4505 = vmul.f32 %v4501, %v4206
  %v4506 = vmul.f32 %v4502, %v4206
  %v4507 = vmul.f32 %v4503, %v4206
  %v4508 = vadd.f32 %v4504, %v4214
  %v4509 = vadd.f32 %v4505, %v4214
  %v4510 = vadd.f32 %v4506, %v4214
  %v4511 = vadd.f32 %v4507, %v4214
  %s4512 = scalar_lea.vmem %s6, 16
  %v4513 = vld [vmem:[%s4512] sm:$0xff]
  %v4514 = vld [vmem:[%s4512 + $0x8] sm:$0x7]
  %s4515 = scalar_lea.vmem %s2, 64
  %v4516 = vld [vmem:[%s4515] sm:$0xff]
  %v4517 = vld [vmem:[%s4515 + $0x8] sm:$0xff]
  %v4518 = vld [vmem:[%s4515 + $0x10] sm:$0xff]
  %v4519 = vld [vmem:[%s4515 + $0x18] sm:$0xff]
  %v4520 = vlaneseq
  %v4521 = vshrl.u32 %v4520, 7
  %v4522 = vsub.s32 0, %v4521
  %v4523 = vrot.slane %v4513, %v4522
  %v4525 = vsel %vm61, %v4508, 0
  %v4528 = vsel %vm61, %v4509, 0
  %v4531 = vsel %vm61, %v4510, 0
  %v4534 = vsel %vm61, %v4511, 0
  %4536 = vmatprep.subr.mxu0 0.0
  %4537 = vmatpush1.msra.mxu0 %v4516
  %4538 = vmatprep.subr.mxu0 0.0
  %4539 = vmatpush1.msra.mxu0 %v4517
  %4540 = vmatprep.subr.mxu0 0.0
  %4541 = vmatpush1.msra.mxu0 %v4518
  %4542 = vmatprep.subr.mxu0 0.0
  %4543 = vmatpush1.msra.mxu0 %v4519
  %4544 = vmatprep.subr.mxu0 0.0
  %4545 = vmatpush1.msra.mxu0 0.0
  %4546 = vmatprep.subr.mxu0 0.0
  %4547 = vmatpush1.msra.mxu0 0.0
  %4548 = vmatprep.subr.mxu0 0.0
  %4549 = vmatpush1.msra.mxu0 0.0
  %4550 = vmatprep.subr.mxu0 0.0
  %4551 = vmatpush1.msra.mxu0 0.0
  %4552 = vmatprep.subr.mxu0 0.0
  %4553 = vmatpush1.msra.mxu0 0.0
  %4554 = vmatprep.subr.mxu0 0.0
  %4555 = vmatpush1.msra.mxu0 0.0
  %4556 = vmatprep.subr.mxu0 0.0
  %4557 = vmatpush1.msra.mxu0 0.0
  %4558 = vmatprep.subr.mxu0 0.0
  %4559 = vmatpush1.msra.mxu0 0.0
  %4560 = vmatprep.subr.mxu0 0.0
  %4561 = vmatpush1.msra.mxu0 0.0
  %4562 = vmatprep.subr.mxu0 0.0
  %4563 = vmatpush1.msra.mxu0 0.0
  %4564 = vmatprep.subr.mxu0 0.0
  %4565 = vmatpush1.msra.mxu0 0.0
  %4566 = vmatprep.subr.mxu0 0.0
  %4567 = vmatpush1.msra.mxu0 0.0
  %4568 = vmatprep.subr.mxu0 0.0
  %4569 = vmatpush1.msra.mxu0 0.0
  %4570 = vmatprep.subr.mxu0 0.0
  %4571 = vmatpush1.msra.mxu0 0.0
  %4572 = vmatprep.subr.mxu0 0.0
  %4573 = vmatpush1.msra.mxu0 0.0
  %4574 = vmatprep.subr.mxu0 0.0
  %4575 = vmatpush1.msra.mxu0 0.0
  %4576 = vmatprep.subr.mxu0 0.0
  %4577 = vmatpush1.msra.mxu0 0.0
  %4578 = vmatprep.subr.mxu0 0.0
  %4579 = vmatpush1.msra.mxu0 0.0
  %4580 = vmatprep.subr.mxu0 0.0
  %4581 = vmatpush1.msra.mxu0 0.0
  %4582 = vmatprep.subr.mxu0 0.0
  %4583 = vmatpush1.msra.mxu0 0.0
  %4584 = vmatprep.subr.mxu0 0.0
  %4585 = vmatpush1.msra.mxu0 0.0
  %4586 = vmatprep.subr.mxu0 0.0
  %4587 = vmatpush1.msra.mxu0 0.0
  %4588 = vmatprep.subr.mxu0 0.0
  %4589 = vmatpush1.msra.mxu0 0.0
  %4590 = vmatprep.subr.mxu0 0.0
  %4591 = vmatpush1.msra.mxu0 0.0
  %4592 = vmatprep.subr.mxu0 0.0
  %4593 = vmatpush1.msra.mxu0 0.0
  %4594 = vmatprep.subr.mxu0 0.0
  %4595 = vmatpush1.msra.mxu0 0.0
  %4596 = vmatprep.subr.mxu0 0.0
  %4597 = vmatpush1.msra.mxu0 0.0
  %4598 = vmatprep.subr.mxu0 0.0
  %4599 = vmatpush1.msra.mxu0 0.0
  %4600 = vmatprep.mubr.f32.mxu0 0.0
  %4601 = vmatmul.mubr.f32.gmra.mrb[0].mxu0 %v4525
  %v4602 = vpop.f32.mrb[0].mxu0
  %v4603 = vadd.f32 %v4523, %v4602
  %v4604 = vpop.f32.mrb[0].mxu0
  %4605 = vmatprep.mubr.f32.mxu0 0.0
  %4606 = vmatmul.mubr.f32.gmra.mrb[0].mxu0 %v4528
  %v4607 = vpop.f32.mrb[0].mxu0
  %v4608 = vadd.f32 %v4523, %v4607
  %v4609 = vpop.f32.mrb[0].mxu0
  %4610 = vmatprep.mubr.f32.mxu0 0.0
  %4611 = vmatmul.mubr.f32.gmra.mrb[0].mxu0 %v4531
  %v4612 = vpop.f32.mrb[0].mxu0
  %v4613 = vadd.f32 %v4523, %v4612
  %v4614 = vpop.f32.mrb[0].mxu0
  %4615 = vmatprep.mubr.f32.mxu0 0.0
  %4616 = vmatmul.mubr.f32.gmra.mrb[0].mxu0 %v4534
  %v4617 = vpop.f32.mrb[0].mxu0
  %v4618 = vadd.f32 %v4523, %v4617
  %v4619 = vpop.f32.mrb[0].mxu0
  %4620 = vdwg.mxu0
  %s4621 = scalar_lea.vmem %s3, 96
  %v4622 = vld [vmem:[%s4621] sm:$0xff]
  %v4623 = vld [vmem:[%s4621 + $0x8] sm:$0xff]
  %v4624 = vld [vmem:[%s4621 + $0x10] sm:$0xff]
  %v4625 = vld [vmem:[%s4621 + $0x18] sm:$0xff]
  %4628 = vrot.lane.b32.xlu0 %v4603, 96
  %v4629 = vpop.permute.xlu0 %4628
  %4630 = vrot.lane.b32.xlu0 %v4608, 96
  %v4631 = vpop.permute.xlu0 %4630
  %v4632 = vsel %vm169, %v4603, 0
  %v4634 = vsel %vm169, %v4608, 0
  %v4636 = vsel %vm169, %v4629, 0
  %v4638 = vsel %vm169, %v4631, 0
  %4640 = vmatprep.subr.mxu0 0.0
  %4641 = vmatpush1.xpose.msra.mxu0 %v4636
  %4642 = vmatprep.subr.mxu0 0.0
  %4643 = vmatpush1.xpose.msra.mxu0 %v4638
  %4644 = vmatprep.subr.mxu0 0.0
  %4645 = vmatpush1.xpose.msra.mxu0 0.0
  %4646 = vmatprep.subr.mxu0 0.0
  %4647 = vmatpush1.xpose.msra.mxu0 0.0
  %4648 = vmatprep.subr.mxu0 0.0
  %4649 = vmatpush1.xpose.msra.mxu0 0.0
  %4650 = vmatprep.subr.mxu0 0.0
  %4651 = vmatpush1.xpose.msra.mxu0 0.0
  %4652 = vmatprep.subr.mxu0 0.0
  %4653 = vmatpush1.xpose.msra.mxu0 0.0
  %4654 = vmatprep.subr.mxu0 0.0
  %4655 = vmatpush1.xpose.msra.mxu0 0.0
  %4656 = vmatprep.subr.mxu0 0.0
  %4657 = vmatpush1.xpose.msra.mxu0 0.0
  %4658 = vmatprep.subr.mxu0 0.0
  %4659 = vmatpush1.xpose.msra.mxu0 0.0
  %4660 = vmatprep.subr.mxu0 0.0
  %4661 = vmatpush1.xpose.msra.mxu0 0.0
  %4662 = vmatprep.subr.mxu0 0.0
  %4663 = vmatpush1.xpose.msra.mxu0 0.0
  %4664 = vmatprep.subr.mxu0 0.0
  %4665 = vmatpush1.xpose.msra.mxu0 0.0
  %4666 = vmatprep.subr.mxu0 0.0
  %4667 = vmatpush1.xpose.msra.mxu0 0.0
  %4668 = vmatprep.subr.mxu0 0.0
  %4669 = vmatpush1.xpose.msra.mxu0 0.0
  %4670 = vmatprep.subr.mxu0 0.0
  %4671 = vmatpush1.xpose.msra.mxu0 0.0
  %4672 = vmatprep.subr.mxu0 0.0
  %4673 = vmatpush1.xpose.msra.mxu0 0.0
  %4674 = vmatprep.subr.mxu0 0.0
  %4675 = vmatpush1.xpose.msra.mxu0 0.0
  %4676 = vmatprep.subr.mxu0 0.0
  %4677 = vmatpush1.xpose.msra.mxu0 0.0
  %4678 = vmatprep.subr.mxu0 0.0
  %4679 = vmatpush1.xpose.msra.mxu0 0.0
  %4680 = vmatprep.subr.mxu0 0.0
  %4681 = vmatpush1.xpose.msra.mxu0 0.0
  %4682 = vmatprep.subr.mxu0 0.0
  %4683 = vmatpush1.xpose.msra.mxu0 0.0
  %4684 = vmatprep.subr.mxu0 0.0
  %4685 = vmatpush1.xpose.msra.mxu0 0.0
  %4686 = vmatprep.subr.mxu0 0.0
  %4687 = vmatpush1.xpose.msra.mxu0 0.0
  %4688 = vmatprep.subr.mxu0 0.0
  %4689 = vmatpush1.xpose.msra.mxu0 0.0
  %4690 = vmatprep.subr.mxu0 0.0
  %4691 = vmatpush1.xpose.msra.mxu0 0.0
  %4692 = vmatprep.subr.mxu0 0.0
  %4693 = vmatpush1.xpose.msra.mxu0 0.0
  %4694 = vmatprep.subr.mxu0 0.0
  %4695 = vmatpush1.xpose.msra.mxu0 0.0
  %4696 = vmatprep.subr.mxu0 0.0
  %4697 = vmatpush1.xpose.msra.mxu0 0.0
  %4698 = vmatprep.subr.mxu0 0.0
  %4699 = vmatpush1.xpose.msra.mxu0 0.0
  %4700 = vmatprep.subr.mxu0 0.0
  %4701 = vmatpush1.xpose.msra.mxu0 0.0
  %4702 = vmatprep.subr.mxu0 0.0
  %4703 = vmatpush1.xpose.msra.mxu0 0.0
  %4704 = vmatprep.mubr.f32.mxu0 0.0
  %4705 = vmatmul.mubr.f32.gmra.mrb[0].mxu0 %v4632
  %v4706 = vpop.f32.mrb[0].mxu0
  %v4707 = vadd.f32 %v49, %v4706
  %v4708 = vpop.f32.mrb[0].mxu0
  %4709 = vmatprep.mubr.f32.mxu0 0.0
  %4710 = vmatmul.mubr.f32.gmra.mrb[0].mxu0 %v4634
  %v4711 = vpop.f32.mrb[0].mxu0
  %v4712 = vadd.f32 %v50, %v4711
  %v4713 = vpop.f32.mrb[0].mxu0
  %4714 = vdwg.mxu0
  %4717 = vrot.lane.b32.xlu0 %v4613, 96
  %v4718 = vpop.permute.xlu0 %4717
  %4719 = vrot.lane.b32.xlu0 %v4618, 96
  %v4720 = vpop.permute.xlu0 %4719
  %v4721 = vsel %vm169, %v4613, 0
  %v4723 = vsel %vm169, %v4618, 0
  %v4725 = vsel %vm169, %v4718, 0
  %v4727 = vsel %vm169, %v4720, 0
  %4729 = vmatprep.subr.mxu0 0.0
  %4730 = vmatpush1.xpose.msra.mxu0 %v4725
  %4731 = vmatprep.subr.mxu0 0.0
  %4732 = vmatpush1.xpose.msra.mxu0 %v4727
  %4733 = vmatprep.subr.mxu0 0.0
  %4734 = vmatpush1.xpose.msra.mxu0 0.0
  %4735 = vmatprep.subr.mxu0 0.0
  %4736 = vmatpush1.xpose.msra.mxu0 0.0
  %4737 = vmatprep.subr.mxu0 0.0
  %4738 = vmatpush1.xpose.msra.mxu0 0.0
  %4739 = vmatprep.subr.mxu0 0.0
  %4740 = vmatpush1.xpose.msra.mxu0 0.0
  %4741 = vmatprep.subr.mxu0 0.0
  %4742 = vmatpush1.xpose.msra.mxu0 0.0
  %4743 = vmatprep.subr.mxu0 0.0
  %4744 = vmatpush1.xpose.msra.mxu0 0.0
  %4745 = vmatprep.subr.mxu0 0.0
  %4746 = vmatpush1.xpose.msra.mxu0 0.0
  %4747 = vmatprep.subr.mxu0 0.0
  %4748 = vmatpush1.xpose.msra.mxu0 0.0
  %4749 = vmatprep.subr.mxu0 0.0
  %4750 = vmatpush1.xpose.msra.mxu0 0.0
  %4751 = vmatprep.subr.mxu0 0.0
  %4752 = vmatpush1.xpose.msra.mxu0 0.0
  %4753 = vmatprep.subr.mxu0 0.0
  %4754 = vmatpush1.xpose.msra.mxu0 0.0
  %4755 = vmatprep.subr.mxu0 0.0
  %4756 = vmatpush1.xpose.msra.mxu0 0.0
  %4757 = vmatprep.subr.mxu0 0.0
  %4758 = vmatpush1.xpose.msra.mxu0 0.0
  %4759 = vmatprep.subr.mxu0 0.0
  %4760 = vmatpush1.xpose.msra.mxu0 0.0
  %4761 = vmatprep.subr.mxu0 0.0
  %4762 = vmatpush1.xpose.msra.mxu0 0.0
  %4763 = vmatprep.subr.mxu0 0.0
  %4764 = vmatpush1.xpose.msra.mxu0 0.0
  %4765 = vmatprep.subr.mxu0 0.0
  %4766 = vmatpush1.xpose.msra.mxu0 0.0
  %4767 = vmatprep.subr.mxu0 0.0
  %4768 = vmatpush1.xpose.msra.mxu0 0.0
  %4769 = vmatprep.subr.mxu0 0.0
  %4770 = vmatpush1.xpose.msra.mxu0 0.0
  %4771 = vmatprep.subr.mxu0 0.0
  %4772 = vmatpush1.xpose.msra.mxu0 0.0
  %4773 = vmatprep.subr.mxu0 0.0
  %4774 = vmatpush1.xpose.msra.mxu0 0.0
  %4775 = vmatprep.subr.mxu0 0.0
  %4776 = vmatpush1.xpose.msra.mxu0 0.0
  %4777 = vmatprep.subr.mxu0 0.0
  %4778 = vmatpush1.xpose.msra.mxu0 0.0
  %4779 = vmatprep.subr.mxu0 0.0
  %4780 = vmatpush1.xpose.msra.mxu0 0.0
  %4781 = vmatprep.subr.mxu0 0.0
  %4782 = vmatpush1.xpose.msra.mxu0 0.0
  %4783 = vmatprep.subr.mxu0 0.0
  %4784 = vmatpush1.xpose.msra.mxu0 0.0
  %4785 = vmatprep.subr.mxu0 0.0
  %4786 = vmatpush1.xpose.msra.mxu0 0.0
  %4787 = vmatprep.subr.mxu0 0.0
  %4788 = vmatpush1.xpose.msra.mxu0 0.0
  %4789 = vmatprep.subr.mxu0 0.0
  %4790 = vmatpush1.xpose.msra.mxu0 0.0
  %4791 = vmatprep.subr.mxu0 0.0
  %4792 = vmatpush1.xpose.msra.mxu0 0.0
  %4793 = vmatprep.mubr.f32.mxu0 0.0
  %4794 = vmatmul.mubr.f32.gmra.mrb[0].mxu0 %v4721
  %v4795 = vpop.f32.mrb[0].mxu0
  %v4796 = vadd.f32 %v49, %v4795
  %v4797 = vpop.f32.mrb[0].mxu0
  %4798 = vmatprep.mubr.f32.mxu0 0.0
  %4799 = vmatmul.mubr.f32.gmra.mrb[0].mxu0 %v4723
  %v4800 = vpop.f32.mrb[0].mxu0
  %v4801 = vadd.f32 %v50, %v4800
  %v4802 = vpop.f32.mrb[0].mxu0
  %4803 = vdwg.mxu0
  %v4804 = vsel %vm342, %v4707, -inf
  %4805 = vmax.xlane.f32.xlu0 %v4804
  %v4806 = vpop.xlane.xlu0 %4805
  %v4807 = vsel %vm342, %v4712, -inf
  %4808 = vmax.xlane.f32.xlu0 %v4807
  %v4809 = vpop.xlane.xlu0 %4808
  %v4810 = vsel %vm342, %v4796, -inf
  %4811 = vmax.xlane.f32.xlu0 %v4810
  %v4812 = vpop.xlane.xlu0 %4811
  %v4813 = vsel %vm342, %v4801, -inf
  %4814 = vmax.xlane.f32.xlu0 %v4813
  %v4815 = vpop.xlane.xlu0 %4814
  %v4816 = vsub.f32 %v4707, %v4806
  %v4817 = vsub.f32 %v4712, %v4809
  %v4818 = vsub.f32 %v4796, %v4812
  %v4819 = vsub.f32 %v4801, %v4815
  %v4820 = vmul.f32 %v4816, 1.442695
  %v4821 = vpow.pop %v4820
  %v4822 = vmul.f32 %v4817, 1.442695
  %v4823 = vpow.pop %v4822
  %v4824 = vmul.f32 %v4818, 1.442695
  %v4825 = vpow.pop %v4824
  %v4826 = vmul.f32 %v4819, 1.442695
  %v4827 = vpow.pop %v4826
  %v4828 = vsel %vm342, %v4821, 0.0
  %4829 = vadd.xlane.f32.xlu0 %v4828
  %v4830 = vpop.xlane.xlu0 %4829
  %v4831 = vsel %vm342, %v4823, 0.0
  %4832 = vadd.xlane.f32.xlu0 %v4831
  %v4833 = vpop.xlane.xlu0 %4832
  %v4834 = vsel %vm342, %v4825, 0.0
  %4835 = vadd.xlane.f32.xlu0 %v4834
  %v4836 = vpop.xlane.xlu0 %4835
  %v4837 = vsel %vm342, %v4827, 0.0
  %4838 = vadd.xlane.f32.xlu0 %v4837
  %v4839 = vpop.xlane.xlu0 %4838
  %v4840 = vrcp.pop %v4830
  %v4841 = vrcp.pop %v4833
  %v4842 = vrcp.pop %v4836
  %v4843 = vrcp.pop %v4839
  %v4844 = vmul.f32 %v4821, %v4840
  %v4845 = vmul.f32 %v4823, %v4841
  %v4846 = vmul.f32 %v4825, %v4842
  %v4847 = vmul.f32 %v4827, %v4843
  %4848 = vrot.lane.b32.xlu0 %v4603, 64
  %v4849 = vpop.permute.xlu0 %4848
  %4850 = vrot.lane.b32.xlu0 %v4608, 64
  %v4851 = vpop.permute.xlu0 %4850
  %v4855 = vsel %vm342, %v4844, 0
  %v4858 = vsel %vm342, %v4845, 0
  %4860 = vmatprep.subr.mxu0 0.0
  %4861 = vmatpush1.msra.mxu0 %v4849
  %4862 = vmatprep.subr.mxu0 0.0
  %4863 = vmatpush1.msra.mxu0 %v4851
  %4864 = vmatprep.subr.mxu0 0.0
  %4865 = vmatpush1.msra.mxu0 0.0
  %4866 = vmatprep.subr.mxu0 0.0
  %4867 = vmatpush1.msra.mxu0 0.0
  %4868 = vmatprep.subr.mxu0 0.0
  %4869 = vmatpush1.msra.mxu0 0.0
  %4870 = vmatprep.subr.mxu0 0.0
  %4871 = vmatpush1.msra.mxu0 0.0
  %4872 = vmatprep.subr.mxu0 0.0
  %4873 = vmatpush1.msra.mxu0 0.0
  %4874 = vmatprep.subr.mxu0 0.0
  %4875 = vmatpush1.msra.mxu0 0.0
  %4876 = vmatprep.subr.mxu0 0.0
  %4877 = vmatpush1.msra.mxu0 0.0
  %4878 = vmatprep.subr.mxu0 0.0
  %4879 = vmatpush1.msra.mxu0 0.0
  %4880 = vmatprep.subr.mxu0 0.0
  %4881 = vmatpush1.msra.mxu0 0.0
  %4882 = vmatprep.subr.mxu0 0.0
  %4883 = vmatpush1.msra.mxu0 0.0
  %4884 = vmatprep.subr.mxu0 0.0
  %4885 = vmatpush1.msra.mxu0 0.0
  %4886 = vmatprep.subr.mxu0 0.0
  %4887 = vmatpush1.msra.mxu0 0.0
  %4888 = vmatprep.subr.mxu0 0.0
  %4889 = vmatpush1.msra.mxu0 0.0
  %4890 = vmatprep.subr.mxu0 0.0
  %4891 = vmatpush1.msra.mxu0 0.0
  %4892 = vmatprep.subr.mxu0 0.0
  %4893 = vmatpush1.msra.mxu0 0.0
  %4894 = vmatprep.subr.mxu0 0.0
  %4895 = vmatpush1.msra.mxu0 0.0
  %4896 = vmatprep.subr.mxu0 0.0
  %4897 = vmatpush1.msra.mxu0 0.0
  %4898 = vmatprep.subr.mxu0 0.0
  %4899 = vmatpush1.msra.mxu0 0.0
  %4900 = vmatprep.subr.mxu0 0.0
  %4901 = vmatpush1.msra.mxu0 0.0
  %4902 = vmatprep.subr.mxu0 0.0
  %4903 = vmatpush1.msra.mxu0 0.0
  %4904 = vmatprep.subr.mxu0 0.0
  %4905 = vmatpush1.msra.mxu0 0.0
  %4906 = vmatprep.subr.mxu0 0.0
  %4907 = vmatpush1.msra.mxu0 0.0
  %4908 = vmatprep.subr.mxu0 0.0
  %4909 = vmatpush1.msra.mxu0 0.0
  %4910 = vmatprep.subr.mxu0 0.0
  %4911 = vmatpush1.msra.mxu0 0.0
  %4912 = vmatprep.subr.mxu0 0.0
  %4913 = vmatpush1.msra.mxu0 0.0
  %4914 = vmatprep.subr.mxu0 0.0
  %4915 = vmatpush1.msra.mxu0 0.0
  %4916 = vmatprep.subr.mxu0 0.0
  %4917 = vmatpush1.msra.mxu0 0.0
  %4918 = vmatprep.subr.mxu0 0.0
  %4919 = vmatpush1.msra.mxu0 0.0
  %4920 = vmatprep.subr.mxu0 0.0
  %4921 = vmatpush1.msra.mxu0 0.0
  %4922 = vmatprep.subr.mxu0 0.0
  %4923 = vmatpush1.msra.mxu0 0.0
  %4924 = vmatprep.mubr.f32.mxu0 0.0
  %4925 = vmatmul.mubr.f32.gmra.mrb[0].mxu0 %v4855
  %v4926 = vpop.f32.mrb[0].mxu0
  %v4927 = vadd.f32 0.0, %v4926
  %v4928 = vpop.f32.mrb[0].mxu0
  %4929 = vmatprep.mubr.f32.mxu0 0.0
  %4930 = vmatmul.mubr.f32.gmra.mrb[0].mxu0 %v4858
  %v4931 = vpop.f32.mrb[0].mxu0
  %v4932 = vadd.f32 0.0, %v4931
  %v4933 = vpop.f32.mrb[0].mxu0
  %4934 = vdwg.mxu0
  %4935 = vrot.lane.b32.xlu0 %v4613, 64
  %v4936 = vpop.permute.xlu0 %4935
  %4937 = vrot.lane.b32.xlu0 %v4618, 64
  %v4938 = vpop.permute.xlu0 %4937
  %v4942 = vsel %vm342, %v4846, 0
  %v4945 = vsel %vm342, %v4847, 0
  %4947 = vmatprep.subr.mxu0 0.0
  %4948 = vmatpush1.msra.mxu0 %v4936
  %4949 = vmatprep.subr.mxu0 0.0
  %4950 = vmatpush1.msra.mxu0 %v4938
  %4951 = vmatprep.subr.mxu0 0.0
  %4952 = vmatpush1.msra.mxu0 0.0
  %4953 = vmatprep.subr.mxu0 0.0
  %4954 = vmatpush1.msra.mxu0 0.0
  %4955 = vmatprep.subr.mxu0 0.0
  %4956 = vmatpush1.msra.mxu0 0.0
  %4957 = vmatprep.subr.mxu0 0.0
  %4958 = vmatpush1.msra.mxu0 0.0
  %4959 = vmatprep.subr.mxu0 0.0
  %4960 = vmatpush1.msra.mxu0 0.0
  %4961 = vmatprep.subr.mxu0 0.0
  %4962 = vmatpush1.msra.mxu0 0.0
  %4963 = vmatprep.subr.mxu0 0.0
  %4964 = vmatpush1.msra.mxu0 0.0
  %4965 = vmatprep.subr.mxu0 0.0
  %4966 = vmatpush1.msra.mxu0 0.0
  %4967 = vmatprep.subr.mxu0 0.0
  %4968 = vmatpush1.msra.mxu0 0.0
  %4969 = vmatprep.subr.mxu0 0.0
  %4970 = vmatpush1.msra.mxu0 0.0
  %4971 = vmatprep.subr.mxu0 0.0
  %4972 = vmatpush1.msra.mxu0 0.0
  %4973 = vmatprep.subr.mxu0 0.0
  %4974 = vmatpush1.msra.mxu0 0.0
  %4975 = vmatprep.subr.mxu0 0.0
  %4976 = vmatpush1.msra.mxu0 0.0
  %4977 = vmatprep.subr.mxu0 0.0
  %4978 = vmatpush1.msra.mxu0 0.0
  %4979 = vmatprep.subr.mxu0 0.0
  %4980 = vmatpush1.msra.mxu0 0.0
  %4981 = vmatprep.subr.mxu0 0.0
  %4982 = vmatpush1.msra.mxu0 0.0
  %4983 = vmatprep.subr.mxu0 0.0
  %4984 = vmatpush1.msra.mxu0 0.0
  %4985 = vmatprep.subr.mxu0 0.0
  %4986 = vmatpush1.msra.mxu0 0.0
  %4987 = vmatprep.subr.mxu0 0.0
  %4988 = vmatpush1.msra.mxu0 0.0
  %4989 = vmatprep.subr.mxu0 0.0
  %4990 = vmatpush1.msra.mxu0 0.0
  %4991 = vmatprep.subr.mxu0 0.0
  %4992 = vmatpush1.msra.mxu0 0.0
  %4993 = vmatprep.subr.mxu0 0.0
  %4994 = vmatpush1.msra.mxu0 0.0
  %4995 = vmatprep.subr.mxu0 0.0
  %4996 = vmatpush1.msra.mxu0 0.0
  %4997 = vmatprep.subr.mxu0 0.0
  %4998 = vmatpush1.msra.mxu0 0.0
  %4999 = vmatprep.subr.mxu0 0.0
  %5000 = vmatpush1.msra.mxu0 0.0
  %5001 = vmatprep.subr.mxu0 0.0
  %5002 = vmatpush1.msra.mxu0 0.0
  %5003 = vmatprep.subr.mxu0 0.0
  %5004 = vmatpush1.msra.mxu0 0.0
  %5005 = vmatprep.subr.mxu0 0.0
  %5006 = vmatpush1.msra.mxu0 0.0
  %5007 = vmatprep.subr.mxu0 0.0
  %5008 = vmatpush1.msra.mxu0 0.0
  %5009 = vmatprep.subr.mxu0 0.0
  %5010 = vmatpush1.msra.mxu0 0.0
  %5011 = vmatprep.mubr.f32.mxu0 0.0
  %5012 = vmatmul.mubr.f32.gmra.mrb[0].mxu0 %v4942
  %v5013 = vpop.f32.mrb[0].mxu0
  %v5014 = vadd.f32 0.0, %v5013
  %v5015 = vpop.f32.mrb[0].mxu0
  %5016 = vmatprep.mubr.f32.mxu0 0.0
  %5017 = vmatmul.mubr.f32.gmra.mrb[0].mxu0 %v4945
  %v5018 = vpop.f32.mrb[0].mxu0
  %v5019 = vadd.f32 0.0, %v5018
  %v5020 = vpop.f32.mrb[0].mxu0
  %5021 = vdwg.mxu0
  %5022 = vst.msk [vmem:[#allocation2] sm:$0xff] %vm169, %v4927
  %5023 = vst.msk [vmem:[#allocation2 + $0x8] sm:$0xff] %vm169, %v4932
  %5024 = vst.msk [vmem:[#allocation2 + $0x10] sm:$0xff] %vm169, %v5014
  %5025 = vst.msk [vmem:[#allocation2 + $0x18] sm:$0xff] %vm169, %v5019
  %5026 = vrot.lane.b32.xlu0 %v4603, 120
  %v5027 = vpop.permute.xlu0 %5026
  %5028 = vrot.lane.b32.xlu0 %v4608, 120
  %v5029 = vpop.permute.xlu0 %5028
  %5030 = vrot.lane.b32.xlu0 %v4603, 88
  %v5031 = vpop.permute.xlu0 %5030
  %5032 = vrot.lane.b32.xlu0 %v4608, 88
  %v5033 = vpop.permute.xlu0 %5032
  %v5034 = vsel %vm169, %v5027, 0
  %v5036 = vsel %vm169, %v5029, 0
  %v5038 = vsel %vm169, %v5031, 0
  %v5040 = vsel %vm169, %v5033, 0
  %5042 = vmatprep.subr.mxu0 0.0
  %5043 = vmatpush1.xpose.msra.mxu0 %v5038
  %5044 = vmatprep.subr.mxu0 0.0
  %5045 = vmatpush1.xpose.msra.mxu0 %v5040
  %5046 = vmatprep.subr.mxu0 0.0
  %5047 = vmatpush1.xpose.msra.mxu0 0.0
  %5048 = vmatprep.subr.mxu0 0.0
  %5049 = vmatpush1.xpose.msra.mxu0 0.0
  %5050 = vmatprep.subr.mxu0 0.0
  %5051 = vmatpush1.xpose.msra.mxu0 0.0
  %5052 = vmatprep.subr.mxu0 0.0
  %5053 = vmatpush1.xpose.msra.mxu0 0.0
  %5054 = vmatprep.subr.mxu0 0.0
  %5055 = vmatpush1.xpose.msra.mxu0 0.0
  %5056 = vmatprep.subr.mxu0 0.0
  %5057 = vmatpush1.xpose.msra.mxu0 0.0
  %5058 = vmatprep.subr.mxu0 0.0
  %5059 = vmatpush1.xpose.msra.mxu0 0.0
  %5060 = vmatprep.subr.mxu0 0.0
  %5061 = vmatpush1.xpose.msra.mxu0 0.0
  %5062 = vmatprep.subr.mxu0 0.0
  %5063 = vmatpush1.xpose.msra.mxu0 0.0
  %5064 = vmatprep.subr.mxu0 0.0
  %5065 = vmatpush1.xpose.msra.mxu0 0.0
  %5066 = vmatprep.subr.mxu0 0.0
  %5067 = vmatpush1.xpose.msra.mxu0 0.0
  %5068 = vmatprep.subr.mxu0 0.0
  %5069 = vmatpush1.xpose.msra.mxu0 0.0
  %5070 = vmatprep.subr.mxu0 0.0
  %5071 = vmatpush1.xpose.msra.mxu0 0.0
  %5072 = vmatprep.subr.mxu0 0.0
  %5073 = vmatpush1.xpose.msra.mxu0 0.0
  %5074 = vmatprep.subr.mxu0 0.0
  %5075 = vmatpush1.xpose.msra.mxu0 0.0
  %5076 = vmatprep.subr.mxu0 0.0
  %5077 = vmatpush1.xpose.msra.mxu0 0.0
  %5078 = vmatprep.subr.mxu0 0.0
  %5079 = vmatpush1.xpose.msra.mxu0 0.0
  %5080 = vmatprep.subr.mxu0 0.0
  %5081 = vmatpush1.xpose.msra.mxu0 0.0
  %5082 = vmatprep.subr.mxu0 0.0
  %5083 = vmatpush1.xpose.msra.mxu0 0.0
  %5084 = vmatprep.subr.mxu0 0.0
  %5085 = vmatpush1.xpose.msra.mxu0 0.0
  %5086 = vmatprep.subr.mxu0 0.0
  %5087 = vmatpush1.xpose.msra.mxu0 0.0
  %5088 = vmatprep.subr.mxu0 0.0
  %5089 = vmatpush1.xpose.msra.mxu0 0.0
  %5090 = vmatprep.subr.mxu0 0.0
  %5091 = vmatpush1.xpose.msra.mxu0 0.0
  %5092 = vmatprep.subr.mxu0 0.0
  %5093 = vmatpush1.xpose.msra.mxu0 0.0
  %5094 = vmatprep.subr.mxu0 0.0
  %5095 = vmatpush1.xpose.msra.mxu0 0.0
  %5096 = vmatprep.subr.mxu0 0.0
  %5097 = vmatpush1.xpose.msra.mxu0 0.0
  %5098 = vmatprep.subr.mxu0 0.0
  %5099 = vmatpush1.xpose.msra.mxu0 0.0
  %5100 = vmatprep.subr.mxu0 0.0
  %5101 = vmatpush1.xpose.msra.mxu0 0.0
  %5102 = vmatprep.subr.mxu0 0.0
  %5103 = vmatpush1.xpose.msra.mxu0 0.0
  %5104 = vmatprep.subr.mxu0 0.0
  %5105 = vmatpush1.xpose.msra.mxu0 0.0
  %5106 = vmatprep.mubr.f32.mxu0 0.0
  %5107 = vmatmul.mubr.f32.gmra.mrb[0].mxu0 %v5034
  %v5108 = vpop.f32.mrb[0].mxu0
  %v5109 = vadd.f32 %v49, %v5108
  %v5110 = vpop.f32.mrb[0].mxu0
  %5111 = vmatprep.mubr.f32.mxu0 0.0
  %5112 = vmatmul.mubr.f32.gmra.mrb[0].mxu0 %v5036
  %v5113 = vpop.f32.mrb[0].mxu0
  %v5114 = vadd.f32 %v50, %v5113
  %v5115 = vpop.f32.mrb[0].mxu0
  %5116 = vdwg.mxu0
  %5117 = vrot.lane.b32.xlu0 %v4613, 120
  %v5118 = vpop.permute.xlu0 %5117
  %5119 = vrot.lane.b32.xlu0 %v4618, 120
  %v5120 = vpop.permute.xlu0 %5119
  %5121 = vrot.lane.b32.xlu0 %v4613, 88
  %v5122 = vpop.permute.xlu0 %5121
  %5123 = vrot.lane.b32.xlu0 %v4618, 88
  %v5124 = vpop.permute.xlu0 %5123
  %v5125 = vsel %vm169, %v5118, 0
  %v5127 = vsel %vm169, %v5120, 0
  %v5129 = vsel %vm169, %v5122, 0
  %v5131 = vsel %vm169, %v5124, 0
  %5133 = vmatprep.subr.mxu0 0.0
  %5134 = vmatpush1.xpose.msra.mxu0 %v5129
  %5135 = vmatprep.subr.mxu0 0.0
  %5136 = vmatpush1.xpose.msra.mxu0 %v5131
  %5137 = vmatprep.subr.mxu0 0.0
  %5138 = vmatpush1.xpose.msra.mxu0 0.0
  %5139 = vmatprep.subr.mxu0 0.0
  %5140 = vmatpush1.xpose.msra.mxu0 0.0
  %5141 = vmatprep.subr.mxu0 0.0
  %5142 = vmatpush1.xpose.msra.mxu0 0.0
  %5143 = vmatprep.subr.mxu0 0.0
  %5144 = vmatpush1.xpose.msra.mxu0 0.0
  %5145 = vmatprep.subr.mxu0 0.0
  %5146 = vmatpush1.xpose.msra.mxu0 0.0
  %5147 = vmatprep.subr.mxu0 0.0
  %5148 = vmatpush1.xpose.msra.mxu0 0.0
  %5149 = vmatprep.subr.mxu0 0.0
  %5150 = vmatpush1.xpose.msra.mxu0 0.0
  %5151 = vmatprep.subr.mxu0 0.0
  %5152 = vmatpush1.xpose.msra.mxu0 0.0
  %5153 = vmatprep.subr.mxu0 0.0
  %5154 = vmatpush1.xpose.msra.mxu0 0.0
  %5155 = vmatprep.subr.mxu0 0.0
  %5156 = vmatpush1.xpose.msra.mxu0 0.0
  %5157 = vmatprep.subr.mxu0 0.0
  %5158 = vmatpush1.xpose.msra.mxu0 0.0
  %5159 = vmatprep.subr.mxu0 0.0
  %5160 = vmatpush1.xpose.msra.mxu0 0.0
  %5161 = vmatprep.subr.mxu0 0.0
  %5162 = vmatpush1.xpose.msra.mxu0 0.0
  %5163 = vmatprep.subr.mxu0 0.0
  %5164 = vmatpush1.xpose.msra.mxu0 0.0
  %5165 = vmatprep.subr.mxu0 0.0
  %5166 = vmatpush1.xpose.msra.mxu0 0.0
  %5167 = vmatprep.subr.mxu0 0.0
  %5168 = vmatpush1.xpose.msra.mxu0 0.0
  %5169 = vmatprep.subr.mxu0 0.0
  %5170 = vmatpush1.xpose.msra.mxu0 0.0
  %5171 = vmatprep.subr.mxu0 0.0
  %5172 = vmatpush1.xpose.msra.mxu0 0.0
  %5173 = vmatprep.subr.mxu0 0.0
  %5174 = vmatpush1.xpose.msra.mxu0 0.0
  %5175 = vmatprep.subr.mxu0 0.0
  %5176 = vmatpush1.xpose.msra.mxu0 0.0
  %5177 = vmatprep.subr.mxu0 0.0
  %5178 = vmatpush1.xpose.msra.mxu0 0.0
  %5179 = vmatprep.subr.mxu0 0.0
  %5180 = vmatpush1.xpose.msra.mxu0 0.0
  %5181 = vmatprep.subr.mxu0 0.0
  %5182 = vmatpush1.xpose.msra.mxu0 0.0
  %5183 = vmatprep.subr.mxu0 0.0
  %5184 = vmatpush1.xpose.msra.mxu0 0.0
  %5185 = vmatprep.subr.mxu0 0.0
  %5186 = vmatpush1.xpose.msra.mxu0 0.0
  %5187 = vmatprep.subr.mxu0 0.0
  %5188 = vmatpush1.xpose.msra.mxu0 0.0
  %5189 = vmatprep.subr.mxu0 0.0
  %5190 = vmatpush1.xpose.msra.mxu0 0.0
  %5191 = vmatprep.subr.mxu0 0.0
  %5192 = vmatpush1.xpose.msra.mxu0 0.0
  %5193 = vmatprep.subr.mxu0 0.0
  %5194 = vmatpush1.xpose.msra.mxu0 0.0
  %5195 = vmatprep.subr.mxu0 0.0
  %5196 = vmatpush1.xpose.msra.mxu0 0.0
  %5197 = vmatprep.mubr.f32.mxu0 0.0
  %5198 = vmatmul.mubr.f32.gmra.mrb[0].mxu0 %v5125
  %v5199 = vpop.f32.mrb[0].mxu0
  %v5200 = vadd.f32 %v49, %v5199
  %v5201 = vpop.f32.mrb[0].mxu0
  %5202 = vmatprep.mubr.f32.mxu0 0.0
  %5203 = vmatmul.mubr.f32.gmra.mrb[0].mxu0 %v5127
  %v5204 = vpop.f32.mrb[0].mxu0
  %v5205 = vadd.f32 %v50, %v5204
  %v5206 = vpop.f32.mrb[0].mxu0
  %5207 = vdwg.mxu0
  %v5208 = vsel %vm342, %v5109, -inf
  %5209 = vmax.xlane.f32.xlu0 %v5208
  %v5210 = vpop.xlane.xlu0 %5209
  %v5211 = vsel %vm342, %v5114, -inf
  %5212 = vmax.xlane.f32.xlu0 %v5211
  %v5213 = vpop.xlane.xlu0 %5212
  %v5214 = vsel %vm342, %v5200, -inf
  %5215 = vmax.xlane.f32.xlu0 %v5214
  %v5216 = vpop.xlane.xlu0 %5215
  %v5217 = vsel %vm342, %v5205, -inf
  %5218 = vmax.xlane.f32.xlu0 %v5217
  %v5219 = vpop.xlane.xlu0 %5218
  %v5220 = vsub.f32 %v5109, %v5210
  %v5221 = vsub.f32 %v5114, %v5213
  %v5222 = vsub.f32 %v5200, %v5216
  %v5223 = vsub.f32 %v5205, %v5219
  %v5224 = vmul.f32 %v5220, 1.442695
  %v5225 = vpow.pop %v5224
  %v5226 = vmul.f32 %v5221, 1.442695
  %v5227 = vpow.pop %v5226
  %v5228 = vmul.f32 %v5222, 1.442695
  %v5229 = vpow.pop %v5228
  %v5230 = vmul.f32 %v5223, 1.442695
  %v5231 = vpow.pop %v5230
  %v5232 = vsel %vm342, %v5225, 0.0
  %5233 = vadd.xlane.f32.xlu0 %v5232
  %v5234 = vpop.xlane.xlu0 %5233
  %v5235 = vsel %vm342, %v5227, 0.0
  %5236 = vadd.xlane.f32.xlu0 %v5235
  %v5237 = vpop.xlane.xlu0 %5236
  %v5238 = vsel %vm342, %v5229, 0.0
  %5239 = vadd.xlane.f32.xlu0 %v5238
  %v5240 = vpop.xlane.xlu0 %5239
  %v5241 = vsel %vm342, %v5231, 0.0
  %5242 = vadd.xlane.f32.xlu0 %v5241
  %v5243 = vpop.xlane.xlu0 %5242
  %v5244 = vrcp.pop %v5234
  %v5245 = vrcp.pop %v5237
  %v5246 = vrcp.pop %v5240
  %v5247 = vrcp.pop %v5243
  %v5248 = vmul.f32 %v5225, %v5244
  %v5249 = vmul.f32 %v5227, %v5245
  %v5250 = vmul.f32 %v5229, %v5246
  %v5251 = vmul.f32 %v5231, %v5247
  %5252 = vrot.lane.b32.xlu0 %v4603, 56
  %v5253 = vpop.permute.xlu0 %5252
  %5254 = vrot.lane.b32.xlu0 %v4608, 56
  %v5255 = vpop.permute.xlu0 %5254
  %v5259 = vsel %vm342, %v5248, 0
  %v5262 = vsel %vm342, %v5249, 0
  %5264 = vmatprep.subr.mxu0 0.0
  %5265 = vmatpush1.msra.mxu0 %v5253
  %5266 = vmatprep.subr.mxu0 0.0
  %5267 = vmatpush1.msra.mxu0 %v5255
  %5268 = vmatprep.subr.mxu0 0.0
  %5269 = vmatpush1.msra.mxu0 0.0
  %5270 = vmatprep.subr.mxu0 0.0
  %5271 = vmatpush1.msra.mxu0 0.0
  %5272 = vmatprep.subr.mxu0 0.0
  %5273 = vmatpush1.msra.mxu0 0.0
  %5274 = vmatprep.subr.mxu0 0.0
  %5275 = vmatpush1.msra.mxu0 0.0
  %5276 = vmatprep.subr.mxu0 0.0
  %5277 = vmatpush1.msra.mxu0 0.0
  %5278 = vmatprep.subr.mxu0 0.0
  %5279 = vmatpush1.msra.mxu0 0.0
  %5280 = vmatprep.subr.mxu0 0.0
  %5281 = vmatpush1.msra.mxu0 0.0
  %5282 = vmatprep.subr.mxu0 0.0
  %5283 = vmatpush1.msra.mxu0 0.0
  %5284 = vmatprep.subr.mxu0 0.0
  %5285 = vmatpush1.msra.mxu0 0.0
  %5286 = vmatprep.subr.mxu0 0.0
  %5287 = vmatpush1.msra.mxu0 0.0
  %5288 = vmatprep.subr.mxu0 0.0
  %5289 = vmatpush1.msra.mxu0 0.0
  %5290 = vmatprep.subr.mxu0 0.0
  %5291 = vmatpush1.msra.mxu0 0.0
  %5292 = vmatprep.subr.mxu0 0.0
  %5293 = vmatpush1.msra.mxu0 0.0
  %5294 = vmatprep.subr.mxu0 0.0
  %5295 = vmatpush1.msra.mxu0 0.0
  %5296 = vmatprep.subr.mxu0 0.0
  %5297 = vmatpush1.msra.mxu0 0.0
  %5298 = vmatprep.subr.mxu0 0.0
  %5299 = vmatpush1.msra.mxu0 0.0
  %5300 = vmatprep.subr.mxu0 0.0
  %5301 = vmatpush1.msra.mxu0 0.0
  %5302 = vmatprep.subr.mxu0 0.0
  %5303 = vmatpush1.msra.mxu0 0.0
  %5304 = vmatprep.subr.mxu0 0.0
  %5305 = vmatpush1.msra.mxu0 0.0
  %5306 = vmatprep.subr.mxu0 0.0
  %5307 = vmatpush1.msra.mxu0 0.0
  %5308 = vmatprep.subr.mxu0 0.0
  %5309 = vmatpush1.msra.mxu0 0.0
  %5310 = vmatprep.subr.mxu0 0.0
  %5311 = vmatpush1.msra.mxu0 0.0
  %5312 = vmatprep.subr.mxu0 0.0
  %5313 = vmatpush1.msra.mxu0 0.0
  %5314 = vmatprep.subr.mxu0 0.0
  %5315 = vmatpush1.msra.mxu0 0.0
  %5316 = vmatprep.subr.mxu0 0.0
  %5317 = vmatpush1.msra.mxu0 0.0
  %5318 = vmatprep.subr.mxu0 0.0
  %5319 = vmatpush1.msra.mxu0 0.0
  %5320 = vmatprep.subr.mxu0 0.0
  %5321 = vmatpush1.msra.mxu0 0.0
  %5322 = vmatprep.subr.mxu0 0.0
  %5323 = vmatpush1.msra.mxu0 0.0
  %5324 = vmatprep.subr.mxu0 0.0
  %5325 = vmatpush1.msra.mxu0 0.0
  %5326 = vmatprep.subr.mxu0 0.0
  %5327 = vmatpush1.msra.mxu0 0.0
  %5328 = vmatprep.mubr.f32.mxu0 0.0
  %5329 = vmatmul.mubr.f32.gmra.mrb[0].mxu0 %v5259
  %v5330 = vpop.f32.mrb[0].mxu0
  %v5331 = vadd.f32 0.0, %v5330
  %v5332 = vpop.f32.mrb[0].mxu0
  %5333 = vmatprep.mubr.f32.mxu0 0.0
  %5334 = vmatmul.mubr.f32.gmra.mrb[0].mxu0 %v5262
  %v5335 = vpop.f32.mrb[0].mxu0
  %v5336 = vadd.f32 0.0, %v5335
  %v5337 = vpop.f32.mrb[0].mxu0
  %5338 = vdwg.mxu0
  %5339 = vrot.lane.b32.xlu0 %v4613, 56
  %v5340 = vpop.permute.xlu0 %5339
  %5341 = vrot.lane.b32.xlu0 %v4618, 56
  %v5342 = vpop.permute.xlu0 %5341
  %v5346 = vsel %vm342, %v5250, 0
  %v5349 = vsel %vm342, %v5251, 0
  %5351 = vmatprep.subr.mxu0 0.0
  %5352 = vmatpush1.msra.mxu0 %v5340
  %5353 = vmatprep.subr.mxu0 0.0
  %5354 = vmatpush1.msra.mxu0 %v5342
  %5355 = vmatprep.subr.mxu0 0.0
  %5356 = vmatpush1.msra.mxu0 0.0
  %5357 = vmatprep.subr.mxu0 0.0
  %5358 = vmatpush1.msra.mxu0 0.0
  %5359 = vmatprep.subr.mxu0 0.0
  %5360 = vmatpush1.msra.mxu0 0.0
  %5361 = vmatprep.subr.mxu0 0.0
  %5362 = vmatpush1.msra.mxu0 0.0
  %5363 = vmatprep.subr.mxu0 0.0
  %5364 = vmatpush1.msra.mxu0 0.0
  %5365 = vmatprep.subr.mxu0 0.0
  %5366 = vmatpush1.msra.mxu0 0.0
  %5367 = vmatprep.subr.mxu0 0.0
  %5368 = vmatpush1.msra.mxu0 0.0
  %5369 = vmatprep.subr.mxu0 0.0
  %5370 = vmatpush1.msra.mxu0 0.0
  %5371 = vmatprep.subr.mxu0 0.0
  %5372 = vmatpush1.msra.mxu0 0.0
  %5373 = vmatprep.subr.mxu0 0.0
  %5374 = vmatpush1.msra.mxu0 0.0
  %5375 = vmatprep.subr.mxu0 0.0
  %5376 = vmatpush1.msra.mxu0 0.0
  %5377 = vmatprep.subr.mxu0 0.0
  %5378 = vmatpush1.msra.mxu0 0.0
  %5379 = vmatprep.subr.mxu0 0.0
  %5380 = vmatpush1.msra.mxu0 0.0
  %5381 = vmatprep.subr.mxu0 0.0
  %5382 = vmatpush1.msra.mxu0 0.0
  %5383 = vmatprep.subr.mxu0 0.0
  %5384 = vmatpush1.msra.mxu0 0.0
  %5385 = vmatprep.subr.mxu0 0.0
  %5386 = vmatpush1.msra.mxu0 0.0
  %5387 = vmatprep.subr.mxu0 0.0
  %5388 = vmatpush1.msra.mxu0 0.0
  %5389 = vmatprep.subr.mxu0 0.0
  %5390 = vmatpush1.msra.mxu0 0.0
  %5391 = vmatprep.subr.mxu0 0.0
  %5392 = vmatpush1.msra.mxu0 0.0
  %5393 = vmatprep.subr.mxu0 0.0
  %5394 = vmatpush1.msra.mxu0 0.0
  %5395 = vmatprep.subr.mxu0 0.0
  %5396 = vmatpush1.msra.mxu0 0.0
  %5397 = vmatprep.subr.mxu0 0.0
  %5398 = vmatpush1.msra.mxu0 0.0
  %5399 = vmatprep.subr.mxu0 0.0
  %5400 = vmatpush1.msra.mxu0 0.0
  %5401 = vmatprep.subr.mxu0 0.0
  %5402 = vmatpush1.msra.mxu0 0.0
  %5403 = vmatprep.subr.mxu0 0.0
  %5404 = vmatpush1.msra.mxu0 0.0
  %5405 = vmatprep.subr.mxu0 0.0
  %5406 = vmatpush1.msra.mxu0 0.0
  %5407 = vmatprep.subr.mxu0 0.0
  %5408 = vmatpush1.msra.mxu0 0.0
  %5409 = vmatprep.subr.mxu0 0.0
  %5410 = vmatpush1.msra.mxu0 0.0
  %5411 = vmatprep.subr.mxu0 0.0
  %5412 = vmatpush1.msra.mxu0 0.0
  %5413 = vmatprep.subr.mxu0 0.0
  %5414 = vmatpush1.msra.mxu0 0.0
  %5415 = vmatprep.mubr.f32.mxu0 0.0
  %5416 = vmatmul.mubr.f32.gmra.mrb[0].mxu0 %v5346
  %v5417 = vpop.f32.mrb[0].mxu0
  %v5418 = vadd.f32 0.0, %v5417
  %v5419 = vpop.f32.mrb[0].mxu0
  %5420 = vmatprep.mubr.f32.mxu0 0.0
  %5421 = vmatmul.mubr.f32.gmra.mrb[0].mxu0 %v5349
  %v5422 = vpop.f32.mrb[0].mxu0
  %v5423 = vadd.f32 0.0, %v5422
  %v5424 = vpop.f32.mrb[0].mxu0
  %5425 = vdwg.mxu0
  %5430 = vrot.lane.b32.xlu0 %v5331, 8
  %v5431 = vpop.permute.xlu0 %5430
  %5432 = vrot.lane.b32.xlu0 %v5336, 8
  %v5433 = vpop.permute.xlu0 %5432
  %5434 = vrot.lane.b32.xlu0 %v5418, 8
  %v5435 = vpop.permute.xlu0 %5434
  %5436 = vrot.lane.b32.xlu0 %v5423, 8
  %v5437 = vpop.permute.xlu0 %5436
  %5442 = vst.msk [vmem:[#allocation2] sm:$0xff] %vm981, %v5431
  %5443 = vst.msk [vmem:[#allocation2 + $0x8] sm:$0xff] %vm981, %v5433
  %5444 = vst.msk [vmem:[#allocation2 + $0x10] sm:$0xff] %vm981, %v5435
  %5445 = vst.msk [vmem:[#allocation2 + $0x18] sm:$0xff] %vm981, %v5437
  %5446 = vrot.lane.b32.xlu0 %v4603, 112
  %v5447 = vpop.permute.xlu0 %5446
  %5448 = vrot.lane.b32.xlu0 %v4608, 112
  %v5449 = vpop.permute.xlu0 %5448
  %5450 = vrot.lane.b32.xlu0 %v4603, 80
  %v5451 = vpop.permute.xlu0 %5450
  %5452 = vrot.lane.b32.xlu0 %v4608, 80
  %v5453 = vpop.permute.xlu0 %5452
  %v5454 = vsel %vm169, %v5447, 0
  %v5456 = vsel %vm169, %v5449, 0
  %v5458 = vsel %vm169, %v5451, 0
  %v5460 = vsel %vm169, %v5453, 0
  %5462 = vmatprep.subr.mxu0 0.0
  %5463 = vmatpush1.xpose.msra.mxu0 %v5458
  %5464 = vmatprep.subr.mxu0 0.0
  %5465 = vmatpush1.xpose.msra.mxu0 %v5460
  %5466 = vmatprep.subr.mxu0 0.0
  %5467 = vmatpush1.xpose.msra.mxu0 0.0
  %5468 = vmatprep.subr.mxu0 0.0
  %5469 = vmatpush1.xpose.msra.mxu0 0.0
  %5470 = vmatprep.subr.mxu0 0.0
  %5471 = vmatpush1.xpose.msra.mxu0 0.0
  %5472 = vmatprep.subr.mxu0 0.0
  %5473 = vmatpush1.xpose.msra.mxu0 0.0
  %5474 = vmatprep.subr.mxu0 0.0
  %5475 = vmatpush1.xpose.msra.mxu0 0.0
  %5476 = vmatprep.subr.mxu0 0.0
  %5477 = vmatpush1.xpose.msra.mxu0 0.0
  %5478 = vmatprep.subr.mxu0 0.0
  %5479 = vmatpush1.xpose.msra.mxu0 0.0
  %5480 = vmatprep.subr.mxu0 0.0
  %5481 = vmatpush1.xpose.msra.mxu0 0.0
  %5482 = vmatprep.subr.mxu0 0.0
  %5483 = vmatpush1.xpose.msra.mxu0 0.0
  %5484 = vmatprep.subr.mxu0 0.0
  %5485 = vmatpush1.xpose.msra.mxu0 0.0
  %5486 = vmatprep.subr.mxu0 0.0
  %5487 = vmatpush1.xpose.msra.mxu0 0.0
  %5488 = vmatprep.subr.mxu0 0.0
  %5489 = vmatpush1.xpose.msra.mxu0 0.0
  %5490 = vmatprep.subr.mxu0 0.0
  %5491 = vmatpush1.xpose.msra.mxu0 0.0
  %5492 = vmatprep.subr.mxu0 0.0
  %5493 = vmatpush1.xpose.msra.mxu0 0.0
  %5494 = vmatprep.subr.mxu0 0.0
  %5495 = vmatpush1.xpose.msra.mxu0 0.0
  %5496 = vmatprep.subr.mxu0 0.0
  %5497 = vmatpush1.xpose.msra.mxu0 0.0
  %5498 = vmatprep.subr.mxu0 0.0
  %5499 = vmatpush1.xpose.msra.mxu0 0.0
  %5500 = vmatprep.subr.mxu0 0.0
  %5501 = vmatpush1.xpose.msra.mxu0 0.0
  %5502 = vmatprep.subr.mxu0 0.0
  %5503 = vmatpush1.xpose.msra.mxu0 0.0
  %5504 = vmatprep.subr.mxu0 0.0
  %5505 = vmatpush1.xpose.msra.mxu0 0.0
  %5506 = vmatprep.subr.mxu0 0.0
  %5507 = vmatpush1.xpose.msra.mxu0 0.0
  %5508 = vmatprep.subr.mxu0 0.0
  %5509 = vmatpush1.xpose.msra.mxu0 0.0
  %5510 = vmatprep.subr.mxu0 0.0
  %5511 = vmatpush1.xpose.msra.mxu0 0.0
  %5512 = vmatprep.subr.mxu0 0.0
  %5513 = vmatpush1.xpose.msra.mxu0 0.0
  %5514 = vmatprep.subr.mxu0 0.0
  %5515 = vmatpush1.xpose.msra.mxu0 0.0
  %5516 = vmatprep.subr.mxu0 0.0
  %5517 = vmatpush1.xpose.msra.mxu0 0.0
  %5518 = vmatprep.subr.mxu0 0.0
  %5519 = vmatpush1.xpose.msra.mxu0 0.0
  %5520 = vmatprep.subr.mxu0 0.0
  %5521 = vmatpush1.xpose.msra.mxu0 0.0
  %5522 = vmatprep.subr.mxu0 0.0
  %5523 = vmatpush1.xpose.msra.mxu0 0.0
  %5524 = vmatprep.subr.mxu0 0.0
  %5525 = vmatpush1.xpose.msra.mxu0 0.0
  %5526 = vmatprep.mubr.f32.mxu0 0.0
  %5527 = vmatmul.mubr.f32.gmra.mrb[0].mxu0 %v5454
  %v5528 = vpop.f32.mrb[0].mxu0
  %v5529 = vadd.f32 %v49, %v5528
  %v5530 = vpop.f32.mrb[0].mxu0
  %5531 = vmatprep.mubr.f32.mxu0 0.0
  %5532 = vmatmul.mubr.f32.gmra.mrb[0].mxu0 %v5456
  %v5533 = vpop.f32.mrb[0].mxu0
  %v5534 = vadd.f32 %v50, %v5533
  %v5535 = vpop.f32.mrb[0].mxu0
  %5536 = vdwg.mxu0
  %5537 = vrot.lane.b32.xlu0 %v4613, 112
  %v5538 = vpop.permute.xlu0 %5537
  %5539 = vrot.lane.b32.xlu0 %v4618, 112
  %v5540 = vpop.permute.xlu0 %5539
  %5541 = vrot.lane.b32.xlu0 %v4613, 80
  %v5542 = vpop.permute.xlu0 %5541
  %5543 = vrot.lane.b32.xlu0 %v4618, 80
  %v5544 = vpop.permute.xlu0 %5543
  %v5545 = vsel %vm169, %v5538, 0
  %v5547 = vsel %vm169, %v5540, 0
  %v5549 = vsel %vm169, %v5542, 0
  %v5551 = vsel %vm169, %v5544, 0
  %5553 = vmatprep.subr.mxu0 0.0
  %5554 = vmatpush1.xpose.msra.mxu0 %v5549
  %5555 = vmatprep.subr.mxu0 0.0
  %5556 = vmatpush1.xpose.msra.mxu0 %v5551
  %5557 = vmatprep.subr.mxu0 0.0
  %5558 = vmatpush1.xpose.msra.mxu0 0.0
  %5559 = vmatprep.subr.mxu0 0.0
  %5560 = vmatpush1.xpose.msra.mxu0 0.0
  %5561 = vmatprep.subr.mxu0 0.0
  %5562 = vmatpush1.xpose.msra.mxu0 0.0
  %5563 = vmatprep.subr.mxu0 0.0
  %5564 = vmatpush1.xpose.msra.mxu0 0.0
  %5565 = vmatprep.subr.mxu0 0.0
  %5566 = vmatpush1.xpose.msra.mxu0 0.0
  %5567 = vmatprep.subr.mxu0 0.0
  %5568 = vmatpush1.xpose.msra.mxu0 0.0
  %5569 = vmatprep.subr.mxu0 0.0
  %5570 = vmatpush1.xpose.msra.mxu0 0.0
  %5571 = vmatprep.subr.mxu0 0.0
  %5572 = vmatpush1.xpose.msra.mxu0 0.0
  %5573 = vmatprep.subr.mxu0 0.0
  %5574 = vmatpush1.xpose.msra.mxu0 0.0
  %5575 = vmatprep.subr.mxu0 0.0
  %5576 = vmatpush1.xpose.msra.mxu0 0.0
  %5577 = vmatprep.subr.mxu0 0.0
  %5578 = vmatpush1.xpose.msra.mxu0 0.0
  %5579 = vmatprep.subr.mxu0 0.0
  %5580 = vmatpush1.xpose.msra.mxu0 0.0
  %5581 = vmatprep.subr.mxu0 0.0
  %5582 = vmatpush1.xpose.msra.mxu0 0.0
  %5583 = vmatprep.subr.mxu0 0.0
  %5584 = vmatpush1.xpose.msra.mxu0 0.0
  %5585 = vmatprep.subr.mxu0 0.0
  %5586 = vmatpush1.xpose.msra.mxu0 0.0
  %5587 = vmatprep.subr.mxu0 0.0
  %5588 = vmatpush1.xpose.msra.mxu0 0.0
  %5589 = vmatprep.subr.mxu0 0.0
  %5590 = vmatpush1.xpose.msra.mxu0 0.0
  %5591 = vmatprep.subr.mxu0 0.0
  %5592 = vmatpush1.xpose.msra.mxu0 0.0
  %5593 = vmatprep.subr.mxu0 0.0
  %5594 = vmatpush1.xpose.msra.mxu0 0.0
  %5595 = vmatprep.subr.mxu0 0.0
  %5596 = vmatpush1.xpose.msra.mxu0 0.0
  %5597 = vmatprep.subr.mxu0 0.0
  %5598 = vmatpush1.xpose.msra.mxu0 0.0
  %5599 = vmatprep.subr.mxu0 0.0
  %5600 = vmatpush1.xpose.msra.mxu0 0.0
  %5601 = vmatprep.subr.mxu0 0.0
  %5602 = vmatpush1.xpose.msra.mxu0 0.0
  %5603 = vmatprep.subr.mxu0 0.0
  %5604 = vmatpush1.xpose.msra.mxu0 0.0
  %5605 = vmatprep.subr.mxu0 0.0
  %5606 = vmatpush1.xpose.msra.mxu0 0.0
  %5607 = vmatprep.subr.mxu0 0.0
  %5608 = vmatpush1.xpose.msra.mxu0 0.0
  %5609 = vmatprep.subr.mxu0 0.0
  %5610 = vmatpush1.xpose.msra.mxu0 0.0
  %5611 = vmatprep.subr.mxu0 0.0
  %5612 = vmatpush1.xpose.msra.mxu0 0.0
  %5613 = vmatprep.subr.mxu0 0.0
  %5614 = vmatpush1.xpose.msra.mxu0 0.0
  %5615 = vmatprep.subr.mxu0 0.0
  %5616 = vmatpush1.xpose.msra.mxu0 0.0
  %5617 = vmatprep.mubr.f32.mxu0 0.0
  %5618 = vmatmul.mubr.f32.gmra.mrb[0].mxu0 %v5545
  %v5619 = vpop.f32.mrb[0].mxu0
  %v5620 = vadd.f32 %v49, %v5619
  %v5621 = vpop.f32.mrb[0].mxu0
  %5622 = vmatprep.mubr.f32.mxu0 0.0
  %5623 = vmatmul.mubr.f32.gmra.mrb[0].mxu0 %v5547
  %v5624 = vpop.f32.mrb[0].mxu0
  %v5625 = vadd.f32 %v50, %v5624
  %v5626 = vpop.f32.mrb[0].mxu0
  %5627 = vdwg.mxu0
  %v5628 = vsel %vm342, %v5529, -inf
  %5629 = vmax.xlane.f32.xlu0 %v5628
  %v5630 = vpop.xlane.xlu0 %5629
  %v5631 = vsel %vm342, %v5534, -inf
  %5632 = vmax.xlane.f32.xlu0 %v5631
  %v5633 = vpop.xlane.xlu0 %5632
  %v5634 = vsel %vm342, %v5620, -inf
  %5635 = vmax.xlane.f32.xlu0 %v5634
  %v5636 = vpop.xlane.xlu0 %5635
  %v5637 = vsel %vm342, %v5625, -inf
  %5638 = vmax.xlane.f32.xlu0 %v5637
  %v5639 = vpop.xlane.xlu0 %5638
  %v5640 = vsub.f32 %v5529, %v5630
  %v5641 = vsub.f32 %v5534, %v5633
  %v5642 = vsub.f32 %v5620, %v5636
  %v5643 = vsub.f32 %v5625, %v5639
  %v5644 = vmul.f32 %v5640, 1.442695
  %v5645 = vpow.pop %v5644
  %v5646 = vmul.f32 %v5641, 1.442695
  %v5647 = vpow.pop %v5646
  %v5648 = vmul.f32 %v5642, 1.442695
  %v5649 = vpow.pop %v5648
  %v5650 = vmul.f32 %v5643, 1.442695
  %v5651 = vpow.pop %v5650
  %v5652 = vsel %vm342, %v5645, 0.0
  %5653 = vadd.xlane.f32.xlu0 %v5652
  %v5654 = vpop.xlane.xlu0 %5653
  %v5655 = vsel %vm342, %v5647, 0.0
  %5656 = vadd.xlane.f32.xlu0 %v5655
  %v5657 = vpop.xlane.xlu0 %5656
  %v5658 = vsel %vm342, %v5649, 0.0
  %5659 = vadd.xlane.f32.xlu0 %v5658
  %v5660 = vpop.xlane.xlu0 %5659
  %v5661 = vsel %vm342, %v5651, 0.0
  %5662 = vadd.xlane.f32.xlu0 %v5661
  %v5663 = vpop.xlane.xlu0 %5662
  %v5664 = vrcp.pop %v5654
  %v5665 = vrcp.pop %v5657
  %v5666 = vrcp.pop %v5660
  %v5667 = vrcp.pop %v5663
  %v5668 = vmul.f32 %v5645, %v5664
  %v5669 = vmul.f32 %v5647, %v5665
  %v5670 = vmul.f32 %v5649, %v5666
  %v5671 = vmul.f32 %v5651, %v5667
  %5672 = vrot.lane.b32.xlu0 %v4603, 48
  %v5673 = vpop.permute.xlu0 %5672
  %5674 = vrot.lane.b32.xlu0 %v4608, 48
  %v5675 = vpop.permute.xlu0 %5674
  %v5679 = vsel %vm342, %v5668, 0
  %v5682 = vsel %vm342, %v5669, 0
  %5684 = vmatprep.subr.mxu0 0.0
  %5685 = vmatpush1.msra.mxu0 %v5673
  %5686 = vmatprep.subr.mxu0 0.0
  %5687 = vmatpush1.msra.mxu0 %v5675
  %5688 = vmatprep.subr.mxu0 0.0
  %5689 = vmatpush1.msra.mxu0 0.0
  %5690 = vmatprep.subr.mxu0 0.0
  %5691 = vmatpush1.msra.mxu0 0.0
  %5692 = vmatprep.subr.mxu0 0.0
  %5693 = vmatpush1.msra.mxu0 0.0
  %5694 = vmatprep.subr.mxu0 0.0
  %5695 = vmatpush1.msra.mxu0 0.0
  %5696 = vmatprep.subr.mxu0 0.0
  %5697 = vmatpush1.msra.mxu0 0.0
  %5698 = vmatprep.subr.mxu0 0.0
  %5699 = vmatpush1.msra.mxu0 0.0
  %5700 = vmatprep.subr.mxu0 0.0
  %5701 = vmatpush1.msra.mxu0 0.0
  %5702 = vmatprep.subr.mxu0 0.0
  %5703 = vmatpush1.msra.mxu0 0.0
  %5704 = vmatprep.subr.mxu0 0.0
  %5705 = vmatpush1.msra.mxu0 0.0
  %5706 = vmatprep.subr.mxu0 0.0
  %5707 = vmatpush1.msra.mxu0 0.0
  %5708 = vmatprep.subr.mxu0 0.0
  %5709 = vmatpush1.msra.mxu0 0.0
  %5710 = vmatprep.subr.mxu0 0.0
  %5711 = vmatpush1.msra.mxu0 0.0
  %5712 = vmatprep.subr.mxu0 0.0
  %5713 = vmatpush1.msra.mxu0 0.0
  %5714 = vmatprep.subr.mxu0 0.0
  %5715 = vmatpush1.msra.mxu0 0.0
  %5716 = vmatprep.subr.mxu0 0.0
  %5717 = vmatpush1.msra.mxu0 0.0
  %5718 = vmatprep.subr.mxu0 0.0
  %5719 = vmatpush1.msra.mxu0 0.0
  %5720 = vmatprep.subr.mxu0 0.0
  %5721 = vmatpush1.msra.mxu0 0.0
  %5722 = vmatprep.subr.mxu0 0.0
  %5723 = vmatpush1.msra.mxu0 0.0
  %5724 = vmatprep.subr.mxu0 0.0
  %5725 = vmatpush1.msra.mxu0 0.0
  %5726 = vmatprep.subr.mxu0 0.0
  %5727 = vmatpush1.msra.mxu0 0.0
  %5728 = vmatprep.subr.mxu0 0.0
  %5729 = vmatpush1.msra.mxu0 0.0
  %5730 = vmatprep.subr.mxu0 0.0
  %5731 = vmatpush1.msra.mxu0 0.0
  %5732 = vmatprep.subr.mxu0 0.0
  %5733 = vmatpush1.msra.mxu0 0.0
  %5734 = vmatprep.subr.mxu0 0.0
  %5735 = vmatpush1.msra.mxu0 0.0
  %5736 = vmatprep.subr.mxu0 0.0
  %5737 = vmatpush1.msra.mxu0 0.0
  %5738 = vmatprep.subr.mxu0 0.0
  %5739 = vmatpush1.msra.mxu0 0.0
  %5740 = vmatprep.subr.mxu0 0.0
  %5741 = vmatpush1.msra.mxu0 0.0
  %5742 = vmatprep.subr.mxu0 0.0
  %5743 = vmatpush1.msra.mxu0 0.0
  %5744 = vmatprep.subr.mxu0 0.0
  %5745 = vmatpush1.msra.mxu0 0.0
  %5746 = vmatprep.subr.mxu0 0.0
  %5747 = vmatpush1.msra.mxu0 0.0
  %5748 = vmatprep.mubr.f32.mxu0 0.0
  %5749 = vmatmul.mubr.f32.gmra.mrb[0].mxu0 %v5679
  %v5750 = vpop.f32.mrb[0].mxu0
  %v5751 = vadd.f32 0.0, %v5750
  %v5752 = vpop.f32.mrb[0].mxu0
  %5753 = vmatprep.mubr.f32.mxu0 0.0
  %5754 = vmatmul.mubr.f32.gmra.mrb[0].mxu0 %v5682
  %v5755 = vpop.f32.mrb[0].mxu0
  %v5756 = vadd.f32 0.0, %v5755
  %v5757 = vpop.f32.mrb[0].mxu0
  %5758 = vdwg.mxu0
  %5759 = vrot.lane.b32.xlu0 %v4613, 48
  %v5760 = vpop.permute.xlu0 %5759
  %5761 = vrot.lane.b32.xlu0 %v4618, 48
  %v5762 = vpop.permute.xlu0 %5761
  %v5766 = vsel %vm342, %v5670, 0
  %v5769 = vsel %vm342, %v5671, 0
  %5771 = vmatprep.subr.mxu0 0.0
  %5772 = vmatpush1.msra.mxu0 %v5760
  %5773 = vmatprep.subr.mxu0 0.0
  %5774 = vmatpush1.msra.mxu0 %v5762
  %5775 = vmatprep.subr.mxu0 0.0
  %5776 = vmatpush1.msra.mxu0 0.0
  %5777 = vmatprep.subr.mxu0 0.0
  %5778 = vmatpush1.msra.mxu0 0.0
  %5779 = vmatprep.subr.mxu0 0.0
  %5780 = vmatpush1.msra.mxu0 0.0
  %5781 = vmatprep.subr.mxu0 0.0
  %5782 = vmatpush1.msra.mxu0 0.0
  %5783 = vmatprep.subr.mxu0 0.0
  %5784 = vmatpush1.msra.mxu0 0.0
  %5785 = vmatprep.subr.mxu0 0.0
  %5786 = vmatpush1.msra.mxu0 0.0
  %5787 = vmatprep.subr.mxu0 0.0
  %5788 = vmatpush1.msra.mxu0 0.0
  %5789 = vmatprep.subr.mxu0 0.0
  %5790 = vmatpush1.msra.mxu0 0.0
  %5791 = vmatprep.subr.mxu0 0.0
  %5792 = vmatpush1.msra.mxu0 0.0
  %5793 = vmatprep.subr.mxu0 0.0
  %5794 = vmatpush1.msra.mxu0 0.0
  %5795 = vmatprep.subr.mxu0 0.0
  %5796 = vmatpush1.msra.mxu0 0.0
  %5797 = vmatprep.subr.mxu0 0.0
  %5798 = vmatpush1.msra.mxu0 0.0
  %5799 = vmatprep.subr.mxu0 0.0
  %5800 = vmatpush1.msra.mxu0 0.0
  %5801 = vmatprep.subr.mxu0 0.0
  %5802 = vmatpush1.msra.mxu0 0.0
  %5803 = vmatprep.subr.mxu0 0.0
  %5804 = vmatpush1.msra.mxu0 0.0
  %5805 = vmatprep.subr.mxu0 0.0
  %5806 = vmatpush1.msra.mxu0 0.0
  %5807 = vmatprep.subr.mxu0 0.0
  %5808 = vmatpush1.msra.mxu0 0.0
  %5809 = vmatprep.subr.mxu0 0.0
  %5810 = vmatpush1.msra.mxu0 0.0
  %5811 = vmatprep.subr.mxu0 0.0
  %5812 = vmatpush1.msra.mxu0 0.0
  %5813 = vmatprep.subr.mxu0 0.0
  %5814 = vmatpush1.msra.mxu0 0.0
  %5815 = vmatprep.subr.mxu0 0.0
  %5816 = vmatpush1.msra.mxu0 0.0
  %5817 = vmatprep.subr.mxu0 0.0
  %5818 = vmatpush1.msra.mxu0 0.0
  %5819 = vmatprep.subr.mxu0 0.0
  %5820 = vmatpush1.msra.mxu0 0.0
  %5821 = vmatprep.subr.mxu0 0.0
  %5822 = vmatpush1.msra.mxu0 0.0
  %5823 = vmatprep.subr.mxu0 0.0
  %5824 = vmatpush1.msra.mxu0 0.0
  %5825 = vmatprep.subr.mxu0 0.0
  %5826 = vmatpush1.msra.mxu0 0.0
  %5827 = vmatprep.subr.mxu0 0.0
  %5828 = vmatpush1.msra.mxu0 0.0
  %5829 = vmatprep.subr.mxu0 0.0
  %5830 = vmatpush1.msra.mxu0 0.0
  %5831 = vmatprep.subr.mxu0 0.0
  %5832 = vmatpush1.msra.mxu0 0.0
  %5833 = vmatprep.subr.mxu0 0.0
  %5834 = vmatpush1.msra.mxu0 0.0
  %5835 = vmatprep.mubr.f32.mxu0 0.0
  %5836 = vmatmul.mubr.f32.gmra.mrb[0].mxu0 %v5766
  %v5837 = vpop.f32.mrb[0].mxu0
  %v5838 = vadd.f32 0.0, %v5837
  %v5839 = vpop.f32.mrb[0].mxu0
  %5840 = vmatprep.mubr.f32.mxu0 0.0
  %5841 = vmatmul.mubr.f32.gmra.mrb[0].mxu0 %v5769
  %v5842 = vpop.f32.mrb[0].mxu0
  %v5843 = vadd.f32 0.0, %v5842
  %v5844 = vpop.f32.mrb[0].mxu0
  %5845 = vdwg.mxu0
  %5850 = vrot.lane.b32.xlu0 %v5751, 16
  %v5851 = vpop.permute.xlu0 %5850
  %5852 = vrot.lane.b32.xlu0 %v5756, 16
  %v5853 = vpop.permute.xlu0 %5852
  %5854 = vrot.lane.b32.xlu0 %v5838, 16
  %v5855 = vpop.permute.xlu0 %5854
  %5856 = vrot.lane.b32.xlu0 %v5843, 16
  %v5857 = vpop.permute.xlu0 %5856
  %5862 = vst.msk [vmem:[#allocation2] sm:$0xff] %vm1402, %v5851
  %5863 = vst.msk [vmem:[#allocation2 + $0x8] sm:$0xff] %vm1402, %v5853
  %5864 = vst.msk [vmem:[#allocation2 + $0x10] sm:$0xff] %vm1402, %v5855
  %5865 = vst.msk [vmem:[#allocation2 + $0x18] sm:$0xff] %vm1402, %v5857
  %5866 = vrot.lane.b32.xlu0 %v4603, 104
  %v5867 = vpop.permute.xlu0 %5866
  %5868 = vrot.lane.b32.xlu0 %v4608, 104
  %v5869 = vpop.permute.xlu0 %5868
  %5870 = vrot.lane.b32.xlu0 %v4603, 72
  %v5871 = vpop.permute.xlu0 %5870
  %5872 = vrot.lane.b32.xlu0 %v4608, 72
  %v5873 = vpop.permute.xlu0 %5872
  %v5874 = vsel %vm169, %v5867, 0
  %v5876 = vsel %vm169, %v5869, 0
  %v5878 = vsel %vm169, %v5871, 0
  %v5880 = vsel %vm169, %v5873, 0
  %5882 = vmatprep.subr.mxu0 0.0
  %5883 = vmatpush1.xpose.msra.mxu0 %v5878
  %5884 = vmatprep.subr.mxu0 0.0
  %5885 = vmatpush1.xpose.msra.mxu0 %v5880
  %5886 = vmatprep.subr.mxu0 0.0
  %5887 = vmatpush1.xpose.msra.mxu0 0.0
  %5888 = vmatprep.subr.mxu0 0.0
  %5889 = vmatpush1.xpose.msra.mxu0 0.0
  %5890 = vmatprep.subr.mxu0 0.0
  %5891 = vmatpush1.xpose.msra.mxu0 0.0
  %5892 = vmatprep.subr.mxu0 0.0
  %5893 = vmatpush1.xpose.msra.mxu0 0.0
  %5894 = vmatprep.subr.mxu0 0.0
  %5895 = vmatpush1.xpose.msra.mxu0 0.0
  %5896 = vmatprep.subr.mxu0 0.0
  %5897 = vmatpush1.xpose.msra.mxu0 0.0
  %5898 = vmatprep.subr.mxu0 0.0
  %5899 = vmatpush1.xpose.msra.mxu0 0.0
  %5900 = vmatprep.subr.mxu0 0.0
  %5901 = vmatpush1.xpose.msra.mxu0 0.0
  %5902 = vmatprep.subr.mxu0 0.0
  %5903 = vmatpush1.xpose.msra.mxu0 0.0
  %5904 = vmatprep.subr.mxu0 0.0
  %5905 = vmatpush1.xpose.msra.mxu0 0.0
  %5906 = vmatprep.subr.mxu0 0.0
  %5907 = vmatpush1.xpose.msra.mxu0 0.0
  %5908 = vmatprep.subr.mxu0 0.0
  %5909 = vmatpush1.xpose.msra.mxu0 0.0
  %5910 = vmatprep.subr.mxu0 0.0
  %5911 = vmatpush1.xpose.msra.mxu0 0.0
  %5912 = vmatprep.subr.mxu0 0.0
  %5913 = vmatpush1.xpose.msra.mxu0 0.0
  %5914 = vmatprep.subr.mxu0 0.0
  %5915 = vmatpush1.xpose.msra.mxu0 0.0
  %5916 = vmatprep.subr.mxu0 0.0
  %5917 = vmatpush1.xpose.msra.mxu0 0.0
  %5918 = vmatprep.subr.mxu0 0.0
  %5919 = vmatpush1.xpose.msra.mxu0 0.0
  %5920 = vmatprep.subr.mxu0 0.0
  %5921 = vmatpush1.xpose.msra.mxu0 0.0
  %5922 = vmatprep.subr.mxu0 0.0
  %5923 = vmatpush1.xpose.msra.mxu0 0.0
  %5924 = vmatprep.subr.mxu0 0.0
  %5925 = vmatpush1.xpose.msra.mxu0 0.0
  %5926 = vmatprep.subr.mxu0 0.0
  %5927 = vmatpush1.xpose.msra.mxu0 0.0
  %5928 = vmatprep.subr.mxu0 0.0
  %5929 = vmatpush1.xpose.msra.mxu0 0.0
  %5930 = vmatprep.subr.mxu0 0.0
  %5931 = vmatpush1.xpose.msra.mxu0 0.0
  %5932 = vmatprep.subr.mxu0 0.0
  %5933 = vmatpush1.xpose.msra.mxu0 0.0
  %5934 = vmatprep.subr.mxu0 0.0
  %5935 = vmatpush1.xpose.msra.mxu0 0.0
  %5936 = vmatprep.subr.mxu0 0.0
  %5937 = vmatpush1.xpose.msra.mxu0 0.0
  %5938 = vmatprep.subr.mxu0 0.0
  %5939 = vmatpush1.xpose.msra.mxu0 0.0
  %5940 = vmatprep.subr.mxu0 0.0
  %5941 = vmatpush1.xpose.msra.mxu0 0.0
  %5942 = vmatprep.subr.mxu0 0.0
  %5943 = vmatpush1.xpose.msra.mxu0 0.0
  %5944 = vmatprep.subr.mxu0 0.0
  %5945 = vmatpush1.xpose.msra.mxu0 0.0
  %5946 = vmatprep.mubr.f32.mxu0 0.0
  %5947 = vmatmul.mubr.f32.gmra.mrb[0].mxu0 %v5874
  %v5948 = vpop.f32.mrb[0].mxu0
  %v5949 = vadd.f32 %v49, %v5948
  %v5950 = vpop.f32.mrb[0].mxu0
  %5951 = vmatprep.mubr.f32.mxu0 0.0
  %5952 = vmatmul.mubr.f32.gmra.mrb[0].mxu0 %v5876
  %v5953 = vpop.f32.mrb[0].mxu0
  %v5954 = vadd.f32 %v50, %v5953
  %v5955 = vpop.f32.mrb[0].mxu0
  %5956 = vdwg.mxu0
  %5957 = vrot.lane.b32.xlu0 %v4613, 104
  %v5958 = vpop.permute.xlu0 %5957
  %5959 = vrot.lane.b32.xlu0 %v4618, 104
  %v5960 = vpop.permute.xlu0 %5959
  %5961 = vrot.lane.b32.xlu0 %v4613, 72
  %v5962 = vpop.permute.xlu0 %5961
  %5963 = vrot.lane.b32.xlu0 %v4618, 72
  %v5964 = vpop.permute.xlu0 %5963
  %v5965 = vsel %vm169, %v5958, 0
  %v5967 = vsel %vm169, %v5960, 0
  %v5969 = vsel %vm169, %v5962, 0
  %v5971 = vsel %vm169, %v5964, 0
  %5973 = vmatprep.subr.mxu0 0.0
  %5974 = vmatpush1.xpose.msra.mxu0 %v5969
  %5975 = vmatprep.subr.mxu0 0.0
  %5976 = vmatpush1.xpose.msra.mxu0 %v5971
  %5977 = vmatprep.subr.mxu0 0.0
  %5978 = vmatpush1.xpose.msra.mxu0 0.0
  %5979 = vmatprep.subr.mxu0 0.0
  %5980 = vmatpush1.xpose.msra.mxu0 0.0
  %5981 = vmatprep.subr.mxu0 0.0
  %5982 = vmatpush1.xpose.msra.mxu0 0.0
  %5983 = vmatprep.subr.mxu0 0.0
  %5984 = vmatpush1.xpose.msra.mxu0 0.0
  %5985 = vmatprep.subr.mxu0 0.0
  %5986 = vmatpush1.xpose.msra.mxu0 0.0
  %5987 = vmatprep.subr.mxu0 0.0
  %5988 = vmatpush1.xpose.msra.mxu0 0.0
  %5989 = vmatprep.subr.mxu0 0.0
  %5990 = vmatpush1.xpose.msra.mxu0 0.0
  %5991 = vmatprep.subr.mxu0 0.0
  %5992 = vmatpush1.xpose.msra.mxu0 0.0
  %5993 = vmatprep.subr.mxu0 0.0
  %5994 = vmatpush1.xpose.msra.mxu0 0.0
  %5995 = vmatprep.subr.mxu0 0.0
  %5996 = vmatpush1.xpose.msra.mxu0 0.0
  %5997 = vmatprep.subr.mxu0 0.0
  %5998 = vmatpush1.xpose.msra.mxu0 0.0
  %5999 = vmatprep.subr.mxu0 0.0
  %6000 = vmatpush1.xpose.msra.mxu0 0.0
  %6001 = vmatprep.subr.mxu0 0.0
  %6002 = vmatpush1.xpose.msra.mxu0 0.0
  %6003 = vmatprep.subr.mxu0 0.0
  %6004 = vmatpush1.xpose.msra.mxu0 0.0
  %6005 = vmatprep.subr.mxu0 0.0
  %6006 = vmatpush1.xpose.msra.mxu0 0.0
  %6007 = vmatprep.subr.mxu0 0.0
  %6008 = vmatpush1.xpose.msra.mxu0 0.0
  %6009 = vmatprep.subr.mxu0 0.0
  %6010 = vmatpush1.xpose.msra.mxu0 0.0
  %6011 = vmatprep.subr.mxu0 0.0
  %6012 = vmatpush1.xpose.msra.mxu0 0.0
  %6013 = vmatprep.subr.mxu0 0.0
  %6014 = vmatpush1.xpose.msra.mxu0 0.0
  %6015 = vmatprep.subr.mxu0 0.0
  %6016 = vmatpush1.xpose.msra.mxu0 0.0
  %6017 = vmatprep.subr.mxu0 0.0
  %6018 = vmatpush1.xpose.msra.mxu0 0.0
  %6019 = vmatprep.subr.mxu0 0.0
  %6020 = vmatpush1.xpose.msra.mxu0 0.0
  %6021 = vmatprep.subr.mxu0 0.0
  %6022 = vmatpush1.xpose.msra.mxu0 0.0
  %6023 = vmatprep.subr.mxu0 0.0
  %6024 = vmatpush1.xpose.msra.mxu0 0.0
  %6025 = vmatprep.subr.mxu0 0.0
  %6026 = vmatpush1.xpose.msra.mxu0 0.0
  %6027 = vmatprep.subr.mxu0 0.0
  %6028 = vmatpush1.xpose.msra.mxu0 0.0
  %6029 = vmatprep.subr.mxu0 0.0
  %6030 = vmatpush1.xpose.msra.mxu0 0.0
  %6031 = vmatprep.subr.mxu0 0.0
  %6032 = vmatpush1.xpose.msra.mxu0 0.0
  %6033 = vmatprep.subr.mxu0 0.0
  %6034 = vmatpush1.xpose.msra.mxu0 0.0
  %6035 = vmatprep.subr.mxu0 0.0
  %6036 = vmatpush1.xpose.msra.mxu0 0.0
  %6037 = vmatprep.mubr.f32.mxu0 0.0
  %6038 = vmatmul.mubr.f32.gmra.mrb[0].mxu0 %v5965
  %v6039 = vpop.f32.mrb[0].mxu0
  %v6040 = vadd.f32 %v49, %v6039
  %v6041 = vpop.f32.mrb[0].mxu0
  %6042 = vmatprep.mubr.f32.mxu0 0.0
  %6043 = vmatmul.mubr.f32.gmra.mrb[0].mxu0 %v5967
  %v6044 = vpop.f32.mrb[0].mxu0
  %v6045 = vadd.f32 %v50, %v6044
  %v6046 = vpop.f32.mrb[0].mxu0
  %6047 = vdwg.mxu0
  %v6048 = vsel %vm342, %v5949, -inf
  %6049 = vmax.xlane.f32.xlu0 %v6048
  %v6050 = vpop.xlane.xlu0 %6049
  %v6051 = vsel %vm342, %v5954, -inf
  %6052 = vmax.xlane.f32.xlu0 %v6051
  %v6053 = vpop.xlane.xlu0 %6052
  %v6054 = vsel %vm342, %v6040, -inf
  %6055 = vmax.xlane.f32.xlu0 %v6054
  %v6056 = vpop.xlane.xlu0 %6055
  %v6057 = vsel %vm342, %v6045, -inf
  %6058 = vmax.xlane.f32.xlu0 %v6057
  %v6059 = vpop.xlane.xlu0 %6058
  %v6060 = vsub.f32 %v5949, %v6050
  %v6061 = vsub.f32 %v5954, %v6053
  %v6062 = vsub.f32 %v6040, %v6056
  %v6063 = vsub.f32 %v6045, %v6059
  %v6064 = vmul.f32 %v6060, 1.442695
  %v6065 = vpow.pop %v6064
  %v6066 = vmul.f32 %v6061, 1.442695
  %v6067 = vpow.pop %v6066
  %v6068 = vmul.f32 %v6062, 1.442695
  %v6069 = vpow.pop %v6068
  %v6070 = vmul.f32 %v6063, 1.442695
  %v6071 = vpow.pop %v6070
  %v6072 = vsel %vm342, %v6065, 0.0
  %6073 = vadd.xlane.f32.xlu0 %v6072
  %v6074 = vpop.xlane.xlu0 %6073
  %v6075 = vsel %vm342, %v6067, 0.0
  %6076 = vadd.xlane.f32.xlu0 %v6075
  %v6077 = vpop.xlane.xlu0 %6076
  %v6078 = vsel %vm342, %v6069, 0.0
  %6079 = vadd.xlane.f32.xlu0 %v6078
  %v6080 = vpop.xlane.xlu0 %6079
  %v6081 = vsel %vm342, %v6071, 0.0
  %6082 = vadd.xlane.f32.xlu0 %v6081
  %v6083 = vpop.xlane.xlu0 %6082
  %v6084 = vrcp.pop %v6074
  %v6085 = vrcp.pop %v6077
  %v6086 = vrcp.pop %v6080
  %v6087 = vrcp.pop %v6083
  %v6088 = vmul.f32 %v6065, %v6084
  %v6089 = vmul.f32 %v6067, %v6085
  %v6090 = vmul.f32 %v6069, %v6086
  %v6091 = vmul.f32 %v6071, %v6087
  %6092 = vrot.lane.b32.xlu0 %v4603, 40
  %v6093 = vpop.permute.xlu0 %6092
  %6094 = vrot.lane.b32.xlu0 %v4608, 40
  %v6095 = vpop.permute.xlu0 %6094
  %v6099 = vsel %vm342, %v6088, 0
  %v6102 = vsel %vm342, %v6089, 0
  %6104 = vmatprep.subr.mxu0 0.0
  %6105 = vmatpush1.msra.mxu0 %v6093
  %6106 = vmatprep.subr.mxu0 0.0
  %6107 = vmatpush1.msra.mxu0 %v6095
  %6108 = vmatprep.subr.mxu0 0.0
  %6109 = vmatpush1.msra.mxu0 0.0
  %6110 = vmatprep.subr.mxu0 0.0
  %6111 = vmatpush1.msra.mxu0 0.0
  %6112 = vmatprep.subr.mxu0 0.0
  %6113 = vmatpush1.msra.mxu0 0.0
  %6114 = vmatprep.subr.mxu0 0.0
  %6115 = vmatpush1.msra.mxu0 0.0
  %6116 = vmatprep.subr.mxu0 0.0
  %6117 = vmatpush1.msra.mxu0 0.0
  %6118 = vmatprep.subr.mxu0 0.0
  %6119 = vmatpush1.msra.mxu0 0.0
  %6120 = vmatprep.subr.mxu0 0.0
  %6121 = vmatpush1.msra.mxu0 0.0
  %6122 = vmatprep.subr.mxu0 0.0
  %6123 = vmatpush1.msra.mxu0 0.0
  %6124 = vmatprep.subr.mxu0 0.0
  %6125 = vmatpush1.msra.mxu0 0.0
  %6126 = vmatprep.subr.mxu0 0.0
  %6127 = vmatpush1.msra.mxu0 0.0
  %6128 = vmatprep.subr.mxu0 0.0
  %6129 = vmatpush1.msra.mxu0 0.0
  %6130 = vmatprep.subr.mxu0 0.0
  %6131 = vmatpush1.msra.mxu0 0.0
  %6132 = vmatprep.subr.mxu0 0.0
  %6133 = vmatpush1.msra.mxu0 0.0
  %6134 = vmatprep.subr.mxu0 0.0
  %6135 = vmatpush1.msra.mxu0 0.0
  %6136 = vmatprep.subr.mxu0 0.0
  %6137 = vmatpush1.msra.mxu0 0.0
  %6138 = vmatprep.subr.mxu0 0.0
  %6139 = vmatpush1.msra.mxu0 0.0
  %6140 = vmatprep.subr.mxu0 0.0
  %6141 = vmatpush1.msra.mxu0 0.0
  %6142 = vmatprep.subr.mxu0 0.0
  %6143 = vmatpush1.msra.mxu0 0.0
  %6144 = vmatprep.subr.mxu0 0.0
  %6145 = vmatpush1.msra.mxu0 0.0
  %6146 = vmatprep.subr.mxu0 0.0
  %6147 = vmatpush1.msra.mxu0 0.0
  %6148 = vmatprep.subr.mxu0 0.0
  %6149 = vmatpush1.msra.mxu0 0.0
  %6150 = vmatprep.subr.mxu0 0.0
  %6151 = vmatpush1.msra.mxu0 0.0
  %6152 = vmatprep.subr.mxu0 0.0
  %6153 = vmatpush1.msra.mxu0 0.0
  %6154 = vmatprep.subr.mxu0 0.0
  %6155 = vmatpush1.msra.mxu0 0.0
  %6156 = vmatprep.subr.mxu0 0.0
  %6157 = vmatpush1.msra.mxu0 0.0
  %6158 = vmatprep.subr.mxu0 0.0
  %6159 = vmatpush1.msra.mxu0 0.0
  %6160 = vmatprep.subr.mxu0 0.0
  %6161 = vmatpush1.msra.mxu0 0.0
  %6162 = vmatprep.subr.mxu0 0.0
  %6163 = vmatpush1.msra.mxu0 0.0
  %6164 = vmatprep.subr.mxu0 0.0
  %6165 = vmatpush1.msra.mxu0 0.0
  %6166 = vmatprep.subr.mxu0 0.0
  %6167 = vmatpush1.msra.mxu0 0.0
  %6168 = vmatprep.mubr.f32.mxu0 0.0
  %6169 = vmatmul.mubr.f32.gmra.mrb[0].mxu0 %v6099
  %v6170 = vpop.f32.mrb[0].mxu0
  %v6171 = vadd.f32 0.0, %v6170
  %v6172 = vpop.f32.mrb[0].mxu0
  %6173 = vmatprep.mubr.f32.mxu0 0.0
  %6174 = vmatmul.mubr.f32.gmra.mrb[0].mxu0 %v6102
  %v6175 = vpop.f32.mrb[0].mxu0
  %v6176 = vadd.f32 0.0, %v6175
  %v6177 = vpop.f32.mrb[0].mxu0
  %6178 = vdwg.mxu0
  %6179 = vrot.lane.b32.xlu0 %v4613, 40
  %v6180 = vpop.permute.xlu0 %6179
  %6181 = vrot.lane.b32.xlu0 %v4618, 40
  %v6182 = vpop.permute.xlu0 %6181
  %v6186 = vsel %vm342, %v6090, 0
  %v6189 = vsel %vm342, %v6091, 0
  %6191 = vmatprep.subr.mxu0 0.0
  %6192 = vmatpush1.msra.mxu0 %v6180
  %6193 = vmatprep.subr.mxu0 0.0
  %6194 = vmatpush1.msra.mxu0 %v6182
  %6195 = vmatprep.subr.mxu0 0.0
  %6196 = vmatpush1.msra.mxu0 0.0
  %6197 = vmatprep.subr.mxu0 0.0
  %6198 = vmatpush1.msra.mxu0 0.0
  %6199 = vmatprep.subr.mxu0 0.0
  %6200 = vmatpush1.msra.mxu0 0.0
  %6201 = vmatprep.subr.mxu0 0.0
  %6202 = vmatpush1.msra.mxu0 0.0
  %6203 = vmatprep.subr.mxu0 0.0
  %6204 = vmatpush1.msra.mxu0 0.0
  %6205 = vmatprep.subr.mxu0 0.0
  %6206 = vmatpush1.msra.mxu0 0.0
  %6207 = vmatprep.subr.mxu0 0.0
  %6208 = vmatpush1.msra.mxu0 0.0
  %6209 = vmatprep.subr.mxu0 0.0
  %6210 = vmatpush1.msra.mxu0 0.0
  %6211 = vmatprep.subr.mxu0 0.0
  %6212 = vmatpush1.msra.mxu0 0.0
  %6213 = vmatprep.subr.mxu0 0.0
  %6214 = vmatpush1.msra.mxu0 0.0
  %6215 = vmatprep.subr.mxu0 0.0
  %6216 = vmatpush1.msra.mxu0 0.0
  %6217 = vmatprep.subr.mxu0 0.0
  %6218 = vmatpush1.msra.mxu0 0.0
  %6219 = vmatprep.subr.mxu0 0.0
  %6220 = vmatpush1.msra.mxu0 0.0
  %6221 = vmatprep.subr.mxu0 0.0
  %6222 = vmatpush1.msra.mxu0 0.0
  %6223 = vmatprep.subr.mxu0 0.0
  %6224 = vmatpush1.msra.mxu0 0.0
  %6225 = vmatprep.subr.mxu0 0.0
  %6226 = vmatpush1.msra.mxu0 0.0
  %6227 = vmatprep.subr.mxu0 0.0
  %6228 = vmatpush1.msra.mxu0 0.0
  %6229 = vmatprep.subr.mxu0 0.0
  %6230 = vmatpush1.msra.mxu0 0.0
  %6231 = vmatprep.subr.mxu0 0.0
  %6232 = vmatpush1.msra.mxu0 0.0
  %6233 = vmatprep.subr.mxu0 0.0
  %6234 = vmatpush1.msra.mxu0 0.0
  %6235 = vmatprep.subr.mxu0 0.0
  %6236 = vmatpush1.msra.mxu0 0.0
  %6237 = vmatprep.subr.mxu0 0.0
  %6238 = vmatpush1.msra.mxu0 0.0
  %6239 = vmatprep.subr.mxu0 0.0
  %6240 = vmatpush1.msra.mxu0 0.0
  %6241 = vmatprep.subr.mxu0 0.0
  %6242 = vmatpush1.msra.mxu0 0.0
  %6243 = vmatprep.subr.mxu0 0.0
  %6244 = vmatpush1.msra.mxu0 0.0
  %6245 = vmatprep.subr.mxu0 0.0
  %6246 = vmatpush1.msra.mxu0 0.0
  %6247 = vmatprep.subr.mxu0 0.0
  %6248 = vmatpush1.msra.mxu0 0.0
  %6249 = vmatprep.subr.mxu0 0.0
  %6250 = vmatpush1.msra.mxu0 0.0
  %6251 = vmatprep.subr.mxu0 0.0
  %6252 = vmatpush1.msra.mxu0 0.0
  %6253 = vmatprep.subr.mxu0 0.0
  %6254 = vmatpush1.msra.mxu0 0.0
  %6255 = vmatprep.mubr.f32.mxu0 0.0
  %6256 = vmatmul.mubr.f32.gmra.mrb[0].mxu0 %v6186
  %v6257 = vpop.f32.mrb[0].mxu0
  %v6258 = vadd.f32 0.0, %v6257
  %v6259 = vpop.f32.mrb[0].mxu0
  %6260 = vmatprep.mubr.f32.mxu0 0.0
  %6261 = vmatmul.mubr.f32.gmra.mrb[0].mxu0 %v6189
  %v6262 = vpop.f32.mrb[0].mxu0
  %v6263 = vadd.f32 0.0, %v6262
  %v6264 = vpop.f32.mrb[0].mxu0
  %6265 = vdwg.mxu0
  %6270 = vrot.lane.b32.xlu0 %v6171, 24
  %v6271 = vpop.permute.xlu0 %6270
  %6272 = vrot.lane.b32.xlu0 %v6176, 24
  %v6273 = vpop.permute.xlu0 %6272
  %6274 = vrot.lane.b32.xlu0 %v6258, 24
  %v6275 = vpop.permute.xlu0 %6274
  %6276 = vrot.lane.b32.xlu0 %v6263, 24
  %v6277 = vpop.permute.xlu0 %6276
  %6282 = vst.msk [vmem:[#allocation2] sm:$0xff] %vm1823, %v6271
  %6283 = vst.msk [vmem:[#allocation2 + $0x8] sm:$0xff] %vm1823, %v6273
  %6284 = vst.msk [vmem:[#allocation2 + $0x10] sm:$0xff] %vm1823, %v6275
  %6285 = vst.msk [vmem:[#allocation2 + $0x18] sm:$0xff] %vm1823, %v6277
  %v6286 = vld [vmem:[#allocation2] sm:$0xff]
  %v6287 = vld [vmem:[#allocation2 + $0x8] sm:$0xff]
  %v6288 = vld [vmem:[#allocation2 + $0x10] sm:$0xff]
  %v6289 = vld [vmem:[#allocation2 + $0x18] sm:$0xff]
  %v6290 = vlaneseq
  %v6291 = vshrl.u32 %v6290, 7
  %v6292 = vsub.s32 2, %v6291
  %v6293 = vrot.slane %v4513, %v6292
  %v6295 = vsel %vm61, %v6286, 0
  %v6298 = vsel %vm61, %v6287, 0
  %v6301 = vsel %vm61, %v6288, 0
  %v6304 = vsel %vm61, %v6289, 0
  %6306 = vmatprep.subr.mxu0 0.0
  %6307 = vmatpush1.msra.mxu0 %v4622
  %6308 = vmatprep.subr.mxu0 0.0
  %6309 = vmatpush1.msra.mxu0 %v4623
  %6310 = vmatprep.subr.mxu0 0.0
  %6311 = vmatpush1.msra.mxu0 %v4624
  %6312 = vmatprep.subr.mxu0 0.0
  %6313 = vmatpush1.msra.mxu0 %v4625
  %6314 = vmatprep.subr.mxu0 0.0
  %6315 = vmatpush1.msra.mxu0 0.0
  %6316 = vmatprep.subr.mxu0 0.0
  %6317 = vmatpush1.msra.mxu0 0.0
  %6318 = vmatprep.subr.mxu0 0.0
  %6319 = vmatpush1.msra.mxu0 0.0
  %6320 = vmatprep.subr.mxu0 0.0
  %6321 = vmatpush1.msra.mxu0 0.0
  %6322 = vmatprep.subr.mxu0 0.0
  %6323 = vmatpush1.msra.mxu0 0.0
  %6324 = vmatprep.subr.mxu0 0.0
  %6325 = vmatpush1.msra.mxu0 0.0
  %6326 = vmatprep.subr.mxu0 0.0
  %6327 = vmatpush1.msra.mxu0 0.0
  %6328 = vmatprep.subr.mxu0 0.0
  %6329 = vmatpush1.msra.mxu0 0.0
  %6330 = vmatprep.subr.mxu0 0.0
  %6331 = vmatpush1.msra.mxu0 0.0
  %6332 = vmatprep.subr.mxu0 0.0
  %6333 = vmatpush1.msra.mxu0 0.0
  %6334 = vmatprep.subr.mxu0 0.0
  %6335 = vmatpush1.msra.mxu0 0.0
  %6336 = vmatprep.subr.mxu0 0.0
  %6337 = vmatpush1.msra.mxu0 0.0
  %6338 = vmatprep.subr.mxu0 0.0
  %6339 = vmatpush1.msra.mxu0 0.0
  %6340 = vmatprep.subr.mxu0 0.0
  %6341 = vmatpush1.msra.mxu0 0.0
  %6342 = vmatprep.subr.mxu0 0.0
  %6343 = vmatpush1.msra.mxu0 0.0
  %6344 = vmatprep.subr.mxu0 0.0
  %6345 = vmatpush1.msra.mxu0 0.0
  %6346 = vmatprep.subr.mxu0 0.0
  %6347 = vmatpush1.msra.mxu0 0.0
  %6348 = vmatprep.subr.mxu0 0.0
  %6349 = vmatpush1.msra.mxu0 0.0
  %6350 = vmatprep.subr.mxu0 0.0
  %6351 = vmatpush1.msra.mxu0 0.0
  %6352 = vmatprep.subr.mxu0 0.0
  %6353 = vmatpush1.msra.mxu0 0.0
  %6354 = vmatprep.subr.mxu0 0.0
  %6355 = vmatpush1.msra.mxu0 0.0
  %6356 = vmatprep.subr.mxu0 0.0
  %6357 = vmatpush1.msra.mxu0 0.0
  %6358 = vmatprep.subr.mxu0 0.0
  %6359 = vmatpush1.msra.mxu0 0.0
  %6360 = vmatprep.subr.mxu0 0.0
  %6361 = vmatpush1.msra.mxu0 0.0
  %6362 = vmatprep.subr.mxu0 0.0
  %6363 = vmatpush1.msra.mxu0 0.0
  %6364 = vmatprep.subr.mxu0 0.0
  %6365 = vmatpush1.msra.mxu0 0.0
  %6366 = vmatprep.subr.mxu0 0.0
  %6367 = vmatpush1.msra.mxu0 0.0
  %6368 = vmatprep.subr.mxu0 0.0
  %6369 = vmatpush1.msra.mxu0 0.0
  %6370 = vmatprep.mubr.f32.mxu0 0.0
  %6371 = vmatmul.mubr.f32.gmra.mrb[0].mxu0 %v6295
  %v6372 = vpop.f32.mrb[0].mxu0
  %v6373 = vadd.f32 %v6293, %v6372
  %v6374 = vpop.f32.mrb[0].mxu0
  %6375 = vmatprep.mubr.f32.mxu0 0.0
  %6376 = vmatmul.mubr.f32.gmra.mrb[0].mxu0 %v6298
  %v6377 = vpop.f32.mrb[0].mxu0
  %v6378 = vadd.f32 %v6293, %v6377
  %v6379 = vpop.f32.mrb[0].mxu0
  %6380 = vmatprep.mubr.f32.mxu0 0.0
  %6381 = vmatmul.mubr.f32.gmra.mrb[0].mxu0 %v6301
  %v6382 = vpop.f32.mrb[0].mxu0
  %v6383 = vadd.f32 %v6293, %v6382
  %v6384 = vpop.f32.mrb[0].mxu0
  %6385 = vmatprep.mubr.f32.mxu0 0.0
  %6386 = vmatmul.mubr.f32.gmra.mrb[0].mxu0 %v6304
  %v6387 = vpop.f32.mrb[0].mxu0
  %v6388 = vadd.f32 %v6293, %v6387
  %v6389 = vpop.f32.mrb[0].mxu0
  %6390 = vdwg.mxu0
  %v6391 = vadd.f32 %v4508, %v6373
  %v6392 = vadd.f32 %v4509, %v6378
  %v6393 = vadd.f32 %v4510, %v6383
  %v6394 = vadd.f32 %v4511, %v6388
  %v6395 = vsel %vm61, %v6391, 0.0
  %6396 = vadd.xlane.f32.xlu0 %v6395
  %v6397 = vpop.xlane.xlu0 %6396
  %v6398 = vsel %vm61, %v6392, 0.0
  %6399 = vadd.xlane.f32.xlu0 %v6398
  %v6400 = vpop.xlane.xlu0 %6399
  %v6401 = vsel %vm61, %v6393, 0.0
  %6402 = vadd.xlane.f32.xlu0 %v6401
  %v6403 = vpop.xlane.xlu0 %6402
  %v6404 = vsel %vm61, %v6394, 0.0
  %6405 = vadd.xlane.f32.xlu0 %v6404
  %v6406 = vpop.xlane.xlu0 %6405
  %v6407 = vmul.f32 %v6397, %v1949
  %v6408 = vmul.f32 %v6400, %v1949
  %v6409 = vmul.f32 %v6403, %v1949
  %v6410 = vmul.f32 %v6406, %v1949
  %v6411 = vmul.f32 %v6391, %v6391
  %v6412 = vmul.f32 %v6392, %v6392
  %v6413 = vmul.f32 %v6393, %v6393
  %v6414 = vmul.f32 %v6394, %v6394
  %v6415 = vsel %vm61, %v6411, 0.0
  %6416 = vadd.xlane.f32.xlu0 %v6415
  %v6417 = vpop.xlane.xlu0 %6416
  %v6418 = vsel %vm61, %v6412, 0.0
  %6419 = vadd.xlane.f32.xlu0 %v6418
  %v6420 = vpop.xlane.xlu0 %6419
  %v6421 = vsel %vm61, %v6413, 0.0
  %6422 = vadd.xlane.f32.xlu0 %v6421
  %v6423 = vpop.xlane.xlu0 %6422
  %v6424 = vsel %vm61, %v6414, 0.0
  %6425 = vadd.xlane.f32.xlu0 %v6424
  %v6426 = vpop.xlane.xlu0 %6425
  %v6427 = vmul.f32 %v6417, %v1949
  %v6428 = vmul.f32 %v6420, %v1949
  %v6429 = vmul.f32 %v6423, %v1949
  %v6430 = vmul.f32 %v6426, %v1949
  %v6431 = vmul.f32 %v6407, %v6407
  %v6432 = vmul.f32 %v6408, %v6408
  %v6433 = vmul.f32 %v6409, %v6409
  %v6434 = vmul.f32 %v6410, %v6410
  %v6435 = vsub.f32 %v6427, %v6431
  %v6436 = vsub.f32 %v6428, %v6432
  %v6437 = vsub.f32 %v6429, %v6433
  %v6438 = vsub.f32 %v6430, %v6434
  %v6439 = vsub.f32 %v6391, %v6407
  %v6440 = vsub.f32 %v6392, %v6408
  %v6441 = vsub.f32 %v6393, %v6409
  %v6442 = vsub.f32 %v6394, %v6410
  %v6443 = vadd.f32 %v6435, 1e-05
  %v6444 = vadd.f32 %v6436, 1e-05
  %v6445 = vadd.f32 %v6437, 1e-05
  %v6446 = vadd.f32 %v6438, 1e-05
  %v6447 = vrsqrt.pop %v6443
  %v6448 = vrsqrt.pop %v6444
  %v6449 = vrsqrt.pop %v6445
  %v6450 = vrsqrt.pop %v6446
  %v6451 = vmul.f32 %v6439, %v6447
  %v6452 = vmul.f32 %v6440, %v6448
  %v6453 = vmul.f32 %v6441, %v6449
  %v6454 = vmul.f32 %v6442, %v6450
  %v6455 = vlaneseq
  %v6456 = vshrl.u32 %v6455, 7
  %v6457 = vsub.s32 5, %v6456
  %v6458 = vrot.slane %v4513, %v6457
  %v6459 = vmul.f32 %v6451, %v6458
  %v6460 = vmul.f32 %v6452, %v6458
  %v6461 = vmul.f32 %v6453, %v6458
  %v6462 = vmul.f32 %v6454, %v6458
  %v6463 = vlaneseq
  %v6464 = vshrl.u32 %v6463, 7
  %v6465 = vsub.s32 6, %v6464
  %v6466 = vrot.slane %v4513, %v6465
  %v6467 = vadd.f32 %v6459, %v6466
  %v6468 = vadd.f32 %v6460, %v6466
  %v6469 = vadd.f32 %v6461, %v6466
  %v6470 = vadd.f32 %v6462, %v6466
  %s6471 = scalar_lea.vmem %s3, 128
  %v6472 = vld [vmem:[%s6471] sm:$0xff]
  %v6473 = vld [vmem:[%s6471 + $0x8] sm:$0xff]
  %v6474 = vld [vmem:[%s6471 + $0x10] sm:$0xff]
  %v6475 = vld [vmem:[%s6471 + $0x18] sm:$0xff]
  %v6476 = vlaneseq
  %v6477 = vshrl.u32 %v6476, 7
  %v6478 = vsub.s32 3, %v6477
  %v6479 = vrot.slane %v4513, %v6478
  %v6481 = vsel %vm61, %v6467, 0
  %v6484 = vsel %vm61, %v6468, 0
  %v6487 = vsel %vm61, %v6469, 0
  %v6490 = vsel %vm61, %v6470, 0
  %6492 = vmatprep.subr.mxu0 0.0
  %6493 = vmatpush1.msra.mxu0 %v6472
  %6494 = vmatprep.subr.mxu0 0.0
  %6495 = vmatpush1.msra.mxu0 %v6473
  %6496 = vmatprep.subr.mxu0 0.0
  %6497 = vmatpush1.msra.mxu0 %v6474
  %6498 = vmatprep.subr.mxu0 0.0
  %6499 = vmatpush1.msra.mxu0 %v6475
  %6500 = vmatprep.subr.mxu0 0.0
  %6501 = vmatpush1.msra.mxu0 0.0
  %6502 = vmatprep.subr.mxu0 0.0
  %6503 = vmatpush1.msra.mxu0 0.0
  %6504 = vmatprep.subr.mxu0 0.0
  %6505 = vmatpush1.msra.mxu0 0.0
  %6506 = vmatprep.subr.mxu0 0.0
  %6507 = vmatpush1.msra.mxu0 0.0
  %6508 = vmatprep.subr.mxu0 0.0
  %6509 = vmatpush1.msra.mxu0 0.0
  %6510 = vmatprep.subr.mxu0 0.0
  %6511 = vmatpush1.msra.mxu0 0.0
  %6512 = vmatprep.subr.mxu0 0.0
  %6513 = vmatpush1.msra.mxu0 0.0
  %6514 = vmatprep.subr.mxu0 0.0
  %6515 = vmatpush1.msra.mxu0 0.0
  %6516 = vmatprep.subr.mxu0 0.0
  %6517 = vmatpush1.msra.mxu0 0.0
  %6518 = vmatprep.subr.mxu0 0.0
  %6519 = vmatpush1.msra.mxu0 0.0
  %6520 = vmatprep.subr.mxu0 0.0
  %6521 = vmatpush1.msra.mxu0 0.0
  %6522 = vmatprep.subr.mxu0 0.0
  %6523 = vmatpush1.msra.mxu0 0.0
  %6524 = vmatprep.subr.mxu0 0.0
  %6525 = vmatpush1.msra.mxu0 0.0
  %6526 = vmatprep.subr.mxu0 0.0
  %6527 = vmatpush1.msra.mxu0 0.0
  %6528 = vmatprep.subr.mxu0 0.0
  %6529 = vmatpush1.msra.mxu0 0.0
  %6530 = vmatprep.subr.mxu0 0.0
  %6531 = vmatpush1.msra.mxu0 0.0
  %6532 = vmatprep.subr.mxu0 0.0
  %6533 = vmatpush1.msra.mxu0 0.0
  %6534 = vmatprep.subr.mxu0 0.0
  %6535 = vmatpush1.msra.mxu0 0.0
  %6536 = vmatprep.subr.mxu0 0.0
  %6537 = vmatpush1.msra.mxu0 0.0
  %6538 = vmatprep.subr.mxu0 0.0
  %6539 = vmatpush1.msra.mxu0 0.0
  %6540 = vmatprep.subr.mxu0 0.0
  %6541 = vmatpush1.msra.mxu0 0.0
  %6542 = vmatprep.subr.mxu0 0.0
  %6543 = vmatpush1.msra.mxu0 0.0
  %6544 = vmatprep.subr.mxu0 0.0
  %6545 = vmatpush1.msra.mxu0 0.0
  %6546 = vmatprep.subr.mxu0 0.0
  %6547 = vmatpush1.msra.mxu0 0.0
  %6548 = vmatprep.subr.mxu0 0.0
  %6549 = vmatpush1.msra.mxu0 0.0
  %6550 = vmatprep.subr.mxu0 0.0
  %6551 = vmatpush1.msra.mxu0 0.0
  %6552 = vmatprep.subr.mxu0 0.0
  %6553 = vmatpush1.msra.mxu0 0.0
  %6554 = vmatprep.subr.mxu0 0.0
  %6555 = vmatpush1.msra.mxu0 0.0
  %6556 = vmatprep.mubr.f32.mxu0 0.0
  %6557 = vmatmul.mubr.f32.gmra.mrb[0].mxu0 %v6481
  %v6558 = vpop.f32.mrb[0].mxu0
  %v6559 = vadd.f32 %v6479, %v6558
  %v6560 = vpop.f32.mrb[0].mxu0
  %6561 = vmatprep.mubr.f32.mxu0 0.0
  %6562 = vmatmul.mubr.f32.gmra.mrb[0].mxu0 %v6484
  %v6563 = vpop.f32.mrb[0].mxu0
  %v6564 = vadd.f32 %v6479, %v6563
  %v6565 = vpop.f32.mrb[0].mxu0
  %6566 = vmatprep.mubr.f32.mxu0 0.0
  %6567 = vmatmul.mubr.f32.gmra.mrb[0].mxu0 %v6487
  %v6568 = vpop.f32.mrb[0].mxu0
  %v6569 = vadd.f32 %v6479, %v6568
  %v6570 = vpop.f32.mrb[0].mxu0
  %6571 = vmatprep.mubr.f32.mxu0 0.0
  %6572 = vmatmul.mubr.f32.gmra.mrb[0].mxu0 %v6490
  %v6573 = vpop.f32.mrb[0].mxu0
  %v6574 = vadd.f32 %v6479, %v6573
  %v6575 = vpop.f32.mrb[0].mxu0
  %6576 = vdwg.mxu0
  %s6577 = scalar_lea.vmem %s2, 96
  %v6578 = vld [vmem:[%s6577] sm:$0xff]
  %v6579 = vld [vmem:[%s6577 + $0x8] sm:$0xff]
  %v6580 = vld [vmem:[%s6577 + $0x10] sm:$0xff]
  %v6581 = vld [vmem:[%s6577 + $0x18] sm:$0xff]
  %v6582 = vlaneseq
  %v6583 = vshrl.u32 %v6582, 7
  %v6584 = vsub.s32 1, %v6583
  %v6585 = vrot.slane %v4513, %v6584
  %6586 = vmatprep.subr.mxu0 0.0
  %6587 = vmatpush1.msra.mxu0 %v6578
  %6588 = vmatprep.subr.mxu0 0.0
  %6589 = vmatpush1.msra.mxu0 %v6579
  %6590 = vmatprep.subr.mxu0 0.0
  %6591 = vmatpush1.msra.mxu0 %v6580
  %6592 = vmatprep.subr.mxu0 0.0
  %6593 = vmatpush1.msra.mxu0 %v6581
  %6594 = vmatprep.subr.mxu0 0.0
  %6595 = vmatpush1.msra.mxu0 0.0
  %6596 = vmatprep.subr.mxu0 0.0
  %6597 = vmatpush1.msra.mxu0 0.0
  %6598 = vmatprep.subr.mxu0 0.0
  %6599 = vmatpush1.msra.mxu0 0.0
  %6600 = vmatprep.subr.mxu0 0.0
  %6601 = vmatpush1.msra.mxu0 0.0
  %6602 = vmatprep.subr.mxu0 0.0
  %6603 = vmatpush1.msra.mxu0 0.0
  %6604 = vmatprep.subr.mxu0 0.0
  %6605 = vmatpush1.msra.mxu0 0.0
  %6606 = vmatprep.subr.mxu0 0.0
  %6607 = vmatpush1.msra.mxu0 0.0
  %6608 = vmatprep.subr.mxu0 0.0
  %6609 = vmatpush1.msra.mxu0 0.0
  %6610 = vmatprep.subr.mxu0 0.0
  %6611 = vmatpush1.msra.mxu0 0.0
  %6612 = vmatprep.subr.mxu0 0.0
  %6613 = vmatpush1.msra.mxu0 0.0
  %6614 = vmatprep.subr.mxu0 0.0
  %6615 = vmatpush1.msra.mxu0 0.0
  %6616 = vmatprep.subr.mxu0 0.0
  %6617 = vmatpush1.msra.mxu0 0.0
  %6618 = vmatprep.subr.mxu0 0.0
  %6619 = vmatpush1.msra.mxu0 0.0
  %6620 = vmatprep.subr.mxu0 0.0
  %6621 = vmatpush1.msra.mxu0 0.0
  %6622 = vmatprep.subr.mxu0 0.0
  %6623 = vmatpush1.msra.mxu0 0.0
  %6624 = vmatprep.subr.mxu0 0.0
  %6625 = vmatpush1.msra.mxu0 0.0
  %6626 = vmatprep.subr.mxu0 0.0
  %6627 = vmatpush1.msra.mxu0 0.0
  %6628 = vmatprep.subr.mxu0 0.0
  %6629 = vmatpush1.msra.mxu0 0.0
  %6630 = vmatprep.subr.mxu0 0.0
  %6631 = vmatpush1.msra.mxu0 0.0
  %6632 = vmatprep.subr.mxu0 0.0
  %6633 = vmatpush1.msra.mxu0 0.0
  %6634 = vmatprep.subr.mxu0 0.0
  %6635 = vmatpush1.msra.mxu0 0.0
  %6636 = vmatprep.subr.mxu0 0.0
  %6637 = vmatpush1.msra.mxu0 0.0
  %6638 = vmatprep.subr.mxu0 0.0
  %6639 = vmatpush1.msra.mxu0 0.0
  %6640 = vmatprep.subr.mxu0 0.0
  %6641 = vmatpush1.msra.mxu0 0.0
  %6642 = vmatprep.subr.mxu0 0.0
  %6643 = vmatpush1.msra.mxu0 0.0
  %6644 = vmatprep.subr.mxu0 0.0
  %6645 = vmatpush1.msra.mxu0 0.0
  %6646 = vmatprep.subr.mxu0 0.0
  %6647 = vmatpush1.msra.mxu0 0.0
  %6648 = vmatprep.subr.mxu0 0.0
  %6649 = vmatpush1.msra.mxu0 0.0
  %6650 = vmatprep.mubr.f32.mxu0 0.0
  %6651 = vmatmul.mubr.f32.gmra.mrb[0].mxu0 %v2130
  %v6652 = vpop.f32.mrb[0].mxu0
  %v6653 = vadd.f32 %v6585, %v6652
  %v6654 = vpop.f32.mrb[0].mxu0
  %6655 = vmatprep.mubr.f32.mxu0 0.0
  %6656 = vmatmul.mubr.f32.gmra.mrb[0].mxu0 %v2133
  %v6657 = vpop.f32.mrb[0].mxu0
  %v6658 = vadd.f32 %v6585, %v6657
  %v6659 = vpop.f32.mrb[0].mxu0
  %6660 = vmatprep.mubr.f32.mxu0 0.0
  %6661 = vmatmul.mubr.f32.gmra.mrb[0].mxu0 %v2136
  %v6662 = vpop.f32.mrb[0].mxu0
  %v6663 = vadd.f32 %v6585, %v6662
  %v6664 = vpop.f32.mrb[0].mxu0
  %6665 = vmatprep.mubr.f32.mxu0 0.0
  %6666 = vmatmul.mubr.f32.gmra.mrb[0].mxu0 %v2139
  %v6667 = vpop.f32.mrb[0].mxu0
  %v6668 = vadd.f32 %v6585, %v6667
  %v6669 = vpop.f32.mrb[0].mxu0
  %6670 = vmatprep.mubr.f32.mxu0 0.0
  %6671 = vmatmul.mubr.f32.gmra.mrb[0].mxu0 %v2142
  %v6672 = vpop.f32.mrb[0].mxu0
  %v6673 = vadd.f32 %v6585, %v6672
  %v6674 = vpop.f32.mrb[0].mxu0
  %6675 = vmatprep.mubr.f32.mxu0 0.0
  %6676 = vmatmul.mubr.f32.gmra.mrb[0].mxu0 %v2145
  %v6677 = vpop.f32.mrb[0].mxu0
  %v6678 = vadd.f32 %v6585, %v6677
  %v6679 = vpop.f32.mrb[0].mxu0
  %6680 = vdwg.mxu0
  %s6681 = scalar_lea.vmem %s3, 160
  %v6682 = vld [vmem:[%s6681] sm:$0xff]
  %v6683 = vld [vmem:[%s6681 + $0x8] sm:$0xff]
  %v6684 = vld [vmem:[%s6681 + $0x10] sm:$0xff]
  %v6685 = vld [vmem:[%s6681 + $0x18] sm:$0xff]
  %v6687 = vsel %vm169, %v6559, 0
  %v6690 = vsel %vm169, %v6564, 0
  %v6693 = vsel %vm169, %v6653, 0
  %v6696 = vsel %vm169, %v6658, 0
  %v6699 = vsel %vm169, %v6663, 0
  %6701 = vmatprep.subr.mxu0 0.0
  %6702 = vmatpush1.xpose.msra.mxu0 %v6693
  %6703 = vmatprep.subr.mxu0 0.0
  %6704 = vmatpush1.xpose.msra.mxu0 %v6696
  %6705 = vmatprep.subr.mxu0 0.0
  %6706 = vmatpush1.xpose.msra.mxu0 %v6699
  %6707 = vmatprep.subr.mxu0 0.0
  %6708 = vmatpush1.xpose.msra.mxu0 0.0
  %6709 = vmatprep.subr.mxu0 0.0
  %6710 = vmatpush1.xpose.msra.mxu0 0.0
  %6711 = vmatprep.subr.mxu0 0.0
  %6712 = vmatpush1.xpose.msra.mxu0 0.0
  %6713 = vmatprep.subr.mxu0 0.0
  %6714 = vmatpush1.xpose.msra.mxu0 0.0
  %6715 = vmatprep.subr.mxu0 0.0
  %6716 = vmatpush1.xpose.msra.mxu0 0.0
  %6717 = vmatprep.subr.mxu0 0.0
  %6718 = vmatpush1.xpose.msra.mxu0 0.0
  %6719 = vmatprep.subr.mxu0 0.0
  %6720 = vmatpush1.xpose.msra.mxu0 0.0
  %6721 = vmatprep.subr.mxu0 0.0
  %6722 = vmatpush1.xpose.msra.mxu0 0.0
  %6723 = vmatprep.subr.mxu0 0.0
  %6724 = vmatpush1.xpose.msra.mxu0 0.0
  %6725 = vmatprep.subr.mxu0 0.0
  %6726 = vmatpush1.xpose.msra.mxu0 0.0
  %6727 = vmatprep.subr.mxu0 0.0
  %6728 = vmatpush1.xpose.msra.mxu0 0.0
  %6729 = vmatprep.subr.mxu0 0.0
  %6730 = vmatpush1.xpose.msra.mxu0 0.0
  %6731 = vmatprep.subr.mxu0 0.0
  %6732 = vmatpush1.xpose.msra.mxu0 0.0
  %6733 = vmatprep.subr.mxu0 0.0
  %6734 = vmatpush1.xpose.msra.mxu0 0.0
  %6735 = vmatprep.subr.mxu0 0.0
  %6736 = vmatpush1.xpose.msra.mxu0 0.0
  %6737 = vmatprep.subr.mxu0 0.0
  %6738 = vmatpush1.xpose.msra.mxu0 0.0
  %6739 = vmatprep.subr.mxu0 0.0
  %6740 = vmatpush1.xpose.msra.mxu0 0.0
  %6741 = vmatprep.subr.mxu0 0.0
  %6742 = vmatpush1.xpose.msra.mxu0 0.0
  %6743 = vmatprep.subr.mxu0 0.0
  %6744 = vmatpush1.xpose.msra.mxu0 0.0
  %6745 = vmatprep.subr.mxu0 0.0
  %6746 = vmatpush1.xpose.msra.mxu0 0.0
  %6747 = vmatprep.subr.mxu0 0.0
  %6748 = vmatpush1.xpose.msra.mxu0 0.0
  %6749 = vmatprep.subr.mxu0 0.0
  %6750 = vmatpush1.xpose.msra.mxu0 0.0
  %6751 = vmatprep.subr.mxu0 0.0
  %6752 = vmatpush1.xpose.msra.mxu0 0.0
  %6753 = vmatprep.subr.mxu0 0.0
  %6754 = vmatpush1.xpose.msra.mxu0 0.0
  %6755 = vmatprep.subr.mxu0 0.0
  %6756 = vmatpush1.xpose.msra.mxu0 0.0
  %6757 = vmatprep.subr.mxu0 0.0
  %6758 = vmatpush1.xpose.msra.mxu0 0.0
  %6759 = vmatprep.subr.mxu0 0.0
  %6760 = vmatpush1.xpose.msra.mxu0 0.0
  %6761 = vmatprep.subr.mxu0 0.0
  %6762 = vmatpush1.xpose.msra.mxu0 0.0
  %6763 = vmatprep.subr.mxu0 0.0
  %6764 = vmatpush1.xpose.msra.mxu0 0.0
  %6765 = vmatprep.mubr.f32.mxu0 0.0
  %6766 = vmatmul.mubr.f32.gmra.mrb[0].mxu0 %v6687
  %v6767 = vpop.f32.mrb[0].mxu0
  %v6768 = vadd.f32 0.0, %v6767
  %v6769 = vpop.f32.mrb[0].mxu0
  %6770 = vmatprep.mubr.f32.mxu0 0.0
  %6771 = vmatmul.mubr.f32.gmra.mrb[0].mxu0 %v6690
  %v6772 = vpop.f32.mrb[0].mxu0
  %v6773 = vadd.f32 0.0, %v6772
  %v6774 = vpop.f32.mrb[0].mxu0
  %6775 = vdwg.mxu0
  %v6777 = vsel %vm169, %v6569, 0
  %v6780 = vsel %vm169, %v6574, 0
  %v6783 = vsel %vm169, %v6668, 0
  %v6786 = vsel %vm169, %v6673, 0
  %v6789 = vsel %vm169, %v6678, 0
  %6791 = vmatprep.subr.mxu0 0.0
  %6792 = vmatpush1.xpose.msra.mxu0 %v6783
  %6793 = vmatprep.subr.mxu0 0.0
  %6794 = vmatpush1.xpose.msra.mxu0 %v6786
  %6795 = vmatprep.subr.mxu0 0.0
  %6796 = vmatpush1.xpose.msra.mxu0 %v6789
  %6797 = vmatprep.subr.mxu0 0.0
  %6798 = vmatpush1.xpose.msra.mxu0 0.0
  %6799 = vmatprep.subr.mxu0 0.0
  %6800 = vmatpush1.xpose.msra.mxu0 0.0
  %6801 = vmatprep.subr.mxu0 0.0
  %6802 = vmatpush1.xpose.msra.mxu0 0.0
  %6803 = vmatprep.subr.mxu0 0.0
  %6804 = vmatpush1.xpose.msra.mxu0 0.0
  %6805 = vmatprep.subr.mxu0 0.0
  %6806 = vmatpush1.xpose.msra.mxu0 0.0
  %6807 = vmatprep.subr.mxu0 0.0
  %6808 = vmatpush1.xpose.msra.mxu0 0.0
  %6809 = vmatprep.subr.mxu0 0.0
  %6810 = vmatpush1.xpose.msra.mxu0 0.0
  %6811 = vmatprep.subr.mxu0 0.0
  %6812 = vmatpush1.xpose.msra.mxu0 0.0
  %6813 = vmatprep.subr.mxu0 0.0
  %6814 = vmatpush1.xpose.msra.mxu0 0.0
  %6815 = vmatprep.subr.mxu0 0.0
  %6816 = vmatpush1.xpose.msra.mxu0 0.0
  %6817 = vmatprep.subr.mxu0 0.0
  %6818 = vmatpush1.xpose.msra.mxu0 0.0
  %6819 = vmatprep.subr.mxu0 0.0
  %6820 = vmatpush1.xpose.msra.mxu0 0.0
  %6821 = vmatprep.subr.mxu0 0.0
  %6822 = vmatpush1.xpose.msra.mxu0 0.0
  %6823 = vmatprep.subr.mxu0 0.0
  %6824 = vmatpush1.xpose.msra.mxu0 0.0
  %6825 = vmatprep.subr.mxu0 0.0
  %6826 = vmatpush1.xpose.msra.mxu0 0.0
  %6827 = vmatprep.subr.mxu0 0.0
  %6828 = vmatpush1.xpose.msra.mxu0 0.0
  %6829 = vmatprep.subr.mxu0 0.0
  %6830 = vmatpush1.xpose.msra.mxu0 0.0
  %6831 = vmatprep.subr.mxu0 0.0
  %6832 = vmatpush1.xpose.msra.mxu0 0.0
  %6833 = vmatprep.subr.mxu0 0.0
  %6834 = vmatpush1.xpose.msra.mxu0 0.0
  %6835 = vmatprep.subr.mxu0 0.0
  %6836 = vmatpush1.xpose.msra.mxu0 0.0
  %6837 = vmatprep.subr.mxu0 0.0
  %6838 = vmatpush1.xpose.msra.mxu0 0.0
  %6839 = vmatprep.subr.mxu0 0.0
  %6840 = vmatpush1.xpose.msra.mxu0 0.0
  %6841 = vmatprep.subr.mxu0 0.0
  %6842 = vmatpush1.xpose.msra.mxu0 0.0
  %6843 = vmatprep.subr.mxu0 0.0
  %6844 = vmatpush1.xpose.msra.mxu0 0.0
  %6845 = vmatprep.subr.mxu0 0.0
  %6846 = vmatpush1.xpose.msra.mxu0 0.0
  %6847 = vmatprep.subr.mxu0 0.0
  %6848 = vmatpush1.xpose.msra.mxu0 0.0
  %6849 = vmatprep.subr.mxu0 0.0
  %6850 = vmatpush1.xpose.msra.mxu0 0.0
  %6851 = vmatprep.subr.mxu0 0.0
  %6852 = vmatpush1.xpose.msra.mxu0 0.0
  %6853 = vmatprep.subr.mxu0 0.0
  %6854 = vmatpush1.xpose.msra.mxu0 0.0
  %6855 = vmatprep.mubr.f32.mxu0 0.0
  %6856 = vmatmul.mubr.f32.gmra.mrb[0].mxu0 %v6777
  %v6857 = vpop.f32.mrb[0].mxu0
  %v6858 = vadd.f32 0.0, %v6857
  %v6859 = vpop.f32.mrb[0].mxu0
  %6860 = vmatprep.mubr.f32.mxu0 0.0
  %6861 = vmatmul.mubr.f32.gmra.mrb[0].mxu0 %v6780
  %v6862 = vpop.f32.mrb[0].mxu0
  %v6863 = vadd.f32 0.0, %v6862
  %v6864 = vpop.f32.mrb[0].mxu0
  %6865 = vdwg.mxu0
  %v6866 = vsel %vm2427, %v6768, -inf
  %6867 = vmax.xlane.f32.xlu0 %v6866
  %v6868 = vpop.xlane.xlu0 %6867
  %v6869 = vsel %vm2427, %v6773, -inf
  %6870 = vmax.xlane.f32.xlu0 %v6869
  %v6871 = vpop.xlane.xlu0 %6870
  %v6872 = vsel %vm2427, %v6858, -inf
  %6873 = vmax.xlane.f32.xlu0 %v6872
  %v6874 = vpop.xlane.xlu0 %6873
  %v6875 = vsel %vm2427, %v6863, -inf
  %6876 = vmax.xlane.f32.xlu0 %v6875
  %v6877 = vpop.xlane.xlu0 %6876
  %v6878 = vsub.f32 %v6768, %v6868
  %v6879 = vsub.f32 %v6773, %v6871
  %v6880 = vsub.f32 %v6858, %v6874
  %v6881 = vsub.f32 %v6863, %v6877
  %v6882 = vmul.f32 %v6878, 1.442695
  %v6883 = vpow.pop %v6882
  %v6884 = vmul.f32 %v6879, 1.442695
  %v6885 = vpow.pop %v6884
  %v6886 = vmul.f32 %v6880, 1.442695
  %v6887 = vpow.pop %v6886
  %v6888 = vmul.f32 %v6881, 1.442695
  %v6889 = vpow.pop %v6888
  %v6890 = vsel %vm2427, %v6883, 0.0
  %6891 = vadd.xlane.f32.xlu0 %v6890
  %v6892 = vpop.xlane.xlu0 %6891
  %v6893 = vsel %vm2427, %v6885, 0.0
  %6894 = vadd.xlane.f32.xlu0 %v6893
  %v6895 = vpop.xlane.xlu0 %6894
  %v6896 = vsel %vm2427, %v6887, 0.0
  %6897 = vadd.xlane.f32.xlu0 %v6896
  %v6898 = vpop.xlane.xlu0 %6897
  %v6899 = vsel %vm2427, %v6889, 0.0
  %6900 = vadd.xlane.f32.xlu0 %v6899
  %v6901 = vpop.xlane.xlu0 %6900
  %v6902 = vrcp.pop %v6892
  %v6903 = vrcp.pop %v6895
  %v6904 = vrcp.pop %v6898
  %v6905 = vrcp.pop %v6901
  %v6906 = vmul.f32 %v6883, %v6902
  %v6907 = vmul.f32 %v6885, %v6903
  %v6908 = vmul.f32 %v6887, %v6904
  %v6909 = vmul.f32 %v6889, %v6905
  %6910 = vrot.lane.b32.xlu0 %v6653, 96
  %v6911 = vpop.permute.xlu0 %6910
  %6912 = vrot.lane.b32.xlu0 %v6658, 96
  %v6913 = vpop.permute.xlu0 %6912
  %6914 = vrot.lane.b32.xlu0 %v6663, 96
  %v6915 = vpop.permute.xlu0 %6914
  %v6920 = vsel %vm2427, %v6906, 0
  %v6923 = vsel %vm2427, %v6907, 0
  %6925 = vmatprep.subr.mxu0 0.0
  %6926 = vmatpush1.msra.mxu0 %v6911
  %6927 = vmatprep.subr.mxu0 0.0
  %6928 = vmatpush1.msra.mxu0 %v6913
  %6929 = vmatprep.subr.mxu0 0.0
  %6930 = vmatpush1.msra.mxu0 %v6915
  %6931 = vmatprep.subr.mxu0 0.0
  %6932 = vmatpush1.msra.mxu0 0.0
  %6933 = vmatprep.subr.mxu0 0.0
  %6934 = vmatpush1.msra.mxu0 0.0
  %6935 = vmatprep.subr.mxu0 0.0
  %6936 = vmatpush1.msra.mxu0 0.0
  %6937 = vmatprep.subr.mxu0 0.0
  %6938 = vmatpush1.msra.mxu0 0.0
  %6939 = vmatprep.subr.mxu0 0.0
  %6940 = vmatpush1.msra.mxu0 0.0
  %6941 = vmatprep.subr.mxu0 0.0
  %6942 = vmatpush1.msra.mxu0 0.0
  %6943 = vmatprep.subr.mxu0 0.0
  %6944 = vmatpush1.msra.mxu0 0.0
  %6945 = vmatprep.subr.mxu0 0.0
  %6946 = vmatpush1.msra.mxu0 0.0
  %6947 = vmatprep.subr.mxu0 0.0
  %6948 = vmatpush1.msra.mxu0 0.0
  %6949 = vmatprep.subr.mxu0 0.0
  %6950 = vmatpush1.msra.mxu0 0.0
  %6951 = vmatprep.subr.mxu0 0.0
  %6952 = vmatpush1.msra.mxu0 0.0
  %6953 = vmatprep.subr.mxu0 0.0
  %6954 = vmatpush1.msra.mxu0 0.0
  %6955 = vmatprep.subr.mxu0 0.0
  %6956 = vmatpush1.msra.mxu0 0.0
  %6957 = vmatprep.subr.mxu0 0.0
  %6958 = vmatpush1.msra.mxu0 0.0
  %6959 = vmatprep.subr.mxu0 0.0
  %6960 = vmatpush1.msra.mxu0 0.0
  %6961 = vmatprep.subr.mxu0 0.0
  %6962 = vmatpush1.msra.mxu0 0.0
  %6963 = vmatprep.subr.mxu0 0.0
  %6964 = vmatpush1.msra.mxu0 0.0
  %6965 = vmatprep.subr.mxu0 0.0
  %6966 = vmatpush1.msra.mxu0 0.0
  %6967 = vmatprep.subr.mxu0 0.0
  %6968 = vmatpush1.msra.mxu0 0.0
  %6969 = vmatprep.subr.mxu0 0.0
  %6970 = vmatpush1.msra.mxu0 0.0
  %6971 = vmatprep.subr.mxu0 0.0
  %6972 = vmatpush1.msra.mxu0 0.0
  %6973 = vmatprep.subr.mxu0 0.0
  %6974 = vmatpush1.msra.mxu0 0.0
  %6975 = vmatprep.subr.mxu0 0.0
  %6976 = vmatpush1.msra.mxu0 0.0
  %6977 = vmatprep.subr.mxu0 0.0
  %6978 = vmatpush1.msra.mxu0 0.0
  %6979 = vmatprep.subr.mxu0 0.0
  %6980 = vmatpush1.msra.mxu0 0.0
  %6981 = vmatprep.subr.mxu0 0.0
  %6982 = vmatpush1.msra.mxu0 0.0
  %6983 = vmatprep.subr.mxu0 0.0
  %6984 = vmatpush1.msra.mxu0 0.0
  %6985 = vmatprep.subr.mxu0 0.0
  %6986 = vmatpush1.msra.mxu0 0.0
  %6987 = vmatprep.subr.mxu0 0.0
  %6988 = vmatpush1.msra.mxu0 0.0
  %6989 = vmatprep.mubr.f32.mxu0 0.0
  %6990 = vmatmul.mubr.f32.gmra.mrb[0].mxu0 %v6920
  %v6991 = vpop.f32.mrb[0].mxu0
  %v6992 = vadd.f32 0.0, %v6991
  %v6993 = vpop.f32.mrb[0].mxu0
  %6994 = vmatprep.mubr.f32.mxu0 0.0
  %6995 = vmatmul.mubr.f32.gmra.mrb[0].mxu0 %v6923
  %v6996 = vpop.f32.mrb[0].mxu0
  %v6997 = vadd.f32 0.0, %v6996
  %v6998 = vpop.f32.mrb[0].mxu0
  %6999 = vdwg.mxu0
  %7000 = vrot.lane.b32.xlu0 %v6668, 96
  %v7001 = vpop.permute.xlu0 %7000
  %7002 = vrot.lane.b32.xlu0 %v6673, 96
  %v7003 = vpop.permute.xlu0 %7002
  %7004 = vrot.lane.b32.xlu0 %v6678, 96
  %v7005 = vpop.permute.xlu0 %7004
  %v7010 = vsel %vm2427, %v6908, 0
  %v7013 = vsel %vm2427, %v6909, 0
  %7015 = vmatprep.subr.mxu0 0.0
  %7016 = vmatpush1.msra.mxu0 %v7001
  %7017 = vmatprep.subr.mxu0 0.0
  %7018 = vmatpush1.msra.mxu0 %v7003
  %7019 = vmatprep.subr.mxu0 0.0
  %7020 = vmatpush1.msra.mxu0 %v7005
  %7021 = vmatprep.subr.mxu0 0.0
  %7022 = vmatpush1.msra.mxu0 0.0
  %7023 = vmatprep.subr.mxu0 0.0
  %7024 = vmatpush1.msra.mxu0 0.0
  %7025 = vmatprep.subr.mxu0 0.0
  %7026 = vmatpush1.msra.mxu0 0.0
  %7027 = vmatprep.subr.mxu0 0.0
  %7028 = vmatpush1.msra.mxu0 0.0
  %7029 = vmatprep.subr.mxu0 0.0
  %7030 = vmatpush1.msra.mxu0 0.0
  %7031 = vmatprep.subr.mxu0 0.0
  %7032 = vmatpush1.msra.mxu0 0.0
  %7033 = vmatprep.subr.mxu0 0.0
  %7034 = vmatpush1.msra.mxu0 0.0
  %7035 = vmatprep.subr.mxu0 0.0
  %7036 = vmatpush1.msra.mxu0 0.0
  %7037 = vmatprep.subr.mxu0 0.0
  %7038 = vmatpush1.msra.mxu0 0.0
  %7039 = vmatprep.subr.mxu0 0.0
  %7040 = vmatpush1.msra.mxu0 0.0
  %7041 = vmatprep.subr.mxu0 0.0
  %7042 = vmatpush1.msra.mxu0 0.0
  %7043 = vmatprep.subr.mxu0 0.0
  %7044 = vmatpush1.msra.mxu0 0.0
  %7045 = vmatprep.subr.mxu0 0.0
  %7046 = vmatpush1.msra.mxu0 0.0
  %7047 = vmatprep.subr.mxu0 0.0
  %7048 = vmatpush1.msra.mxu0 0.0
  %7049 = vmatprep.subr.mxu0 0.0
  %7050 = vmatpush1.msra.mxu0 0.0
  %7051 = vmatprep.subr.mxu0 0.0
  %7052 = vmatpush1.msra.mxu0 0.0
  %7053 = vmatprep.subr.mxu0 0.0
  %7054 = vmatpush1.msra.mxu0 0.0
  %7055 = vmatprep.subr.mxu0 0.0
  %7056 = vmatpush1.msra.mxu0 0.0
  %7057 = vmatprep.subr.mxu0 0.0
  %7058 = vmatpush1.msra.mxu0 0.0
  %7059 = vmatprep.subr.mxu0 0.0
  %7060 = vmatpush1.msra.mxu0 0.0
  %7061 = vmatprep.subr.mxu0 0.0
  %7062 = vmatpush1.msra.mxu0 0.0
  %7063 = vmatprep.subr.mxu0 0.0
  %7064 = vmatpush1.msra.mxu0 0.0
  %7065 = vmatprep.subr.mxu0 0.0
  %7066 = vmatpush1.msra.mxu0 0.0
  %7067 = vmatprep.subr.mxu0 0.0
  %7068 = vmatpush1.msra.mxu0 0.0
  %7069 = vmatprep.subr.mxu0 0.0
  %7070 = vmatpush1.msra.mxu0 0.0
  %7071 = vmatprep.subr.mxu0 0.0
  %7072 = vmatpush1.msra.mxu0 0.0
  %7073 = vmatprep.subr.mxu0 0.0
  %7074 = vmatpush1.msra.mxu0 0.0
  %7075 = vmatprep.subr.mxu0 0.0
  %7076 = vmatpush1.msra.mxu0 0.0
  %7077 = vmatprep.subr.mxu0 0.0
  %7078 = vmatpush1.msra.mxu0 0.0
  %7079 = vmatprep.mubr.f32.mxu0 0.0
  %7080 = vmatmul.mubr.f32.gmra.mrb[0].mxu0 %v7010
  %v7081 = vpop.f32.mrb[0].mxu0
  %v7082 = vadd.f32 0.0, %v7081
  %v7083 = vpop.f32.mrb[0].mxu0
  %7084 = vmatprep.mubr.f32.mxu0 0.0
  %7085 = vmatmul.mubr.f32.gmra.mrb[0].mxu0 %v7013
  %v7086 = vpop.f32.mrb[0].mxu0
  %v7087 = vadd.f32 0.0, %v7086
  %v7088 = vpop.f32.mrb[0].mxu0
  %7089 = vdwg.mxu0
  %7090 = vst.msk [vmem:[#allocation2] sm:$0xff] %vm169, %v6992
  %7091 = vst.msk [vmem:[#allocation2 + $0x8] sm:$0xff] %vm169, %v6997
  %7092 = vst.msk [vmem:[#allocation2 + $0x10] sm:$0xff] %vm169, %v7082
  %7093 = vst.msk [vmem:[#allocation2 + $0x18] sm:$0xff] %vm169, %v7087
  %7094 = vrot.lane.b32.xlu0 %v6559, 120
  %v7095 = vpop.permute.xlu0 %7094
  %7096 = vrot.lane.b32.xlu0 %v6564, 120
  %v7097 = vpop.permute.xlu0 %7096
  %7098 = vrot.lane.b32.xlu0 %v6653, 120
  %v7099 = vpop.permute.xlu0 %7098
  %7100 = vrot.lane.b32.xlu0 %v6658, 120
  %v7101 = vpop.permute.xlu0 %7100
  %7102 = vrot.lane.b32.xlu0 %v6663, 120
  %v7103 = vpop.permute.xlu0 %7102
  %v7104 = vsel %vm169, %v7095, 0
  %v7106 = vsel %vm169, %v7097, 0
  %v7108 = vsel %vm169, %v7099, 0
  %v7110 = vsel %vm169, %v7101, 0
  %v7112 = vsel %vm169, %v7103, 0
  %7114 = vmatprep.subr.mxu0 0.0
  %7115 = vmatpush1.xpose.msra.mxu0 %v7108
  %7116 = vmatprep.subr.mxu0 0.0
  %7117 = vmatpush1.xpose.msra.mxu0 %v7110
  %7118 = vmatprep.subr.mxu0 0.0
  %7119 = vmatpush1.xpose.msra.mxu0 %v7112
  %7120 = vmatprep.subr.mxu0 0.0
  %7121 = vmatpush1.xpose.msra.mxu0 0.0
  %7122 = vmatprep.subr.mxu0 0.0
  %7123 = vmatpush1.xpose.msra.mxu0 0.0
  %7124 = vmatprep.subr.mxu0 0.0
  %7125 = vmatpush1.xpose.msra.mxu0 0.0
  %7126 = vmatprep.subr.mxu0 0.0
  %7127 = vmatpush1.xpose.msra.mxu0 0.0
  %7128 = vmatprep.subr.mxu0 0.0
  %7129 = vmatpush1.xpose.msra.mxu0 0.0
  %7130 = vmatprep.subr.mxu0 0.0
  %7131 = vmatpush1.xpose.msra.mxu0 0.0
  %7132 = vmatprep.subr.mxu0 0.0
  %7133 = vmatpush1.xpose.msra.mxu0 0.0
  %7134 = vmatprep.subr.mxu0 0.0
  %7135 = vmatpush1.xpose.msra.mxu0 0.0
  %7136 = vmatprep.subr.mxu0 0.0
  %7137 = vmatpush1.xpose.msra.mxu0 0.0
  %7138 = vmatprep.subr.mxu0 0.0
  %7139 = vmatpush1.xpose.msra.mxu0 0.0
  %7140 = vmatprep.subr.mxu0 0.0
  %7141 = vmatpush1.xpose.msra.mxu0 0.0
  %7142 = vmatprep.subr.mxu0 0.0
  %7143 = vmatpush1.xpose.msra.mxu0 0.0
  %7144 = vmatprep.subr.mxu0 0.0
  %7145 = vmatpush1.xpose.msra.mxu0 0.0
  %7146 = vmatprep.subr.mxu0 0.0
  %7147 = vmatpush1.xpose.msra.mxu0 0.0
  %7148 = vmatprep.subr.mxu0 0.0
  %7149 = vmatpush1.xpose.msra.mxu0 0.0
  %7150 = vmatprep.subr.mxu0 0.0
  %7151 = vmatpush1.xpose.msra.mxu0 0.0
  %7152 = vmatprep.subr.mxu0 0.0
  %7153 = vmatpush1.xpose.msra.mxu0 0.0
  %7154 = vmatprep.subr.mxu0 0.0
  %7155 = vmatpush1.xpose.msra.mxu0 0.0
  %7156 = vmatprep.subr.mxu0 0.0
  %7157 = vmatpush1.xpose.msra.mxu0 0.0
  %7158 = vmatprep.subr.mxu0 0.0
  %7159 = vmatpush1.xpose.msra.mxu0 0.0
  %7160 = vmatprep.subr.mxu0 0.0
  %7161 = vmatpush1.xpose.msra.mxu0 0.0
  %7162 = vmatprep.subr.mxu0 0.0
  %7163 = vmatpush1.xpose.msra.mxu0 0.0
  %7164 = vmatprep.subr.mxu0 0.0
  %7165 = vmatpush1.xpose.msra.mxu0 0.0
  %7166 = vmatprep.subr.mxu0 0.0
  %7167 = vmatpush1.xpose.msra.mxu0 0.0
  %7168 = vmatprep.subr.mxu0 0.0
  %7169 = vmatpush1.xpose.msra.mxu0 0.0
  %7170 = vmatprep.subr.mxu0 0.0
  %7171 = vmatpush1.xpose.msra.mxu0 0.0
  %7172 = vmatprep.subr.mxu0 0.0
  %7173 = vmatpush1.xpose.msra.mxu0 0.0
  %7174 = vmatprep.subr.mxu0 0.0
  %7175 = vmatpush1.xpose.msra.mxu0 0.0
  %7176 = vmatprep.subr.mxu0 0.0
  %7177 = vmatpush1.xpose.msra.mxu0 0.0
  %7178 = vmatprep.mubr.f32.mxu0 0.0
  %7179 = vmatmul.mubr.f32.gmra.mrb[0].mxu0 %v7104
  %v7180 = vpop.f32.mrb[0].mxu0
  %v7181 = vadd.f32 0.0, %v7180
  %v7182 = vpop.f32.mrb[0].mxu0
  %7183 = vmatprep.mubr.f32.mxu0 0.0
  %7184 = vmatmul.mubr.f32.gmra.mrb[0].mxu0 %v7106
  %v7185 = vpop.f32.mrb[0].mxu0
  %v7186 = vadd.f32 0.0, %v7185
  %v7187 = vpop.f32.mrb[0].mxu0
  %7188 = vdwg.mxu0
  %7189 = vrot.lane.b32.xlu0 %v6569, 120
  %v7190 = vpop.permute.xlu0 %7189
  %7191 = vrot.lane.b32.xlu0 %v6574, 120
  %v7192 = vpop.permute.xlu0 %7191
  %7193 = vrot.lane.b32.xlu0 %v6668, 120
  %v7194 = vpop.permute.xlu0 %7193
  %7195 = vrot.lane.b32.xlu0 %v6673, 120
  %v7196 = vpop.permute.xlu0 %7195
  %7197 = vrot.lane.b32.xlu0 %v6678, 120
  %v7198 = vpop.permute.xlu0 %7197
  %v7199 = vsel %vm169, %v7190, 0
  %v7201 = vsel %vm169, %v7192, 0
  %v7203 = vsel %vm169, %v7194, 0
  %v7205 = vsel %vm169, %v7196, 0
  %v7207 = vsel %vm169, %v7198, 0
  %7209 = vmatprep.subr.mxu0 0.0
  %7210 = vmatpush1.xpose.msra.mxu0 %v7203
  %7211 = vmatprep.subr.mxu0 0.0
  %7212 = vmatpush1.xpose.msra.mxu0 %v7205
  %7213 = vmatprep.subr.mxu0 0.0
  %7214 = vmatpush1.xpose.msra.mxu0 %v7207
  %7215 = vmatprep.subr.mxu0 0.0
  %7216 = vmatpush1.xpose.msra.mxu0 0.0
  %7217 = vmatprep.subr.mxu0 0.0
  %7218 = vmatpush1.xpose.msra.mxu0 0.0
  %7219 = vmatprep.subr.mxu0 0.0
  %7220 = vmatpush1.xpose.msra.mxu0 0.0
  %7221 = vmatprep.subr.mxu0 0.0
  %7222 = vmatpush1.xpose.msra.mxu0 0.0
  %7223 = vmatprep.subr.mxu0 0.0
  %7224 = vmatpush1.xpose.msra.mxu0 0.0
  %7225 = vmatprep.subr.mxu0 0.0
  %7226 = vmatpush1.xpose.msra.mxu0 0.0
  %7227 = vmatprep.subr.mxu0 0.0
  %7228 = vmatpush1.xpose.msra.mxu0 0.0
  %7229 = vmatprep.subr.mxu0 0.0
  %7230 = vmatpush1.xpose.msra.mxu0 0.0
  %7231 = vmatprep.subr.mxu0 0.0
  %7232 = vmatpush1.xpose.msra.mxu0 0.0
  %7233 = vmatprep.subr.mxu0 0.0
  %7234 = vmatpush1.xpose.msra.mxu0 0.0
  %7235 = vmatprep.subr.mxu0 0.0
  %7236 = vmatpush1.xpose.msra.mxu0 0.0
  %7237 = vmatprep.subr.mxu0 0.0
  %7238 = vmatpush1.xpose.msra.mxu0 0.0
  %7239 = vmatprep.subr.mxu0 0.0
  %7240 = vmatpush1.xpose.msra.mxu0 0.0
  %7241 = vmatprep.subr.mxu0 0.0
  %7242 = vmatpush1.xpose.msra.mxu0 0.0
  %7243 = vmatprep.subr.mxu0 0.0
  %7244 = vmatpush1.xpose.msra.mxu0 0.0
  %7245 = vmatprep.subr.mxu0 0.0
  %7246 = vmatpush1.xpose.msra.mxu0 0.0
  %7247 = vmatprep.subr.mxu0 0.0
  %7248 = vmatpush1.xpose.msra.mxu0 0.0
  %7249 = vmatprep.subr.mxu0 0.0
  %7250 = vmatpush1.xpose.msra.mxu0 0.0
  %7251 = vmatprep.subr.mxu0 0.0
  %7252 = vmatpush1.xpose.msra.mxu0 0.0
  %7253 = vmatprep.subr.mxu0 0.0
  %7254 = vmatpush1.xpose.msra.mxu0 0.0
  %7255 = vmatprep.subr.mxu0 0.0
  %7256 = vmatpush1.xpose.msra.mxu0 0.0
  %7257 = vmatprep.subr.mxu0 0.0
  %7258 = vmatpush1.xpose.msra.mxu0 0.0
  %7259 = vmatprep.subr.mxu0 0.0
  %7260 = vmatpush1.xpose.msra.mxu0 0.0
  %7261 = vmatprep.subr.mxu0 0.0
  %7262 = vmatpush1.xpose.msra.mxu0 0.0
  %7263 = vmatprep.subr.mxu0 0.0
  %7264 = vmatpush1.xpose.msra.mxu0 0.0
  %7265 = vmatprep.subr.mxu0 0.0
  %7266 = vmatpush1.xpose.msra.mxu0 0.0
  %7267 = vmatprep.subr.mxu0 0.0
  %7268 = vmatpush1.xpose.msra.mxu0 0.0
  %7269 = vmatprep.subr.mxu0 0.0
  %7270 = vmatpush1.xpose.msra.mxu0 0.0
  %7271 = vmatprep.subr.mxu0 0.0
  %7272 = vmatpush1.xpose.msra.mxu0 0.0
  %7273 = vmatprep.mubr.f32.mxu0 0.0
  %7274 = vmatmul.mubr.f32.gmra.mrb[0].mxu0 %v7199
  %v7275 = vpop.f32.mrb[0].mxu0
  %v7276 = vadd.f32 0.0, %v7275
  %v7277 = vpop.f32.mrb[0].mxu0
  %7278 = vmatprep.mubr.f32.mxu0 0.0
  %7279 = vmatmul.mubr.f32.gmra.mrb[0].mxu0 %v7201
  %v7280 = vpop.f32.mrb[0].mxu0
  %v7281 = vadd.f32 0.0, %v7280
  %v7282 = vpop.f32.mrb[0].mxu0
  %7283 = vdwg.mxu0
  %v7284 = vsel %vm2427, %v7181, -inf
  %7285 = vmax.xlane.f32.xlu0 %v7284
  %v7286 = vpop.xlane.xlu0 %7285
  %v7287 = vsel %vm2427, %v7186, -inf
  %7288 = vmax.xlane.f32.xlu0 %v7287
  %v7289 = vpop.xlane.xlu0 %7288
  %v7290 = vsel %vm2427, %v7276, -inf
  %7291 = vmax.xlane.f32.xlu0 %v7290
  %v7292 = vpop.xlane.xlu0 %7291
  %v7293 = vsel %vm2427, %v7281, -inf
  %7294 = vmax.xlane.f32.xlu0 %v7293
  %v7295 = vpop.xlane.xlu0 %7294
  %v7296 = vsub.f32 %v7181, %v7286
  %v7297 = vsub.f32 %v7186, %v7289
  %v7298 = vsub.f32 %v7276, %v7292
  %v7299 = vsub.f32 %v7281, %v7295
  %v7300 = vmul.f32 %v7296, 1.442695
  %v7301 = vpow.pop %v7300
  %v7302 = vmul.f32 %v7297, 1.442695
  %v7303 = vpow.pop %v7302
  %v7304 = vmul.f32 %v7298, 1.442695
  %v7305 = vpow.pop %v7304
  %v7306 = vmul.f32 %v7299, 1.442695
  %v7307 = vpow.pop %v7306
  %v7308 = vsel %vm2427, %v7301, 0.0
  %7309 = vadd.xlane.f32.xlu0 %v7308
  %v7310 = vpop.xlane.xlu0 %7309
  %v7311 = vsel %vm2427, %v7303, 0.0
  %7312 = vadd.xlane.f32.xlu0 %v7311
  %v7313 = vpop.xlane.xlu0 %7312
  %v7314 = vsel %vm2427, %v7305, 0.0
  %7315 = vadd.xlane.f32.xlu0 %v7314
  %v7316 = vpop.xlane.xlu0 %7315
  %v7317 = vsel %vm2427, %v7307, 0.0
  %7318 = vadd.xlane.f32.xlu0 %v7317
  %v7319 = vpop.xlane.xlu0 %7318
  %v7320 = vrcp.pop %v7310
  %v7321 = vrcp.pop %v7313
  %v7322 = vrcp.pop %v7316
  %v7323 = vrcp.pop %v7319
  %v7324 = vmul.f32 %v7301, %v7320
  %v7325 = vmul.f32 %v7303, %v7321
  %v7326 = vmul.f32 %v7305, %v7322
  %v7327 = vmul.f32 %v7307, %v7323
  %7328 = vrot.lane.b32.xlu0 %v6653, 88
  %v7329 = vpop.permute.xlu0 %7328
  %7330 = vrot.lane.b32.xlu0 %v6658, 88
  %v7331 = vpop.permute.xlu0 %7330
  %7332 = vrot.lane.b32.xlu0 %v6663, 88
  %v7333 = vpop.permute.xlu0 %7332
  %v7338 = vsel %vm2427, %v7324, 0
  %v7341 = vsel %vm2427, %v7325, 0
  %7343 = vmatprep.subr.mxu0 0.0
  %7344 = vmatpush1.msra.mxu0 %v7329
  %7345 = vmatprep.subr.mxu0 0.0
  %7346 = vmatpush1.msra.mxu0 %v7331
  %7347 = vmatprep.subr.mxu0 0.0
  %7348 = vmatpush1.msra.mxu0 %v7333
  %7349 = vmatprep.subr.mxu0 0.0
  %7350 = vmatpush1.msra.mxu0 0.0
  %7351 = vmatprep.subr.mxu0 0.0
  %7352 = vmatpush1.msra.mxu0 0.0
  %7353 = vmatprep.subr.mxu0 0.0
  %7354 = vmatpush1.msra.mxu0 0.0
  %7355 = vmatprep.subr.mxu0 0.0
  %7356 = vmatpush1.msra.mxu0 0.0
  %7357 = vmatprep.subr.mxu0 0.0
  %7358 = vmatpush1.msra.mxu0 0.0
  %7359 = vmatprep.subr.mxu0 0.0
  %7360 = vmatpush1.msra.mxu0 0.0
  %7361 = vmatprep.subr.mxu0 0.0
  %7362 = vmatpush1.msra.mxu0 0.0
  %7363 = vmatprep.subr.mxu0 0.0
  %7364 = vmatpush1.msra.mxu0 0.0
  %7365 = vmatprep.subr.mxu0 0.0
  %7366 = vmatpush1.msra.mxu0 0.0
  %7367 = vmatprep.subr.mxu0 0.0
  %7368 = vmatpush1.msra.mxu0 0.0
  %7369 = vmatprep.subr.mxu0 0.0
  %7370 = vmatpush1.msra.mxu0 0.0
  %7371 = vmatprep.subr.mxu0 0.0
  %7372 = vmatpush1.msra.mxu0 0.0
  %7373 = vmatprep.subr.mxu0 0.0
  %7374 = vmatpush1.msra.mxu0 0.0
  %7375 = vmatprep.subr.mxu0 0.0
  %7376 = vmatpush1.msra.mxu0 0.0
  %7377 = vmatprep.subr.mxu0 0.0
  %7378 = vmatpush1.msra.mxu0 0.0
  %7379 = vmatprep.subr.mxu0 0.0
  %7380 = vmatpush1.msra.mxu0 0.0
  %7381 = vmatprep.subr.mxu0 0.0
  %7382 = vmatpush1.msra.mxu0 0.0
  %7383 = vmatprep.subr.mxu0 0.0
  %7384 = vmatpush1.msra.mxu0 0.0
  %7385 = vmatprep.subr.mxu0 0.0
  %7386 = vmatpush1.msra.mxu0 0.0
  %7387 = vmatprep.subr.mxu0 0.0
  %7388 = vmatpush1.msra.mxu0 0.0
  %7389 = vmatprep.subr.mxu0 0.0
  %7390 = vmatpush1.msra.mxu0 0.0
  %7391 = vmatprep.subr.mxu0 0.0
  %7392 = vmatpush1.msra.mxu0 0.0
  %7393 = vmatprep.subr.mxu0 0.0
  %7394 = vmatpush1.msra.mxu0 0.0
  %7395 = vmatprep.subr.mxu0 0.0
  %7396 = vmatpush1.msra.mxu0 0.0
  %7397 = vmatprep.subr.mxu0 0.0
  %7398 = vmatpush1.msra.mxu0 0.0
  %7399 = vmatprep.subr.mxu0 0.0
  %7400 = vmatpush1.msra.mxu0 0.0
  %7401 = vmatprep.subr.mxu0 0.0
  %7402 = vmatpush1.msra.mxu0 0.0
  %7403 = vmatprep.subr.mxu0 0.0
  %7404 = vmatpush1.msra.mxu0 0.0
  %7405 = vmatprep.subr.mxu0 0.0
  %7406 = vmatpush1.msra.mxu0 0.0
  %7407 = vmatprep.mubr.f32.mxu0 0.0
  %7408 = vmatmul.mubr.f32.gmra.mrb[0].mxu0 %v7338
  %v7409 = vpop.f32.mrb[0].mxu0
  %v7410 = vadd.f32 0.0, %v7409
  %v7411 = vpop.f32.mrb[0].mxu0
  %7412 = vmatprep.mubr.f32.mxu0 0.0
  %7413 = vmatmul.mubr.f32.gmra.mrb[0].mxu0 %v7341
  %v7414 = vpop.f32.mrb[0].mxu0
  %v7415 = vadd.f32 0.0, %v7414
  %v7416 = vpop.f32.mrb[0].mxu0
  %7417 = vdwg.mxu0
  %7418 = vrot.lane.b32.xlu0 %v6668, 88
  %v7419 = vpop.permute.xlu0 %7418
  %7420 = vrot.lane.b32.xlu0 %v6673, 88
  %v7421 = vpop.permute.xlu0 %7420
  %7422 = vrot.lane.b32.xlu0 %v6678, 88
  %v7423 = vpop.permute.xlu0 %7422
  %v7428 = vsel %vm2427, %v7326, 0
  %v7431 = vsel %vm2427, %v7327, 0
  %7433 = vmatprep.subr.mxu0 0.0
  %7434 = vmatpush1.msra.mxu0 %v7419
  %7435 = vmatprep.subr.mxu0 0.0
  %7436 = vmatpush1.msra.mxu0 %v7421
  %7437 = vmatprep.subr.mxu0 0.0
  %7438 = vmatpush1.msra.mxu0 %v7423
  %7439 = vmatprep.subr.mxu0 0.0
  %7440 = vmatpush1.msra.mxu0 0.0
  %7441 = vmatprep.subr.mxu0 0.0
  %7442 = vmatpush1.msra.mxu0 0.0
  %7443 = vmatprep.subr.mxu0 0.0
  %7444 = vmatpush1.msra.mxu0 0.0
  %7445 = vmatprep.subr.mxu0 0.0
  %7446 = vmatpush1.msra.mxu0 0.0
  %7447 = vmatprep.subr.mxu0 0.0
  %7448 = vmatpush1.msra.mxu0 0.0
  %7449 = vmatprep.subr.mxu0 0.0
  %7450 = vmatpush1.msra.mxu0 0.0
  %7451 = vmatprep.subr.mxu0 0.0
  %7452 = vmatpush1.msra.mxu0 0.0
  %7453 = vmatprep.subr.mxu0 0.0
  %7454 = vmatpush1.msra.mxu0 0.0
  %7455 = vmatprep.subr.mxu0 0.0
  %7456 = vmatpush1.msra.mxu0 0.0
  %7457 = vmatprep.subr.mxu0 0.0
  %7458 = vmatpush1.msra.mxu0 0.0
  %7459 = vmatprep.subr.mxu0 0.0
  %7460 = vmatpush1.msra.mxu0 0.0
  %7461 = vmatprep.subr.mxu0 0.0
  %7462 = vmatpush1.msra.mxu0 0.0
  %7463 = vmatprep.subr.mxu0 0.0
  %7464 = vmatpush1.msra.mxu0 0.0
  %7465 = vmatprep.subr.mxu0 0.0
  %7466 = vmatpush1.msra.mxu0 0.0
  %7467 = vmatprep.subr.mxu0 0.0
  %7468 = vmatpush1.msra.mxu0 0.0
  %7469 = vmatprep.subr.mxu0 0.0
  %7470 = vmatpush1.msra.mxu0 0.0
  %7471 = vmatprep.subr.mxu0 0.0
  %7472 = vmatpush1.msra.mxu0 0.0
  %7473 = vmatprep.subr.mxu0 0.0
  %7474 = vmatpush1.msra.mxu0 0.0
  %7475 = vmatprep.subr.mxu0 0.0
  %7476 = vmatpush1.msra.mxu0 0.0
  %7477 = vmatprep.subr.mxu0 0.0
  %7478 = vmatpush1.msra.mxu0 0.0
  %7479 = vmatprep.subr.mxu0 0.0
  %7480 = vmatpush1.msra.mxu0 0.0
  %7481 = vmatprep.subr.mxu0 0.0
  %7482 = vmatpush1.msra.mxu0 0.0
  %7483 = vmatprep.subr.mxu0 0.0
  %7484 = vmatpush1.msra.mxu0 0.0
  %7485 = vmatprep.subr.mxu0 0.0
  %7486 = vmatpush1.msra.mxu0 0.0
  %7487 = vmatprep.subr.mxu0 0.0
  %7488 = vmatpush1.msra.mxu0 0.0
  %7489 = vmatprep.subr.mxu0 0.0
  %7490 = vmatpush1.msra.mxu0 0.0
  %7491 = vmatprep.subr.mxu0 0.0
  %7492 = vmatpush1.msra.mxu0 0.0
  %7493 = vmatprep.subr.mxu0 0.0
  %7494 = vmatpush1.msra.mxu0 0.0
  %7495 = vmatprep.subr.mxu0 0.0
  %7496 = vmatpush1.msra.mxu0 0.0
  %7497 = vmatprep.mubr.f32.mxu0 0.0
  %7498 = vmatmul.mubr.f32.gmra.mrb[0].mxu0 %v7428
  %v7499 = vpop.f32.mrb[0].mxu0
  %v7500 = vadd.f32 0.0, %v7499
  %v7501 = vpop.f32.mrb[0].mxu0
  %7502 = vmatprep.mubr.f32.mxu0 0.0
  %7503 = vmatmul.mubr.f32.gmra.mrb[0].mxu0 %v7431
  %v7504 = vpop.f32.mrb[0].mxu0
  %v7505 = vadd.f32 0.0, %v7504
  %v7506 = vpop.f32.mrb[0].mxu0
  %7507 = vdwg.mxu0
  %7512 = vrot.lane.b32.xlu0 %v7410, 8
  %v7513 = vpop.permute.xlu0 %7512
  %7514 = vrot.lane.b32.xlu0 %v7415, 8
  %v7515 = vpop.permute.xlu0 %7514
  %7516 = vrot.lane.b32.xlu0 %v7500, 8
  %v7517 = vpop.permute.xlu0 %7516
  %7518 = vrot.lane.b32.xlu0 %v7505, 8
  %v7519 = vpop.permute.xlu0 %7518
  %7524 = vst.msk [vmem:[#allocation2] sm:$0xff] %vm981, %v7513
  %7525 = vst.msk [vmem:[#allocation2 + $0x8] sm:$0xff] %vm981, %v7515
  %7526 = vst.msk [vmem:[#allocation2 + $0x10] sm:$0xff] %vm981, %v7517
  %7527 = vst.msk [vmem:[#allocation2 + $0x18] sm:$0xff] %vm981, %v7519
  %7528 = vrot.lane.b32.xlu0 %v6559, 112
  %v7529 = vpop.permute.xlu0 %7528
  %7530 = vrot.lane.b32.xlu0 %v6564, 112
  %v7531 = vpop.permute.xlu0 %7530
  %7532 = vrot.lane.b32.xlu0 %v6653, 112
  %v7533 = vpop.permute.xlu0 %7532
  %7534 = vrot.lane.b32.xlu0 %v6658, 112
  %v7535 = vpop.permute.xlu0 %7534
  %7536 = vrot.lane.b32.xlu0 %v6663, 112
  %v7537 = vpop.permute.xlu0 %7536
  %v7538 = vsel %vm169, %v7529, 0
  %v7540 = vsel %vm169, %v7531, 0
  %v7542 = vsel %vm169, %v7533, 0
  %v7544 = vsel %vm169, %v7535, 0
  %v7546 = vsel %vm169, %v7537, 0
  %7548 = vmatprep.subr.mxu0 0.0
  %7549 = vmatpush1.xpose.msra.mxu0 %v7542
  %7550 = vmatprep.subr.mxu0 0.0
  %7551 = vmatpush1.xpose.msra.mxu0 %v7544
  %7552 = vmatprep.subr.mxu0 0.0
  %7553 = vmatpush1.xpose.msra.mxu0 %v7546
  %7554 = vmatprep.subr.mxu0 0.0
  %7555 = vmatpush1.xpose.msra.mxu0 0.0
  %7556 = vmatprep.subr.mxu0 0.0
  %7557 = vmatpush1.xpose.msra.mxu0 0.0
  %7558 = vmatprep.subr.mxu0 0.0
  %7559 = vmatpush1.xpose.msra.mxu0 0.0
  %7560 = vmatprep.subr.mxu0 0.0
  %7561 = vmatpush1.xpose.msra.mxu0 0.0
  %7562 = vmatprep.subr.mxu0 0.0
  %7563 = vmatpush1.xpose.msra.mxu0 0.0
  %7564 = vmatprep.subr.mxu0 0.0
  %7565 = vmatpush1.xpose.msra.mxu0 0.0
  %7566 = vmatprep.subr.mxu0 0.0
  %7567 = vmatpush1.xpose.msra.mxu0 0.0
  %7568 = vmatprep.subr.mxu0 0.0
  %7569 = vmatpush1.xpose.msra.mxu0 0.0
  %7570 = vmatprep.subr.mxu0 0.0
  %7571 = vmatpush1.xpose.msra.mxu0 0.0
  %7572 = vmatprep.subr.mxu0 0.0
  %7573 = vmatpush1.xpose.msra.mxu0 0.0
  %7574 = vmatprep.subr.mxu0 0.0
  %7575 = vmatpush1.xpose.msra.mxu0 0.0
  %7576 = vmatprep.subr.mxu0 0.0
  %7577 = vmatpush1.xpose.msra.mxu0 0.0
  %7578 = vmatprep.subr.mxu0 0.0
  %7579 = vmatpush1.xpose.msra.mxu0 0.0
  %7580 = vmatprep.subr.mxu0 0.0
  %7581 = vmatpush1.xpose.msra.mxu0 0.0
  %7582 = vmatprep.subr.mxu0 0.0
  %7583 = vmatpush1.xpose.msra.mxu0 0.0
  %7584 = vmatprep.subr.mxu0 0.0
  %7585 = vmatpush1.xpose.msra.mxu0 0.0
  %7586 = vmatprep.subr.mxu0 0.0
  %7587 = vmatpush1.xpose.msra.mxu0 0.0
  %7588 = vmatprep.subr.mxu0 0.0
  %7589 = vmatpush1.xpose.msra.mxu0 0.0
  %7590 = vmatprep.subr.mxu0 0.0
  %7591 = vmatpush1.xpose.msra.mxu0 0.0
  %7592 = vmatprep.subr.mxu0 0.0
  %7593 = vmatpush1.xpose.msra.mxu0 0.0
  %7594 = vmatprep.subr.mxu0 0.0
  %7595 = vmatpush1.xpose.msra.mxu0 0.0
  %7596 = vmatprep.subr.mxu0 0.0
  %7597 = vmatpush1.xpose.msra.mxu0 0.0
  %7598 = vmatprep.subr.mxu0 0.0
  %7599 = vmatpush1.xpose.msra.mxu0 0.0
  %7600 = vmatprep.subr.mxu0 0.0
  %7601 = vmatpush1.xpose.msra.mxu0 0.0
  %7602 = vmatprep.subr.mxu0 0.0
  %7603 = vmatpush1.xpose.msra.mxu0 0.0
  %7604 = vmatprep.subr.mxu0 0.0
  %7605 = vmatpush1.xpose.msra.mxu0 0.0
  %7606 = vmatprep.subr.mxu0 0.0
  %7607 = vmatpush1.xpose.msra.mxu0 0.0
  %7608 = vmatprep.subr.mxu0 0.0
  %7609 = vmatpush1.xpose.msra.mxu0 0.0
  %7610 = vmatprep.subr.mxu0 0.0
  %7611 = vmatpush1.xpose.msra.mxu0 0.0
  %7612 = vmatprep.mubr.f32.mxu0 0.0
  %7613 = vmatmul.mubr.f32.gmra.mrb[0].mxu0 %v7538
  %v7614 = vpop.f32.mrb[0].mxu0
  %v7615 = vadd.f32 0.0, %v7614
  %v7616 = vpop.f32.mrb[0].mxu0
  %7617 = vmatprep.mubr.f32.mxu0 0.0
  %7618 = vmatmul.mubr.f32.gmra.mrb[0].mxu0 %v7540
  %v7619 = vpop.f32.mrb[0].mxu0
  %v7620 = vadd.f32 0.0, %v7619
  %v7621 = vpop.f32.mrb[0].mxu0
  %7622 = vdwg.mxu0
  %7623 = vrot.lane.b32.xlu0 %v6569, 112
  %v7624 = vpop.permute.xlu0 %7623
  %7625 = vrot.lane.b32.xlu0 %v6574, 112
  %v7626 = vpop.permute.xlu0 %7625
  %7627 = vrot.lane.b32.xlu0 %v6668, 112
  %v7628 = vpop.permute.xlu0 %7627
  %7629 = vrot.lane.b32.xlu0 %v6673, 112
  %v7630 = vpop.permute.xlu0 %7629
  %7631 = vrot.lane.b32.xlu0 %v6678, 112
  %v7632 = vpop.permute.xlu0 %7631
  %v7633 = vsel %vm169, %v7624, 0
  %v7635 = vsel %vm169, %v7626, 0
  %v7637 = vsel %vm169, %v7628, 0
  %v7639 = vsel %vm169, %v7630, 0
  %v7641 = vsel %vm169, %v7632, 0
  %7643 = vmatprep.subr.mxu0 0.0
  %7644 = vmatpush1.xpose.msra.mxu0 %v7637
  %7645 = vmatprep.subr.mxu0 0.0
  %7646 = vmatpush1.xpose.msra.mxu0 %v7639
  %7647 = vmatprep.subr.mxu0 0.0
  %7648 = vmatpush1.xpose.msra.mxu0 %v7641
  %7649 = vmatprep.subr.mxu0 0.0
  %7650 = vmatpush1.xpose.msra.mxu0 0.0
  %7651 = vmatprep.subr.mxu0 0.0
  %7652 = vmatpush1.xpose.msra.mxu0 0.0
  %7653 = vmatprep.subr.mxu0 0.0
  %7654 = vmatpush1.xpose.msra.mxu0 0.0
  %7655 = vmatprep.subr.mxu0 0.0
  %7656 = vmatpush1.xpose.msra.mxu0 0.0
  %7657 = vmatprep.subr.mxu0 0.0
  %7658 = vmatpush1.xpose.msra.mxu0 0.0
  %7659 = vmatprep.subr.mxu0 0.0
  %7660 = vmatpush1.xpose.msra.mxu0 0.0
  %7661 = vmatprep.subr.mxu0 0.0
  %7662 = vmatpush1.xpose.msra.mxu0 0.0
  %7663 = vmatprep.subr.mxu0 0.0
  %7664 = vmatpush1.xpose.msra.mxu0 0.0
  %7665 = vmatprep.subr.mxu0 0.0
  %7666 = vmatpush1.xpose.msra.mxu0 0.0
  %7667 = vmatprep.subr.mxu0 0.0
  %7668 = vmatpush1.xpose.msra.mxu0 0.0
  %7669 = vmatprep.subr.mxu0 0.0
  %7670 = vmatpush1.xpose.msra.mxu0 0.0
  %7671 = vmatprep.subr.mxu0 0.0
  %7672 = vmatpush1.xpose.msra.mxu0 0.0
  %7673 = vmatprep.subr.mxu0 0.0
  %7674 = vmatpush1.xpose.msra.mxu0 0.0
  %7675 = vmatprep.subr.mxu0 0.0
  %7676 = vmatpush1.xpose.msra.mxu0 0.0
  %7677 = vmatprep.subr.mxu0 0.0
  %7678 = vmatpush1.xpose.msra.mxu0 0.0
  %7679 = vmatprep.subr.mxu0 0.0
  %7680 = vmatpush1.xpose.msra.mxu0 0.0
  %7681 = vmatprep.subr.mxu0 0.0
  %7682 = vmatpush1.xpose.msra.mxu0 0.0
  %7683 = vmatprep.subr.mxu0 0.0
  %7684 = vmatpush1.xpose.msra.mxu0 0.0
  %7685 = vmatprep.subr.mxu0 0.0
  %7686 = vmatpush1.xpose.msra.mxu0 0.0
  %7687 = vmatprep.subr.mxu0 0.0
  %7688 = vmatpush1.xpose.msra.mxu0 0.0
  %7689 = vmatprep.subr.mxu0 0.0
  %7690 = vmatpush1.xpose.msra.mxu0 0.0
  %7691 = vmatprep.subr.mxu0 0.0
  %7692 = vmatpush1.xpose.msra.mxu0 0.0
  %7693 = vmatprep.subr.mxu0 0.0
  %7694 = vmatpush1.xpose.msra.mxu0 0.0
  %7695 = vmatprep.subr.mxu0 0.0
  %7696 = vmatpush1.xpose.msra.mxu0 0.0
  %7697 = vmatprep.subr.mxu0 0.0
  %7698 = vmatpush1.xpose.msra.mxu0 0.0
  %7699 = vmatprep.subr.mxu0 0.0
  %7700 = vmatpush1.xpose.msra.mxu0 0.0
  %7701 = vmatprep.subr.mxu0 0.0
  %7702 = vmatpush1.xpose.msra.mxu0 0.0
  %7703 = vmatprep.subr.mxu0 0.0
  %7704 = vmatpush1.xpose.msra.mxu0 0.0
  %7705 = vmatprep.subr.mxu0 0.0
  %7706 = vmatpush1.xpose.msra.mxu0 0.0
  %7707 = vmatprep.mubr.f32.mxu0 0.0
  %7708 = vmatmul.mubr.f32.gmra.mrb[0].mxu0 %v7633
  %v7709 = vpop.f32.mrb[0].mxu0
  %v7710 = vadd.f32 0.0, %v7709
  %v7711 = vpop.f32.mrb[0].mxu0
  %7712 = vmatprep.mubr.f32.mxu0 0.0
  %7713 = vmatmul.mubr.f32.gmra.mrb[0].mxu0 %v7635
  %v7714 = vpop.f32.mrb[0].mxu0
  %v7715 = vadd.f32 0.0, %v7714
  %v7716 = vpop.f32.mrb[0].mxu0
  %7717 = vdwg.mxu0
  %v7718 = vsel %vm2427, %v7615, -inf
  %7719 = vmax.xlane.f32.xlu0 %v7718
  %v7720 = vpop.xlane.xlu0 %7719
  %v7721 = vsel %vm2427, %v7620, -inf
  %7722 = vmax.xlane.f32.xlu0 %v7721
  %v7723 = vpop.xlane.xlu0 %7722
  %v7724 = vsel %vm2427, %v7710, -inf
  %7725 = vmax.xlane.f32.xlu0 %v7724
  %v7726 = vpop.xlane.xlu0 %7725
  %v7727 = vsel %vm2427, %v7715, -inf
  %7728 = vmax.xlane.f32.xlu0 %v7727
  %v7729 = vpop.xlane.xlu0 %7728
  %v7730 = vsub.f32 %v7615, %v7720
  %v7731 = vsub.f32 %v7620, %v7723
  %v7732 = vsub.f32 %v7710, %v7726
  %v7733 = vsub.f32 %v7715, %v7729
  %v7734 = vmul.f32 %v7730, 1.442695
  %v7735 = vpow.pop %v7734
  %v7736 = vmul.f32 %v7731, 1.442695
  %v7737 = vpow.pop %v7736
  %v7738 = vmul.f32 %v7732, 1.442695
  %v7739 = vpow.pop %v7738
  %v7740 = vmul.f32 %v7733, 1.442695
  %v7741 = vpow.pop %v7740
  %v7742 = vsel %vm2427, %v7735, 0.0
  %7743 = vadd.xlane.f32.xlu0 %v7742
  %v7744 = vpop.xlane.xlu0 %7743
  %v7745 = vsel %vm2427, %v7737, 0.0
  %7746 = vadd.xlane.f32.xlu0 %v7745
  %v7747 = vpop.xlane.xlu0 %7746
  %v7748 = vsel %vm2427, %v7739, 0.0
  %7749 = vadd.xlane.f32.xlu0 %v7748
  %v7750 = vpop.xlane.xlu0 %7749
  %v7751 = vsel %vm2427, %v7741, 0.0
  %7752 = vadd.xlane.f32.xlu0 %v7751
  %v7753 = vpop.xlane.xlu0 %7752
  %v7754 = vrcp.pop %v7744
  %v7755 = vrcp.pop %v7747
  %v7756 = vrcp.pop %v7750
  %v7757 = vrcp.pop %v7753
  %v7758 = vmul.f32 %v7735, %v7754
  %v7759 = vmul.f32 %v7737, %v7755
  %v7760 = vmul.f32 %v7739, %v7756
  %v7761 = vmul.f32 %v7741, %v7757
  %7762 = vrot.lane.b32.xlu0 %v6653, 80
  %v7763 = vpop.permute.xlu0 %7762
  %7764 = vrot.lane.b32.xlu0 %v6658, 80
  %v7765 = vpop.permute.xlu0 %7764
  %7766 = vrot.lane.b32.xlu0 %v6663, 80
  %v7767 = vpop.permute.xlu0 %7766
  %v7772 = vsel %vm2427, %v7758, 0
  %v7775 = vsel %vm2427, %v7759, 0
  %7777 = vmatprep.subr.mxu0 0.0
  %7778 = vmatpush1.msra.mxu0 %v7763
  %7779 = vmatprep.subr.mxu0 0.0
  %7780 = vmatpush1.msra.mxu0 %v7765
  %7781 = vmatprep.subr.mxu0 0.0
  %7782 = vmatpush1.msra.mxu0 %v7767
  %7783 = vmatprep.subr.mxu0 0.0
  %7784 = vmatpush1.msra.mxu0 0.0
  %7785 = vmatprep.subr.mxu0 0.0
  %7786 = vmatpush1.msra.mxu0 0.0
  %7787 = vmatprep.subr.mxu0 0.0
  %7788 = vmatpush1.msra.mxu0 0.0
  %7789 = vmatprep.subr.mxu0 0.0
  %7790 = vmatpush1.msra.mxu0 0.0
  %7791 = vmatprep.subr.mxu0 0.0
  %7792 = vmatpush1.msra.mxu0 0.0
  %7793 = vmatprep.subr.mxu0 0.0
  %7794 = vmatpush1.msra.mxu0 0.0
  %7795 = vmatprep.subr.mxu0 0.0
  %7796 = vmatpush1.msra.mxu0 0.0
  %7797 = vmatprep.subr.mxu0 0.0
  %7798 = vmatpush1.msra.mxu0 0.0
  %7799 = vmatprep.subr.mxu0 0.0
  %7800 = vmatpush1.msra.mxu0 0.0
  %7801 = vmatprep.subr.mxu0 0.0
  %7802 = vmatpush1.msra.mxu0 0.0
  %7803 = vmatprep.subr.mxu0 0.0
  %7804 = vmatpush1.msra.mxu0 0.0
  %7805 = vmatprep.subr.mxu0 0.0
  %7806 = vmatpush1.msra.mxu0 0.0
  %7807 = vmatprep.subr.mxu0 0.0
  %7808 = vmatpush1.msra.mxu0 0.0
  %7809 = vmatprep.subr.mxu0 0.0
  %7810 = vmatpush1.msra.mxu0 0.0
  %7811 = vmatprep.subr.mxu0 0.0
  %7812 = vmatpush1.msra.mxu0 0.0
  %7813 = vmatprep.subr.mxu0 0.0
  %7814 = vmatpush1.msra.mxu0 0.0
  %7815 = vmatprep.subr.mxu0 0.0
  %7816 = vmatpush1.msra.mxu0 0.0
  %7817 = vmatprep.subr.mxu0 0.0
  %7818 = vmatpush1.msra.mxu0 0.0
  %7819 = vmatprep.subr.mxu0 0.0
  %7820 = vmatpush1.msra.mxu0 0.0
  %7821 = vmatprep.subr.mxu0 0.0
  %7822 = vmatpush1.msra.mxu0 0.0
  %7823 = vmatprep.subr.mxu0 0.0
  %7824 = vmatpush1.msra.mxu0 0.0
  %7825 = vmatprep.subr.mxu0 0.0
  %7826 = vmatpush1.msra.mxu0 0.0
  %7827 = vmatprep.subr.mxu0 0.0
  %7828 = vmatpush1.msra.mxu0 0.0
  %7829 = vmatprep.subr.mxu0 0.0
  %7830 = vmatpush1.msra.mxu0 0.0
  %7831 = vmatprep.subr.mxu0 0.0
  %7832 = vmatpush1.msra.mxu0 0.0
  %7833 = vmatprep.subr.mxu0 0.0
  %7834 = vmatpush1.msra.mxu0 0.0
  %7835 = vmatprep.subr.mxu0 0.0
  %7836 = vmatpush1.msra.mxu0 0.0
  %7837 = vmatprep.subr.mxu0 0.0
  %7838 = vmatpush1.msra.mxu0 0.0
  %7839 = vmatprep.subr.mxu0 0.0
  %7840 = vmatpush1.msra.mxu0 0.0
  %7841 = vmatprep.mubr.f32.mxu0 0.0
  %7842 = vmatmul.mubr.f32.gmra.mrb[0].mxu0 %v7772
  %v7843 = vpop.f32.mrb[0].mxu0
  %v7844 = vadd.f32 0.0, %v7843
  %v7845 = vpop.f32.mrb[0].mxu0
  %7846 = vmatprep.mubr.f32.mxu0 0.0
  %7847 = vmatmul.mubr.f32.gmra.mrb[0].mxu0 %v7775
  %v7848 = vpop.f32.mrb[0].mxu0
  %v7849 = vadd.f32 0.0, %v7848
  %v7850 = vpop.f32.mrb[0].mxu0
  %7851 = vdwg.mxu0
  %7852 = vrot.lane.b32.xlu0 %v6668, 80
  %v7853 = vpop.permute.xlu0 %7852
  %7854 = vrot.lane.b32.xlu0 %v6673, 80
  %v7855 = vpop.permute.xlu0 %7854
  %7856 = vrot.lane.b32.xlu0 %v6678, 80
  %v7857 = vpop.permute.xlu0 %7856
  %v7862 = vsel %vm2427, %v7760, 0
  %v7865 = vsel %vm2427, %v7761, 0
  %7867 = vmatprep.subr.mxu0 0.0
  %7868 = vmatpush1.msra.mxu0 %v7853
  %7869 = vmatprep.subr.mxu0 0.0
  %7870 = vmatpush1.msra.mxu0 %v7855
  %7871 = vmatprep.subr.mxu0 0.0
  %7872 = vmatpush1.msra.mxu0 %v7857
  %7873 = vmatprep.subr.mxu0 0.0
  %7874 = vmatpush1.msra.mxu0 0.0
  %7875 = vmatprep.subr.mxu0 0.0
  %7876 = vmatpush1.msra.mxu0 0.0
  %7877 = vmatprep.subr.mxu0 0.0
  %7878 = vmatpush1.msra.mxu0 0.0
  %7879 = vmatprep.subr.mxu0 0.0
  %7880 = vmatpush1.msra.mxu0 0.0
  %7881 = vmatprep.subr.mxu0 0.0
  %7882 = vmatpush1.msra.mxu0 0.0
  %7883 = vmatprep.subr.mxu0 0.0
  %7884 = vmatpush1.msra.mxu0 0.0
  %7885 = vmatprep.subr.mxu0 0.0
  %7886 = vmatpush1.msra.mxu0 0.0
  %7887 = vmatprep.subr.mxu0 0.0
  %7888 = vmatpush1.msra.mxu0 0.0
  %7889 = vmatprep.subr.mxu0 0.0
  %7890 = vmatpush1.msra.mxu0 0.0
  %7891 = vmatprep.subr.mxu0 0.0
  %7892 = vmatpush1.msra.mxu0 0.0
  %7893 = vmatprep.subr.mxu0 0.0
  %7894 = vmatpush1.msra.mxu0 0.0
  %7895 = vmatprep.subr.mxu0 0.0
  %7896 = vmatpush1.msra.mxu0 0.0
  %7897 = vmatprep.subr.mxu0 0.0
  %7898 = vmatpush1.msra.mxu0 0.0
  %7899 = vmatprep.subr.mxu0 0.0
  %7900 = vmatpush1.msra.mxu0 0.0
  %7901 = vmatprep.subr.mxu0 0.0
  %7902 = vmatpush1.msra.mxu0 0.0
  %7903 = vmatprep.subr.mxu0 0.0
  %7904 = vmatpush1.msra.mxu0 0.0
  %7905 = vmatprep.subr.mxu0 0.0
  %7906 = vmatpush1.msra.mxu0 0.0
  %7907 = vmatprep.subr.mxu0 0.0
  %7908 = vmatpush1.msra.mxu0 0.0
  %7909 = vmatprep.subr.mxu0 0.0
  %7910 = vmatpush1.msra.mxu0 0.0
  %7911 = vmatprep.subr.mxu0 0.0
  %7912 = vmatpush1.msra.mxu0 0.0
  %7913 = vmatprep.subr.mxu0 0.0
  %7914 = vmatpush1.msra.mxu0 0.0
  %7915 = vmatprep.subr.mxu0 0.0
  %7916 = vmatpush1.msra.mxu0 0.0
  %7917 = vmatprep.subr.mxu0 0.0
  %7918 = vmatpush1.msra.mxu0 0.0
  %7919 = vmatprep.subr.mxu0 0.0
  %7920 = vmatpush1.msra.mxu0 0.0
  %7921 = vmatprep.subr.mxu0 0.0
  %7922 = vmatpush1.msra.mxu0 0.0
  %7923 = vmatprep.subr.mxu0 0.0
  %7924 = vmatpush1.msra.mxu0 0.0
  %7925 = vmatprep.subr.mxu0 0.0
  %7926 = vmatpush1.msra.mxu0 0.0
  %7927 = vmatprep.subr.mxu0 0.0
  %7928 = vmatpush1.msra.mxu0 0.0
  %7929 = vmatprep.subr.mxu0 0.0
  %7930 = vmatpush1.msra.mxu0 0.0
  %7931 = vmatprep.mubr.f32.mxu0 0.0
  %7932 = vmatmul.mubr.f32.gmra.mrb[0].mxu0 %v7862
  %v7933 = vpop.f32.mrb[0].mxu0
  %v7934 = vadd.f32 0.0, %v7933
  %v7935 = vpop.f32.mrb[0].mxu0
  %7936 = vmatprep.mubr.f32.mxu0 0.0
  %7937 = vmatmul.mubr.f32.gmra.mrb[0].mxu0 %v7865
  %v7938 = vpop.f32.mrb[0].mxu0
  %v7939 = vadd.f32 0.0, %v7938
  %v7940 = vpop.f32.mrb[0].mxu0
  %7941 = vdwg.mxu0
  %7946 = vrot.lane.b32.xlu0 %v7844, 16
  %v7947 = vpop.permute.xlu0 %7946
  %7948 = vrot.lane.b32.xlu0 %v7849, 16
  %v7949 = vpop.permute.xlu0 %7948
  %7950 = vrot.lane.b32.xlu0 %v7934, 16
  %v7951 = vpop.permute.xlu0 %7950
  %7952 = vrot.lane.b32.xlu0 %v7939, 16
  %v7953 = vpop.permute.xlu0 %7952
  %7958 = vst.msk [vmem:[#allocation2] sm:$0xff] %vm1402, %v7947
  %7959 = vst.msk [vmem:[#allocation2 + $0x8] sm:$0xff] %vm1402, %v7949
  %7960 = vst.msk [vmem:[#allocation2 + $0x10] sm:$0xff] %vm1402, %v7951
  %7961 = vst.msk [vmem:[#allocation2 + $0x18] sm:$0xff] %vm1402, %v7953
  %7962 = vrot.lane.b32.xlu0 %v6559, 104
  %v7963 = vpop.permute.xlu0 %7962
  %7964 = vrot.lane.b32.xlu0 %v6564, 104
  %v7965 = vpop.permute.xlu0 %7964
  %7966 = vrot.lane.b32.xlu0 %v6653, 104
  %v7967 = vpop.permute.xlu0 %7966
  %7968 = vrot.lane.b32.xlu0 %v6658, 104
  %v7969 = vpop.permute.xlu0 %7968
  %7970 = vrot.lane.b32.xlu0 %v6663, 104
  %v7971 = vpop.permute.xlu0 %7970
  %v7972 = vsel %vm169, %v7963, 0
  %v7974 = vsel %vm169, %v7965, 0
  %v7976 = vsel %vm169, %v7967, 0
  %v7978 = vsel %vm169, %v7969, 0
  %v7980 = vsel %vm169, %v7971, 0
  %7982 = vmatprep.subr.mxu0 0.0
  %7983 = vmatpush1.xpose.msra.mxu0 %v7976
  %7984 = vmatprep.subr.mxu0 0.0
  %7985 = vmatpush1.xpose.msra.mxu0 %v7978
  %7986 = vmatprep.subr.mxu0 0.0
  %7987 = vmatpush1.xpose.msra.mxu0 %v7980
  %7988 = vmatprep.subr.mxu0 0.0
  %7989 = vmatpush1.xpose.msra.mxu0 0.0
  %7990 = vmatprep.subr.mxu0 0.0
  %7991 = vmatpush1.xpose.msra.mxu0 0.0
  %7992 = vmatprep.subr.mxu0 0.0
  %7993 = vmatpush1.xpose.msra.mxu0 0.0
  %7994 = vmatprep.subr.mxu0 0.0
  %7995 = vmatpush1.xpose.msra.mxu0 0.0
  %7996 = vmatprep.subr.mxu0 0.0
  %7997 = vmatpush1.xpose.msra.mxu0 0.0
  %7998 = vmatprep.subr.mxu0 0.0
  %7999 = vmatpush1.xpose.msra.mxu0 0.0
  %8000 = vmatprep.subr.mxu0 0.0
  %8001 = vmatpush1.xpose.msra.mxu0 0.0
  %8002 = vmatprep.subr.mxu0 0.0
  %8003 = vmatpush1.xpose.msra.mxu0 0.0
  %8004 = vmatprep.subr.mxu0 0.0
  %8005 = vmatpush1.xpose.msra.mxu0 0.0
  %8006 = vmatprep.subr.mxu0 0.0
  %8007 = vmatpush1.xpose.msra.mxu0 0.0
  %8008 = vmatprep.subr.mxu0 0.0
  %8009 = vmatpush1.xpose.msra.mxu0 0.0
  %8010 = vmatprep.subr.mxu0 0.0
  %8011 = vmatpush1.xpose.msra.mxu0 0.0
  %8012 = vmatprep.subr.mxu0 0.0
  %8013 = vmatpush1.xpose.msra.mxu0 0.0
  %8014 = vmatprep.subr.mxu0 0.0
  %8015 = vmatpush1.xpose.msra.mxu0 0.0
  %8016 = vmatprep.subr.mxu0 0.0
  %8017 = vmatpush1.xpose.msra.mxu0 0.0
  %8018 = vmatprep.subr.mxu0 0.0
  %8019 = vmatpush1.xpose.msra.mxu0 0.0
  %8020 = vmatprep.subr.mxu0 0.0
  %8021 = vmatpush1.xpose.msra.mxu0 0.0
  %8022 = vmatprep.subr.mxu0 0.0
  %8023 = vmatpush1.xpose.msra.mxu0 0.0
  %8024 = vmatprep.subr.mxu0 0.0
  %8025 = vmatpush1.xpose.msra.mxu0 0.0
  %8026 = vmatprep.subr.mxu0 0.0
  %8027 = vmatpush1.xpose.msra.mxu0 0.0
  %8028 = vmatprep.subr.mxu0 0.0
  %8029 = vmatpush1.xpose.msra.mxu0 0.0
  %8030 = vmatprep.subr.mxu0 0.0
  %8031 = vmatpush1.xpose.msra.mxu0 0.0
  %8032 = vmatprep.subr.mxu0 0.0
  %8033 = vmatpush1.xpose.msra.mxu0 0.0
  %8034 = vmatprep.subr.mxu0 0.0
  %8035 = vmatpush1.xpose.msra.mxu0 0.0
  %8036 = vmatprep.subr.mxu0 0.0
  %8037 = vmatpush1.xpose.msra.mxu0 0.0
  %8038 = vmatprep.subr.mxu0 0.0
  %8039 = vmatpush1.xpose.msra.mxu0 0.0
  %8040 = vmatprep.subr.mxu0 0.0
  %8041 = vmatpush1.xpose.msra.mxu0 0.0
  %8042 = vmatprep.subr.mxu0 0.0
  %8043 = vmatpush1.xpose.msra.mxu0 0.0
  %8044 = vmatprep.subr.mxu0 0.0
  %8045 = vmatpush1.xpose.msra.mxu0 0.0
  %8046 = vmatprep.mubr.f32.mxu0 0.0
  %8047 = vmatmul.mubr.f32.gmra.mrb[0].mxu0 %v7972
  %v8048 = vpop.f32.mrb[0].mxu0
  %v8049 = vadd.f32 0.0, %v8048
  %v8050 = vpop.f32.mrb[0].mxu0
  %8051 = vmatprep.mubr.f32.mxu0 0.0
  %8052 = vmatmul.mubr.f32.gmra.mrb[0].mxu0 %v7974
  %v8053 = vpop.f32.mrb[0].mxu0
  %v8054 = vadd.f32 0.0, %v8053
  %v8055 = vpop.f32.mrb[0].mxu0
  %8056 = vdwg.mxu0
  %8057 = vrot.lane.b32.xlu0 %v6569, 104
  %v8058 = vpop.permute.xlu0 %8057
  %8059 = vrot.lane.b32.xlu0 %v6574, 104
  %v8060 = vpop.permute.xlu0 %8059
  %8061 = vrot.lane.b32.xlu0 %v6668, 104
  %v8062 = vpop.permute.xlu0 %8061
  %8063 = vrot.lane.b32.xlu0 %v6673, 104
  %v8064 = vpop.permute.xlu0 %8063
  %8065 = vrot.lane.b32.xlu0 %v6678, 104
  %v8066 = vpop.permute.xlu0 %8065
  %v8067 = vsel %vm169, %v8058, 0
  %v8069 = vsel %vm169, %v8060, 0
  %v8071 = vsel %vm169, %v8062, 0
  %v8073 = vsel %vm169, %v8064, 0
  %v8075 = vsel %vm169, %v8066, 0
  %8077 = vmatprep.subr.mxu0 0.0
  %8078 = vmatpush1.xpose.msra.mxu0 %v8071
  %8079 = vmatprep.subr.mxu0 0.0
  %8080 = vmatpush1.xpose.msra.mxu0 %v8073
  %8081 = vmatprep.subr.mxu0 0.0
  %8082 = vmatpush1.xpose.msra.mxu0 %v8075
  %8083 = vmatprep.subr.mxu0 0.0
  %8084 = vmatpush1.xpose.msra.mxu0 0.0
  %8085 = vmatprep.subr.mxu0 0.0
  %8086 = vmatpush1.xpose.msra.mxu0 0.0
  %8087 = vmatprep.subr.mxu0 0.0
  %8088 = vmatpush1.xpose.msra.mxu0 0.0
  %8089 = vmatprep.subr.mxu0 0.0
  %8090 = vmatpush1.xpose.msra.mxu0 0.0
  %8091 = vmatprep.subr.mxu0 0.0
  %8092 = vmatpush1.xpose.msra.mxu0 0.0
  %8093 = vmatprep.subr.mxu0 0.0
  %8094 = vmatpush1.xpose.msra.mxu0 0.0
  %8095 = vmatprep.subr.mxu0 0.0
  %8096 = vmatpush1.xpose.msra.mxu0 0.0
  %8097 = vmatprep.subr.mxu0 0.0
  %8098 = vmatpush1.xpose.msra.mxu0 0.0
  %8099 = vmatprep.subr.mxu0 0.0
  %8100 = vmatpush1.xpose.msra.mxu0 0.0
  %8101 = vmatprep.subr.mxu0 0.0
  %8102 = vmatpush1.xpose.msra.mxu0 0.0
  %8103 = vmatprep.subr.mxu0 0.0
  %8104 = vmatpush1.xpose.msra.mxu0 0.0
  %8105 = vmatprep.subr.mxu0 0.0
  %8106 = vmatpush1.xpose.msra.mxu0 0.0
  %8107 = vmatprep.subr.mxu0 0.0
  %8108 = vmatpush1.xpose.msra.mxu0 0.0
  %8109 = vmatprep.subr.mxu0 0.0
  %8110 = vmatpush1.xpose.msra.mxu0 0.0
  %8111 = vmatprep.subr.mxu0 0.0
  %8112 = vmatpush1.xpose.msra.mxu0 0.0
  %8113 = vmatprep.subr.mxu0 0.0
  %8114 = vmatpush1.xpose.msra.mxu0 0.0
  %8115 = vmatprep.subr.mxu0 0.0
  %8116 = vmatpush1.xpose.msra.mxu0 0.0
  %8117 = vmatprep.subr.mxu0 0.0
  %8118 = vmatpush1.xpose.msra.mxu0 0.0
  %8119 = vmatprep.subr.mxu0 0.0
  %8120 = vmatpush1.xpose.msra.mxu0 0.0
  %8121 = vmatprep.subr.mxu0 0.0
  %8122 = vmatpush1.xpose.msra.mxu0 0.0
  %8123 = vmatprep.subr.mxu0 0.0
  %8124 = vmatpush1.xpose.msra.mxu0 0.0
  %8125 = vmatprep.subr.mxu0 0.0
  %8126 = vmatpush1.xpose.msra.mxu0 0.0
  %8127 = vmatprep.subr.mxu0 0.0
  %8128 = vmatpush1.xpose.msra.mxu0 0.0
  %8129 = vmatprep.subr.mxu0 0.0
  %8130 = vmatpush1.xpose.msra.mxu0 0.0
  %8131 = vmatprep.subr.mxu0 0.0
  %8132 = vmatpush1.xpose.msra.mxu0 0.0
  %8133 = vmatprep.subr.mxu0 0.0
  %8134 = vmatpush1.xpose.msra.mxu0 0.0
  %8135 = vmatprep.subr.mxu0 0.0
  %8136 = vmatpush1.xpose.msra.mxu0 0.0
  %8137 = vmatprep.subr.mxu0 0.0
  %8138 = vmatpush1.xpose.msra.mxu0 0.0
  %8139 = vmatprep.subr.mxu0 0.0
  %8140 = vmatpush1.xpose.msra.mxu0 0.0
  %8141 = vmatprep.mubr.f32.mxu0 0.0
  %8142 = vmatmul.mubr.f32.gmra.mrb[0].mxu0 %v8067
  %v8143 = vpop.f32.mrb[0].mxu0
  %v8144 = vadd.f32 0.0, %v8143
  %v8145 = vpop.f32.mrb[0].mxu0
  %8146 = vmatprep.mubr.f32.mxu0 0.0
  %8147 = vmatmul.mubr.f32.gmra.mrb[0].mxu0 %v8069
  %v8148 = vpop.f32.mrb[0].mxu0
  %v8149 = vadd.f32 0.0, %v8148
  %v8150 = vpop.f32.mrb[0].mxu0
  %8151 = vdwg.mxu0
  %v8152 = vsel %vm2427, %v8049, -inf
  %8153 = vmax.xlane.f32.xlu0 %v8152
  %v8154 = vpop.xlane.xlu0 %8153
  %v8155 = vsel %vm2427, %v8054, -inf
  %8156 = vmax.xlane.f32.xlu0 %v8155
  %v8157 = vpop.xlane.xlu0 %8156
  %v8158 = vsel %vm2427, %v8144, -inf
  %8159 = vmax.xlane.f32.xlu0 %v8158
  %v8160 = vpop.xlane.xlu0 %8159
  %v8161 = vsel %vm2427, %v8149, -inf
  %8162 = vmax.xlane.f32.xlu0 %v8161
  %v8163 = vpop.xlane.xlu0 %8162
  %v8164 = vsub.f32 %v8049, %v8154
  %v8165 = vsub.f32 %v8054, %v8157
  %v8166 = vsub.f32 %v8144, %v8160
  %v8167 = vsub.f32 %v8149, %v8163
  %v8168 = vmul.f32 %v8164, 1.442695
  %v8169 = vpow.pop %v8168
  %v8170 = vmul.f32 %v8165, 1.442695
  %v8171 = vpow.pop %v8170
  %v8172 = vmul.f32 %v8166, 1.442695
  %v8173 = vpow.pop %v8172
  %v8174 = vmul.f32 %v8167, 1.442695
  %v8175 = vpow.pop %v8174
  %v8176 = vsel %vm2427, %v8169, 0.0
  %8177 = vadd.xlane.f32.xlu0 %v8176
  %v8178 = vpop.xlane.xlu0 %8177
  %v8179 = vsel %vm2427, %v8171, 0.0
  %8180 = vadd.xlane.f32.xlu0 %v8179
  %v8181 = vpop.xlane.xlu0 %8180
  %v8182 = vsel %vm2427, %v8173, 0.0
  %8183 = vadd.xlane.f32.xlu0 %v8182
  %v8184 = vpop.xlane.xlu0 %8183
  %v8185 = vsel %vm2427, %v8175, 0.0
  %8186 = vadd.xlane.f32.xlu0 %v8185
  %v8187 = vpop.xlane.xlu0 %8186
  %v8188 = vrcp.pop %v8178
  %v8189 = vrcp.pop %v8181
  %v8190 = vrcp.pop %v8184
  %v8191 = vrcp.pop %v8187
  %v8192 = vmul.f32 %v8169, %v8188
  %v8193 = vmul.f32 %v8171, %v8189
  %v8194 = vmul.f32 %v8173, %v8190
  %v8195 = vmul.f32 %v8175, %v8191
  %8196 = vrot.lane.b32.xlu0 %v6653, 72
  %v8197 = vpop.permute.xlu0 %8196
  %8198 = vrot.lane.b32.xlu0 %v6658, 72
  %v8199 = vpop.permute.xlu0 %8198
  %8200 = vrot.lane.b32.xlu0 %v6663, 72
  %v8201 = vpop.permute.xlu0 %8200
  %v8206 = vsel %vm2427, %v8192, 0
  %v8209 = vsel %vm2427, %v8193, 0
  %8211 = vmatprep.subr.mxu0 0.0
  %8212 = vmatpush1.msra.mxu0 %v8197
  %8213 = vmatprep.subr.mxu0 0.0
  %8214 = vmatpush1.msra.mxu0 %v8199
  %8215 = vmatprep.subr.mxu0 0.0
  %8216 = vmatpush1.msra.mxu0 %v8201
  %8217 = vmatprep.subr.mxu0 0.0
  %8218 = vmatpush1.msra.mxu0 0.0
  %8219 = vmatprep.subr.mxu0 0.0
  %8220 = vmatpush1.msra.mxu0 0.0
  %8221 = vmatprep.subr.mxu0 0.0
  %8222 = vmatpush1.msra.mxu0 0.0
  %8223 = vmatprep.subr.mxu0 0.0
  %8224 = vmatpush1.msra.mxu0 0.0
  %8225 = vmatprep.subr.mxu0 0.0
  %8226 = vmatpush1.msra.mxu0 0.0
  %8227 = vmatprep.subr.mxu0 0.0
  %8228 = vmatpush1.msra.mxu0 0.0
  %8229 = vmatprep.subr.mxu0 0.0
  %8230 = vmatpush1.msra.mxu0 0.0
  %8231 = vmatprep.subr.mxu0 0.0
  %8232 = vmatpush1.msra.mxu0 0.0
  %8233 = vmatprep.subr.mxu0 0.0
  %8234 = vmatpush1.msra.mxu0 0.0
  %8235 = vmatprep.subr.mxu0 0.0
  %8236 = vmatpush1.msra.mxu0 0.0
  %8237 = vmatprep.subr.mxu0 0.0
  %8238 = vmatpush1.msra.mxu0 0.0
  %8239 = vmatprep.subr.mxu0 0.0
  %8240 = vmatpush1.msra.mxu0 0.0
  %8241 = vmatprep.subr.mxu0 0.0
  %8242 = vmatpush1.msra.mxu0 0.0
  %8243 = vmatprep.subr.mxu0 0.0
  %8244 = vmatpush1.msra.mxu0 0.0
  %8245 = vmatprep.subr.mxu0 0.0
  %8246 = vmatpush1.msra.mxu0 0.0
  %8247 = vmatprep.subr.mxu0 0.0
  %8248 = vmatpush1.msra.mxu0 0.0
  %8249 = vmatprep.subr.mxu0 0.0
  %8250 = vmatpush1.msra.mxu0 0.0
  %8251 = vmatprep.subr.mxu0 0.0
  %8252 = vmatpush1.msra.mxu0 0.0
  %8253 = vmatprep.subr.mxu0 0.0
  %8254 = vmatpush1.msra.mxu0 0.0
  %8255 = vmatprep.subr.mxu0 0.0
  %8256 = vmatpush1.msra.mxu0 0.0
  %8257 = vmatprep.subr.mxu0 0.0
  %8258 = vmatpush1.msra.mxu0 0.0
  %8259 = vmatprep.subr.mxu0 0.0
  %8260 = vmatpush1.msra.mxu0 0.0
  %8261 = vmatprep.subr.mxu0 0.0
  %8262 = vmatpush1.msra.mxu0 0.0
  %8263 = vmatprep.subr.mxu0 0.0
  %8264 = vmatpush1.msra.mxu0 0.0
  %8265 = vmatprep.subr.mxu0 0.0
  %8266 = vmatpush1.msra.mxu0 0.0
  %8267 = vmatprep.subr.mxu0 0.0
  %8268 = vmatpush1.msra.mxu0 0.0
  %8269 = vmatprep.subr.mxu0 0.0
  %8270 = vmatpush1.msra.mxu0 0.0
  %8271 = vmatprep.subr.mxu0 0.0
  %8272 = vmatpush1.msra.mxu0 0.0
  %8273 = vmatprep.subr.mxu0 0.0
  %8274 = vmatpush1.msra.mxu0 0.0
  %8275 = vmatprep.mubr.f32.mxu0 0.0
  %8276 = vmatmul.mubr.f32.gmra.mrb[0].mxu0 %v8206
  %v8277 = vpop.f32.mrb[0].mxu0
  %v8278 = vadd.f32 0.0, %v8277
  %v8279 = vpop.f32.mrb[0].mxu0
  %8280 = vmatprep.mubr.f32.mxu0 0.0
  %8281 = vmatmul.mubr.f32.gmra.mrb[0].mxu0 %v8209
  %v8282 = vpop.f32.mrb[0].mxu0
  %v8283 = vadd.f32 0.0, %v8282
  %v8284 = vpop.f32.mrb[0].mxu0
  %8285 = vdwg.mxu0
  %8286 = vrot.lane.b32.xlu0 %v6668, 72
  %v8287 = vpop.permute.xlu0 %8286
  %8288 = vrot.lane.b32.xlu0 %v6673, 72
  %v8289 = vpop.permute.xlu0 %8288
  %8290 = vrot.lane.b32.xlu0 %v6678, 72
  %v8291 = vpop.permute.xlu0 %8290
  %v8296 = vsel %vm2427, %v8194, 0
  %v8299 = vsel %vm2427, %v8195, 0
  %8301 = vmatprep.subr.mxu0 0.0
  %8302 = vmatpush1.msra.mxu0 %v8287
  %8303 = vmatprep.subr.mxu0 0.0
  %8304 = vmatpush1.msra.mxu0 %v8289
  %8305 = vmatprep.subr.mxu0 0.0
  %8306 = vmatpush1.msra.mxu0 %v8291
  %8307 = vmatprep.subr.mxu0 0.0
  %8308 = vmatpush1.msra.mxu0 0.0
  %8309 = vmatprep.subr.mxu0 0.0
  %8310 = vmatpush1.msra.mxu0 0.0
  %8311 = vmatprep.subr.mxu0 0.0
  %8312 = vmatpush1.msra.mxu0 0.0
  %8313 = vmatprep.subr.mxu0 0.0
  %8314 = vmatpush1.msra.mxu0 0.0
  %8315 = vmatprep.subr.mxu0 0.0
  %8316 = vmatpush1.msra.mxu0 0.0
  %8317 = vmatprep.subr.mxu0 0.0
  %8318 = vmatpush1.msra.mxu0 0.0
  %8319 = vmatprep.subr.mxu0 0.0
  %8320 = vmatpush1.msra.mxu0 0.0
  %8321 = vmatprep.subr.mxu0 0.0
  %8322 = vmatpush1.msra.mxu0 0.0
  %8323 = vmatprep.subr.mxu0 0.0
  %8324 = vmatpush1.msra.mxu0 0.0
  %8325 = vmatprep.subr.mxu0 0.0
  %8326 = vmatpush1.msra.mxu0 0.0
  %8327 = vmatprep.subr.mxu0 0.0
  %8328 = vmatpush1.msra.mxu0 0.0
  %8329 = vmatprep.subr.mxu0 0.0
  %8330 = vmatpush1.msra.mxu0 0.0
  %8331 = vmatprep.subr.mxu0 0.0
  %8332 = vmatpush1.msra.mxu0 0.0
  %8333 = vmatprep.subr.mxu0 0.0
  %8334 = vmatpush1.msra.mxu0 0.0
  %8335 = vmatprep.subr.mxu0 0.0
  %8336 = vmatpush1.msra.mxu0 0.0
  %8337 = vmatprep.subr.mxu0 0.0
  %8338 = vmatpush1.msra.mxu0 0.0
  %8339 = vmatprep.subr.mxu0 0.0
  %8340 = vmatpush1.msra.mxu0 0.0
  %8341 = vmatprep.subr.mxu0 0.0
  %8342 = vmatpush1.msra.mxu0 0.0
  %8343 = vmatprep.subr.mxu0 0.0
  %8344 = vmatpush1.msra.mxu0 0.0
  %8345 = vmatprep.subr.mxu0 0.0
  %8346 = vmatpush1.msra.mxu0 0.0
  %8347 = vmatprep.subr.mxu0 0.0
  %8348 = vmatpush1.msra.mxu0 0.0
  %8349 = vmatprep.subr.mxu0 0.0
  %8350 = vmatpush1.msra.mxu0 0.0
  %8351 = vmatprep.subr.mxu0 0.0
  %8352 = vmatpush1.msra.mxu0 0.0
  %8353 = vmatprep.subr.mxu0 0.0
  %8354 = vmatpush1.msra.mxu0 0.0
  %8355 = vmatprep.subr.mxu0 0.0
  %8356 = vmatpush1.msra.mxu0 0.0
  %8357 = vmatprep.subr.mxu0 0.0
  %8358 = vmatpush1.msra.mxu0 0.0
  %8359 = vmatprep.subr.mxu0 0.0
  %8360 = vmatpush1.msra.mxu0 0.0
  %8361 = vmatprep.subr.mxu0 0.0
  %8362 = vmatpush1.msra.mxu0 0.0
  %8363 = vmatprep.subr.mxu0 0.0
  %8364 = vmatpush1.msra.mxu0 0.0
  %8365 = vmatprep.mubr.f32.mxu0 0.0
  %8366 = vmatmul.mubr.f32.gmra.mrb[0].mxu0 %v8296
  %v8367 = vpop.f32.mrb[0].mxu0
  %v8368 = vadd.f32 0.0, %v8367
  %v8369 = vpop.f32.mrb[0].mxu0
  %8370 = vmatprep.mubr.f32.mxu0 0.0
  %8371 = vmatmul.mubr.f32.gmra.mrb[0].mxu0 %v8299
  %v8372 = vpop.f32.mrb[0].mxu0
  %v8373 = vadd.f32 0.0, %v8372
  %v8374 = vpop.f32.mrb[0].mxu0
  %8375 = vdwg.mxu0
  %8380 = vrot.lane.b32.xlu0 %v8278, 24
  %v8381 = vpop.permute.xlu0 %8380
  %8382 = vrot.lane.b32.xlu0 %v8283, 24
  %v8383 = vpop.permute.xlu0 %8382
  %8384 = vrot.lane.b32.xlu0 %v8368, 24
  %v8385 = vpop.permute.xlu0 %8384
  %8386 = vrot.lane.b32.xlu0 %v8373, 24
  %v8387 = vpop.permute.xlu0 %8386
  %8392 = vst.msk [vmem:[#allocation2] sm:$0xff] %vm1823, %v8381
  %8393 = vst.msk [vmem:[#allocation2 + $0x8] sm:$0xff] %vm1823, %v8383
  %8394 = vst.msk [vmem:[#allocation2 + $0x10] sm:$0xff] %vm1823, %v8385
  %8395 = vst.msk [vmem:[#allocation2 + $0x18] sm:$0xff] %vm1823, %v8387
  %v8396 = vld [vmem:[#allocation2] sm:$0xff]
  %v8397 = vld [vmem:[#allocation2 + $0x8] sm:$0xff]
  %v8398 = vld [vmem:[#allocation2 + $0x10] sm:$0xff]
  %v8399 = vld [vmem:[#allocation2 + $0x18] sm:$0xff]
  %v8400 = vlaneseq
  %v8401 = vshrl.u32 %v8400, 7
  %v8402 = vsub.s32 4, %v8401
  %v8403 = vrot.slane %v4513, %v8402
  %v8405 = vsel %vm61, %v8396, 0
  %v8408 = vsel %vm61, %v8397, 0
  %v8411 = vsel %vm61, %v8398, 0
  %v8414 = vsel %vm61, %v8399, 0
  %8416 = vmatprep.subr.mxu0 0.0
  %8417 = vmatpush1.msra.mxu0 %v6682
  %8418 = vmatprep.subr.mxu0 0.0
  %8419 = vmatpush1.msra.mxu0 %v6683
  %8420 = vmatprep.subr.mxu0 0.0
  %8421 = vmatpush1.msra.mxu0 %v6684
  %8422 = vmatprep.subr.mxu0 0.0
  %8423 = vmatpush1.msra.mxu0 %v6685
  %8424 = vmatprep.subr.mxu0 0.0
  %8425 = vmatpush1.msra.mxu0 0.0
  %8426 = vmatprep.subr.mxu0 0.0
  %8427 = vmatpush1.msra.mxu0 0.0
  %8428 = vmatprep.subr.mxu0 0.0
  %8429 = vmatpush1.msra.mxu0 0.0
  %8430 = vmatprep.subr.mxu0 0.0
  %8431 = vmatpush1.msra.mxu0 0.0
  %8432 = vmatprep.subr.mxu0 0.0
  %8433 = vmatpush1.msra.mxu0 0.0
  %8434 = vmatprep.subr.mxu0 0.0
  %8435 = vmatpush1.msra.mxu0 0.0
  %8436 = vmatprep.subr.mxu0 0.0
  %8437 = vmatpush1.msra.mxu0 0.0
  %8438 = vmatprep.subr.mxu0 0.0
  %8439 = vmatpush1.msra.mxu0 0.0
  %8440 = vmatprep.subr.mxu0 0.0
  %8441 = vmatpush1.msra.mxu0 0.0
  %8442 = vmatprep.subr.mxu0 0.0
  %8443 = vmatpush1.msra.mxu0 0.0
  %8444 = vmatprep.subr.mxu0 0.0
  %8445 = vmatpush1.msra.mxu0 0.0
  %8446 = vmatprep.subr.mxu0 0.0
  %8447 = vmatpush1.msra.mxu0 0.0
  %8448 = vmatprep.subr.mxu0 0.0
  %8449 = vmatpush1.msra.mxu0 0.0
  %8450 = vmatprep.subr.mxu0 0.0
  %8451 = vmatpush1.msra.mxu0 0.0
  %8452 = vmatprep.subr.mxu0 0.0
  %8453 = vmatpush1.msra.mxu0 0.0
  %8454 = vmatprep.subr.mxu0 0.0
  %8455 = vmatpush1.msra.mxu0 0.0
  %8456 = vmatprep.subr.mxu0 0.0
  %8457 = vmatpush1.msra.mxu0 0.0
  %8458 = vmatprep.subr.mxu0 0.0
  %8459 = vmatpush1.msra.mxu0 0.0
  %8460 = vmatprep.subr.mxu0 0.0
  %8461 = vmatpush1.msra.mxu0 0.0
  %8462 = vmatprep.subr.mxu0 0.0
  %8463 = vmatpush1.msra.mxu0 0.0
  %8464 = vmatprep.subr.mxu0 0.0
  %8465 = vmatpush1.msra.mxu0 0.0
  %8466 = vmatprep.subr.mxu0 0.0
  %8467 = vmatpush1.msra.mxu0 0.0
  %8468 = vmatprep.subr.mxu0 0.0
  %8469 = vmatpush1.msra.mxu0 0.0
  %8470 = vmatprep.subr.mxu0 0.0
  %8471 = vmatpush1.msra.mxu0 0.0
  %8472 = vmatprep.subr.mxu0 0.0
  %8473 = vmatpush1.msra.mxu0 0.0
  %8474 = vmatprep.subr.mxu0 0.0
  %8475 = vmatpush1.msra.mxu0 0.0
  %8476 = vmatprep.subr.mxu0 0.0
  %8477 = vmatpush1.msra.mxu0 0.0
  %8478 = vmatprep.subr.mxu0 0.0
  %8479 = vmatpush1.msra.mxu0 0.0
  %8480 = vmatprep.mubr.f32.mxu0 0.0
  %8481 = vmatmul.mubr.f32.gmra.mrb[0].mxu0 %v8405
  %v8482 = vpop.f32.mrb[0].mxu0
  %v8483 = vadd.f32 %v8403, %v8482
  %v8484 = vpop.f32.mrb[0].mxu0
  %8485 = vmatprep.mubr.f32.mxu0 0.0
  %8486 = vmatmul.mubr.f32.gmra.mrb[0].mxu0 %v8408
  %v8487 = vpop.f32.mrb[0].mxu0
  %v8488 = vadd.f32 %v8403, %v8487
  %v8489 = vpop.f32.mrb[0].mxu0
  %8490 = vmatprep.mubr.f32.mxu0 0.0
  %8491 = vmatmul.mubr.f32.gmra.mrb[0].mxu0 %v8411
  %v8492 = vpop.f32.mrb[0].mxu0
  %v8493 = vadd.f32 %v8403, %v8492
  %v8494 = vpop.f32.mrb[0].mxu0
  %8495 = vmatprep.mubr.f32.mxu0 0.0
  %8496 = vmatmul.mubr.f32.gmra.mrb[0].mxu0 %v8414
  %v8497 = vpop.f32.mrb[0].mxu0
  %v8498 = vadd.f32 %v8403, %v8497
  %v8499 = vpop.f32.mrb[0].mxu0
  %8500 = vdwg.mxu0
  %v8501 = vadd.f32 %v6467, %v8483
  %v8502 = vadd.f32 %v6468, %v8488
  %v8503 = vadd.f32 %v6469, %v8493
  %v8504 = vadd.f32 %v6470, %v8498
  %v8505 = vsel %vm61, %v8501, 0.0
  %8506 = vadd.xlane.f32.xlu0 %v8505
  %v8507 = vpop.xlane.xlu0 %8506
  %v8508 = vsel %vm61, %v8502, 0.0
  %8509 = vadd.xlane.f32.xlu0 %v8508
  %v8510 = vpop.xlane.xlu0 %8509
  %v8511 = vsel %vm61, %v8503, 0.0
  %8512 = vadd.xlane.f32.xlu0 %v8511
  %v8513 = vpop.xlane.xlu0 %8512
  %v8514 = vsel %vm61, %v8504, 0.0
  %8515 = vadd.xlane.f32.xlu0 %v8514
  %v8516 = vpop.xlane.xlu0 %8515
  %v8517 = vmul.f32 %v8507, %v1949
  %v8518 = vmul.f32 %v8510, %v1949
  %v8519 = vmul.f32 %v8513, %v1949
  %v8520 = vmul.f32 %v8516, %v1949
  %v8521 = vmul.f32 %v8501, %v8501
  %v8522 = vmul.f32 %v8502, %v8502
  %v8523 = vmul.f32 %v8503, %v8503
  %v8524 = vmul.f32 %v8504, %v8504
  %v8525 = vsel %vm61, %v8521, 0.0
  %8526 = vadd.xlane.f32.xlu0 %v8525
  %v8527 = vpop.xlane.xlu0 %8526
  %v8528 = vsel %vm61, %v8522, 0.0
  %8529 = vadd.xlane.f32.xlu0 %v8528
  %v8530 = vpop.xlane.xlu0 %8529
  %v8531 = vsel %vm61, %v8523, 0.0
  %8532 = vadd.xlane.f32.xlu0 %v8531
  %v8533 = vpop.xlane.xlu0 %8532
  %v8534 = vsel %vm61, %v8524, 0.0
  %8535 = vadd.xlane.f32.xlu0 %v8534
  %v8536 = vpop.xlane.xlu0 %8535
  %v8537 = vmul.f32 %v8527, %v1949
  %v8538 = vmul.f32 %v8530, %v1949
  %v8539 = vmul.f32 %v8533, %v1949
  %v8540 = vmul.f32 %v8536, %v1949
  %v8541 = vmul.f32 %v8517, %v8517
  %v8542 = vmul.f32 %v8518, %v8518
  %v8543 = vmul.f32 %v8519, %v8519
  %v8544 = vmul.f32 %v8520, %v8520
  %v8545 = vsub.f32 %v8537, %v8541
  %v8546 = vsub.f32 %v8538, %v8542
  %v8547 = vsub.f32 %v8539, %v8543
  %v8548 = vsub.f32 %v8540, %v8544
  %v8549 = vsub.f32 %v8501, %v8517
  %v8550 = vsub.f32 %v8502, %v8518
  %v8551 = vsub.f32 %v8503, %v8519
  %v8552 = vsub.f32 %v8504, %v8520
  %v8553 = vadd.f32 %v8545, 1e-05
  %v8554 = vadd.f32 %v8546, 1e-05
  %v8555 = vadd.f32 %v8547, 1e-05
  %v8556 = vadd.f32 %v8548, 1e-05
  %v8557 = vrsqrt.pop %v8553
  %v8558 = vrsqrt.pop %v8554
  %v8559 = vrsqrt.pop %v8555
  %v8560 = vrsqrt.pop %v8556
  %v8561 = vmul.f32 %v8549, %v8557
  %v8562 = vmul.f32 %v8550, %v8558
  %v8563 = vmul.f32 %v8551, %v8559
  %v8564 = vmul.f32 %v8552, %v8560
  %v8565 = vlaneseq
  %v8566 = vshrl.u32 %v8565, 7
  %v8567 = vsub.s32 7, %v8566
  %v8568 = vrot.slane %v4513, %v8567
  %v8569 = vmul.f32 %v8561, %v8568
  %v8570 = vmul.f32 %v8562, %v8568
  %v8571 = vmul.f32 %v8563, %v8568
  %v8572 = vmul.f32 %v8564, %v8568
  %v8573 = vlaneseq
  %v8574 = vshrl.u32 %v8573, 7
  %v8575 = vsub.s32 0, %v8574
  %v8576 = vrot.slane %v4514, %v8575
  %v8577 = vadd.f32 %v8569, %v8576
  %v8578 = vadd.f32 %v8570, %v8576
  %v8579 = vadd.f32 %v8571, %v8576
  %v8580 = vadd.f32 %v8572, %v8576
  %v8581 = vsel %vm61, %v8577, 0.0
  %8582 = vadd.xlane.f32.xlu0 %v8581
  %v8583 = vpop.xlane.xlu0 %8582
  %v8584 = vsel %vm61, %v8578, 0.0
  %8585 = vadd.xlane.f32.xlu0 %v8584
  %v8586 = vpop.xlane.xlu0 %8585
  %v8587 = vsel %vm61, %v8579, 0.0
  %8588 = vadd.xlane.f32.xlu0 %v8587
  %v8589 = vpop.xlane.xlu0 %8588
  %v8590 = vsel %vm61, %v8580, 0.0
  %8591 = vadd.xlane.f32.xlu0 %v8590
  %v8592 = vpop.xlane.xlu0 %8591
  %v8593 = vmul.f32 %v8583, %v1949
  %v8594 = vmul.f32 %v8586, %v1949
  %v8595 = vmul.f32 %v8589, %v1949
  %v8596 = vmul.f32 %v8592, %v1949
  %v8597 = vmul.f32 %v8577, %v8577
  %v8598 = vmul.f32 %v8578, %v8578
  %v8599 = vmul.f32 %v8579, %v8579
  %v8600 = vmul.f32 %v8580, %v8580
  %v8601 = vsel %vm61, %v8597, 0.0
  %8602 = vadd.xlane.f32.xlu0 %v8601
  %v8603 = vpop.xlane.xlu0 %8602
  %v8604 = vsel %vm61, %v8598, 0.0
  %8605 = vadd.xlane.f32.xlu0 %v8604
  %v8606 = vpop.xlane.xlu0 %8605
  %v8607 = vsel %vm61, %v8599, 0.0
  %8608 = vadd.xlane.f32.xlu0 %v8607
  %v8609 = vpop.xlane.xlu0 %8608
  %v8610 = vsel %vm61, %v8600, 0.0
  %8611 = vadd.xlane.f32.xlu0 %v8610
  %v8612 = vpop.xlane.xlu0 %8611
  %v8613 = vmul.f32 %v8603, %v1949
  %v8614 = vmul.f32 %v8606, %v1949
  %v8615 = vmul.f32 %v8609, %v1949
  %v8616 = vmul.f32 %v8612, %v1949
  %v8617 = vmul.f32 %v8593, %v8593
  %v8618 = vmul.f32 %v8594, %v8594
  %v8619 = vmul.f32 %v8595, %v8595
  %v8620 = vmul.f32 %v8596, %v8596
  %v8621 = vsub.f32 %v8613, %v8617
  %v8622 = vsub.f32 %v8614, %v8618
  %v8623 = vsub.f32 %v8615, %v8619
  %v8624 = vsub.f32 %v8616, %v8620
  %v8625 = vsub.f32 %v8577, %v8593
  %v8626 = vsub.f32 %v8578, %v8594
  %v8627 = vsub.f32 %v8579, %v8595
  %v8628 = vsub.f32 %v8580, %v8596
  %v8629 = vadd.f32 %v8621, 1e-05
  %v8630 = vadd.f32 %v8622, 1e-05
  %v8631 = vadd.f32 %v8623, 1e-05
  %v8632 = vadd.f32 %v8624, 1e-05
  %v8633 = vrsqrt.pop %v8629
  %v8634 = vrsqrt.pop %v8630
  %v8635 = vrsqrt.pop %v8631
  %v8636 = vrsqrt.pop %v8632
  %v8637 = vmul.f32 %v8625, %v8633
  %v8638 = vmul.f32 %v8626, %v8634
  %v8639 = vmul.f32 %v8627, %v8635
  %v8640 = vmul.f32 %v8628, %v8636
  %v8641 = vlaneseq
  %v8642 = vshrl.u32 %v8641, 7
  %v8643 = vsub.s32 1, %v8642
  %v8644 = vrot.slane %v4514, %v8643
  %v8645 = vmul.f32 %v8637, %v8644
  %v8646 = vmul.f32 %v8638, %v8644
  %v8647 = vmul.f32 %v8639, %v8644
  %v8648 = vmul.f32 %v8640, %v8644
  %v8649 = vlaneseq
  %v8650 = vshrl.u32 %v8649, 7
  %v8651 = vsub.s32 2, %v8650
  %v8652 = vrot.slane %v4514, %v8651
  %v8653 = vadd.f32 %v8645, %v8652
  %v8654 = vadd.f32 %v8646, %v8652
  %v8655 = vadd.f32 %v8647, %v8652
  %v8656 = vadd.f32 %v8648, %v8652
  %s8657 = scalar_lea.vmem %s4, 40
  %v8658 = vld [vmem:[%s8657] sm:$0xff]
  %v8659 = vld [vmem:[%s8657 + $0x8] sm:$0xff]
  %v8660 = vld [vmem:[%s8657 + $0x10] sm:$0xff]
  %v8661 = vld [vmem:[%s8657 + $0x18] sm:$0xff]
  %v8662 = vld [vmem:[%s8657 + $0x20] sm:$0x1]
  %v8663 = vlaneseq
  %v8664 = vshrl.u32 %v8663, 7
  %v8665 = vsub.s32 0, %v8664
  %v8666 = vrot.slane %v8662, %v8665
  %v8668 = vsel %vm61, %v8653, 0
  %v8671 = vsel %vm61, %v8654, 0
  %v8674 = vsel %vm61, %v8655, 0
  %v8677 = vsel %vm61, %v8656, 0
  %8679 = vmatprep.subr.mxu0 0.0
  %8680 = vmatpush1.msra.mxu0 %v8658
  %8681 = vmatprep.subr.mxu0 0.0
  %8682 = vmatpush1.msra.mxu0 %v8659
  %8683 = vmatprep.subr.mxu0 0.0
  %8684 = vmatpush1.msra.mxu0 %v8660
  %8685 = vmatprep.subr.mxu0 0.0
  %8686 = vmatpush1.msra.mxu0 %v8661
  %8687 = vmatprep.subr.mxu0 0.0
  %8688 = vmatpush1.msra.mxu0 0.0
  %8689 = vmatprep.subr.mxu0 0.0
  %8690 = vmatpush1.msra.mxu0 0.0
  %8691 = vmatprep.subr.mxu0 0.0
  %8692 = vmatpush1.msra.mxu0 0.0
  %8693 = vmatprep.subr.mxu0 0.0
  %8694 = vmatpush1.msra.mxu0 0.0
  %8695 = vmatprep.subr.mxu0 0.0
  %8696 = vmatpush1.msra.mxu0 0.0
  %8697 = vmatprep.subr.mxu0 0.0
  %8698 = vmatpush1.msra.mxu0 0.0
  %8699 = vmatprep.subr.mxu0 0.0
  %8700 = vmatpush1.msra.mxu0 0.0
  %8701 = vmatprep.subr.mxu0 0.0
  %8702 = vmatpush1.msra.mxu0 0.0
  %8703 = vmatprep.subr.mxu0 0.0
  %8704 = vmatpush1.msra.mxu0 0.0
  %8705 = vmatprep.subr.mxu0 0.0
  %8706 = vmatpush1.msra.mxu0 0.0
  %8707 = vmatprep.subr.mxu0 0.0
  %8708 = vmatpush1.msra.mxu0 0.0
  %8709 = vmatprep.subr.mxu0 0.0
  %8710 = vmatpush1.msra.mxu0 0.0
  %8711 = vmatprep.subr.mxu0 0.0
  %8712 = vmatpush1.msra.mxu0 0.0
  %8713 = vmatprep.subr.mxu0 0.0
  %8714 = vmatpush1.msra.mxu0 0.0
  %8715 = vmatprep.subr.mxu0 0.0
  %8716 = vmatpush1.msra.mxu0 0.0
  %8717 = vmatprep.subr.mxu0 0.0
  %8718 = vmatpush1.msra.mxu0 0.0
  %8719 = vmatprep.subr.mxu0 0.0
  %8720 = vmatpush1.msra.mxu0 0.0
  %8721 = vmatprep.subr.mxu0 0.0
  %8722 = vmatpush1.msra.mxu0 0.0
  %8723 = vmatprep.subr.mxu0 0.0
  %8724 = vmatpush1.msra.mxu0 0.0
  %8725 = vmatprep.subr.mxu0 0.0
  %8726 = vmatpush1.msra.mxu0 0.0
  %8727 = vmatprep.subr.mxu0 0.0
  %8728 = vmatpush1.msra.mxu0 0.0
  %8729 = vmatprep.subr.mxu0 0.0
  %8730 = vmatpush1.msra.mxu0 0.0
  %8731 = vmatprep.subr.mxu0 0.0
  %8732 = vmatpush1.msra.mxu0 0.0
  %8733 = vmatprep.subr.mxu0 0.0
  %8734 = vmatpush1.msra.mxu0 0.0
  %8735 = vmatprep.subr.mxu0 0.0
  %8736 = vmatpush1.msra.mxu0 0.0
  %8737 = vmatprep.subr.mxu0 0.0
  %8738 = vmatpush1.msra.mxu0 0.0
  %8739 = vmatprep.subr.mxu0 0.0
  %8740 = vmatpush1.msra.mxu0 0.0
  %8741 = vmatprep.subr.mxu0 0.0
  %8742 = vmatpush1.msra.mxu0 0.0
  %8743 = vmatprep.mubr.f32.mxu0 0.0
  %8744 = vmatmul.mubr.f32.gmra.mrb[0].mxu0 %v8668
  %v8745 = vpop.f32.mrb[0].mxu0
  %v8746 = vadd.f32 %v8666, %v8745
  %v8747 = vpop.f32.mrb[0].mxu0
  %8748 = vmatprep.mubr.f32.mxu0 0.0
  %8749 = vmatmul.mubr.f32.gmra.mrb[0].mxu0 %v8671
  %v8750 = vpop.f32.mrb[0].mxu0
  %v8751 = vadd.f32 %v8666, %v8750
  %v8752 = vpop.f32.mrb[0].mxu0
  %8753 = vmatprep.mubr.f32.mxu0 0.0
  %8754 = vmatmul.mubr.f32.gmra.mrb[0].mxu0 %v8674
  %v8755 = vpop.f32.mrb[0].mxu0
  %v8756 = vadd.f32 %v8666, %v8755
  %v8757 = vpop.f32.mrb[0].mxu0
  %8758 = vmatprep.mubr.f32.mxu0 0.0
  %8759 = vmatmul.mubr.f32.gmra.mrb[0].mxu0 %v8677
  %v8760 = vpop.f32.mrb[0].mxu0
  %v8761 = vadd.f32 %v8666, %v8760
  %v8762 = vpop.f32.mrb[0].mxu0
  %8763 = vdwg.mxu0
  %v8764 = vmax.f32 %v8746, 0.0
  %v8765 = vmax.f32 %v8751, 0.0
  %v8766 = vmax.f32 %v8756, 0.0
  %v8767 = vmax.f32 %v8761, 0.0
  %s8768 = scalar_lea.vmem %s5, 72
  %v8769 = vld [vmem:[%s8768] sm:$0xff]
  %v8770 = vld [vmem:[%s8768 + $0x8] sm:$0xff]
  %v8771 = vld [vmem:[%s8768 + $0x10] sm:$0xff]
  %v8772 = vld [vmem:[%s8768 + $0x18] sm:$0xff]
  %v8773 = vld [vmem:[%s8768 + $0x20] sm:$0xff]
  %v8774 = vld [vmem:[%s8768 + $0x28] sm:$0xff]
  %v8775 = vld [vmem:[%s8768 + $0x30] sm:$0xff]
  %v8776 = vld [vmem:[%s8768 + $0x38] sm:$0xff]
  %v8777 = vld [vmem:[%s8768 + $0x40] sm:$0x1]
  %v8778 = vlaneseq
  %v8779 = vshrl.u32 %v8778, 7
  %v8780 = vsub.s32 0, %v8779
  %v8781 = vrot.slane %v8777, %v8780
  %v8783 = vsel %vm4342, %v8764, 0
  %v8786 = vsel %vm4342, %v8765, 0
  %v8789 = vsel %vm4342, %v8766, 0
  %v8792 = vsel %vm4342, %v8767, 0
  %8794 = vmatprep.subr.mxu0 0.0
  %8795 = vmatpush1.msra.mxu0 %v8769
  %8796 = vmatprep.subr.mxu0 0.0
  %8797 = vmatpush1.msra.mxu0 %v8770
  %8798 = vmatprep.subr.mxu0 0.0
  %8799 = vmatpush1.msra.mxu0 %v8771
  %8800 = vmatprep.subr.mxu0 0.0
  %8801 = vmatpush1.msra.mxu0 %v8772
  %8802 = vmatprep.subr.mxu0 0.0
  %8803 = vmatpush1.msra.mxu0 %v8773
  %8804 = vmatprep.subr.mxu0 0.0
  %8805 = vmatpush1.msra.mxu0 %v8774
  %8806 = vmatprep.subr.mxu0 0.0
  %8807 = vmatpush1.msra.mxu0 %v8775
  %8808 = vmatprep.subr.mxu0 0.0
  %8809 = vmatpush1.msra.mxu0 %v8776
  %8810 = vmatprep.subr.mxu0 0.0
  %8811 = vmatpush1.msra.mxu0 0.0
  %8812 = vmatprep.subr.mxu0 0.0
  %8813 = vmatpush1.msra.mxu0 0.0
  %8814 = vmatprep.subr.mxu0 0.0
  %8815 = vmatpush1.msra.mxu0 0.0
  %8816 = vmatprep.subr.mxu0 0.0
  %8817 = vmatpush1.msra.mxu0 0.0
  %8818 = vmatprep.subr.mxu0 0.0
  %8819 = vmatpush1.msra.mxu0 0.0
  %8820 = vmatprep.subr.mxu0 0.0
  %8821 = vmatpush1.msra.mxu0 0.0
  %8822 = vmatprep.subr.mxu0 0.0
  %8823 = vmatpush1.msra.mxu0 0.0
  %8824 = vmatprep.subr.mxu0 0.0
  %8825 = vmatpush1.msra.mxu0 0.0
  %8826 = vmatprep.subr.mxu0 0.0
  %8827 = vmatpush1.msra.mxu0 0.0
  %8828 = vmatprep.subr.mxu0 0.0
  %8829 = vmatpush1.msra.mxu0 0.0
  %8830 = vmatprep.subr.mxu0 0.0
  %8831 = vmatpush1.msra.mxu0 0.0
  %8832 = vmatprep.subr.mxu0 0.0
  %8833 = vmatpush1.msra.mxu0 0.0
  %8834 = vmatprep.subr.mxu0 0.0
  %8835 = vmatpush1.msra.mxu0 0.0
  %8836 = vmatprep.subr.mxu0 0.0
  %8837 = vmatpush1.msra.mxu0 0.0
  %8838 = vmatprep.subr.mxu0 0.0
  %8839 = vmatpush1.msra.mxu0 0.0
  %8840 = vmatprep.subr.mxu0 0.0
  %8841 = vmatpush1.msra.mxu0 0.0
  %8842 = vmatprep.subr.mxu0 0.0
  %8843 = vmatpush1.msra.mxu0 0.0
  %8844 = vmatprep.subr.mxu0 0.0
  %8845 = vmatpush1.msra.mxu0 0.0
  %8846 = vmatprep.subr.mxu0 0.0
  %8847 = vmatpush1.msra.mxu0 0.0
  %8848 = vmatprep.subr.mxu0 0.0
  %8849 = vmatpush1.msra.mxu0 0.0
  %8850 = vmatprep.subr.mxu0 0.0
  %8851 = vmatpush1.msra.mxu0 0.0
  %8852 = vmatprep.subr.mxu0 0.0
  %8853 = vmatpush1.msra.mxu0 0.0
  %8854 = vmatprep.subr.mxu0 0.0
  %8855 = vmatpush1.msra.mxu0 0.0
  %8856 = vmatprep.subr.mxu0 0.0
  %8857 = vmatpush1.msra.mxu0 0.0
  %8858 = vmatprep.mubr.f32.mxu0 0.0
  %8859 = vmatmul.mubr.f32.gmra.mrb[0].mxu0 %v8783
  %v8860 = vpop.f32.mrb[0].mxu0
  %v8861 = vadd.f32 %v8781, %v8860
  %v8862 = vpop.f32.mrb[0].mxu0
  %8863 = vmatprep.mubr.f32.mxu0 0.0
  %8864 = vmatmul.mubr.f32.gmra.mrb[0].mxu0 %v8786
  %v8865 = vpop.f32.mrb[0].mxu0
  %v8866 = vadd.f32 %v8781, %v8865
  %v8867 = vpop.f32.mrb[0].mxu0
  %8868 = vmatprep.mubr.f32.mxu0 0.0
  %8869 = vmatmul.mubr.f32.gmra.mrb[0].mxu0 %v8789
  %v8870 = vpop.f32.mrb[0].mxu0
  %v8871 = vadd.f32 %v8781, %v8870
  %v8872 = vpop.f32.mrb[0].mxu0
  %8873 = vmatprep.mubr.f32.mxu0 0.0
  %8874 = vmatmul.mubr.f32.gmra.mrb[0].mxu0 %v8792
  %v8875 = vpop.f32.mrb[0].mxu0
  %v8876 = vadd.f32 %v8781, %v8875
  %v8877 = vpop.f32.mrb[0].mxu0
  %8878 = vdwg.mxu0
  %v8879 = vadd.f32 %v8653, %v8861
  %v8880 = vadd.f32 %v8654, %v8866
  %v8881 = vadd.f32 %v8655, %v8871
  %v8882 = vadd.f32 %v8656, %v8876
  %v8883 = vsel %vm61, %v8879, 0.0
  %8884 = vadd.xlane.f32.xlu0 %v8883
  %v8885 = vpop.xlane.xlu0 %8884
  %v8886 = vsel %vm61, %v8880, 0.0
  %8887 = vadd.xlane.f32.xlu0 %v8886
  %v8888 = vpop.xlane.xlu0 %8887
  %v8889 = vsel %vm61, %v8881, 0.0
  %8890 = vadd.xlane.f32.xlu0 %v8889
  %v8891 = vpop.xlane.xlu0 %8890
  %v8892 = vsel %vm61, %v8882, 0.0
  %8893 = vadd.xlane.f32.xlu0 %v8892
  %v8894 = vpop.xlane.xlu0 %8893
  %v8895 = vmul.f32 %v8885, %v1949
  %v8896 = vmul.f32 %v8888, %v1949
  %v8897 = vmul.f32 %v8891, %v1949
  %v8898 = vmul.f32 %v8894, %v1949
  %v8899 = vmul.f32 %v8879, %v8879
  %v8900 = vmul.f32 %v8880, %v8880
  %v8901 = vmul.f32 %v8881, %v8881
  %v8902 = vmul.f32 %v8882, %v8882
  %v8903 = vsel %vm61, %v8899, 0.0
  %8904 = vadd.xlane.f32.xlu0 %v8903
  %v8905 = vpop.xlane.xlu0 %8904
  %v8906 = vsel %vm61, %v8900, 0.0
  %8907 = vadd.xlane.f32.xlu0 %v8906
  %v8908 = vpop.xlane.xlu0 %8907
  %v8909 = vsel %vm61, %v8901, 0.0
  %8910 = vadd.xlane.f32.xlu0 %v8909
  %v8911 = vpop.xlane.xlu0 %8910
  %v8912 = vsel %vm61, %v8902, 0.0
  %8913 = vadd.xlane.f32.xlu0 %v8912
  %v8914 = vpop.xlane.xlu0 %8913
  %v8915 = vmul.f32 %v8905, %v1949
  %v8916 = vmul.f32 %v8908, %v1949
  %v8917 = vmul.f32 %v8911, %v1949
  %v8918 = vmul.f32 %v8914, %v1949
  %v8919 = vmul.f32 %v8895, %v8895
  %v8920 = vmul.f32 %v8896, %v8896
  %v8921 = vmul.f32 %v8897, %v8897
  %v8922 = vmul.f32 %v8898, %v8898
  %v8923 = vsub.f32 %v8915, %v8919
  %v8924 = vsub.f32 %v8916, %v8920
  %v8925 = vsub.f32 %v8917, %v8921
  %v8926 = vsub.f32 %v8918, %v8922
  %v8927 = vsub.f32 %v8879, %v8895
  %v8928 = vsub.f32 %v8880, %v8896
  %v8929 = vsub.f32 %v8881, %v8897
  %v8930 = vsub.f32 %v8882, %v8898
  %v8931 = vadd.f32 %v8923, 1e-05
  %v8932 = vadd.f32 %v8924, 1e-05
  %v8933 = vadd.f32 %v8925, 1e-05
  %v8934 = vadd.f32 %v8926, 1e-05
  %v8935 = vrsqrt.pop %v8931
  %v8936 = vrsqrt.pop %v8932
  %v8937 = vrsqrt.pop %v8933
  %v8938 = vrsqrt.pop %v8934
  %v8939 = vmul.f32 %v8927, %v8935
  %v8940 = vmul.f32 %v8928, %v8936
  %v8941 = vmul.f32 %v8929, %v8937
  %v8942 = vmul.f32 %v8930, %v8938
  %v8943 = vmul.f32 %v8939, %v8644
  %v8944 = vmul.f32 %v8940, %v8644
  %v8945 = vmul.f32 %v8941, %v8644
  %v8946 = vmul.f32 %v8942, %v8644
  %v8947 = vadd.f32 %v8943, %v8652
  %v8948 = vadd.f32 %v8944, %v8652
  %v8949 = vadd.f32 %v8945, %v8652
  %v8950 = vadd.f32 %v8946, %v8652
  %v8951 = vld [vmem:[%s7] sm:$0x1]
  %v8952 = vld [vmem:[%s7 + $0x1] sm:$0x1]
  %v8953 = vsel %vm61, %v8947, 0.0
  %8954 = vadd.xlane.f32.xlu0 %v8953
  %v8955 = vpop.xlane.xlu0 %8954
  %v8956 = vsel %vm61, %v8948, 0.0
  %8957 = vadd.xlane.f32.xlu0 %v8956
  %v8958 = vpop.xlane.xlu0 %8957
  %v8959 = vsel %vm61, %v8949, 0.0
  %8960 = vadd.xlane.f32.xlu0 %v8959
  %v8961 = vpop.xlane.xlu0 %8960
  %v8962 = vsel %vm61, %v8950, 0.0
  %8963 = vadd.xlane.f32.xlu0 %v8962
  %v8964 = vpop.xlane.xlu0 %8963
  %v8965 = vmul.f32 %v8955, %v1949
  %v8966 = vmul.f32 %v8958, %v1949
  %v8967 = vmul.f32 %v8961, %v1949
  %v8968 = vmul.f32 %v8964, %v1949
  %v8969 = vmul.f32 %v8947, %v8947
  %v8970 = vmul.f32 %v8948, %v8948
  %v8971 = vmul.f32 %v8949, %v8949
  %v8972 = vmul.f32 %v8950, %v8950
  %v8973 = vsel %vm61, %v8969, 0.0
  %8974 = vadd.xlane.f32.xlu0 %v8973
  %v8975 = vpop.xlane.xlu0 %8974
  %v8976 = vsel %vm61, %v8970, 0.0
  %8977 = vadd.xlane.f32.xlu0 %v8976
  %v8978 = vpop.xlane.xlu0 %8977
  %v8979 = vsel %vm61, %v8971, 0.0
  %8980 = vadd.xlane.f32.xlu0 %v8979
  %v8981 = vpop.xlane.xlu0 %8980
  %v8982 = vsel %vm61, %v8972, 0.0
  %8983 = vadd.xlane.f32.xlu0 %v8982
  %v8984 = vpop.xlane.xlu0 %8983
  %v8985 = vmul.f32 %v8975, %v1949
  %v8986 = vmul.f32 %v8978, %v1949
  %v8987 = vmul.f32 %v8981, %v1949
  %v8988 = vmul.f32 %v8984, %v1949
  %v8989 = vmul.f32 %v8965, %v8965
  %v8990 = vmul.f32 %v8966, %v8966
  %v8991 = vmul.f32 %v8967, %v8967
  %v8992 = vmul.f32 %v8968, %v8968
  %v8993 = vsub.f32 %v8985, %v8989
  %v8994 = vsub.f32 %v8986, %v8990
  %v8995 = vsub.f32 %v8987, %v8991
  %v8996 = vsub.f32 %v8988, %v8992
  %v8997 = vsub.f32 %v8947, %v8965
  %v8998 = vsub.f32 %v8948, %v8966
  %v8999 = vsub.f32 %v8949, %v8967
  %v9000 = vsub.f32 %v8950, %v8968
  %v9001 = vadd.f32 %v8993, 1e-05
  %v9002 = vadd.f32 %v8994, 1e-05
  %v9003 = vadd.f32 %v8995, 1e-05
  %v9004 = vadd.f32 %v8996, 1e-05
  %v9005 = vrsqrt.pop %v9001
  %v9006 = vrsqrt.pop %v9002
  %v9007 = vrsqrt.pop %v9003
  %v9008 = vrsqrt.pop %v9004
  %v9009 = vmul.f32 %v8997, %v9005
  %v9010 = vmul.f32 %v8998, %v9006
  %v9011 = vmul.f32 %v8999, %v9007
  %v9012 = vmul.f32 %v9000, %v9008
  %v9013 = vlaneseq
  %v9014 = vshrl.u32 %v9013, 7
  %v9015 = vsub.s32 0, %v9014
  %v9016 = vrot.slane %v8951, %v9015
  %v9017 = vmul.f32 %v9009, %v9016
  %v9018 = vmul.f32 %v9010, %v9016
  %v9019 = vmul.f32 %v9011, %v9016
  %v9020 = vmul.f32 %v9012, %v9016
  %v9021 = vlaneseq
  %v9022 = vshrl.u32 %v9021, 7
  %v9023 = vsub.s32 0, %v9022
  %v9024 = vrot.slane %v8952, %v9023
  %v9025 = vadd.f32 %v9017, %v9024
  %v9026 = vadd.f32 %v9018, %v9024
  %v9027 = vadd.f32 %v9019, %v9024
  %v9028 = vadd.f32 %v9020, %v9024
  %v9029 = vld [vmem:[%s8] sm:$0xff]
  %v9030 = vld [vmem:[%s8 + $0x8] sm:$0xff]
  %v9031 = vld [vmem:[%s8 + $0x10] sm:$0xff]
  %v9032 = vld [vmem:[%s8 + $0x18] sm:$0xff]
  %v9033 = vld [vmem:[%s8 + $0x20] sm:$0x1]
  %v9034 = vlaneseq
  %v9035 = vshrl.u32 %v9034, 7
  %v9036 = vsub.s32 0, %v9035
  %v9037 = vrot.slane %v9033, %v9036
  %v9039 = vsel %vm61, %v9025, 0
  %v9042 = vsel %vm61, %v9026, 0
  %v9045 = vsel %vm61, %v9027, 0
  %v9048 = vsel %vm61, %v9028, 0
  %9050 = vmatprep.subr.mxu0 0.0
  %9051 = vmatpush1.msra.mxu0 %v9029
  %9052 = vmatprep.subr.mxu0 0.0
  %9053 = vmatpush1.msra.mxu0 %v9030
  %9054 = vmatprep.subr.mxu0 0.0
  %9055 = vmatpush1.msra.mxu0 %v9031
  %9056 = vmatprep.subr.mxu0 0.0
  %9057 = vmatpush1.msra.mxu0 %v9032
  %9058 = vmatprep.subr.mxu0 0.0
  %9059 = vmatpush1.msra.mxu0 0.0
  %9060 = vmatprep.subr.mxu0 0.0
  %9061 = vmatpush1.msra.mxu0 0.0
  %9062 = vmatprep.subr.mxu0 0.0
  %9063 = vmatpush1.msra.mxu0 0.0
  %9064 = vmatprep.subr.mxu0 0.0
  %9065 = vmatpush1.msra.mxu0 0.0
  %9066 = vmatprep.subr.mxu0 0.0
  %9067 = vmatpush1.msra.mxu0 0.0
  %9068 = vmatprep.subr.mxu0 0.0
  %9069 = vmatpush1.msra.mxu0 0.0
  %9070 = vmatprep.subr.mxu0 0.0
  %9071 = vmatpush1.msra.mxu0 0.0
  %9072 = vmatprep.subr.mxu0 0.0
  %9073 = vmatpush1.msra.mxu0 0.0
  %9074 = vmatprep.subr.mxu0 0.0
  %9075 = vmatpush1.msra.mxu0 0.0
  %9076 = vmatprep.subr.mxu0 0.0
  %9077 = vmatpush1.msra.mxu0 0.0
  %9078 = vmatprep.subr.mxu0 0.0
  %9079 = vmatpush1.msra.mxu0 0.0
  %9080 = vmatprep.subr.mxu0 0.0
  %9081 = vmatpush1.msra.mxu0 0.0
  %9082 = vmatprep.subr.mxu0 0.0
  %9083 = vmatpush1.msra.mxu0 0.0
  %9084 = vmatprep.subr.mxu0 0.0
  %9085 = vmatpush1.msra.mxu0 0.0
  %9086 = vmatprep.subr.mxu0 0.0
  %9087 = vmatpush1.msra.mxu0 0.0
  %9088 = vmatprep.subr.mxu0 0.0
  %9089 = vmatpush1.msra.mxu0 0.0
  %9090 = vmatprep.subr.mxu0 0.0
  %9091 = vmatpush1.msra.mxu0 0.0
  %9092 = vmatprep.subr.mxu0 0.0
  %9093 = vmatpush1.msra.mxu0 0.0
  %9094 = vmatprep.subr.mxu0 0.0
  %9095 = vmatpush1.msra.mxu0 0.0
  %9096 = vmatprep.subr.mxu0 0.0
  %9097 = vmatpush1.msra.mxu0 0.0
  %9098 = vmatprep.subr.mxu0 0.0
  %9099 = vmatpush1.msra.mxu0 0.0
  %9100 = vmatprep.subr.mxu0 0.0
  %9101 = vmatpush1.msra.mxu0 0.0
  %9102 = vmatprep.subr.mxu0 0.0
  %9103 = vmatpush1.msra.mxu0 0.0
  %9104 = vmatprep.subr.mxu0 0.0
  %9105 = vmatpush1.msra.mxu0 0.0
  %9106 = vmatprep.subr.mxu0 0.0
  %9107 = vmatpush1.msra.mxu0 0.0
  %9108 = vmatprep.subr.mxu0 0.0
  %9109 = vmatpush1.msra.mxu0 0.0
  %9110 = vmatprep.subr.mxu0 0.0
  %9111 = vmatpush1.msra.mxu0 0.0
  %9112 = vmatprep.subr.mxu0 0.0
  %9113 = vmatpush1.msra.mxu0 0.0
  %9114 = vmatprep.mubr.f32.mxu0 0.0
  %9115 = vmatmul.mubr.f32.gmra.mrb[0].mxu0 %v9039
  %v9116 = vpop.f32.mrb[0].mxu0
  %v9117 = vadd.f32 %v9037, %v9116
  %v9118 = vpop.f32.mrb[0].mxu0
  %9119 = vmatprep.mubr.f32.mxu0 0.0
  %9120 = vmatmul.mubr.f32.gmra.mrb[0].mxu0 %v9042
  %v9121 = vpop.f32.mrb[0].mxu0
  %v9122 = vadd.f32 %v9037, %v9121
  %v9123 = vpop.f32.mrb[0].mxu0
  %9124 = vmatprep.mubr.f32.mxu0 0.0
  %9125 = vmatmul.mubr.f32.gmra.mrb[0].mxu0 %v9045
  %v9126 = vpop.f32.mrb[0].mxu0
  %v9127 = vadd.f32 %v9037, %v9126
  %v9128 = vpop.f32.mrb[0].mxu0
  %9129 = vmatprep.mubr.f32.mxu0 0.0
  %9130 = vmatmul.mubr.f32.gmra.mrb[0].mxu0 %v9048
  %v9131 = vpop.f32.mrb[0].mxu0
  %v9132 = vadd.f32 %v9037, %v9131
  %v9133 = vpop.f32.mrb[0].mxu0
  %9134 = vdwg.mxu0
  %9135 = vst.msk [vmem:[%s9] sm:$0xff] %vm169, %v9117
  %9136 = vst.msk [vmem:[%s9 + $0x8] sm:$0xff] %vm169, %v9122
  %9137 = vst.msk [vmem:[%s9 + $0x10] sm:$0xff] %vm169, %v9127
  %9138 = vst.msk [vmem:[%s9 + $0x18] sm:$0xff] %vm169, %v9132
  // Predicated region
  $region38: #{tpu_custom_call.1} parent=0 // pred_check
    _
  $region39: #{tpu_custom_call.1} parent=0 // pred_check_branch
    %9140 = sbr.rel (0) target = $region41
  $region40: #{tpu_custom_call.1} parent=0 // pred_region
    _
  $region41: #{tpu_custom_call.1} parent=0 // pred_fallthru
    _
  // Predicated region
  $region42: #{tpu_custom_call.1} parent=0 // pred_check
    _
  $region43: #{tpu_custom_call.1} parent=0 // pred_check_branch
    %9142 = sbr.rel (0) target = $region45
  $region44: #{tpu_custom_call.1} parent=0 // pred_region
    _
  $region45: #{tpu_custom_call.1} parent=0 // pred_fallthru
    _

</llo_original>
